<compile_context>
chip_gen: v7x
topology: tpu7x:2x2x1
jax: 0.10.0
libtpu: 0.0.40
codegen_flags: <defaults>
</compile_context>

<pallas_src>
import jax
import jax.numpy as jnp
from jax.experimental import pallas as pl
from jax.experimental.pallas import tpu as pltpu

EPS = 1e-5


def _mlp_kernel(pc_ref, q_ref,
                w1q_ref, b1q_ref, g1q_ref, be1q_ref,
                w2q_ref, b2q_ref, g2q_ref, be2q_ref,
                w3q_ref, b3q_ref, g3q_ref, be3q_ref,
                w1pc_ref, w1h_ref, b1_ref, g1_ref, be1_ref,
                w2_ref, b2_ref, g2_ref, be2_ref,
                w3_ref, b3_ref,
                out_ref):
    def gn_relu(x, g_ref, be_ref):
        # GroupNorm(1, C) on [tb, C]: per-row normalization, biased variance.
        # Single-pass statistics: both lane reductions share the same loaded x.
        inv_c = 1.0 / x.shape[-1]
        s1 = jnp.sum(x, axis=-1, keepdims=True)
        s2 = jnp.sum(x * x, axis=-1, keepdims=True)
        mu = s1 * inv_c
        var = s2 * inv_c - mu * mu
        xn = (x - mu) * jax.lax.rsqrt(var + EPS)
        return jnp.maximum(xn * g_ref[...] + be_ref[...], 0.0)

    def lin(x, w_ref, b_ref):
        return jnp.dot(x, w_ref[...], preferred_element_type=jnp.float32) + b_ref[...]

    # ---- query branch ----
    # fc1_query as a zero-padded K=8 MXU matmul (query padded to 8 cols in the
    # wrapper, w1q padded with zero rows) — keeps this off the VPU/XLU.
    h = gn_relu(lin(q_ref[...], w1q_ref, b1q_ref), g1q_ref, be1q_ref)      # [tb, 64]
    h = gn_relu(lin(h, w2q_ref, b2q_ref), g2q_ref, be2q_ref)               # [tb, 128]
    h = gn_relu(lin(h, w3q_ref, b3q_ref), g3q_ref, be3q_ref)               # [tb, 256]

    # ---- trunk: fc1 over concat(pc, h) without materializing the concat ----
    x = jnp.dot(pc_ref[...], w1pc_ref[...], preferred_element_type=jnp.float32)
    x = x + jnp.dot(h, w1h_ref[...], preferred_element_type=jnp.float32)
    x = gn_relu(x + b1_ref[...], g1_ref, be1_ref)                          # [tb, 256]

    x = gn_relu(lin(x, w2_ref, b2_ref), g2_ref, be2_ref)                   # [tb, 128]

    # ---- fc3: natural [M,K]@[K,N] orientation (no activation transpose) ----
    out_ref[...] = (jnp.dot(x, w3_ref[...], preferred_element_type=jnp.float32)
                    + b3_ref[...])                                          # [tb, 1]


def query_embedder_stress_only(pc_embedding, query, params, *,
                               batch_tile=None, core_parallel=False):
    """pc_embedding: [B, 256] f32, query: [B, 3] f32 -> [B, 1] f32."""
    B = pc_embedding.shape[0]

    def rup(v, m):
        return ((v + m - 1) // m) * m

    # ---- batch-tile selection (see header comments) ----
    MAX_TILE = 1024  # ~8-9 MiB working set: fits every generation's scoped VMEM
    if batch_tile is None:
        if core_parallel:
            # v7x: even split across the two TensorCores.
            bt = min(MAX_TILE, rup(pl.cdiv(B, 2), 128))
        elif B <= MAX_TILE:
            bt = rup(max(B, 1), 8)            # single grid step (single-TC chips)
        else:
            bt = MAX_TILE
    else:
        bt = min(batch_tile, rup(max(B, 1), 8))
        bt = rup(max(bt, 8), 8)
        if bt < B:
            bt = rup(bt, 128)
    num_tiles = pl.cdiv(B, bt)
    Bp = num_tiles * bt

    pad_rows = Bp - B
    if pad_rows:
        pc_embedding = jnp.pad(pc_embedding, ((0, pad_rows), (0, 0)))
    # Pad query to 8 lanes (zero columns) so fc1_query is a K=8 MXU matmul with
    # 32-byte-aligned rows.
    query = jnp.pad(query, ((0, pad_rows), (0, 8 - query.shape[1])))

    # Layout plumbing outside the kernel (free): pad w1q rows, split fc1 weight.
    w1q_p = jnp.pad(params["w1q"], ((0, 8 - params["w1q"].shape[0]), (0, 0)))  # [8,64]
    w1 = params["w1"]                        # [512, 256]
    w1_pc, w1_h = w1[:256, :], w1[256:, :]   # [256,256] each

    param_list = [
        w1q_p, params["b1q"], params["g1q"], params["be1q"],
        params["w2q"], params["b2q"], params["g2q"], params["be2q"],
        params["w3q"], params["b3q"], params["g3q"], params["be3q"],
        w1_pc, w1_h, params["b1"], params["g1"], params["be1"],
        params["w2"], params["b2"], params["g2"], params["be2"],
        params["w3"], params["b3"],
    ]

    def batch_spec(feat):
        return pl.BlockSpec((bt, feat), lambda i: (i, 0))

    def full_spec(shape):
        # Constant-index weight/bias blocks (DMA'd once across the grid).
        return pl.BlockSpec(shape, lambda i: (0, 0))

    in_specs = [batch_spec(pc_embedding.shape[1]), batch_spec(query.shape[1])]
    in_specs += [full_spec(p.shape) for p in param_list]

    if num_tiles > 1 and core_parallel:
        dim_sem = (pltpu.CORE_PARALLEL,)      # v7x: real two-core split
    elif num_tiles > 1:
        dim_sem = ("parallel",)
    else:
        dim_sem = ("arbitrary",)

    out = pl.pallas_call(
        _mlp_kernel,
        out_shape=jax.ShapeDtypeStruct((Bp, 1), jnp.float32),
        grid_spec=pltpu.PrefetchScalarGridSpec(
            num_scalar_prefetch=0,
            grid=(num_tiles,),
            in_specs=in_specs,
            out_specs=pl.BlockSpec((bt, 1), lambda i: (i, 0)),
        ),
        compiler_params=pltpu.CompilerParams(dimension_semantics=dim_sem),
    )(pc_embedding, query, *param_list)

    return out[:B]   # [B, 1]


def make_params(key):
    """Deterministic synthetic parameters (PyTorch Linear weight [out,in] is
    stored here pre-transposed as [in,out]; biases / GN affine as [1, C])."""
    dims = dict(
        w1q=(3, 64), w2q=(64, 128), w3q=(128, 256),
        w1=(512, 256), w2=(256, 128), w3=(128, 1),
    )
    params = {}
    keys = jax.random.split(key, len(dims) * 2)
    ki = 0
    for name, (fan_in, fan_out) in dims.items():
        scale = 1.0 / jnp.sqrt(fan_in)
        params[name] = scale * jax.random.normal(keys[ki], (fan_in, fan_out), jnp.float32)
        ki += 1
        params["b" + name[1:]] = 0.1 * jax.random.normal(keys[ki], (1, fan_out), jnp.float32)
        ki += 1
    gn_dims = dict(g1q=64, g2q=128, g3q=256, g1=256, g2=128)
    gkeys = jax.random.split(jax.random.fold_in(key, 7), len(gn_dims) * 2)
    ki = 0
    for name, c in gn_dims.items():
        params[name] = 1.0 + 0.05 * jax.random.normal(gkeys[ki], (1, c), jnp.float32)
        ki += 1
        params["be" + name[1:]] = 0.05 * jax.random.normal(gkeys[ki], (1, c), jnp.float32)
        ki += 1
    return params


def reference_forward(pc_embedding, query, p):
    """Pure-JAX reference mirroring the PyTorch forward (two-pass GN)."""
    def gn_relu(x, g, b):
        mu = jnp.mean(x, axis=-1, keepdims=True)
        var = jnp.mean(jnp.square(x - mu), axis=-1, keepdims=True)
        return jnp.maximum((x - mu) / jnp.sqrt(var + EPS) * g + b, 0.0)

    h = gn_relu(query @ p["w1q"] + p["b1q"], p["g1q"], p["be1q"])
    h = gn_relu(h @ p["w2q"] + p["b2q"], p["g2q"], p["be2q"])
    h = gn_relu(h @ p["w3q"] + p["b3q"], p["g3q"], p["be3q"])
    x = jnp.concatenate([pc_embedding, h], axis=-1)
    x = gn_relu(x @ p["w1"] + p["b1"], p["g1"], p["be1"])
    x = gn_relu(x @ p["w2"] + p["b2"], p["g2"], p["be2"])
    return x @ p["w3"] + p["b3"]


if __name__ == "__main__":
    key = jax.random.PRNGKey(0)
    k_pc, k_q, k_p = jax.random.split(key, 3)

    B = 512  # small demo shape: single grid step (no serial-loop overhead)
    pc_embedding = jax.random.normal(k_pc, (B, 256), jnp.float32)
    query = jax.random.normal(k_q, (B, 3), jnp.float32)
    params = make_params(k_p)

    out = query_embedder_stress_only(pc_embedding, query, params)
    out = jax.block_until_ready(out)

    ref = reference_forward(pc_embedding, query, params)
    assert out.shape == (B, 1)
    err = jnp.max(jnp.abs(out - ref))
    assert jnp.allclose(out, ref, atol=1e-4, rtol=1e-4), f"max abs err {err}"

    print("KERNEL_OK")
</pallas_src>

<mosaic_0001>
module attributes {stable_mosaic.version = 11 : i64} {
  func.func @_mlp_kernel(%arg0: i32, %arg1: memref<512x256xf32, #tpu.memory_space<vmem>>, %arg2: memref<512x8xf32, #tpu.memory_space<vmem>>, %arg3: memref<8x64xf32, #tpu.memory_space<vmem>>, %arg4: memref<1x64xf32, #tpu.memory_space<vmem>>, %arg5: memref<1x64xf32, #tpu.memory_space<vmem>>, %arg6: memref<1x64xf32, #tpu.memory_space<vmem>>, %arg7: memref<64x128xf32, #tpu.memory_space<vmem>>, %arg8: memref<1x128xf32, #tpu.memory_space<vmem>>, %arg9: memref<1x128xf32, #tpu.memory_space<vmem>>, %arg10: memref<1x128xf32, #tpu.memory_space<vmem>>, %arg11: memref<128x256xf32, #tpu.memory_space<vmem>>, %arg12: memref<1x256xf32, #tpu.memory_space<vmem>>, %arg13: memref<1x256xf32, #tpu.memory_space<vmem>>, %arg14: memref<1x256xf32, #tpu.memory_space<vmem>>, %arg15: memref<256x256xf32, #tpu.memory_space<vmem>>, %arg16: memref<256x256xf32, #tpu.memory_space<vmem>>, %arg17: memref<1x256xf32, #tpu.memory_space<vmem>>, %arg18: memref<1x256xf32, #tpu.memory_space<vmem>>, %arg19: memref<1x256xf32, #tpu.memory_space<vmem>>, %arg20: memref<256x128xf32, #tpu.memory_space<vmem>>, %arg21: memref<1x128xf32, #tpu.memory_space<vmem>>, %arg22: memref<1x128xf32, #tpu.memory_space<vmem>>, %arg23: memref<1x128xf32, #tpu.memory_space<vmem>>, %arg24: memref<128x1xf32, #tpu.memory_space<vmem>>, %arg25: memref<1x1xf32, #tpu.memory_space<vmem>>, %arg26: memref<512x1xf32, #tpu.memory_space<vmem>>) attributes {dimension_semantics = [#tpu.dimension_semantics<arbitrary>], iteration_bounds = array<i64: 1>, scalar_prefetch = 0 : i64, scratch_operands = 0 : i64, tpu.core_type = #tpu.core_type<tc>, window_params = [{transform_indices = @transform_0, window_bounds = array<i64: 512, 256>}, {transform_indices = @transform_1, window_bounds = array<i64: 512, 8>}, {pipeline_mode = #tpu.pipeline_mode<synchronous>, transform_indices = @transform_2, window_bounds = array<i64: 8, 64>}, {pipeline_mode = #tpu.pipeline_mode<synchronous>, transform_indices = @transform_3, window_bounds = array<i64: 1, 64>}, {pipeline_mode = #tpu.pipeline_mode<synchronous>, transform_indices = @transform_4, window_bounds = array<i64: 1, 64>}, {pipeline_mode = #tpu.pipeline_mode<synchronous>, transform_indices = @transform_5, window_bounds = array<i64: 1, 64>}, {pipeline_mode = #tpu.pipeline_mode<synchronous>, transform_indices = @transform_6, window_bounds = array<i64: 64, 128>}, {pipeline_mode = #tpu.pipeline_mode<synchronous>, transform_indices = @transform_7, window_bounds = array<i64: 1, 128>}, {pipeline_mode = #tpu.pipeline_mode<synchronous>, transform_indices = @transform_8, window_bounds = array<i64: 1, 128>}, {pipeline_mode = #tpu.pipeline_mode<synchronous>, transform_indices = @transform_9, window_bounds = array<i64: 1, 128>}, {pipeline_mode = #tpu.pipeline_mode<synchronous>, transform_indices = @transform_10, window_bounds = array<i64: 128, 256>}, {pipeline_mode = #tpu.pipeline_mode<synchronous>, transform_indices = @transform_11, window_bounds = array<i64: 1, 256>}, {pipeline_mode = #tpu.pipeline_mode<synchronous>, transform_indices = @transform_12, window_bounds = array<i64: 1, 256>}, {pipeline_mode = #tpu.pipeline_mode<synchronous>, transform_indices = @transform_13, window_bounds = array<i64: 1, 256>}, {pipeline_mode = #tpu.pipeline_mode<synchronous>, transform_indices = @transform_14, window_bounds = array<i64: 256, 256>}, {pipeline_mode = #tpu.pipeline_mode<synchronous>, transform_indices = @transform_15, window_bounds = array<i64: 256, 256>}, {pipeline_mode = #tpu.pipeline_mode<synchronous>, transform_indices = @transform_16, window_bounds = array<i64: 1, 256>}, {pipeline_mode = #tpu.pipeline_mode<synchronous>, transform_indices = @transform_17, window_bounds = array<i64: 1, 256>}, {pipeline_mode = #tpu.pipeline_mode<synchronous>, transform_indices = @transform_18, window_bounds = array<i64: 1, 256>}, {pipeline_mode = #tpu.pipeline_mode<synchronous>, transform_indices = @transform_19, window_bounds = array<i64: 256, 128>}, {pipeline_mode = #tpu.pipeline_mode<synchronous>, transform_indices = @transform_20, window_bounds = array<i64: 1, 128>}, {pipeline_mode = #tpu.pipeline_mode<synchronous>, transform_indices = @transform_21, window_bounds = array<i64: 1, 128>}, {pipeline_mode = #tpu.pipeline_mode<synchronous>, transform_indices = @transform_22, window_bounds = array<i64: 1, 128>}, {pipeline_mode = #tpu.pipeline_mode<synchronous>, transform_indices = @transform_23, window_bounds = array<i64: 128, 1>}, {pipeline_mode = #tpu.pipeline_mode<synchronous>, transform_indices = @transform_24, window_bounds = array<i64: 1, 1>}, {transform_indices = @transform_25, window_bounds = array<i64: 512, 1>}]} {
    %c0 = arith.constant 0 : index
    %c0_0 = arith.constant 0 : index
    %0 = vector.load %arg2[%c0, %c0_0] : memref<512x8xf32, #tpu.memory_space<vmem>>, vector<512x8xf32>
    %c0_1 = arith.constant 0 : index
    %c0_2 = arith.constant 0 : index
    %1 = vector.load %arg3[%c0_1, %c0_2] : memref<8x64xf32, #tpu.memory_space<vmem>>, vector<8x64xf32>
    %cst = arith.constant dense<0.000000e+00> : vector<512x64xf32>
    %2 = tpu.matmul %0, %1, %cst {dimension_numbers = #tpu.dot_dimension_numbers<[1], [0], [0], [1], [0, 0, 1, 1], [], []>} : vector<512x8xf32>, vector<8x64xf32>, vector<512x64xf32> -> vector<512x64xf32>
    %c0_3 = arith.constant 0 : index
    %c0_4 = arith.constant 0 : index
    %3 = vector.load %arg4[%c0_3, %c0_4] : memref<1x64xf32, #tpu.memory_space<vmem>>, vector<1x64xf32>
    %4 = vector.broadcast %3 : vector<1x64xf32> to vector<512x64xf32>
    %5 = arith.addf %2, %4 : vector<512x64xf32>
    %cst_5 = arith.constant dense<0.000000e+00> : vector<512xf32>
    %6 = vector.multi_reduction <add>, %5, %cst_5 [1] : vector<512x64xf32> to vector<512xf32>
    %7 = vector.shape_cast %6 : vector<512xf32> to vector<512x1xf32>
    %8 = arith.mulf %5, %5 : vector<512x64xf32>
    %cst_6 = arith.constant dense<0.000000e+00> : vector<512xf32>
    %9 = vector.multi_reduction <add>, %8, %cst_6 [1] : vector<512x64xf32> to vector<512xf32>
    %10 = vector.shape_cast %9 : vector<512xf32> to vector<512x1xf32>
    %cst_7 = arith.constant 1.562500e-02 : f32
    %11 = vector.broadcast %cst_7 : f32 to vector<512x1xf32>
    %12 = arith.mulf %7, %11 : vector<512x1xf32>
    %cst_8 = arith.constant 1.562500e-02 : f32
    %13 = vector.broadcast %cst_8 : f32 to vector<512x1xf32>
    %14 = arith.mulf %10, %13 : vector<512x1xf32>
    %15 = arith.mulf %12, %12 : vector<512x1xf32>
    %16 = arith.subf %14, %15 : vector<512x1xf32>
    %17 = vector.broadcast %12 : vector<512x1xf32> to vector<512x64xf32>
    %18 = arith.subf %5, %17 : vector<512x64xf32>
    %cst_9 = arith.constant 9.99999974E-6 : f32
    %19 = vector.broadcast %cst_9 : f32 to vector<512x1xf32>
    %20 = arith.addf %16, %19 : vector<512x1xf32>
    %21 = math.rsqrt %20 : vector<512x1xf32>
    %22 = vector.broadcast %21 : vector<512x1xf32> to vector<512x64xf32>
    %23 = arith.mulf %18, %22 : vector<512x64xf32>
    %c0_10 = arith.constant 0 : index
    %c0_11 = arith.constant 0 : index
    %24 = vector.load %arg5[%c0_10, %c0_11] : memref<1x64xf32, #tpu.memory_space<vmem>>, vector<1x64xf32>
    %25 = vector.broadcast %24 : vector<1x64xf32> to vector<512x64xf32>
    %26 = arith.mulf %23, %25 : vector<512x64xf32>
    %c0_12 = arith.constant 0 : index
    %c0_13 = arith.constant 0 : index
    %27 = vector.load %arg6[%c0_12, %c0_13] : memref<1x64xf32, #tpu.memory_space<vmem>>, vector<1x64xf32>
    %28 = vector.broadcast %27 : vector<1x64xf32> to vector<512x64xf32>
    %29 = arith.addf %26, %28 : vector<512x64xf32>
    %cst_14 = arith.constant 0.000000e+00 : f32
    %30 = vector.broadcast %cst_14 : f32 to vector<512x64xf32>
    %31 = arith.maximumf %29, %30 : vector<512x64xf32>
    %c0_15 = arith.constant 0 : index
    %c0_16 = arith.constant 0 : index
    %32 = vector.load %arg7[%c0_15, %c0_16] : memref<64x128xf32, #tpu.memory_space<vmem>>, vector<64x128xf32>
    %cst_17 = arith.constant dense<0.000000e+00> : vector<512x128xf32>
    %33 = tpu.matmul %31, %32, %cst_17 {dimension_numbers = #tpu.dot_dimension_numbers<[1], [0], [0], [1], [0, 0, 1, 1], [], []>} : vector<512x64xf32>, vector<64x128xf32>, vector<512x128xf32> -> vector<512x128xf32>
    %c0_18 = arith.constant 0 : index
    %c0_19 = arith.constant 0 : index
    %34 = vector.load %arg8[%c0_18, %c0_19] : memref<1x128xf32, #tpu.memory_space<vmem>>, vector<1x128xf32>
    %35 = vector.broadcast %34 : vector<1x128xf32> to vector<512x128xf32>
    %36 = arith.addf %33, %35 : vector<512x128xf32>
    %cst_20 = arith.constant dense<0.000000e+00> : vector<512xf32>
    %37 = vector.multi_reduction <add>, %36, %cst_20 [1] : vector<512x128xf32> to vector<512xf32>
    %38 = vector.shape_cast %37 : vector<512xf32> to vector<512x1xf32>
    %39 = arith.mulf %36, %36 : vector<512x128xf32>
    %cst_21 = arith.constant dense<0.000000e+00> : vector<512xf32>
    %40 = vector.multi_reduction <add>, %39, %cst_21 [1] : vector<512x128xf32> to vector<512xf32>
    %41 = vector.shape_cast %40 : vector<512xf32> to vector<512x1xf32>
    %cst_22 = arith.constant 7.812500e-03 : f32
    %42 = vector.broadcast %cst_22 : f32 to vector<512x1xf32>
    %43 = arith.mulf %38, %42 : vector<512x1xf32>
    %cst_23 = arith.constant 7.812500e-03 : f32
    %44 = vector.broadcast %cst_23 : f32 to vector<512x1xf32>
    %45 = arith.mulf %41, %44 : vector<512x1xf32>
    %46 = arith.mulf %43, %43 : vector<512x1xf32>
    %47 = arith.subf %45, %46 : vector<512x1xf32>
    %48 = vector.broadcast %43 : vector<512x1xf32> to vector<512x128xf32>
    %49 = arith.subf %36, %48 : vector<512x128xf32>
    %cst_24 = arith.constant 9.99999974E-6 : f32
    %50 = vector.broadcast %cst_24 : f32 to vector<512x1xf32>
    %51 = arith.addf %47, %50 : vector<512x1xf32>
    %52 = math.rsqrt %51 : vector<512x1xf32>
    %53 = vector.broadcast %52 : vector<512x1xf32> to vector<512x128xf32>
    %54 = arith.mulf %49, %53 : vector<512x128xf32>
    %c0_25 = arith.constant 0 : index
    %c0_26 = arith.constant 0 : index
    %55 = vector.load %arg9[%c0_25, %c0_26] : memref<1x128xf32, #tpu.memory_space<vmem>>, vector<1x128xf32>
    %56 = vector.broadcast %55 : vector<1x128xf32> to vector<512x128xf32>
    %57 = arith.mulf %54, %56 : vector<512x128xf32>
    %c0_27 = arith.constant 0 : index
    %c0_28 = arith.constant 0 : index
    %58 = vector.load %arg10[%c0_27, %c0_28] : memref<1x128xf32, #tpu.memory_space<vmem>>, vector<1x128xf32>
    %59 = vector.broadcast %58 : vector<1x128xf32> to vector<512x128xf32>
    %60 = arith.addf %57, %59 : vector<512x128xf32>
    %cst_29 = arith.constant 0.000000e+00 : f32
    %61 = vector.broadcast %cst_29 : f32 to vector<512x128xf32>
    %62 = arith.maximumf %60, %61 : vector<512x128xf32>
    %c0_30 = arith.constant 0 : index
    %c0_31 = arith.constant 0 : index
    %63 = vector.load %arg11[%c0_30, %c0_31] : memref<128x256xf32, #tpu.memory_space<vmem>>, vector<128x256xf32>
    %cst_32 = arith.constant dense<0.000000e+00> : vector<512x256xf32>
    %64 = tpu.matmul %62, %63, %cst_32 {dimension_numbers = #tpu.dot_dimension_numbers<[1], [0], [0], [1], [0, 0, 1, 1], [], []>} : vector<512x128xf32>, vector<128x256xf32>, vector<512x256xf32> -> vector<512x256xf32>
    %c0_33 = arith.constant 0 : index
    %c0_34 = arith.constant 0 : index
    %65 = vector.load %arg12[%c0_33, %c0_34] : memref<1x256xf32, #tpu.memory_space<vmem>>, vector<1x256xf32>
    %66 = vector.broadcast %65 : vector<1x256xf32> to vector<512x256xf32>
    %67 = arith.addf %64, %66 : vector<512x256xf32>
    %cst_35 = arith.constant dense<0.000000e+00> : vector<512xf32>
    %68 = vector.multi_reduction <add>, %67, %cst_35 [1] : vector<512x256xf32> to vector<512xf32>
    %69 = vector.shape_cast %68 : vector<512xf32> to vector<512x1xf32>
    %70 = arith.mulf %67, %67 : vector<512x256xf32>
    %cst_36 = arith.constant dense<0.000000e+00> : vector<512xf32>
    %71 = vector.multi_reduction <add>, %70, %cst_36 [1] : vector<512x256xf32> to vector<512xf32>
    %72 = vector.shape_cast %71 : vector<512xf32> to vector<512x1xf32>
    %cst_37 = arith.constant 3.906250e-03 : f32
    %73 = vector.broadcast %cst_37 : f32 to vector<512x1xf32>
    %74 = arith.mulf %69, %73 : vector<512x1xf32>
    %cst_38 = arith.constant 3.906250e-03 : f32
    %75 = vector.broadcast %cst_38 : f32 to vector<512x1xf32>
    %76 = arith.mulf %72, %75 : vector<512x1xf32>
    %77 = arith.mulf %74, %74 : vector<512x1xf32>
    %78 = arith.subf %76, %77 : vector<512x1xf32>
    %79 = vector.broadcast %74 : vector<512x1xf32> to vector<512x256xf32>
    %80 = arith.subf %67, %79 : vector<512x256xf32>
    %cst_39 = arith.constant 9.99999974E-6 : f32
    %81 = vector.broadcast %cst_39 : f32 to vector<512x1xf32>
    %82 = arith.addf %78, %81 : vector<512x1xf32>
    %83 = math.rsqrt %82 : vector<512x1xf32>
    %84 = vector.broadcast %83 : vector<512x1xf32> to vector<512x256xf32>
    %85 = arith.mulf %80, %84 : vector<512x256xf32>
    %c0_40 = arith.constant 0 : index
    %c0_41 = arith.constant 0 : index
    %86 = vector.load %arg13[%c0_40, %c0_41] : memref<1x256xf32, #tpu.memory_space<vmem>>, vector<1x256xf32>
    %87 = vector.broadcast %86 : vector<1x256xf32> to vector<512x256xf32>
    %88 = arith.mulf %85, %87 : vector<512x256xf32>
    %c0_42 = arith.constant 0 : index
    %c0_43 = arith.constant 0 : index
    %89 = vector.load %arg14[%c0_42, %c0_43] : memref<1x256xf32, #tpu.memory_space<vmem>>, vector<1x256xf32>
    %90 = vector.broadcast %89 : vector<1x256xf32> to vector<512x256xf32>
    %91 = arith.addf %88, %90 : vector<512x256xf32>
    %cst_44 = arith.constant 0.000000e+00 : f32
    %92 = vector.broadcast %cst_44 : f32 to vector<512x256xf32>
    %93 = arith.maximumf %91, %92 : vector<512x256xf32>
    %c0_45 = arith.constant 0 : index
    %c0_46 = arith.constant 0 : index
    %94 = vector.load %arg1[%c0_45, %c0_46] : memref<512x256xf32, #tpu.memory_space<vmem>>, vector<512x256xf32>
    %c0_47 = arith.constant 0 : index
    %c0_48 = arith.constant 0 : index
    %95 = vector.load %arg15[%c0_47, %c0_48] : memref<256x256xf32, #tpu.memory_space<vmem>>, vector<256x256xf32>
    %cst_49 = arith.constant dense<0.000000e+00> : vector<512x256xf32>
    %96 = tpu.matmul %94, %95, %cst_49 {dimension_numbers = #tpu.dot_dimension_numbers<[1], [0], [0], [1], [0, 0, 1, 1], [], []>} : vector<512x256xf32>, vector<256x256xf32>, vector<512x256xf32> -> vector<512x256xf32>
    %c0_50 = arith.constant 0 : index
    %c0_51 = arith.constant 0 : index
    %97 = vector.load %arg16[%c0_50, %c0_51] : memref<256x256xf32, #tpu.memory_space<vmem>>, vector<256x256xf32>
    %cst_52 = arith.constant dense<0.000000e+00> : vector<512x256xf32>
    %98 = tpu.matmul %93, %97, %cst_52 {dimension_numbers = #tpu.dot_dimension_numbers<[1], [0], [0], [1], [0, 0, 1, 1], [], []>} : vector<512x256xf32>, vector<256x256xf32>, vector<512x256xf32> -> vector<512x256xf32>
    %99 = arith.addf %96, %98 : vector<512x256xf32>
    %c0_53 = arith.constant 0 : index
    %c0_54 = arith.constant 0 : index
    %100 = vector.load %arg17[%c0_53, %c0_54] : memref<1x256xf32, #tpu.memory_space<vmem>>, vector<1x256xf32>
    %101 = vector.broadcast %100 : vector<1x256xf32> to vector<512x256xf32>
    %102 = arith.addf %99, %101 : vector<512x256xf32>
    %cst_55 = arith.constant dense<0.000000e+00> : vector<512xf32>
    %103 = vector.multi_reduction <add>, %102, %cst_55 [1] : vector<512x256xf32> to vector<512xf32>
    %104 = vector.shape_cast %103 : vector<512xf32> to vector<512x1xf32>
    %105 = arith.mulf %102, %102 : vector<512x256xf32>
    %cst_56 = arith.constant dense<0.000000e+00> : vector<512xf32>
    %106 = vector.multi_reduction <add>, %105, %cst_56 [1] : vector<512x256xf32> to vector<512xf32>
    %107 = vector.shape_cast %106 : vector<512xf32> to vector<512x1xf32>
    %cst_57 = arith.constant 3.906250e-03 : f32
    %108 = vector.broadcast %cst_57 : f32 to vector<512x1xf32>
    %109 = arith.mulf %104, %108 : vector<512x1xf32>
    %cst_58 = arith.constant 3.906250e-03 : f32
    %110 = vector.broadcast %cst_58 : f32 to vector<512x1xf32>
    %111 = arith.mulf %107, %110 : vector<512x1xf32>
    %112 = arith.mulf %109, %109 : vector<512x1xf32>
    %113 = arith.subf %111, %112 : vector<512x1xf32>
    %114 = vector.broadcast %109 : vector<512x1xf32> to vector<512x256xf32>
    %115 = arith.subf %102, %114 : vector<512x256xf32>
    %cst_59 = arith.constant 9.99999974E-6 : f32
    %116 = vector.broadcast %cst_59 : f32 to vector<512x1xf32>
    %117 = arith.addf %113, %116 : vector<512x1xf32>
    %118 = math.rsqrt %117 : vector<512x1xf32>
    %119 = vector.broadcast %118 : vector<512x1xf32> to vector<512x256xf32>
    %120 = arith.mulf %115, %119 : vector<512x256xf32>
    %c0_60 = arith.constant 0 : index
    %c0_61 = arith.constant 0 : index
    %121 = vector.load %arg18[%c0_60, %c0_61] : memref<1x256xf32, #tpu.memory_space<vmem>>, vector<1x256xf32>
    %122 = vector.broadcast %121 : vector<1x256xf32> to vector<512x256xf32>
    %123 = arith.mulf %120, %122 : vector<512x256xf32>
    %c0_62 = arith.constant 0 : index
    %c0_63 = arith.constant 0 : index
    %124 = vector.load %arg19[%c0_62, %c0_63] : memref<1x256xf32, #tpu.memory_space<vmem>>, vector<1x256xf32>
    %125 = vector.broadcast %124 : vector<1x256xf32> to vector<512x256xf32>
    %126 = arith.addf %123, %125 : vector<512x256xf32>
    %cst_64 = arith.constant 0.000000e+00 : f32
    %127 = vector.broadcast %cst_64 : f32 to vector<512x256xf32>
    %128 = arith.maximumf %126, %127 : vector<512x256xf32>
    %c0_65 = arith.constant 0 : index
    %c0_66 = arith.constant 0 : index
    %129 = vector.load %arg20[%c0_65, %c0_66] : memref<256x128xf32, #tpu.memory_space<vmem>>, vector<256x128xf32>
    %cst_67 = arith.constant dense<0.000000e+00> : vector<512x128xf32>
    %130 = tpu.matmul %128, %129, %cst_67 {dimension_numbers = #tpu.dot_dimension_numbers<[1], [0], [0], [1], [0, 0, 1, 1], [], []>} : vector<512x256xf32>, vector<256x128xf32>, vector<512x128xf32> -> vector<512x128xf32>
    %c0_68 = arith.constant 0 : index
    %c0_69 = arith.constant 0 : index
    %131 = vector.load %arg21[%c0_68, %c0_69] : memref<1x128xf32, #tpu.memory_space<vmem>>, vector<1x128xf32>
    %132 = vector.broadcast %131 : vector<1x128xf32> to vector<512x128xf32>
    %133 = arith.addf %130, %132 : vector<512x128xf32>
    %cst_70 = arith.constant dense<0.000000e+00> : vector<512xf32>
    %134 = vector.multi_reduction <add>, %133, %cst_70 [1] : vector<512x128xf32> to vector<512xf32>
    %135 = vector.shape_cast %134 : vector<512xf32> to vector<512x1xf32>
    %136 = arith.mulf %133, %133 : vector<512x128xf32>
    %cst_71 = arith.constant dense<0.000000e+00> : vector<512xf32>
    %137 = vector.multi_reduction <add>, %136, %cst_71 [1] : vector<512x128xf32> to vector<512xf32>
    %138 = vector.shape_cast %137 : vector<512xf32> to vector<512x1xf32>
    %cst_72 = arith.constant 7.812500e-03 : f32
    %139 = vector.broadcast %cst_72 : f32 to vector<512x1xf32>
    %140 = arith.mulf %135, %139 : vector<512x1xf32>
    %cst_73 = arith.constant 7.812500e-03 : f32
    %141 = vector.broadcast %cst_73 : f32 to vector<512x1xf32>
    %142 = arith.mulf %138, %141 : vector<512x1xf32>
    %143 = arith.mulf %140, %140 : vector<512x1xf32>
    %144 = arith.subf %142, %143 : vector<512x1xf32>
    %145 = vector.broadcast %140 : vector<512x1xf32> to vector<512x128xf32>
    %146 = arith.subf %133, %145 : vector<512x128xf32>
    %cst_74 = arith.constant 9.99999974E-6 : f32
    %147 = vector.broadcast %cst_74 : f32 to vector<512x1xf32>
    %148 = arith.addf %144, %147 : vector<512x1xf32>
    %149 = math.rsqrt %148 : vector<512x1xf32>
    %150 = vector.broadcast %149 : vector<512x1xf32> to vector<512x128xf32>
    %151 = arith.mulf %146, %150 : vector<512x128xf32>
    %c0_75 = arith.constant 0 : index
    %c0_76 = arith.constant 0 : index
    %152 = vector.load %arg22[%c0_75, %c0_76] : memref<1x128xf32, #tpu.memory_space<vmem>>, vector<1x128xf32>
    %153 = vector.broadcast %152 : vector<1x128xf32> to vector<512x128xf32>
    %154 = arith.mulf %151, %153 : vector<512x128xf32>
    %c0_77 = arith.constant 0 : index
    %c0_78 = arith.constant 0 : index
    %155 = vector.load %arg23[%c0_77, %c0_78] : memref<1x128xf32, #tpu.memory_space<vmem>>, vector<1x128xf32>
    %156 = vector.broadcast %155 : vector<1x128xf32> to vector<512x128xf32>
    %157 = arith.addf %154, %156 : vector<512x128xf32>
    %cst_79 = arith.constant 0.000000e+00 : f32
    %158 = vector.broadcast %cst_79 : f32 to vector<512x128xf32>
    %159 = arith.maximumf %157, %158 : vector<512x128xf32>
    %c0_80 = arith.constant 0 : index
    %c0_81 = arith.constant 0 : index
    %160 = vector.load %arg24[%c0_80, %c0_81] : memref<128x1xf32, #tpu.memory_space<vmem>>, vector<128x1xf32>
    %cst_82 = arith.constant dense<0.000000e+00> : vector<512x1xf32>
    %161 = tpu.matmul %159, %160, %cst_82 {dimension_numbers = #tpu.dot_dimension_numbers<[1], [0], [0], [1], [0, 0, 1, 1], [], []>} : vector<512x128xf32>, vector<128x1xf32>, vector<512x1xf32> -> vector<512x1xf32>
    %c0_83 = arith.constant 0 : index
    %c0_84 = arith.constant 0 : index
    %162 = vector.load %arg25[%c0_83, %c0_84] : memref<1x1xf32, #tpu.memory_space<vmem>>, vector<1x1xf32>
    %163 = vector.broadcast %162 : vector<1x1xf32> to vector<512x1xf32>
    %164 = arith.addf %161, %163 : vector<512x1xf32>
    %c0_85 = arith.constant 0 : index
    %c0_86 = arith.constant 0 : index
    %165 = vector.load %arg26[%c0_85, %c0_86] : memref<512x1xf32, #tpu.memory_space<vmem>>, vector<512x1xf32>
    tpu.vector_store %arg26[%c0_85, %c0_86], %164 {strides = array<i32>} : memref<512x1xf32, #tpu.memory_space<vmem>>, vector<512x1xf32>,
    return
  }
  func.func @transform_0(%arg0: i32) -> (i32, i32) {
    %c0_i32 = arith.constant 0 : i32
    %c0_i32_0 = arith.constant 0 : i32
    return %arg0, %c0_i32 : i32, i32
  }
  func.func @transform_1(%arg0: i32) -> (i32, i32) {
    %c0_i32 = arith.constant 0 : i32
    %c0_i32_0 = arith.constant 0 : i32
    return %arg0, %c0_i32 : i32, i32
  }
  func.func @transform_2(%arg0: i32) -> (i32, i32) {
    %c0_i32 = arith.constant 0 : i32
    %c0_i32_0 = arith.constant 0 : i32
    %c0_i32_1 = arith.constant 0 : i32
    return %c0_i32, %c0_i32_0 : i32, i32
  }
  func.func @transform_3(%arg0: i32) -> (i32, i32) {
    %c0_i32 = arith.constant 0 : i32
    %c0_i32_0 = arith.constant 0 : i32
    %c0_i32_1 = arith.constant 0 : i32
    return %c0_i32, %c0_i32_0 : i32, i32
  }
  func.func @transform_4(%arg0: i32) -> (i32, i32) {
    %c0_i32 = arith.constant 0 : i32
    %c0_i32_0 = arith.constant 0 : i32
    %c0_i32_1 = arith.constant 0 : i32
    return %c0_i32, %c0_i32_0 : i32, i32
  }
  func.func @transform_5(%arg0: i32) -> (i32, i32) {
    %c0_i32 = arith.constant 0 : i32
    %c0_i32_0 = arith.constant 0 : i32
    %c0_i32_1 = arith.constant 0 : i32
    return %c0_i32, %c0_i32_0 : i32, i32
  }
  func.func @transform_6(%arg0: i32) -> (i32, i32) {
    %c0_i32 = arith.constant 0 : i32
    %c0_i32_0 = arith.constant 0 : i32
    %c0_i32_1 = arith.constant 0 : i32
    return %c0_i32, %c0_i32_0 : i32, i32
  }
  func.func @transform_7(%arg0: i32) -> (i32, i32) {
    %c0_i32 = arith.constant 0 : i32
    %c0_i32_0 = arith.constant 0 : i32
    %c0_i32_1 = arith.constant 0 : i32
    return %c0_i32, %c0_i32_0 : i32, i32
  }
  func.func @transform_8(%arg0: i32) -> (i32, i32) {
    %c0_i32 = arith.constant 0 : i32
    %c0_i32_0 = arith.constant 0 : i32
    %c0_i32_1 = arith.constant 0 : i32
    return %c0_i32, %c0_i32_0 : i32, i32
  }
  func.func @transform_9(%arg0: i32) -> (i32, i32) {
    %c0_i32 = arith.constant 0 : i32
    %c0_i32_0 = arith.constant 0 : i32
    %c0_i32_1 = arith.constant 0 : i32
    return %c0_i32, %c0_i32_0 : i32, i32
  }
  func.func @transform_10(%arg0: i32) -> (i32, i32) {
    %c0_i32 = arith.constant 0 : i32
    %c0_i32_0 = arith.constant 0 : i32
    %c0_i32_1 = arith.constant 0 : i32
    return %c0_i32, %c0_i32_0 : i32, i32
  }
  func.func @transform_11(%arg0: i32) -> (i32, i32) {
    %c0_i32 = arith.constant 0 : i32
    %c0_i32_0 = arith.constant 0 : i32
    %c0_i32_1 = arith.constant 0 : i32
    return %c0_i32, %c0_i32_0 : i32, i32
  }
  func.func @transform_12(%arg0: i32) -> (i32, i32) {
    %c0_i32 = arith.constant 0 : i32
    %c0_i32_0 = arith.constant 0 : i32
    %c0_i32_1 = arith.constant 0 : i32
    return %c0_i32, %c0_i32_0 : i32, i32
  }
  func.func @transform_13(%arg0: i32) -> (i32, i32) {
    %c0_i32 = arith.constant 0 : i32
    %c0_i32_0 = arith.constant 0 : i32
    %c0_i32_1 = arith.constant 0 : i32
    return %c0_i32, %c0_i32_0 : i32, i32
  }
  func.func @transform_14(%arg0: i32) -> (i32, i32) {
    %c0_i32 = arith.constant 0 : i32
    %c0_i32_0 = arith.constant 0 : i32
    %c0_i32_1 = arith.constant 0 : i32
    return %c0_i32, %c0_i32_0 : i32, i32
  }
  func.func @transform_15(%arg0: i32) -> (i32, i32) {
    %c0_i32 = arith.constant 0 : i32
    %c0_i32_0 = arith.constant 0 : i32
    %c0_i32_1 = arith.constant 0 : i32
    return %c0_i32, %c0_i32_0 : i32, i32
  }
  func.func @transform_16(%arg0: i32) -> (i32, i32) {
    %c0_i32 = arith.constant 0 : i32
    %c0_i32_0 = arith.constant 0 : i32
    %c0_i32_1 = arith.constant 0 : i32
    return %c0_i32, %c0_i32_0 : i32, i32
  }
  func.func @transform_17(%arg0: i32) -> (i32, i32) {
    %c0_i32 = arith.constant 0 : i32
    %c0_i32_0 = arith.constant 0 : i32
    %c0_i32_1 = arith.constant 0 : i32
    return %c0_i32, %c0_i32_0 : i32, i32
  }
  func.func @transform_18(%arg0: i32) -> (i32, i32) {
    %c0_i32 = arith.constant 0 : i32
    %c0_i32_0 = arith.constant 0 : i32
    %c0_i32_1 = arith.constant 0 : i32
    return %c0_i32, %c0_i32_0 : i32, i32
  }
  func.func @transform_19(%arg0: i32) -> (i32, i32) {
    %c0_i32 = arith.constant 0 : i32
    %c0_i32_0 = arith.constant 0 : i32
    %c0_i32_1 = arith.constant 0 : i32
    return %c0_i32, %c0_i32_0 : i32, i32
  }
  func.func @transform_20(%arg0: i32) -> (i32, i32) {
    %c0_i32 = arith.constant 0 : i32
    %c0_i32_0 = arith.constant 0 : i32
    %c0_i32_1 = arith.constant 0 : i32
    return %c0_i32, %c0_i32_0 : i32, i32
  }
  func.func @transform_21(%arg0: i32) -> (i32, i32) {
    %c0_i32 = arith.constant 0 : i32
    %c0_i32_0 = arith.constant 0 : i32
    %c0_i32_1 = arith.constant 0 : i32
    return %c0_i32, %c0_i32_0 : i32, i32
  }
  func.func @transform_22(%arg0: i32) -> (i32, i32) {
    %c0_i32 = arith.constant 0 : i32
    %c0_i32_0 = arith.constant 0 : i32
    %c0_i32_1 = arith.constant 0 : i32
    return %c0_i32, %c0_i32_0 : i32, i32
  }
  func.func @transform_23(%arg0: i32) -> (i32, i32) {
    %c0_i32 = arith.constant 0 : i32
    %c0_i32_0 = arith.constant 0 : i32
    %c0_i32_1 = arith.constant 0 : i32
    return %c0_i32, %c0_i32_0 : i32, i32
  }
  func.func @transform_24(%arg0: i32) -> (i32, i32) {
    %c0_i32 = arith.constant 0 : i32
    %c0_i32_0 = arith.constant 0 : i32
    %c0_i32_1 = arith.constant 0 : i32
    return %c0_i32, %c0_i32_0 : i32, i32
  }
  func.func @transform_25(%arg0: i32) -> (i32, i32) {
    %c0_i32 = arith.constant 0 : i32
    %c0_i32_0 = arith.constant 0 : i32
    return %arg0, %c0_i32 : i32, i32
  }
}

</mosaic_0001>

<llo_original>
// kernel: tpu_custom_call.1
$region0: #{tpu_custom_call.1}
  #allocation0 [shape = 'u32[]', space=smem, size = 0x4, offset = 0x4, fixed_abs, tag = 'smem constant byte address 0x4 - core index']
  #allocation1 [shape = 'u32[144,128]{1,0:T(1,128)}', space=vmem, size = 0x12000, scoped, tag = 'internal scratch']
  #allocation2 [shape = 'f32[1,1]{1,0:T(1,128)S(1)}', space=vmem, size = 0x200, scoped, tag = 'scoped memory for tpu_custom_call.1']
  %s0 = inlined_call_operand.hbm [shape: f32[512,256], index: 0, kind: input, shape index: {}]
  %s1 = inlined_call_operand.vmem [shape: f32[512,8], index: 1, kind: input, shape index: {}]
  %s2 = inlined_call_operand.vmem [shape: f32[8,64], index: 2, kind: input, shape index: {}]
  %s3 = inlined_call_operand.vmem [shape: f32[1,64], index: 3, kind: input, shape index: {}]
  %s4 = inlined_call_operand.vmem [shape: f32[1,64], index: 4, kind: input, shape index: {}]
  %s5 = inlined_call_operand.vmem [shape: f32[1,64], index: 5, kind: input, shape index: {}]
  %s6 = inlined_call_operand.vmem [shape: f32[64,128], index: 6, kind: input, shape index: {}]
  %s7 = inlined_call_operand.vmem [shape: f32[1,128], index: 7, kind: input, shape index: {}]
  %s8 = inlined_call_operand.vmem [shape: f32[1,128], index: 8, kind: input, shape index: {}]
  %s9 = inlined_call_operand.vmem [shape: f32[1,128], index: 9, kind: input, shape index: {}]
  %s10 = inlined_call_operand.hbm [shape: f32[128,256], index: 10, kind: input, shape index: {}]
  %s11 = inlined_call_operand.vmem [shape: f32[1,256], index: 11, kind: input, shape index: {}]
  %s12 = inlined_call_operand.vmem [shape: f32[1,256], index: 12, kind: input, shape index: {}]
  %s13 = inlined_call_operand.vmem [shape: f32[1,256], index: 13, kind: input, shape index: {}]
  %s14 = inlined_call_operand.vmem [shape: f32[256,256], index: 14, kind: input, shape index: {}]
  %s15 = inlined_call_operand.hbm [shape: f32[256,256], index: 15, kind: input, shape index: {}]
  %s16 = inlined_call_operand.vmem [shape: f32[1,256], index: 16, kind: input, shape index: {}]
  %s17 = inlined_call_operand.vmem [shape: f32[1,256], index: 17, kind: input, shape index: {}]
  %s18 = inlined_call_operand.vmem [shape: f32[1,256], index: 18, kind: input, shape index: {}]
  %s19 = inlined_call_operand.hbm [shape: f32[256,128], index: 19, kind: input, shape index: {}]
  %s20 = inlined_call_operand.vmem [shape: f32[1,128], index: 20, kind: input, shape index: {}]
  %s21 = inlined_call_operand.vmem [shape: f32[1,128], index: 21, kind: input, shape index: {}]
  %s22 = inlined_call_operand.vmem [shape: f32[1,128], index: 22, kind: input, shape index: {}]
  %s23 = inlined_call_operand.vmem [shape: f32[128,1], index: 23, kind: input, shape index: {}]
  %s24 = inlined_call_operand.<no memory space> [shape: f32[1,1], index: 24, kind: input, shape index: {}]
  %s25 = inlined_call_operand.vmem [shape: f32[512,1], index: 25, kind: output, shape index: {}]
  %s26 = sld [smem:[#allocation0]]
  $region126: #{tpu_custom_call.1} parent=0
    _
  %s28 = ssub.s32 1, %s26
  %s29 = scalar_select 0, %s28, %s26
  %v30 = vstv %s24
  %31 = vst [vmem:[#allocation2] sm:$0x1] %v30
  $region1: #{tpu_custom_call.1} parent=0
    #allocation3 [shape = 'u8[524288]{0}', space=vmem, size = 0x80000, scoped, tag = 'input window, operand 0, single buffered']
    #allocation4 [shape = 's32[1]{0}', space=sflag, size = 0x4, scoped, tag = 'scoped memory for tpu_custom_call.1']
    #allocation5 [shape = 'u8[131072]{0}', space=vmem, size = 0x20000, scoped, tag = 'input window, operand 10, single buffered']
    #allocation6 [shape = 's32[1]{0}', space=sflag, size = 0x4, scoped, tag = 'scoped memory for tpu_custom_call.1']
    #allocation7 [shape = 'u8[262144]{0}', space=vmem, size = 0x40000, scoped, tag = 'input window, operand 15, single buffered']
    #allocation8 [shape = 'u8[131072]{0}', space=vmem, size = 0x20000, scoped, tag = 'input window, operand 19, single buffered']
    #allocation9 [shape = 's32[1]{0}', space=sflag, size = 0x4, scoped, tag = 'scoped memory for tpu_custom_call.1']
    %32 = vsyncpa [#allocation4], 0
    %33 = vsyncpa [#allocation6], 0
    %34 = vsyncpa [#allocation9], 0
    // Predicated region
    $region2: #{tpu_custom_call.1} parent=1 // pred_check
      _
    $region3: #{tpu_custom_call.1} parent=1 // pred_check_branch
      %36 = sbr.rel (0) target = $region5
    $region4: #{tpu_custom_call.1} parent=1 // pred_region
      %s38 = ssub.s32 16384, 16384
      %39 = vsyncadd [#allocation4], %s38
      %s40 = sshll.u32 [#allocation3], 4
      %s41 = int_to_ptr.vmem [resolvable:$true] %s40
      %46 = dma.hbm_to_vmem [thread:$0]  %s0, 16384, %s41, [#allocation4], 256, 256, 16
    $region5: #{tpu_custom_call.1} parent=1 // pred_fallthru
      _
    // Predicated region
    $region6: #{tpu_custom_call.1} parent=1 // pred_check
      _
    $region7: #{tpu_custom_call.1} parent=1 // pred_check_branch
      %48 = sbr.rel (0) target = $region9
    $region8: #{tpu_custom_call.1} parent=1 // pred_region
      _
    $region9: #{tpu_custom_call.1} parent=1 // pred_fallthru
      _
    // Predicated region
    $region10: #{tpu_custom_call.1} parent=1 // pred_check
      _
    $region11: #{tpu_custom_call.1} parent=1 // pred_check_branch
      %50 = sbr.rel (0) target = $region13
    $region12: #{tpu_custom_call.1} parent=1 // pred_region
      _
    $region13: #{tpu_custom_call.1} parent=1 // pred_fallthru
      _
    // Predicated region
    $region14: #{tpu_custom_call.1} parent=1 // pred_check
      _
    $region15: #{tpu_custom_call.1} parent=1 // pred_check_branch
      %52 = sbr.rel (0) target = $region17
    $region16: #{tpu_custom_call.1} parent=1 // pred_region
      _
    $region17: #{tpu_custom_call.1} parent=1 // pred_fallthru
      _
    // Predicated region
    $region18: #{tpu_custom_call.1} parent=1 // pred_check
      _
    $region19: #{tpu_custom_call.1} parent=1 // pred_check_branch
      %54 = sbr.rel (0) target = $region21
    $region20: #{tpu_custom_call.1} parent=1 // pred_region
      _
    $region21: #{tpu_custom_call.1} parent=1 // pred_fallthru
      _
    // Predicated region
    $region22: #{tpu_custom_call.1} parent=1 // pred_check
      _
    $region23: #{tpu_custom_call.1} parent=1 // pred_check_branch
      %56 = sbr.rel (0) target = $region25
    $region24: #{tpu_custom_call.1} parent=1 // pred_region
      _
    $region25: #{tpu_custom_call.1} parent=1 // pred_fallthru
      _
    // Predicated region
    $region26: #{tpu_custom_call.1} parent=1 // pred_check
      _
    $region27: #{tpu_custom_call.1} parent=1 // pred_check_branch
      %58 = sbr.rel (0) target = $region29
    $region28: #{tpu_custom_call.1} parent=1 // pred_region
      _
    $region29: #{tpu_custom_call.1} parent=1 // pred_fallthru
      _
    // Predicated region
    $region30: #{tpu_custom_call.1} parent=1 // pred_check
      _
    $region31: #{tpu_custom_call.1} parent=1 // pred_check_branch
      %60 = sbr.rel (0) target = $region33
    $region32: #{tpu_custom_call.1} parent=1 // pred_region
      _
    $region33: #{tpu_custom_call.1} parent=1 // pred_fallthru
      _
    // Predicated region
    $region34: #{tpu_custom_call.1} parent=1 // pred_check
      _
    $region35: #{tpu_custom_call.1} parent=1 // pred_check_branch
      %62 = sbr.rel (0) target = $region37
    $region36: #{tpu_custom_call.1} parent=1 // pred_region
      _
    $region37: #{tpu_custom_call.1} parent=1 // pred_fallthru
      _
    // Predicated region
    $region38: #{tpu_custom_call.1} parent=1 // pred_check
      _
    $region39: #{tpu_custom_call.1} parent=1 // pred_check_branch
      %64 = sbr.rel (0) target = $region41
    $region40: #{tpu_custom_call.1} parent=1 // pred_region
      _
    $region41: #{tpu_custom_call.1} parent=1 // pred_fallthru
      _
    // Predicated region
    $region42: #{tpu_custom_call.1} parent=1 // pred_check
      _
    $region43: #{tpu_custom_call.1} parent=1 // pred_check_branch
      %66 = sbr.rel (0) target = $region45
    $region44: #{tpu_custom_call.1} parent=1 // pred_region
      %s68 = ssub.s32 4096, 4096
      %69 = vsyncadd [#allocation6], %s68
      %s70 = sshll.u32 [#allocation5], 4
      %s71 = int_to_ptr.vmem [resolvable:$true] %s70
      %76 = dma.hbm_to_vmem [thread:$0]  %s10, 4096, %s71, [#allocation6], 256, 256, 16
    $region45: #{tpu_custom_call.1} parent=1 // pred_fallthru
      _
    // Predicated region
    $region46: #{tpu_custom_call.1} parent=1 // pred_check
      _
    $region47: #{tpu_custom_call.1} parent=1 // pred_check_branch
      %78 = sbr.rel (0) target = $region49
    $region48: #{tpu_custom_call.1} parent=1 // pred_region
      _
    $region49: #{tpu_custom_call.1} parent=1 // pred_fallthru
      _
    // Predicated region
    $region50: #{tpu_custom_call.1} parent=1 // pred_check
      _
    $region51: #{tpu_custom_call.1} parent=1 // pred_check_branch
      %80 = sbr.rel (0) target = $region53
    $region52: #{tpu_custom_call.1} parent=1 // pred_region
      _
    $region53: #{tpu_custom_call.1} parent=1 // pred_fallthru
      _
    // Predicated region
    $region54: #{tpu_custom_call.1} parent=1 // pred_check
      _
    $region55: #{tpu_custom_call.1} parent=1 // pred_check_branch
      %82 = sbr.rel (0) target = $region57
    $region56: #{tpu_custom_call.1} parent=1 // pred_region
      _
    $region57: #{tpu_custom_call.1} parent=1 // pred_fallthru
      _
    // Predicated region
    $region58: #{tpu_custom_call.1} parent=1 // pred_check
      _
    $region59: #{tpu_custom_call.1} parent=1 // pred_check_branch
      %84 = sbr.rel (0) target = $region61
    $region60: #{tpu_custom_call.1} parent=1 // pred_region
      _
    $region61: #{tpu_custom_call.1} parent=1 // pred_fallthru
      _
    // Predicated region
    $region62: #{tpu_custom_call.1} parent=1 // pred_check
      _
    $region63: #{tpu_custom_call.1} parent=1 // pred_check_branch
      %86 = sbr.rel (0) target = $region65
    $region64: #{tpu_custom_call.1} parent=1 // pred_region
      %s88 = ssub.s32 8192, 8192
      %89 = vsyncadd [#allocation6], %s88
      %s90 = sshll.u32 [#allocation7], 4
      %s91 = int_to_ptr.vmem [resolvable:$true] %s90
      %96 = dma.hbm_to_vmem [thread:$0]  %s15, 8192, %s91, [#allocation6], 256, 256, 16
    $region65: #{tpu_custom_call.1} parent=1 // pred_fallthru
      _
    // Predicated region
    $region66: #{tpu_custom_call.1} parent=1 // pred_check
      _
    $region67: #{tpu_custom_call.1} parent=1 // pred_check_branch
      %98 = sbr.rel (0) target = $region69
    $region68: #{tpu_custom_call.1} parent=1 // pred_region
      _
    $region69: #{tpu_custom_call.1} parent=1 // pred_fallthru
      _
    // Predicated region
    $region70: #{tpu_custom_call.1} parent=1 // pred_check
      _
    $region71: #{tpu_custom_call.1} parent=1 // pred_check_branch
      %100 = sbr.rel (0) target = $region73
    $region72: #{tpu_custom_call.1} parent=1 // pred_region
      _
    $region73: #{tpu_custom_call.1} parent=1 // pred_fallthru
      _
    // Predicated region
    $region74: #{tpu_custom_call.1} parent=1 // pred_check
      _
    $region75: #{tpu_custom_call.1} parent=1 // pred_check_branch
      %102 = sbr.rel (0) target = $region77
    $region76: #{tpu_custom_call.1} parent=1 // pred_region
      _
    $region77: #{tpu_custom_call.1} parent=1 // pred_fallthru
      _
    // Predicated region
    $region78: #{tpu_custom_call.1} parent=1 // pred_check
      _
    $region79: #{tpu_custom_call.1} parent=1 // pred_check_branch
      %104 = sbr.rel (0) target = $region81
    $region80: #{tpu_custom_call.1} parent=1 // pred_region
      %s106 = ssub.s32 4096, 4096
      %107 = vsyncadd [#allocation9], %s106
      %s108 = sshll.u32 [#allocation8], 4
      %s109 = int_to_ptr.vmem [resolvable:$true] %s108
      %114 = dma.hbm_to_vmem [thread:$0]  %s19, 4096, %s109, [#allocation9], 128, 128, 8
    $region81: #{tpu_custom_call.1} parent=1 // pred_fallthru
      _
    // Predicated region
    $region82: #{tpu_custom_call.1} parent=1 // pred_check
      _
    $region83: #{tpu_custom_call.1} parent=1 // pred_check_branch
      %116 = sbr.rel (0) target = $region85
    $region84: #{tpu_custom_call.1} parent=1 // pred_region
      _
    $region85: #{tpu_custom_call.1} parent=1 // pred_fallthru
      _
    // Predicated region
    $region86: #{tpu_custom_call.1} parent=1 // pred_check
      _
    $region87: #{tpu_custom_call.1} parent=1 // pred_check_branch
      %118 = sbr.rel (0) target = $region89
    $region88: #{tpu_custom_call.1} parent=1 // pred_region
      _
    $region89: #{tpu_custom_call.1} parent=1 // pred_fallthru
      _
    // Predicated region
    $region90: #{tpu_custom_call.1} parent=1 // pred_check
      _
    $region91: #{tpu_custom_call.1} parent=1 // pred_check_branch
      %120 = sbr.rel (0) target = $region93
    $region92: #{tpu_custom_call.1} parent=1 // pred_region
      _
    $region93: #{tpu_custom_call.1} parent=1 // pred_fallthru
      _
    // Predicated region
    $region94: #{tpu_custom_call.1} parent=1 // pred_check
      _
    $region95: #{tpu_custom_call.1} parent=1 // pred_check_branch
      %122 = sbr.rel (0) target = $region97
    $region96: #{tpu_custom_call.1} parent=1 // pred_region
      _
    $region97: #{tpu_custom_call.1} parent=1 // pred_fallthru
      _
    // Predicated region
    $region98: #{tpu_custom_call.1} parent=1 // pred_check
      _
    $region99: #{tpu_custom_call.1} parent=1 // pred_check_branch
      %124 = sbr.rel (0) target = $region101
    $region100: #{tpu_custom_call.1} parent=1 // pred_region
      _
    $region101: #{tpu_custom_call.1} parent=1 // pred_fallthru
      _
    // Predicated region
    $region102: #{tpu_custom_call.1} parent=1 // pred_check
      _
    $region103: #{tpu_custom_call.1} parent=1 // pred_check_branch
      %126 = sbr.rel (0) target = $region105
    $region104: #{tpu_custom_call.1} parent=1 // pred_region
      %127 = dma.done [#allocation4], 16384
    $region105: #{tpu_custom_call.1} parent=1 // pred_fallthru
      _
    // Predicated region
    $region106: #{tpu_custom_call.1} parent=1 // pred_check
      _
    $region107: #{tpu_custom_call.1} parent=1 // pred_check_branch
      %129 = sbr.rel (0) target = $region109
    $region108: #{tpu_custom_call.1} parent=1 // pred_region
      %130 = dma.done [#allocation6], 4096
    $region109: #{tpu_custom_call.1} parent=1 // pred_fallthru
      _
    // Predicated region
    $region110: #{tpu_custom_call.1} parent=1 // pred_check
      _
    $region111: #{tpu_custom_call.1} parent=1 // pred_check_branch
      %132 = sbr.rel (0) target = $region113
    $region112: #{tpu_custom_call.1} parent=1 // pred_region
      %133 = dma.done [#allocation6], 8192
    $region113: #{tpu_custom_call.1} parent=1 // pred_fallthru
      _
    // Predicated region
    $region114: #{tpu_custom_call.1} parent=1 // pred_check
      _
    $region115: #{tpu_custom_call.1} parent=1 // pred_check_branch
      %135 = sbr.rel (0) target = $region117
    $region116: #{tpu_custom_call.1} parent=1 // pred_region
      %136 = dma.done [#allocation9], 4096
    $region117: #{tpu_custom_call.1} parent=1 // pred_fallthru
      _
    %v137 = vld [vmem:[%s1] sm:$0xff]
    %v138 = vld [vmem:[%s1 + $0x8] sm:$0xff]
    %v139 = vld [vmem:[%s1 + $0x10] sm:$0xff]
    %v140 = vld [vmem:[%s1 + $0x18] sm:$0xff]
    %v141 = vld [vmem:[%s1 + $0x20] sm:$0xff]
    %v142 = vld [vmem:[%s1 + $0x28] sm:$0xff]
    %v143 = vld [vmem:[%s1 + $0x30] sm:$0xff]
    %v144 = vld [vmem:[%s1 + $0x38] sm:$0xff]
    %v145 = vld [vmem:[%s1 + $0x40] sm:$0xff]
    %v146 = vld [vmem:[%s1 + $0x48] sm:$0xff]
    %v147 = vld [vmem:[%s1 + $0x50] sm:$0xff]
    %v148 = vld [vmem:[%s1 + $0x58] sm:$0xff]
    %v149 = vld [vmem:[%s1 + $0x60] sm:$0xff]
    %v150 = vld [vmem:[%s1 + $0x68] sm:$0xff]
    %v151 = vld [vmem:[%s1 + $0x70] sm:$0xff]
    %v152 = vld [vmem:[%s1 + $0x78] sm:$0xff]
    %v153 = vld [vmem:[%s1 + $0x80] sm:$0xff]
    %v154 = vld [vmem:[%s1 + $0x88] sm:$0xff]
    %v155 = vld [vmem:[%s1 + $0x90] sm:$0xff]
    %v156 = vld [vmem:[%s1 + $0x98] sm:$0xff]
    %v157 = vld [vmem:[%s1 + $0xa0] sm:$0xff]
    %v158 = vld [vmem:[%s1 + $0xa8] sm:$0xff]
    %v159 = vld [vmem:[%s1 + $0xb0] sm:$0xff]
    %v160 = vld [vmem:[%s1 + $0xb8] sm:$0xff]
    %v161 = vld [vmem:[%s1 + $0xc0] sm:$0xff]
    %v162 = vld [vmem:[%s1 + $0xc8] sm:$0xff]
    %v163 = vld [vmem:[%s1 + $0xd0] sm:$0xff]
    %v164 = vld [vmem:[%s1 + $0xd8] sm:$0xff]
    %v165 = vld [vmem:[%s1 + $0xe0] sm:$0xff]
    %v166 = vld [vmem:[%s1 + $0xe8] sm:$0xff]
    %v167 = vld [vmem:[%s1 + $0xf0] sm:$0xff]
    %v168 = vld [vmem:[%s1 + $0xf8] sm:$0xff]
    %v169 = vld [vmem:[%s1 + $0x100] sm:$0xff]
    %v170 = vld [vmem:[%s1 + $0x108] sm:$0xff]
    %v171 = vld [vmem:[%s1 + $0x110] sm:$0xff]
    %v172 = vld [vmem:[%s1 + $0x118] sm:$0xff]
    %v173 = vld [vmem:[%s1 + $0x120] sm:$0xff]
    %v174 = vld [vmem:[%s1 + $0x128] sm:$0xff]
    %v175 = vld [vmem:[%s1 + $0x130] sm:$0xff]
    %v176 = vld [vmem:[%s1 + $0x138] sm:$0xff]
    %v177 = vld [vmem:[%s1 + $0x140] sm:$0xff]
    %v178 = vld [vmem:[%s1 + $0x148] sm:$0xff]
    %v179 = vld [vmem:[%s1 + $0x150] sm:$0xff]
    %v180 = vld [vmem:[%s1 + $0x158] sm:$0xff]
    %v181 = vld [vmem:[%s1 + $0x160] sm:$0xff]
    %v182 = vld [vmem:[%s1 + $0x168] sm:$0xff]
    %v183 = vld [vmem:[%s1 + $0x170] sm:$0xff]
    %v184 = vld [vmem:[%s1 + $0x178] sm:$0xff]
    %v185 = vld [vmem:[%s1 + $0x180] sm:$0xff]
    %v186 = vld [vmem:[%s1 + $0x188] sm:$0xff]
    %v187 = vld [vmem:[%s1 + $0x190] sm:$0xff]
    %v188 = vld [vmem:[%s1 + $0x198] sm:$0xff]
    %v189 = vld [vmem:[%s1 + $0x1a0] sm:$0xff]
    %v190 = vld [vmem:[%s1 + $0x1a8] sm:$0xff]
    %v191 = vld [vmem:[%s1 + $0x1b0] sm:$0xff]
    %v192 = vld [vmem:[%s1 + $0x1b8] sm:$0xff]
    %v193 = vld [vmem:[%s1 + $0x1c0] sm:$0xff]
    %v194 = vld [vmem:[%s1 + $0x1c8] sm:$0xff]
    %v195 = vld [vmem:[%s1 + $0x1d0] sm:$0xff]
    %v196 = vld [vmem:[%s1 + $0x1d8] sm:$0xff]
    %v197 = vld [vmem:[%s1 + $0x1e0] sm:$0xff]
    %v198 = vld [vmem:[%s1 + $0x1e8] sm:$0xff]
    %v199 = vld [vmem:[%s1 + $0x1f0] sm:$0xff]
    %v200 = vld [vmem:[%s1 + $0x1f8] sm:$0xff]
    %v201 = vld [vmem:[%s2] sm:$0xff]
    %v202 = vld [vmem:[%s3] sm:$0x1]
    %v204 = vlaneseq
    %v205 = vshrl.u32 %v204, 7
    %v206 = vsub.s32 0, %v205
    %v207 = vrot.slane %v202, %v206
    %vm209 = vcmask 64512
    %v211 = vsel %vm209, %v137, 0
    %v214 = vsel %vm209, %v138, 0
    %v217 = vsel %vm209, %v139, 0
    %v220 = vsel %vm209, %v140, 0
    %v223 = vsel %vm209, %v141, 0
    %v226 = vsel %vm209, %v142, 0
    %v229 = vsel %vm209, %v143, 0
    %v232 = vsel %vm209, %v144, 0
    %v235 = vsel %vm209, %v145, 0
    %v238 = vsel %vm209, %v146, 0
    %v241 = vsel %vm209, %v147, 0
    %v244 = vsel %vm209, %v148, 0
    %v247 = vsel %vm209, %v149, 0
    %v250 = vsel %vm209, %v150, 0
    %v253 = vsel %vm209, %v151, 0
    %v256 = vsel %vm209, %v152, 0
    %v259 = vsel %vm209, %v153, 0
    %v262 = vsel %vm209, %v154, 0
    %v265 = vsel %vm209, %v155, 0
    %v268 = vsel %vm209, %v156, 0
    %v271 = vsel %vm209, %v157, 0
    %v274 = vsel %vm209, %v158, 0
    %v277 = vsel %vm209, %v159, 0
    %v280 = vsel %vm209, %v160, 0
    %v283 = vsel %vm209, %v161, 0
    %v286 = vsel %vm209, %v162, 0
    %v289 = vsel %vm209, %v163, 0
    %v292 = vsel %vm209, %v164, 0
    %v295 = vsel %vm209, %v165, 0
    %v298 = vsel %vm209, %v166, 0
    %v301 = vsel %vm209, %v167, 0
    %v304 = vsel %vm209, %v168, 0
    %v307 = vsel %vm209, %v169, 0
    %v310 = vsel %vm209, %v170, 0
    %v313 = vsel %vm209, %v171, 0
    %v316 = vsel %vm209, %v172, 0
    %v319 = vsel %vm209, %v173, 0
    %v322 = vsel %vm209, %v174, 0
    %v325 = vsel %vm209, %v175, 0
    %v328 = vsel %vm209, %v176, 0
    %v331 = vsel %vm209, %v177, 0
    %v334 = vsel %vm209, %v178, 0
    %v337 = vsel %vm209, %v179, 0
    %v340 = vsel %vm209, %v180, 0
    %v343 = vsel %vm209, %v181, 0
    %v346 = vsel %vm209, %v182, 0
    %v349 = vsel %vm209, %v183, 0
    %v352 = vsel %vm209, %v184, 0
    %v355 = vsel %vm209, %v185, 0
    %v358 = vsel %vm209, %v186, 0
    %v361 = vsel %vm209, %v187, 0
    %v364 = vsel %vm209, %v188, 0
    %v367 = vsel %vm209, %v189, 0
    %v370 = vsel %vm209, %v190, 0
    %v373 = vsel %vm209, %v191, 0
    %v376 = vsel %vm209, %v192, 0
    %v379 = vsel %vm209, %v193, 0
    %v382 = vsel %vm209, %v194, 0
    %v385 = vsel %vm209, %v195, 0
    %v388 = vsel %vm209, %v196, 0
    %v391 = vsel %vm209, %v197, 0
    %v394 = vsel %vm209, %v198, 0
    %v397 = vsel %vm209, %v199, 0
    %v400 = vsel %vm209, %v200, 0
    %402 = vmatprep.subr.mxu0 0.0
    %403 = vmatpush1.msra.mxu0 %v201
    %404 = vmatprep.subr.mxu0 0.0
    %405 = vmatpush1.msra.mxu0 0.0
    %406 = vmatprep.subr.mxu0 0.0
    %407 = vmatpush1.msra.mxu0 0.0
    %408 = vmatprep.subr.mxu0 0.0
    %409 = vmatpush1.msra.mxu0 0.0
    %410 = vmatprep.subr.mxu0 0.0
    %411 = vmatpush1.msra.mxu0 0.0
    %412 = vmatprep.subr.mxu0 0.0
    %413 = vmatpush1.msra.mxu0 0.0
    %414 = vmatprep.subr.mxu0 0.0
    %415 = vmatpush1.msra.mxu0 0.0
    %416 = vmatprep.subr.mxu0 0.0
    %417 = vmatpush1.msra.mxu0 0.0
    %418 = vmatprep.subr.mxu0 0.0
    %419 = vmatpush1.msra.mxu0 0.0
    %420 = vmatprep.subr.mxu0 0.0
    %421 = vmatpush1.msra.mxu0 0.0
    %422 = vmatprep.subr.mxu0 0.0
    %423 = vmatpush1.msra.mxu0 0.0
    %424 = vmatprep.subr.mxu0 0.0
    %425 = vmatpush1.msra.mxu0 0.0
    %426 = vmatprep.subr.mxu0 0.0
    %427 = vmatpush1.msra.mxu0 0.0
    %428 = vmatprep.subr.mxu0 0.0
    %429 = vmatpush1.msra.mxu0 0.0
    %430 = vmatprep.subr.mxu0 0.0
    %431 = vmatpush1.msra.mxu0 0.0
    %432 = vmatprep.subr.mxu0 0.0
    %433 = vmatpush1.msra.mxu0 0.0
    %434 = vmatprep.subr.mxu0 0.0
    %435 = vmatpush1.msra.mxu0 0.0
    %436 = vmatprep.subr.mxu0 0.0
    %437 = vmatpush1.msra.mxu0 0.0
    %438 = vmatprep.subr.mxu0 0.0
    %439 = vmatpush1.msra.mxu0 0.0
    %440 = vmatprep.subr.mxu0 0.0
    %441 = vmatpush1.msra.mxu0 0.0
    %442 = vmatprep.subr.mxu0 0.0
    %443 = vmatpush1.msra.mxu0 0.0
    %444 = vmatprep.subr.mxu0 0.0
    %445 = vmatpush1.msra.mxu0 0.0
    %446 = vmatprep.subr.mxu0 0.0
    %447 = vmatpush1.msra.mxu0 0.0
    %448 = vmatprep.subr.mxu0 0.0
    %449 = vmatpush1.msra.mxu0 0.0
    %450 = vmatprep.subr.mxu0 0.0
    %451 = vmatpush1.msra.mxu0 0.0
    %452 = vmatprep.subr.mxu0 0.0
    %453 = vmatpush1.msra.mxu0 0.0
    %454 = vmatprep.subr.mxu0 0.0
    %455 = vmatpush1.msra.mxu0 0.0
    %456 = vmatprep.subr.mxu0 0.0
    %457 = vmatpush1.msra.mxu0 0.0
    %458 = vmatprep.subr.mxu0 0.0
    %459 = vmatpush1.msra.mxu0 0.0
    %460 = vmatprep.subr.mxu0 0.0
    %461 = vmatpush1.msra.mxu0 0.0
    %462 = vmatprep.subr.mxu0 0.0
    %463 = vmatpush1.msra.mxu0 0.0
    %464 = vmatprep.subr.mxu0 0.0
    %465 = vmatpush1.msra.mxu0 0.0
    %466 = vmatprep.mubr.f32.mxu0 0.0
    %467 = vmatmul.mubr.f32.gmra.mrb[0].mxu0 %v211
    %v468 = vpop.f32.mrb[0].mxu0
    %v469 = vadd.f32 %v207, %v468
    %v470 = vpop.f32.mrb[0].mxu0
    %471 = vmatprep.mubr.f32.mxu0 0.0
    %472 = vmatmul.mubr.f32.gmra.mrb[0].mxu0 %v214
    %v473 = vpop.f32.mrb[0].mxu0
    %v474 = vadd.f32 %v207, %v473
    %v475 = vpop.f32.mrb[0].mxu0
    %476 = vmatprep.mubr.f32.mxu0 0.0
    %477 = vmatmul.mubr.f32.gmra.mrb[0].mxu0 %v217
    %v478 = vpop.f32.mrb[0].mxu0
    %v479 = vadd.f32 %v207, %v478
    %v480 = vpop.f32.mrb[0].mxu0
    %481 = vmatprep.mubr.f32.mxu0 0.0
    %482 = vmatmul.mubr.f32.gmra.mrb[0].mxu0 %v220
    %v483 = vpop.f32.mrb[0].mxu0
    %v484 = vadd.f32 %v207, %v483
    %v485 = vpop.f32.mrb[0].mxu0
    %486 = vmatprep.mubr.f32.mxu0 0.0
    %487 = vmatmul.mubr.f32.gmra.mrb[0].mxu0 %v223
    %v488 = vpop.f32.mrb[0].mxu0
    %v489 = vadd.f32 %v207, %v488
    %v490 = vpop.f32.mrb[0].mxu0
    %491 = vmatprep.mubr.f32.mxu0 0.0
    %492 = vmatmul.mubr.f32.gmra.mrb[0].mxu0 %v226
    %v493 = vpop.f32.mrb[0].mxu0
    %v494 = vadd.f32 %v207, %v493
    %v495 = vpop.f32.mrb[0].mxu0
    %496 = vmatprep.mubr.f32.mxu0 0.0
    %497 = vmatmul.mubr.f32.gmra.mrb[0].mxu0 %v229
    %v498 = vpop.f32.mrb[0].mxu0
    %v499 = vadd.f32 %v207, %v498
    %v500 = vpop.f32.mrb[0].mxu0
    %501 = vmatprep.mubr.f32.mxu0 0.0
    %502 = vmatmul.mubr.f32.gmra.mrb[0].mxu0 %v232
    %v503 = vpop.f32.mrb[0].mxu0
    %v504 = vadd.f32 %v207, %v503
    %v505 = vpop.f32.mrb[0].mxu0
    %506 = vmatprep.mubr.f32.mxu0 0.0
    %507 = vmatmul.mubr.f32.gmra.mrb[0].mxu0 %v235
    %v508 = vpop.f32.mrb[0].mxu0
    %v509 = vadd.f32 %v207, %v508
    %v510 = vpop.f32.mrb[0].mxu0
    %511 = vmatprep.mubr.f32.mxu0 0.0
    %512 = vmatmul.mubr.f32.gmra.mrb[0].mxu0 %v238
    %v513 = vpop.f32.mrb[0].mxu0
    %v514 = vadd.f32 %v207, %v513
    %v515 = vpop.f32.mrb[0].mxu0
    %516 = vmatprep.mubr.f32.mxu0 0.0
    %517 = vmatmul.mubr.f32.gmra.mrb[0].mxu0 %v241
    %v518 = vpop.f32.mrb[0].mxu0
    %v519 = vadd.f32 %v207, %v518
    %v520 = vpop.f32.mrb[0].mxu0
    %521 = vmatprep.mubr.f32.mxu0 0.0
    %522 = vmatmul.mubr.f32.gmra.mrb[0].mxu0 %v244
    %v523 = vpop.f32.mrb[0].mxu0
    %v524 = vadd.f32 %v207, %v523
    %v525 = vpop.f32.mrb[0].mxu0
    %526 = vmatprep.mubr.f32.mxu0 0.0
    %527 = vmatmul.mubr.f32.gmra.mrb[0].mxu0 %v247
    %v528 = vpop.f32.mrb[0].mxu0
    %v529 = vadd.f32 %v207, %v528
    %v530 = vpop.f32.mrb[0].mxu0
    %531 = vmatprep.mubr.f32.mxu0 0.0
    %532 = vmatmul.mubr.f32.gmra.mrb[0].mxu0 %v250
    %v533 = vpop.f32.mrb[0].mxu0
    %v534 = vadd.f32 %v207, %v533
    %v535 = vpop.f32.mrb[0].mxu0
    %536 = vmatprep.mubr.f32.mxu0 0.0
    %537 = vmatmul.mubr.f32.gmra.mrb[0].mxu0 %v253
    %v538 = vpop.f32.mrb[0].mxu0
    %v539 = vadd.f32 %v207, %v538
    %v540 = vpop.f32.mrb[0].mxu0
    %541 = vmatprep.mubr.f32.mxu0 0.0
    %542 = vmatmul.mubr.f32.gmra.mrb[0].mxu0 %v256
    %v543 = vpop.f32.mrb[0].mxu0
    %v544 = vadd.f32 %v207, %v543
    %v545 = vpop.f32.mrb[0].mxu0
    %546 = vmatprep.mubr.f32.mxu0 0.0
    %547 = vmatmul.mubr.f32.gmra.mrb[0].mxu0 %v259
    %v548 = vpop.f32.mrb[0].mxu0
    %v549 = vadd.f32 %v207, %v548
    %v550 = vpop.f32.mrb[0].mxu0
    %551 = vmatprep.mubr.f32.mxu0 0.0
    %552 = vmatmul.mubr.f32.gmra.mrb[0].mxu0 %v262
    %v553 = vpop.f32.mrb[0].mxu0
    %v554 = vadd.f32 %v207, %v553
    %v555 = vpop.f32.mrb[0].mxu0
    %556 = vmatprep.mubr.f32.mxu0 0.0
    %557 = vmatmul.mubr.f32.gmra.mrb[0].mxu0 %v265
    %v558 = vpop.f32.mrb[0].mxu0
    %v559 = vadd.f32 %v207, %v558
    %v560 = vpop.f32.mrb[0].mxu0
    %561 = vmatprep.mubr.f32.mxu0 0.0
    %562 = vmatmul.mubr.f32.gmra.mrb[0].mxu0 %v268
    %v563 = vpop.f32.mrb[0].mxu0
    %v564 = vadd.f32 %v207, %v563
    %v565 = vpop.f32.mrb[0].mxu0
    %566 = vmatprep.mubr.f32.mxu0 0.0
    %567 = vmatmul.mubr.f32.gmra.mrb[0].mxu0 %v271
    %v568 = vpop.f32.mrb[0].mxu0
    %v569 = vadd.f32 %v207, %v568
    %v570 = vpop.f32.mrb[0].mxu0
    %571 = vmatprep.mubr.f32.mxu0 0.0
    %572 = vmatmul.mubr.f32.gmra.mrb[0].mxu0 %v274
    %v573 = vpop.f32.mrb[0].mxu0
    %v574 = vadd.f32 %v207, %v573
    %v575 = vpop.f32.mrb[0].mxu0
    %576 = vmatprep.mubr.f32.mxu0 0.0
    %577 = vmatmul.mubr.f32.gmra.mrb[0].mxu0 %v277
    %v578 = vpop.f32.mrb[0].mxu0
    %v579 = vadd.f32 %v207, %v578
    %v580 = vpop.f32.mrb[0].mxu0
    %581 = vmatprep.mubr.f32.mxu0 0.0
    %582 = vmatmul.mubr.f32.gmra.mrb[0].mxu0 %v280
    %v583 = vpop.f32.mrb[0].mxu0
    %v584 = vadd.f32 %v207, %v583
    %v585 = vpop.f32.mrb[0].mxu0
    %586 = vmatprep.mubr.f32.mxu0 0.0
    %587 = vmatmul.mubr.f32.gmra.mrb[0].mxu0 %v283
    %v588 = vpop.f32.mrb[0].mxu0
    %v589 = vadd.f32 %v207, %v588
    %v590 = vpop.f32.mrb[0].mxu0
    %591 = vmatprep.mubr.f32.mxu0 0.0
    %592 = vmatmul.mubr.f32.gmra.mrb[0].mxu0 %v286
    %v593 = vpop.f32.mrb[0].mxu0
    %v594 = vadd.f32 %v207, %v593
    %v595 = vpop.f32.mrb[0].mxu0
    %596 = vmatprep.mubr.f32.mxu0 0.0
    %597 = vmatmul.mubr.f32.gmra.mrb[0].mxu0 %v289
    %v598 = vpop.f32.mrb[0].mxu0
    %v599 = vadd.f32 %v207, %v598
    %v600 = vpop.f32.mrb[0].mxu0
    %601 = vmatprep.mubr.f32.mxu0 0.0
    %602 = vmatmul.mubr.f32.gmra.mrb[0].mxu0 %v292
    %v603 = vpop.f32.mrb[0].mxu0
    %v604 = vadd.f32 %v207, %v603
    %v605 = vpop.f32.mrb[0].mxu0
    %606 = vmatprep.mubr.f32.mxu0 0.0
    %607 = vmatmul.mubr.f32.gmra.mrb[0].mxu0 %v295
    %v608 = vpop.f32.mrb[0].mxu0
    %v609 = vadd.f32 %v207, %v608
    %v610 = vpop.f32.mrb[0].mxu0
    %611 = vmatprep.mubr.f32.mxu0 0.0
    %612 = vmatmul.mubr.f32.gmra.mrb[0].mxu0 %v298
    %v613 = vpop.f32.mrb[0].mxu0
    %v614 = vadd.f32 %v207, %v613
    %v615 = vpop.f32.mrb[0].mxu0
    %616 = vmatprep.mubr.f32.mxu0 0.0
    %617 = vmatmul.mubr.f32.gmra.mrb[0].mxu0 %v301
    %v618 = vpop.f32.mrb[0].mxu0
    %v619 = vadd.f32 %v207, %v618
    %v620 = vpop.f32.mrb[0].mxu0
    %621 = vmatprep.mubr.f32.mxu0 0.0
    %622 = vmatmul.mubr.f32.gmra.mrb[0].mxu0 %v304
    %v623 = vpop.f32.mrb[0].mxu0
    %v624 = vadd.f32 %v207, %v623
    %v625 = vpop.f32.mrb[0].mxu0
    %626 = vmatprep.mubr.f32.mxu0 0.0
    %627 = vmatmul.mubr.f32.gmra.mrb[0].mxu0 %v307
    %v628 = vpop.f32.mrb[0].mxu0
    %v629 = vadd.f32 %v207, %v628
    %v630 = vpop.f32.mrb[0].mxu0
    %631 = vmatprep.mubr.f32.mxu0 0.0
    %632 = vmatmul.mubr.f32.gmra.mrb[0].mxu0 %v310
    %v633 = vpop.f32.mrb[0].mxu0
    %v634 = vadd.f32 %v207, %v633
    %v635 = vpop.f32.mrb[0].mxu0
    %636 = vmatprep.mubr.f32.mxu0 0.0
    %637 = vmatmul.mubr.f32.gmra.mrb[0].mxu0 %v313
    %v638 = vpop.f32.mrb[0].mxu0
    %v639 = vadd.f32 %v207, %v638
    %v640 = vpop.f32.mrb[0].mxu0
    %641 = vmatprep.mubr.f32.mxu0 0.0
    %642 = vmatmul.mubr.f32.gmra.mrb[0].mxu0 %v316
    %v643 = vpop.f32.mrb[0].mxu0
    %v644 = vadd.f32 %v207, %v643
    %v645 = vpop.f32.mrb[0].mxu0
    %646 = vmatprep.mubr.f32.mxu0 0.0
    %647 = vmatmul.mubr.f32.gmra.mrb[0].mxu0 %v319
    %v648 = vpop.f32.mrb[0].mxu0
    %v649 = vadd.f32 %v207, %v648
    %v650 = vpop.f32.mrb[0].mxu0
    %651 = vmatprep.mubr.f32.mxu0 0.0
    %652 = vmatmul.mubr.f32.gmra.mrb[0].mxu0 %v322
    %v653 = vpop.f32.mrb[0].mxu0
    %v654 = vadd.f32 %v207, %v653
    %v655 = vpop.f32.mrb[0].mxu0
    %656 = vmatprep.mubr.f32.mxu0 0.0
    %657 = vmatmul.mubr.f32.gmra.mrb[0].mxu0 %v325
    %v658 = vpop.f32.mrb[0].mxu0
    %v659 = vadd.f32 %v207, %v658
    %v660 = vpop.f32.mrb[0].mxu0
    %661 = vmatprep.mubr.f32.mxu0 0.0
    %662 = vmatmul.mubr.f32.gmra.mrb[0].mxu0 %v328
    %v663 = vpop.f32.mrb[0].mxu0
    %v664 = vadd.f32 %v207, %v663
    %v665 = vpop.f32.mrb[0].mxu0
    %666 = vmatprep.mubr.f32.mxu0 0.0
    %667 = vmatmul.mubr.f32.gmra.mrb[0].mxu0 %v331
    %v668 = vpop.f32.mrb[0].mxu0
    %v669 = vadd.f32 %v207, %v668
    %v670 = vpop.f32.mrb[0].mxu0
    %671 = vmatprep.mubr.f32.mxu0 0.0
    %672 = vmatmul.mubr.f32.gmra.mrb[0].mxu0 %v334
    %v673 = vpop.f32.mrb[0].mxu0
    %v674 = vadd.f32 %v207, %v673
    %v675 = vpop.f32.mrb[0].mxu0
    %676 = vmatprep.mubr.f32.mxu0 0.0
    %677 = vmatmul.mubr.f32.gmra.mrb[0].mxu0 %v337
    %v678 = vpop.f32.mrb[0].mxu0
    %v679 = vadd.f32 %v207, %v678
    %v680 = vpop.f32.mrb[0].mxu0
    %681 = vmatprep.mubr.f32.mxu0 0.0
    %682 = vmatmul.mubr.f32.gmra.mrb[0].mxu0 %v340
    %v683 = vpop.f32.mrb[0].mxu0
    %v684 = vadd.f32 %v207, %v683
    %v685 = vpop.f32.mrb[0].mxu0
    %686 = vmatprep.mubr.f32.mxu0 0.0
    %687 = vmatmul.mubr.f32.gmra.mrb[0].mxu0 %v343
    %v688 = vpop.f32.mrb[0].mxu0
    %v689 = vadd.f32 %v207, %v688
    %v690 = vpop.f32.mrb[0].mxu0
    %691 = vmatprep.mubr.f32.mxu0 0.0
    %692 = vmatmul.mubr.f32.gmra.mrb[0].mxu0 %v346
    %v693 = vpop.f32.mrb[0].mxu0
    %v694 = vadd.f32 %v207, %v693
    %v695 = vpop.f32.mrb[0].mxu0
    %696 = vmatprep.mubr.f32.mxu0 0.0
    %697 = vmatmul.mubr.f32.gmra.mrb[0].mxu0 %v349
    %v698 = vpop.f32.mrb[0].mxu0
    %v699 = vadd.f32 %v207, %v698
    %v700 = vpop.f32.mrb[0].mxu0
    %701 = vmatprep.mubr.f32.mxu0 0.0
    %702 = vmatmul.mubr.f32.gmra.mrb[0].mxu0 %v352
    %v703 = vpop.f32.mrb[0].mxu0
    %v704 = vadd.f32 %v207, %v703
    %v705 = vpop.f32.mrb[0].mxu0
    %706 = vmatprep.mubr.f32.mxu0 0.0
    %707 = vmatmul.mubr.f32.gmra.mrb[0].mxu0 %v355
    %v708 = vpop.f32.mrb[0].mxu0
    %v709 = vadd.f32 %v207, %v708
    %v710 = vpop.f32.mrb[0].mxu0
    %711 = vmatprep.mubr.f32.mxu0 0.0
    %712 = vmatmul.mubr.f32.gmra.mrb[0].mxu0 %v358
    %v713 = vpop.f32.mrb[0].mxu0
    %v714 = vadd.f32 %v207, %v713
    %v715 = vpop.f32.mrb[0].mxu0
    %716 = vmatprep.mubr.f32.mxu0 0.0
    %717 = vmatmul.mubr.f32.gmra.mrb[0].mxu0 %v361
    %v718 = vpop.f32.mrb[0].mxu0
    %v719 = vadd.f32 %v207, %v718
    %v720 = vpop.f32.mrb[0].mxu0
    %721 = vmatprep.mubr.f32.mxu0 0.0
    %722 = vmatmul.mubr.f32.gmra.mrb[0].mxu0 %v364
    %v723 = vpop.f32.mrb[0].mxu0
    %v724 = vadd.f32 %v207, %v723
    %v725 = vpop.f32.mrb[0].mxu0
    %726 = vmatprep.mubr.f32.mxu0 0.0
    %727 = vmatmul.mubr.f32.gmra.mrb[0].mxu0 %v367
    %v728 = vpop.f32.mrb[0].mxu0
    %v729 = vadd.f32 %v207, %v728
    %v730 = vpop.f32.mrb[0].mxu0
    %731 = vmatprep.mubr.f32.mxu0 0.0
    %732 = vmatmul.mubr.f32.gmra.mrb[0].mxu0 %v370
    %v733 = vpop.f32.mrb[0].mxu0
    %v734 = vadd.f32 %v207, %v733
    %v735 = vpop.f32.mrb[0].mxu0
    %736 = vmatprep.mubr.f32.mxu0 0.0
    %737 = vmatmul.mubr.f32.gmra.mrb[0].mxu0 %v373
    %v738 = vpop.f32.mrb[0].mxu0
    %v739 = vadd.f32 %v207, %v738
    %v740 = vpop.f32.mrb[0].mxu0
    %741 = vmatprep.mubr.f32.mxu0 0.0
    %742 = vmatmul.mubr.f32.gmra.mrb[0].mxu0 %v376
    %v743 = vpop.f32.mrb[0].mxu0
    %v744 = vadd.f32 %v207, %v743
    %v745 = vpop.f32.mrb[0].mxu0
    %746 = vmatprep.mubr.f32.mxu0 0.0
    %747 = vmatmul.mubr.f32.gmra.mrb[0].mxu0 %v379
    %v748 = vpop.f32.mrb[0].mxu0
    %v749 = vadd.f32 %v207, %v748
    %v750 = vpop.f32.mrb[0].mxu0
    %751 = vmatprep.mubr.f32.mxu0 0.0
    %752 = vmatmul.mubr.f32.gmra.mrb[0].mxu0 %v382
    %v753 = vpop.f32.mrb[0].mxu0
    %v754 = vadd.f32 %v207, %v753
    %v755 = vpop.f32.mrb[0].mxu0
    %756 = vmatprep.mubr.f32.mxu0 0.0
    %757 = vmatmul.mubr.f32.gmra.mrb[0].mxu0 %v385
    %v758 = vpop.f32.mrb[0].mxu0
    %v759 = vadd.f32 %v207, %v758
    %v760 = vpop.f32.mrb[0].mxu0
    %761 = vmatprep.mubr.f32.mxu0 0.0
    %762 = vmatmul.mubr.f32.gmra.mrb[0].mxu0 %v388
    %v763 = vpop.f32.mrb[0].mxu0
    %v764 = vadd.f32 %v207, %v763
    %v765 = vpop.f32.mrb[0].mxu0
    %766 = vmatprep.mubr.f32.mxu0 0.0
    %767 = vmatmul.mubr.f32.gmra.mrb[0].mxu0 %v391
    %v768 = vpop.f32.mrb[0].mxu0
    %v769 = vadd.f32 %v207, %v768
    %v770 = vpop.f32.mrb[0].mxu0
    %771 = vmatprep.mubr.f32.mxu0 0.0
    %772 = vmatmul.mubr.f32.gmra.mrb[0].mxu0 %v394
    %v773 = vpop.f32.mrb[0].mxu0
    %v774 = vadd.f32 %v207, %v773
    %v775 = vpop.f32.mrb[0].mxu0
    %776 = vmatprep.mubr.f32.mxu0 0.0
    %777 = vmatmul.mubr.f32.gmra.mrb[0].mxu0 %v397
    %v778 = vpop.f32.mrb[0].mxu0
    %v779 = vadd.f32 %v207, %v778
    %v780 = vpop.f32.mrb[0].mxu0
    %781 = vmatprep.mubr.f32.mxu0 0.0
    %782 = vmatmul.mubr.f32.gmra.mrb[0].mxu0 %v400
    %v783 = vpop.f32.mrb[0].mxu0
    %v784 = vadd.f32 %v207, %v783
    %v785 = vpop.f32.mrb[0].mxu0
    %786 = vdwg.mxu0
    %vm787 = vcmask 523264
    %v788 = vsel %vm787, %v469, 0.0
    %789 = vadd.xlane.f32.xlu0 %v788
    %v790 = vpop.xlane.xlu0 %789
    %v791 = vsel %vm787, %v474, 0.0
    %792 = vadd.xlane.f32.xlu0 %v791
    %v793 = vpop.xlane.xlu0 %792
    %v794 = vsel %vm787, %v479, 0.0
    %795 = vadd.xlane.f32.xlu0 %v794
    %v796 = vpop.xlane.xlu0 %795
    %v797 = vsel %vm787, %v484, 0.0
    %798 = vadd.xlane.f32.xlu0 %v797
    %v799 = vpop.xlane.xlu0 %798
    %v800 = vsel %vm787, %v489, 0.0
    %801 = vadd.xlane.f32.xlu0 %v800
    %v802 = vpop.xlane.xlu0 %801
    %v803 = vsel %vm787, %v494, 0.0
    %804 = vadd.xlane.f32.xlu0 %v803
    %v805 = vpop.xlane.xlu0 %804
    %v806 = vsel %vm787, %v499, 0.0
    %807 = vadd.xlane.f32.xlu0 %v806
    %v808 = vpop.xlane.xlu0 %807
    %v809 = vsel %vm787, %v504, 0.0
    %810 = vadd.xlane.f32.xlu0 %v809
    %v811 = vpop.xlane.xlu0 %810
    %v812 = vsel %vm787, %v509, 0.0
    %813 = vadd.xlane.f32.xlu0 %v812
    %v814 = vpop.xlane.xlu0 %813
    %v815 = vsel %vm787, %v514, 0.0
    %816 = vadd.xlane.f32.xlu0 %v815
    %v817 = vpop.xlane.xlu0 %816
    %v818 = vsel %vm787, %v519, 0.0
    %819 = vadd.xlane.f32.xlu0 %v818
    %v820 = vpop.xlane.xlu0 %819
    %v821 = vsel %vm787, %v524, 0.0
    %822 = vadd.xlane.f32.xlu0 %v821
    %v823 = vpop.xlane.xlu0 %822
    %v824 = vsel %vm787, %v529, 0.0
    %825 = vadd.xlane.f32.xlu0 %v824
    %v826 = vpop.xlane.xlu0 %825
    %v827 = vsel %vm787, %v534, 0.0
    %828 = vadd.xlane.f32.xlu0 %v827
    %v829 = vpop.xlane.xlu0 %828
    %v830 = vsel %vm787, %v539, 0.0
    %831 = vadd.xlane.f32.xlu0 %v830
    %v832 = vpop.xlane.xlu0 %831
    %v833 = vsel %vm787, %v544, 0.0
    %834 = vadd.xlane.f32.xlu0 %v833
    %v835 = vpop.xlane.xlu0 %834
    %v836 = vsel %vm787, %v549, 0.0
    %837 = vadd.xlane.f32.xlu0 %v836
    %v838 = vpop.xlane.xlu0 %837
    %v839 = vsel %vm787, %v554, 0.0
    %840 = vadd.xlane.f32.xlu0 %v839
    %v841 = vpop.xlane.xlu0 %840
    %v842 = vsel %vm787, %v559, 0.0
    %843 = vadd.xlane.f32.xlu0 %v842
    %v844 = vpop.xlane.xlu0 %843
    %v845 = vsel %vm787, %v564, 0.0
    %846 = vadd.xlane.f32.xlu0 %v845
    %v847 = vpop.xlane.xlu0 %846
    %v848 = vsel %vm787, %v569, 0.0
    %849 = vadd.xlane.f32.xlu0 %v848
    %v850 = vpop.xlane.xlu0 %849
    %v851 = vsel %vm787, %v574, 0.0
    %852 = vadd.xlane.f32.xlu0 %v851
    %v853 = vpop.xlane.xlu0 %852
    %v854 = vsel %vm787, %v579, 0.0
    %855 = vadd.xlane.f32.xlu0 %v854
    %v856 = vpop.xlane.xlu0 %855
    %v857 = vsel %vm787, %v584, 0.0
    %858 = vadd.xlane.f32.xlu0 %v857
    %v859 = vpop.xlane.xlu0 %858
    %v860 = vsel %vm787, %v589, 0.0
    %861 = vadd.xlane.f32.xlu0 %v860
    %v862 = vpop.xlane.xlu0 %861
    %v863 = vsel %vm787, %v594, 0.0
    %864 = vadd.xlane.f32.xlu0 %v863
    %v865 = vpop.xlane.xlu0 %864
    %v866 = vsel %vm787, %v599, 0.0
    %867 = vadd.xlane.f32.xlu0 %v866
    %v868 = vpop.xlane.xlu0 %867
    %v869 = vsel %vm787, %v604, 0.0
    %870 = vadd.xlane.f32.xlu0 %v869
    %v871 = vpop.xlane.xlu0 %870
    %v872 = vsel %vm787, %v609, 0.0
    %873 = vadd.xlane.f32.xlu0 %v872
    %v874 = vpop.xlane.xlu0 %873
    %v875 = vsel %vm787, %v614, 0.0
    %876 = vadd.xlane.f32.xlu0 %v875
    %v877 = vpop.xlane.xlu0 %876
    %v878 = vsel %vm787, %v619, 0.0
    %879 = vadd.xlane.f32.xlu0 %v878
    %v880 = vpop.xlane.xlu0 %879
    %v881 = vsel %vm787, %v624, 0.0
    %882 = vadd.xlane.f32.xlu0 %v881
    %v883 = vpop.xlane.xlu0 %882
    %v884 = vsel %vm787, %v629, 0.0
    %885 = vadd.xlane.f32.xlu0 %v884
    %v886 = vpop.xlane.xlu0 %885
    %v887 = vsel %vm787, %v634, 0.0
    %888 = vadd.xlane.f32.xlu0 %v887
    %v889 = vpop.xlane.xlu0 %888
    %v890 = vsel %vm787, %v639, 0.0
    %891 = vadd.xlane.f32.xlu0 %v890
    %v892 = vpop.xlane.xlu0 %891
    %v893 = vsel %vm787, %v644, 0.0
    %894 = vadd.xlane.f32.xlu0 %v893
    %v895 = vpop.xlane.xlu0 %894
    %v896 = vsel %vm787, %v649, 0.0
    %897 = vadd.xlane.f32.xlu0 %v896
    %v898 = vpop.xlane.xlu0 %897
    %v899 = vsel %vm787, %v654, 0.0
    %900 = vadd.xlane.f32.xlu0 %v899
    %v901 = vpop.xlane.xlu0 %900
    %v902 = vsel %vm787, %v659, 0.0
    %903 = vadd.xlane.f32.xlu0 %v902
    %v904 = vpop.xlane.xlu0 %903
    %v905 = vsel %vm787, %v664, 0.0
    %906 = vadd.xlane.f32.xlu0 %v905
    %v907 = vpop.xlane.xlu0 %906
    %v908 = vsel %vm787, %v669, 0.0
    %909 = vadd.xlane.f32.xlu0 %v908
    %v910 = vpop.xlane.xlu0 %909
    %v911 = vsel %vm787, %v674, 0.0
    %912 = vadd.xlane.f32.xlu0 %v911
    %v913 = vpop.xlane.xlu0 %912
    %v914 = vsel %vm787, %v679, 0.0
    %915 = vadd.xlane.f32.xlu0 %v914
    %v916 = vpop.xlane.xlu0 %915
    %v917 = vsel %vm787, %v684, 0.0
    %918 = vadd.xlane.f32.xlu0 %v917
    %v919 = vpop.xlane.xlu0 %918
    %v920 = vsel %vm787, %v689, 0.0
    %921 = vadd.xlane.f32.xlu0 %v920
    %v922 = vpop.xlane.xlu0 %921
    %v923 = vsel %vm787, %v694, 0.0
    %924 = vadd.xlane.f32.xlu0 %v923
    %v925 = vpop.xlane.xlu0 %924
    %v926 = vsel %vm787, %v699, 0.0
    %927 = vadd.xlane.f32.xlu0 %v926
    %v928 = vpop.xlane.xlu0 %927
    %v929 = vsel %vm787, %v704, 0.0
    %930 = vadd.xlane.f32.xlu0 %v929
    %v931 = vpop.xlane.xlu0 %930
    %v932 = vsel %vm787, %v709, 0.0
    %933 = vadd.xlane.f32.xlu0 %v932
    %v934 = vpop.xlane.xlu0 %933
    %v935 = vsel %vm787, %v714, 0.0
    %936 = vadd.xlane.f32.xlu0 %v935
    %v937 = vpop.xlane.xlu0 %936
    %v938 = vsel %vm787, %v719, 0.0
    %939 = vadd.xlane.f32.xlu0 %v938
    %v940 = vpop.xlane.xlu0 %939
    %v941 = vsel %vm787, %v724, 0.0
    %942 = vadd.xlane.f32.xlu0 %v941
    %v943 = vpop.xlane.xlu0 %942
    %v944 = vsel %vm787, %v729, 0.0
    %945 = vadd.xlane.f32.xlu0 %v944
    %v946 = vpop.xlane.xlu0 %945
    %v947 = vsel %vm787, %v734, 0.0
    %948 = vadd.xlane.f32.xlu0 %v947
    %v949 = vpop.xlane.xlu0 %948
    %v950 = vsel %vm787, %v739, 0.0
    %951 = vadd.xlane.f32.xlu0 %v950
    %v952 = vpop.xlane.xlu0 %951
    %v953 = vsel %vm787, %v744, 0.0
    %954 = vadd.xlane.f32.xlu0 %v953
    %v955 = vpop.xlane.xlu0 %954
    %v956 = vsel %vm787, %v749, 0.0
    %957 = vadd.xlane.f32.xlu0 %v956
    %v958 = vpop.xlane.xlu0 %957
    %v959 = vsel %vm787, %v754, 0.0
    %960 = vadd.xlane.f32.xlu0 %v959
    %v961 = vpop.xlane.xlu0 %960
    %v962 = vsel %vm787, %v759, 0.0
    %963 = vadd.xlane.f32.xlu0 %v962
    %v964 = vpop.xlane.xlu0 %963
    %v965 = vsel %vm787, %v764, 0.0
    %966 = vadd.xlane.f32.xlu0 %v965
    %v967 = vpop.xlane.xlu0 %966
    %v968 = vsel %vm787, %v769, 0.0
    %969 = vadd.xlane.f32.xlu0 %v968
    %v970 = vpop.xlane.xlu0 %969
    %v971 = vsel %vm787, %v774, 0.0
    %972 = vadd.xlane.f32.xlu0 %v971
    %v973 = vpop.xlane.xlu0 %972
    %v974 = vsel %vm787, %v779, 0.0
    %975 = vadd.xlane.f32.xlu0 %v974
    %v976 = vpop.xlane.xlu0 %975
    %v977 = vsel %vm787, %v784, 0.0
    %978 = vadd.xlane.f32.xlu0 %v977
    %v979 = vpop.xlane.xlu0 %978
    %v980 = vmul.f32 %v469, %v469
    %v981 = vmul.f32 %v474, %v474
    %v982 = vmul.f32 %v479, %v479
    %v983 = vmul.f32 %v484, %v484
    %v984 = vmul.f32 %v489, %v489
    %v985 = vmul.f32 %v494, %v494
    %v986 = vmul.f32 %v499, %v499
    %v987 = vmul.f32 %v504, %v504
    %v988 = vmul.f32 %v509, %v509
    %v989 = vmul.f32 %v514, %v514
    %v990 = vmul.f32 %v519, %v519
    %v991 = vmul.f32 %v524, %v524
    %v992 = vmul.f32 %v529, %v529
    %v993 = vmul.f32 %v534, %v534
    %v994 = vmul.f32 %v539, %v539
    %v995 = vmul.f32 %v544, %v544
    %v996 = vmul.f32 %v549, %v549
    %v997 = vmul.f32 %v554, %v554
    %v998 = vmul.f32 %v559, %v559
    %v999 = vmul.f32 %v564, %v564
    %v1000 = vmul.f32 %v569, %v569
    %v1001 = vmul.f32 %v574, %v574
    %v1002 = vmul.f32 %v579, %v579
    %v1003 = vmul.f32 %v584, %v584
    %v1004 = vmul.f32 %v589, %v589
    %v1005 = vmul.f32 %v594, %v594
    %v1006 = vmul.f32 %v599, %v599
    %v1007 = vmul.f32 %v604, %v604
    %v1008 = vmul.f32 %v609, %v609
    %v1009 = vmul.f32 %v614, %v614
    %v1010 = vmul.f32 %v619, %v619
    %v1011 = vmul.f32 %v624, %v624
    %v1012 = vmul.f32 %v629, %v629
    %v1013 = vmul.f32 %v634, %v634
    %v1014 = vmul.f32 %v639, %v639
    %v1015 = vmul.f32 %v644, %v644
    %v1016 = vmul.f32 %v649, %v649
    %v1017 = vmul.f32 %v654, %v654
    %v1018 = vmul.f32 %v659, %v659
    %v1019 = vmul.f32 %v664, %v664
    %v1020 = vmul.f32 %v669, %v669
    %v1021 = vmul.f32 %v674, %v674
    %v1022 = vmul.f32 %v679, %v679
    %v1023 = vmul.f32 %v684, %v684
    %v1024 = vmul.f32 %v689, %v689
    %v1025 = vmul.f32 %v694, %v694
    %v1026 = vmul.f32 %v699, %v699
    %v1027 = vmul.f32 %v704, %v704
    %v1028 = vmul.f32 %v709, %v709
    %v1029 = vmul.f32 %v714, %v714
    %v1030 = vmul.f32 %v719, %v719
    %v1031 = vmul.f32 %v724, %v724
    %v1032 = vmul.f32 %v729, %v729
    %v1033 = vmul.f32 %v734, %v734
    %v1034 = vmul.f32 %v739, %v739
    %v1035 = vmul.f32 %v744, %v744
    %v1036 = vmul.f32 %v749, %v749
    %v1037 = vmul.f32 %v754, %v754
    %v1038 = vmul.f32 %v759, %v759
    %v1039 = vmul.f32 %v764, %v764
    %v1040 = vmul.f32 %v769, %v769
    %v1041 = vmul.f32 %v774, %v774
    %v1042 = vmul.f32 %v779, %v779
    %v1043 = vmul.f32 %v784, %v784
    %v1044 = vsel %vm787, %v980, 0.0
    %1045 = vadd.xlane.f32.xlu0 %v1044
    %v1046 = vpop.xlane.xlu0 %1045
    %v1047 = vsel %vm787, %v981, 0.0
    %1048 = vadd.xlane.f32.xlu0 %v1047
    %v1049 = vpop.xlane.xlu0 %1048
    %v1050 = vsel %vm787, %v982, 0.0
    %1051 = vadd.xlane.f32.xlu0 %v1050
    %v1052 = vpop.xlane.xlu0 %1051
    %v1053 = vsel %vm787, %v983, 0.0
    %1054 = vadd.xlane.f32.xlu0 %v1053
    %v1055 = vpop.xlane.xlu0 %1054
    %v1056 = vsel %vm787, %v984, 0.0
    %1057 = vadd.xlane.f32.xlu0 %v1056
    %v1058 = vpop.xlane.xlu0 %1057
    %v1059 = vsel %vm787, %v985, 0.0
    %1060 = vadd.xlane.f32.xlu0 %v1059
    %v1061 = vpop.xlane.xlu0 %1060
    %v1062 = vsel %vm787, %v986, 0.0
    %1063 = vadd.xlane.f32.xlu0 %v1062
    %v1064 = vpop.xlane.xlu0 %1063
    %v1065 = vsel %vm787, %v987, 0.0
    %1066 = vadd.xlane.f32.xlu0 %v1065
    %v1067 = vpop.xlane.xlu0 %1066
    %v1068 = vsel %vm787, %v988, 0.0
    %1069 = vadd.xlane.f32.xlu0 %v1068
    %v1070 = vpop.xlane.xlu0 %1069
    %v1071 = vsel %vm787, %v989, 0.0
    %1072 = vadd.xlane.f32.xlu0 %v1071
    %v1073 = vpop.xlane.xlu0 %1072
    %v1074 = vsel %vm787, %v990, 0.0
    %1075 = vadd.xlane.f32.xlu0 %v1074
    %v1076 = vpop.xlane.xlu0 %1075
    %v1077 = vsel %vm787, %v991, 0.0
    %1078 = vadd.xlane.f32.xlu0 %v1077
    %v1079 = vpop.xlane.xlu0 %1078
    %v1080 = vsel %vm787, %v992, 0.0
    %1081 = vadd.xlane.f32.xlu0 %v1080
    %v1082 = vpop.xlane.xlu0 %1081
    %v1083 = vsel %vm787, %v993, 0.0
    %1084 = vadd.xlane.f32.xlu0 %v1083
    %v1085 = vpop.xlane.xlu0 %1084
    %v1086 = vsel %vm787, %v994, 0.0
    %1087 = vadd.xlane.f32.xlu0 %v1086
    %v1088 = vpop.xlane.xlu0 %1087
    %v1089 = vsel %vm787, %v995, 0.0
    %1090 = vadd.xlane.f32.xlu0 %v1089
    %v1091 = vpop.xlane.xlu0 %1090
    %v1092 = vsel %vm787, %v996, 0.0
    %1093 = vadd.xlane.f32.xlu0 %v1092
    %v1094 = vpop.xlane.xlu0 %1093
    %v1095 = vsel %vm787, %v997, 0.0
    %1096 = vadd.xlane.f32.xlu0 %v1095
    %v1097 = vpop.xlane.xlu0 %1096
    %v1098 = vsel %vm787, %v998, 0.0
    %1099 = vadd.xlane.f32.xlu0 %v1098
    %v1100 = vpop.xlane.xlu0 %1099
    %v1101 = vsel %vm787, %v999, 0.0
    %1102 = vadd.xlane.f32.xlu0 %v1101
    %v1103 = vpop.xlane.xlu0 %1102
    %v1104 = vsel %vm787, %v1000, 0.0
    %1105 = vadd.xlane.f32.xlu0 %v1104
    %v1106 = vpop.xlane.xlu0 %1105
    %v1107 = vsel %vm787, %v1001, 0.0
    %1108 = vadd.xlane.f32.xlu0 %v1107
    %v1109 = vpop.xlane.xlu0 %1108
    %v1110 = vsel %vm787, %v1002, 0.0
    %1111 = vadd.xlane.f32.xlu0 %v1110
    %v1112 = vpop.xlane.xlu0 %1111
    %v1113 = vsel %vm787, %v1003, 0.0
    %1114 = vadd.xlane.f32.xlu0 %v1113
    %v1115 = vpop.xlane.xlu0 %1114
    %v1116 = vsel %vm787, %v1004, 0.0
    %1117 = vadd.xlane.f32.xlu0 %v1116
    %v1118 = vpop.xlane.xlu0 %1117
    %v1119 = vsel %vm787, %v1005, 0.0
    %1120 = vadd.xlane.f32.xlu0 %v1119
    %v1121 = vpop.xlane.xlu0 %1120
    %v1122 = vsel %vm787, %v1006, 0.0
    %1123 = vadd.xlane.f32.xlu0 %v1122
    %v1124 = vpop.xlane.xlu0 %1123
    %v1125 = vsel %vm787, %v1007, 0.0
    %1126 = vadd.xlane.f32.xlu0 %v1125
    %v1127 = vpop.xlane.xlu0 %1126
    %v1128 = vsel %vm787, %v1008, 0.0
    %1129 = vadd.xlane.f32.xlu0 %v1128
    %v1130 = vpop.xlane.xlu0 %1129
    %v1131 = vsel %vm787, %v1009, 0.0
    %1132 = vadd.xlane.f32.xlu0 %v1131
    %v1133 = vpop.xlane.xlu0 %1132
    %v1134 = vsel %vm787, %v1010, 0.0
    %1135 = vadd.xlane.f32.xlu0 %v1134
    %v1136 = vpop.xlane.xlu0 %1135
    %v1137 = vsel %vm787, %v1011, 0.0
    %1138 = vadd.xlane.f32.xlu0 %v1137
    %v1139 = vpop.xlane.xlu0 %1138
    %v1140 = vsel %vm787, %v1012, 0.0
    %1141 = vadd.xlane.f32.xlu0 %v1140
    %v1142 = vpop.xlane.xlu0 %1141
    %v1143 = vsel %vm787, %v1013, 0.0
    %1144 = vadd.xlane.f32.xlu0 %v1143
    %v1145 = vpop.xlane.xlu0 %1144
    %v1146 = vsel %vm787, %v1014, 0.0
    %1147 = vadd.xlane.f32.xlu0 %v1146
    %v1148 = vpop.xlane.xlu0 %1147
    %v1149 = vsel %vm787, %v1015, 0.0
    %1150 = vadd.xlane.f32.xlu0 %v1149
    %v1151 = vpop.xlane.xlu0 %1150
    %v1152 = vsel %vm787, %v1016, 0.0
    %1153 = vadd.xlane.f32.xlu0 %v1152
    %v1154 = vpop.xlane.xlu0 %1153
    %v1155 = vsel %vm787, %v1017, 0.0
    %1156 = vadd.xlane.f32.xlu0 %v1155
    %v1157 = vpop.xlane.xlu0 %1156
    %v1158 = vsel %vm787, %v1018, 0.0
    %1159 = vadd.xlane.f32.xlu0 %v1158
    %v1160 = vpop.xlane.xlu0 %1159
    %v1161 = vsel %vm787, %v1019, 0.0
    %1162 = vadd.xlane.f32.xlu0 %v1161
    %v1163 = vpop.xlane.xlu0 %1162
    %v1164 = vsel %vm787, %v1020, 0.0
    %1165 = vadd.xlane.f32.xlu0 %v1164
    %v1166 = vpop.xlane.xlu0 %1165
    %v1167 = vsel %vm787, %v1021, 0.0
    %1168 = vadd.xlane.f32.xlu0 %v1167
    %v1169 = vpop.xlane.xlu0 %1168
    %v1170 = vsel %vm787, %v1022, 0.0
    %1171 = vadd.xlane.f32.xlu0 %v1170
    %v1172 = vpop.xlane.xlu0 %1171
    %v1173 = vsel %vm787, %v1023, 0.0
    %1174 = vadd.xlane.f32.xlu0 %v1173
    %v1175 = vpop.xlane.xlu0 %1174
    %v1176 = vsel %vm787, %v1024, 0.0
    %1177 = vadd.xlane.f32.xlu0 %v1176
    %v1178 = vpop.xlane.xlu0 %1177
    %v1179 = vsel %vm787, %v1025, 0.0
    %1180 = vadd.xlane.f32.xlu0 %v1179
    %v1181 = vpop.xlane.xlu0 %1180
    %v1182 = vsel %vm787, %v1026, 0.0
    %1183 = vadd.xlane.f32.xlu0 %v1182
    %v1184 = vpop.xlane.xlu0 %1183
    %v1185 = vsel %vm787, %v1027, 0.0
    %1186 = vadd.xlane.f32.xlu0 %v1185
    %v1187 = vpop.xlane.xlu0 %1186
    %v1188 = vsel %vm787, %v1028, 0.0
    %1189 = vadd.xlane.f32.xlu0 %v1188
    %v1190 = vpop.xlane.xlu0 %1189
    %v1191 = vsel %vm787, %v1029, 0.0
    %1192 = vadd.xlane.f32.xlu0 %v1191
    %v1193 = vpop.xlane.xlu0 %1192
    %v1194 = vsel %vm787, %v1030, 0.0
    %1195 = vadd.xlane.f32.xlu0 %v1194
    %v1196 = vpop.xlane.xlu0 %1195
    %v1197 = vsel %vm787, %v1031, 0.0
    %1198 = vadd.xlane.f32.xlu0 %v1197
    %v1199 = vpop.xlane.xlu0 %1198
    %v1200 = vsel %vm787, %v1032, 0.0
    %1201 = vadd.xlane.f32.xlu0 %v1200
    %v1202 = vpop.xlane.xlu0 %1201
    %v1203 = vsel %vm787, %v1033, 0.0
    %1204 = vadd.xlane.f32.xlu0 %v1203
    %v1205 = vpop.xlane.xlu0 %1204
    %v1206 = vsel %vm787, %v1034, 0.0
    %1207 = vadd.xlane.f32.xlu0 %v1206
    %v1208 = vpop.xlane.xlu0 %1207
    %v1209 = vsel %vm787, %v1035, 0.0
    %1210 = vadd.xlane.f32.xlu0 %v1209
    %v1211 = vpop.xlane.xlu0 %1210
    %v1212 = vsel %vm787, %v1036, 0.0
    %1213 = vadd.xlane.f32.xlu0 %v1212
    %v1214 = vpop.xlane.xlu0 %1213
    %v1215 = vsel %vm787, %v1037, 0.0
    %1216 = vadd.xlane.f32.xlu0 %v1215
    %v1217 = vpop.xlane.xlu0 %1216
    %v1218 = vsel %vm787, %v1038, 0.0
    %1219 = vadd.xlane.f32.xlu0 %v1218
    %v1220 = vpop.xlane.xlu0 %1219
    %v1221 = vsel %vm787, %v1039, 0.0
    %1222 = vadd.xlane.f32.xlu0 %v1221
    %v1223 = vpop.xlane.xlu0 %1222
    %v1224 = vsel %vm787, %v1040, 0.0
    %1225 = vadd.xlane.f32.xlu0 %v1224
    %v1226 = vpop.xlane.xlu0 %1225
    %v1227 = vsel %vm787, %v1041, 0.0
    %1228 = vadd.xlane.f32.xlu0 %v1227
    %v1229 = vpop.xlane.xlu0 %1228
    %v1230 = vsel %vm787, %v1042, 0.0
    %1231 = vadd.xlane.f32.xlu0 %v1230
    %v1232 = vpop.xlane.xlu0 %1231
    %v1233 = vsel %vm787, %v1043, 0.0
    %1234 = vadd.xlane.f32.xlu0 %v1233
    %v1235 = vpop.xlane.xlu0 %1234
    %v1236 = vmul.f32 %v790, 0.015625
    %v1237 = vmul.f32 %v793, 0.015625
    %v1238 = vmul.f32 %v796, 0.015625
    %v1239 = vmul.f32 %v799, 0.015625
    %v1240 = vmul.f32 %v802, 0.015625
    %v1241 = vmul.f32 %v805, 0.015625
    %v1242 = vmul.f32 %v808, 0.015625
    %v1243 = vmul.f32 %v811, 0.015625
    %v1244 = vmul.f32 %v814, 0.015625
    %v1245 = vmul.f32 %v817, 0.015625
    %v1246 = vmul.f32 %v820, 0.015625
    %v1247 = vmul.f32 %v823, 0.015625
    %v1248 = vmul.f32 %v826, 0.015625
    %v1249 = vmul.f32 %v829, 0.015625
    %v1250 = vmul.f32 %v832, 0.015625
    %v1251 = vmul.f32 %v835, 0.015625
    %v1252 = vmul.f32 %v838, 0.015625
    %v1253 = vmul.f32 %v841, 0.015625
    %v1254 = vmul.f32 %v844, 0.015625
    %v1255 = vmul.f32 %v847, 0.015625
    %v1256 = vmul.f32 %v850, 0.015625
    %v1257 = vmul.f32 %v853, 0.015625
    %v1258 = vmul.f32 %v856, 0.015625
    %v1259 = vmul.f32 %v859, 0.015625
    %v1260 = vmul.f32 %v862, 0.015625
    %v1261 = vmul.f32 %v865, 0.015625
    %v1262 = vmul.f32 %v868, 0.015625
    %v1263 = vmul.f32 %v871, 0.015625
    %v1264 = vmul.f32 %v874, 0.015625
    %v1265 = vmul.f32 %v877, 0.015625
    %v1266 = vmul.f32 %v880, 0.015625
    %v1267 = vmul.f32 %v883, 0.015625
    %v1268 = vmul.f32 %v886, 0.015625
    %v1269 = vmul.f32 %v889, 0.015625
    %v1270 = vmul.f32 %v892, 0.015625
    %v1271 = vmul.f32 %v895, 0.015625
    %v1272 = vmul.f32 %v898, 0.015625
    %v1273 = vmul.f32 %v901, 0.015625
    %v1274 = vmul.f32 %v904, 0.015625
    %v1275 = vmul.f32 %v907, 0.015625
    %v1276 = vmul.f32 %v910, 0.015625
    %v1277 = vmul.f32 %v913, 0.015625
    %v1278 = vmul.f32 %v916, 0.015625
    %v1279 = vmul.f32 %v919, 0.015625
    %v1280 = vmul.f32 %v922, 0.015625
    %v1281 = vmul.f32 %v925, 0.015625
    %v1282 = vmul.f32 %v928, 0.015625
    %v1283 = vmul.f32 %v931, 0.015625
    %v1284 = vmul.f32 %v934, 0.015625
    %v1285 = vmul.f32 %v937, 0.015625
    %v1286 = vmul.f32 %v940, 0.015625
    %v1287 = vmul.f32 %v943, 0.015625
    %v1288 = vmul.f32 %v946, 0.015625
    %v1289 = vmul.f32 %v949, 0.015625
    %v1290 = vmul.f32 %v952, 0.015625
    %v1291 = vmul.f32 %v955, 0.015625
    %v1292 = vmul.f32 %v958, 0.015625
    %v1293 = vmul.f32 %v961, 0.015625
    %v1294 = vmul.f32 %v964, 0.015625
    %v1295 = vmul.f32 %v967, 0.015625
    %v1296 = vmul.f32 %v970, 0.015625
    %v1297 = vmul.f32 %v973, 0.015625
    %v1298 = vmul.f32 %v976, 0.015625
    %v1299 = vmul.f32 %v979, 0.015625
    %v1300 = vmul.f32 %v1046, 0.015625
    %v1301 = vmul.f32 %v1049, 0.015625
    %v1302 = vmul.f32 %v1052, 0.015625
    %v1303 = vmul.f32 %v1055, 0.015625
    %v1304 = vmul.f32 %v1058, 0.015625
    %v1305 = vmul.f32 %v1061, 0.015625
    %v1306 = vmul.f32 %v1064, 0.015625
    %v1307 = vmul.f32 %v1067, 0.015625
    %v1308 = vmul.f32 %v1070, 0.015625
    %v1309 = vmul.f32 %v1073, 0.015625
    %v1310 = vmul.f32 %v1076, 0.015625
    %v1311 = vmul.f32 %v1079, 0.015625
    %v1312 = vmul.f32 %v1082, 0.015625
    %v1313 = vmul.f32 %v1085, 0.015625
    %v1314 = vmul.f32 %v1088, 0.015625
    %v1315 = vmul.f32 %v1091, 0.015625
    %v1316 = vmul.f32 %v1094, 0.015625
    %v1317 = vmul.f32 %v1097, 0.015625
    %v1318 = vmul.f32 %v1100, 0.015625
    %v1319 = vmul.f32 %v1103, 0.015625
    %v1320 = vmul.f32 %v1106, 0.015625
    %v1321 = vmul.f32 %v1109, 0.015625
    %v1322 = vmul.f32 %v1112, 0.015625
    %v1323 = vmul.f32 %v1115, 0.015625
    %v1324 = vmul.f32 %v1118, 0.015625
    %v1325 = vmul.f32 %v1121, 0.015625
    %v1326 = vmul.f32 %v1124, 0.015625
    %v1327 = vmul.f32 %v1127, 0.015625
    %v1328 = vmul.f32 %v1130, 0.015625
    %v1329 = vmul.f32 %v1133, 0.015625
    %v1330 = vmul.f32 %v1136, 0.015625
    %v1331 = vmul.f32 %v1139, 0.015625
    %v1332 = vmul.f32 %v1142, 0.015625
    %v1333 = vmul.f32 %v1145, 0.015625
    %v1334 = vmul.f32 %v1148, 0.015625
    %v1335 = vmul.f32 %v1151, 0.015625
    %v1336 = vmul.f32 %v1154, 0.015625
    %v1337 = vmul.f32 %v1157, 0.015625
    %v1338 = vmul.f32 %v1160, 0.015625
    %v1339 = vmul.f32 %v1163, 0.015625
    %v1340 = vmul.f32 %v1166, 0.015625
    %v1341 = vmul.f32 %v1169, 0.015625
    %v1342 = vmul.f32 %v1172, 0.015625
    %v1343 = vmul.f32 %v1175, 0.015625
    %v1344 = vmul.f32 %v1178, 0.015625
    %v1345 = vmul.f32 %v1181, 0.015625
    %v1346 = vmul.f32 %v1184, 0.015625
    %v1347 = vmul.f32 %v1187, 0.015625
    %v1348 = vmul.f32 %v1190, 0.015625
    %v1349 = vmul.f32 %v1193, 0.015625
    %v1350 = vmul.f32 %v1196, 0.015625
    %v1351 = vmul.f32 %v1199, 0.015625
    %v1352 = vmul.f32 %v1202, 0.015625
    %v1353 = vmul.f32 %v1205, 0.015625
    %v1354 = vmul.f32 %v1208, 0.015625
    %v1355 = vmul.f32 %v1211, 0.015625
    %v1356 = vmul.f32 %v1214, 0.015625
    %v1357 = vmul.f32 %v1217, 0.015625
    %v1358 = vmul.f32 %v1220, 0.015625
    %v1359 = vmul.f32 %v1223, 0.015625
    %v1360 = vmul.f32 %v1226, 0.015625
    %v1361 = vmul.f32 %v1229, 0.015625
    %v1362 = vmul.f32 %v1232, 0.015625
    %v1363 = vmul.f32 %v1235, 0.015625
    %v1364 = vmul.f32 %v1236, %v1236
    %v1365 = vmul.f32 %v1237, %v1237
    %v1366 = vmul.f32 %v1238, %v1238
    %v1367 = vmul.f32 %v1239, %v1239
    %v1368 = vmul.f32 %v1240, %v1240
    %v1369 = vmul.f32 %v1241, %v1241
    %v1370 = vmul.f32 %v1242, %v1242
    %v1371 = vmul.f32 %v1243, %v1243
    %v1372 = vmul.f32 %v1244, %v1244
    %v1373 = vmul.f32 %v1245, %v1245
    %v1374 = vmul.f32 %v1246, %v1246
    %v1375 = vmul.f32 %v1247, %v1247
    %v1376 = vmul.f32 %v1248, %v1248
    %v1377 = vmul.f32 %v1249, %v1249
    %v1378 = vmul.f32 %v1250, %v1250
    %v1379 = vmul.f32 %v1251, %v1251
    %v1380 = vmul.f32 %v1252, %v1252
    %v1381 = vmul.f32 %v1253, %v1253
    %v1382 = vmul.f32 %v1254, %v1254
    %v1383 = vmul.f32 %v1255, %v1255
    %v1384 = vmul.f32 %v1256, %v1256
    %v1385 = vmul.f32 %v1257, %v1257
    %v1386 = vmul.f32 %v1258, %v1258
    %v1387 = vmul.f32 %v1259, %v1259
    %v1388 = vmul.f32 %v1260, %v1260
    %v1389 = vmul.f32 %v1261, %v1261
    %v1390 = vmul.f32 %v1262, %v1262
    %v1391 = vmul.f32 %v1263, %v1263
    %v1392 = vmul.f32 %v1264, %v1264
    %v1393 = vmul.f32 %v1265, %v1265
    %v1394 = vmul.f32 %v1266, %v1266
    %v1395 = vmul.f32 %v1267, %v1267
    %v1396 = vmul.f32 %v1268, %v1268
    %v1397 = vmul.f32 %v1269, %v1269
    %v1398 = vmul.f32 %v1270, %v1270
    %v1399 = vmul.f32 %v1271, %v1271
    %v1400 = vmul.f32 %v1272, %v1272
    %v1401 = vmul.f32 %v1273, %v1273
    %v1402 = vmul.f32 %v1274, %v1274
    %v1403 = vmul.f32 %v1275, %v1275
    %v1404 = vmul.f32 %v1276, %v1276
    %v1405 = vmul.f32 %v1277, %v1277
    %v1406 = vmul.f32 %v1278, %v1278
    %v1407 = vmul.f32 %v1279, %v1279
    %v1408 = vmul.f32 %v1280, %v1280
    %v1409 = vmul.f32 %v1281, %v1281
    %v1410 = vmul.f32 %v1282, %v1282
    %v1411 = vmul.f32 %v1283, %v1283
    %v1412 = vmul.f32 %v1284, %v1284
    %v1413 = vmul.f32 %v1285, %v1285
    %v1414 = vmul.f32 %v1286, %v1286
    %v1415 = vmul.f32 %v1287, %v1287
    %v1416 = vmul.f32 %v1288, %v1288
    %v1417 = vmul.f32 %v1289, %v1289
    %v1418 = vmul.f32 %v1290, %v1290
    %v1419 = vmul.f32 %v1291, %v1291
    %v1420 = vmul.f32 %v1292, %v1292
    %v1421 = vmul.f32 %v1293, %v1293
    %v1422 = vmul.f32 %v1294, %v1294
    %v1423 = vmul.f32 %v1295, %v1295
    %v1424 = vmul.f32 %v1296, %v1296
    %v1425 = vmul.f32 %v1297, %v1297
    %v1426 = vmul.f32 %v1298, %v1298
    %v1427 = vmul.f32 %v1299, %v1299
    %v1428 = vsub.f32 %v1300, %v1364
    %v1429 = vsub.f32 %v1301, %v1365
    %v1430 = vsub.f32 %v1302, %v1366
    %v1431 = vsub.f32 %v1303, %v1367
    %v1432 = vsub.f32 %v1304, %v1368
    %v1433 = vsub.f32 %v1305, %v1369
    %v1434 = vsub.f32 %v1306, %v1370
    %v1435 = vsub.f32 %v1307, %v1371
    %v1436 = vsub.f32 %v1308, %v1372
    %v1437 = vsub.f32 %v1309, %v1373
    %v1438 = vsub.f32 %v1310, %v1374
    %v1439 = vsub.f32 %v1311, %v1375
    %v1440 = vsub.f32 %v1312, %v1376
    %v1441 = vsub.f32 %v1313, %v1377
    %v1442 = vsub.f32 %v1314, %v1378
    %v1443 = vsub.f32 %v1315, %v1379
    %v1444 = vsub.f32 %v1316, %v1380
    %v1445 = vsub.f32 %v1317, %v1381
    %v1446 = vsub.f32 %v1318, %v1382
    %v1447 = vsub.f32 %v1319, %v1383
    %v1448 = vsub.f32 %v1320, %v1384
    %v1449 = vsub.f32 %v1321, %v1385
    %v1450 = vsub.f32 %v1322, %v1386
    %v1451 = vsub.f32 %v1323, %v1387
    %v1452 = vsub.f32 %v1324, %v1388
    %v1453 = vsub.f32 %v1325, %v1389
    %v1454 = vsub.f32 %v1326, %v1390
    %v1455 = vsub.f32 %v1327, %v1391
    %v1456 = vsub.f32 %v1328, %v1392
    %v1457 = vsub.f32 %v1329, %v1393
    %v1458 = vsub.f32 %v1330, %v1394
    %v1459 = vsub.f32 %v1331, %v1395
    %v1460 = vsub.f32 %v1332, %v1396
    %v1461 = vsub.f32 %v1333, %v1397
    %v1462 = vsub.f32 %v1334, %v1398
    %v1463 = vsub.f32 %v1335, %v1399
    %v1464 = vsub.f32 %v1336, %v1400
    %v1465 = vsub.f32 %v1337, %v1401
    %v1466 = vsub.f32 %v1338, %v1402
    %v1467 = vsub.f32 %v1339, %v1403
    %v1468 = vsub.f32 %v1340, %v1404
    %v1469 = vsub.f32 %v1341, %v1405
    %v1470 = vsub.f32 %v1342, %v1406
    %v1471 = vsub.f32 %v1343, %v1407
    %v1472 = vsub.f32 %v1344, %v1408
    %v1473 = vsub.f32 %v1345, %v1409
    %v1474 = vsub.f32 %v1346, %v1410
    %v1475 = vsub.f32 %v1347, %v1411
    %v1476 = vsub.f32 %v1348, %v1412
    %v1477 = vsub.f32 %v1349, %v1413
    %v1478 = vsub.f32 %v1350, %v1414
    %v1479 = vsub.f32 %v1351, %v1415
    %v1480 = vsub.f32 %v1352, %v1416
    %v1481 = vsub.f32 %v1353, %v1417
    %v1482 = vsub.f32 %v1354, %v1418
    %v1483 = vsub.f32 %v1355, %v1419
    %v1484 = vsub.f32 %v1356, %v1420
    %v1485 = vsub.f32 %v1357, %v1421
    %v1486 = vsub.f32 %v1358, %v1422
    %v1487 = vsub.f32 %v1359, %v1423
    %v1488 = vsub.f32 %v1360, %v1424
    %v1489 = vsub.f32 %v1361, %v1425
    %v1490 = vsub.f32 %v1362, %v1426
    %v1491 = vsub.f32 %v1363, %v1427
    %v1492 = vsub.f32 %v469, %v1236
    %v1493 = vsub.f32 %v474, %v1237
    %v1494 = vsub.f32 %v479, %v1238
    %v1495 = vsub.f32 %v484, %v1239
    %v1496 = vsub.f32 %v489, %v1240
    %v1497 = vsub.f32 %v494, %v1241
    %v1498 = vsub.f32 %v499, %v1242
    %v1499 = vsub.f32 %v504, %v1243
    %v1500 = vsub.f32 %v509, %v1244
    %v1501 = vsub.f32 %v514, %v1245
    %v1502 = vsub.f32 %v519, %v1246
    %v1503 = vsub.f32 %v524, %v1247
    %v1504 = vsub.f32 %v529, %v1248
    %v1505 = vsub.f32 %v534, %v1249
    %v1506 = vsub.f32 %v539, %v1250
    %v1507 = vsub.f32 %v544, %v1251
    %v1508 = vsub.f32 %v549, %v1252
    %v1509 = vsub.f32 %v554, %v1253
    %v1510 = vsub.f32 %v559, %v1254
    %v1511 = vsub.f32 %v564, %v1255
    %v1512 = vsub.f32 %v569, %v1256
    %v1513 = vsub.f32 %v574, %v1257
    %v1514 = vsub.f32 %v579, %v1258
    %v1515 = vsub.f32 %v584, %v1259
    %v1516 = vsub.f32 %v589, %v1260
    %v1517 = vsub.f32 %v594, %v1261
    %v1518 = vsub.f32 %v599, %v1262
    %v1519 = vsub.f32 %v604, %v1263
    %v1520 = vsub.f32 %v609, %v1264
    %v1521 = vsub.f32 %v614, %v1265
    %v1522 = vsub.f32 %v619, %v1266
    %v1523 = vsub.f32 %v624, %v1267
    %v1524 = vsub.f32 %v629, %v1268
    %v1525 = vsub.f32 %v634, %v1269
    %v1526 = vsub.f32 %v639, %v1270
    %v1527 = vsub.f32 %v644, %v1271
    %v1528 = vsub.f32 %v649, %v1272
    %v1529 = vsub.f32 %v654, %v1273
    %v1530 = vsub.f32 %v659, %v1274
    %v1531 = vsub.f32 %v664, %v1275
    %v1532 = vsub.f32 %v669, %v1276
    %v1533 = vsub.f32 %v674, %v1277
    %v1534 = vsub.f32 %v679, %v1278
    %v1535 = vsub.f32 %v684, %v1279
    %v1536 = vsub.f32 %v689, %v1280
    %v1537 = vsub.f32 %v694, %v1281
    %v1538 = vsub.f32 %v699, %v1282
    %v1539 = vsub.f32 %v704, %v1283
    %v1540 = vsub.f32 %v709, %v1284
    %v1541 = vsub.f32 %v714, %v1285
    %v1542 = vsub.f32 %v719, %v1286
    %v1543 = vsub.f32 %v724, %v1287
    %v1544 = vsub.f32 %v729, %v1288
    %v1545 = vsub.f32 %v734, %v1289
    %v1546 = vsub.f32 %v739, %v1290
    %v1547 = vsub.f32 %v744, %v1291
    %v1548 = vsub.f32 %v749, %v1292
    %v1549 = vsub.f32 %v754, %v1293
    %v1550 = vsub.f32 %v759, %v1294
    %v1551 = vsub.f32 %v764, %v1295
    %v1552 = vsub.f32 %v769, %v1296
    %v1553 = vsub.f32 %v774, %v1297
    %v1554 = vsub.f32 %v779, %v1298
    %v1555 = vsub.f32 %v784, %v1299
    %v1556 = vadd.f32 %v1428, 1e-05
    %v1557 = vadd.f32 %v1429, 1e-05
    %v1558 = vadd.f32 %v1430, 1e-05
    %v1559 = vadd.f32 %v1431, 1e-05
    %v1560 = vadd.f32 %v1432, 1e-05
    %v1561 = vadd.f32 %v1433, 1e-05
    %v1562 = vadd.f32 %v1434, 1e-05
    %v1563 = vadd.f32 %v1435, 1e-05
    %v1564 = vadd.f32 %v1436, 1e-05
    %v1565 = vadd.f32 %v1437, 1e-05
    %v1566 = vadd.f32 %v1438, 1e-05
    %v1567 = vadd.f32 %v1439, 1e-05
    %v1568 = vadd.f32 %v1440, 1e-05
    %v1569 = vadd.f32 %v1441, 1e-05
    %v1570 = vadd.f32 %v1442, 1e-05
    %v1571 = vadd.f32 %v1443, 1e-05
    %v1572 = vadd.f32 %v1444, 1e-05
    %v1573 = vadd.f32 %v1445, 1e-05
    %v1574 = vadd.f32 %v1446, 1e-05
    %v1575 = vadd.f32 %v1447, 1e-05
    %v1576 = vadd.f32 %v1448, 1e-05
    %v1577 = vadd.f32 %v1449, 1e-05
    %v1578 = vadd.f32 %v1450, 1e-05
    %v1579 = vadd.f32 %v1451, 1e-05
    %v1580 = vadd.f32 %v1452, 1e-05
    %v1581 = vadd.f32 %v1453, 1e-05
    %v1582 = vadd.f32 %v1454, 1e-05
    %v1583 = vadd.f32 %v1455, 1e-05
    %v1584 = vadd.f32 %v1456, 1e-05
    %v1585 = vadd.f32 %v1457, 1e-05
    %v1586 = vadd.f32 %v1458, 1e-05
    %v1587 = vadd.f32 %v1459, 1e-05
    %v1588 = vadd.f32 %v1460, 1e-05
    %v1589 = vadd.f32 %v1461, 1e-05
    %v1590 = vadd.f32 %v1462, 1e-05
    %v1591 = vadd.f32 %v1463, 1e-05
    %v1592 = vadd.f32 %v1464, 1e-05
    %v1593 = vadd.f32 %v1465, 1e-05
    %v1594 = vadd.f32 %v1466, 1e-05
    %v1595 = vadd.f32 %v1467, 1e-05
    %v1596 = vadd.f32 %v1468, 1e-05
    %v1597 = vadd.f32 %v1469, 1e-05
    %v1598 = vadd.f32 %v1470, 1e-05
    %v1599 = vadd.f32 %v1471, 1e-05
    %v1600 = vadd.f32 %v1472, 1e-05
    %v1601 = vadd.f32 %v1473, 1e-05
    %v1602 = vadd.f32 %v1474, 1e-05
    %v1603 = vadd.f32 %v1475, 1e-05
    %v1604 = vadd.f32 %v1476, 1e-05
    %v1605 = vadd.f32 %v1477, 1e-05
    %v1606 = vadd.f32 %v1478, 1e-05
    %v1607 = vadd.f32 %v1479, 1e-05
    %v1608 = vadd.f32 %v1480, 1e-05
    %v1609 = vadd.f32 %v1481, 1e-05
    %v1610 = vadd.f32 %v1482, 1e-05
    %v1611 = vadd.f32 %v1483, 1e-05
    %v1612 = vadd.f32 %v1484, 1e-05
    %v1613 = vadd.f32 %v1485, 1e-05
    %v1614 = vadd.f32 %v1486, 1e-05
    %v1615 = vadd.f32 %v1487, 1e-05
    %v1616 = vadd.f32 %v1488, 1e-05
    %v1617 = vadd.f32 %v1489, 1e-05
    %v1618 = vadd.f32 %v1490, 1e-05
    %v1619 = vadd.f32 %v1491, 1e-05
    %v1620 = vrsqrt.pop %v1556
    %v1621 = vrsqrt.pop %v1557
    %v1622 = vrsqrt.pop %v1558
    %v1623 = vrsqrt.pop %v1559
    %v1624 = vrsqrt.pop %v1560
    %v1625 = vrsqrt.pop %v1561
    %v1626 = vrsqrt.pop %v1562
    %v1627 = vrsqrt.pop %v1563
    %v1628 = vrsqrt.pop %v1564
    %v1629 = vrsqrt.pop %v1565
    %v1630 = vrsqrt.pop %v1566
    %v1631 = vrsqrt.pop %v1567
    %v1632 = vrsqrt.pop %v1568
    %v1633 = vrsqrt.pop %v1569
    %v1634 = vrsqrt.pop %v1570
    %v1635 = vrsqrt.pop %v1571
    %v1636 = vrsqrt.pop %v1572
    %v1637 = vrsqrt.pop %v1573
    %v1638 = vrsqrt.pop %v1574
    %v1639 = vrsqrt.pop %v1575
    %v1640 = vrsqrt.pop %v1576
    %v1641 = vrsqrt.pop %v1577
    %v1642 = vrsqrt.pop %v1578
    %v1643 = vrsqrt.pop %v1579
    %v1644 = vrsqrt.pop %v1580
    %v1645 = vrsqrt.pop %v1581
    %v1646 = vrsqrt.pop %v1582
    %v1647 = vrsqrt.pop %v1583
    %v1648 = vrsqrt.pop %v1584
    %v1649 = vrsqrt.pop %v1585
    %v1650 = vrsqrt.pop %v1586
    %v1651 = vrsqrt.pop %v1587
    %v1652 = vrsqrt.pop %v1588
    %v1653 = vrsqrt.pop %v1589
    %v1654 = vrsqrt.pop %v1590
    %v1655 = vrsqrt.pop %v1591
    %v1656 = vrsqrt.pop %v1592
    %v1657 = vrsqrt.pop %v1593
    %v1658 = vrsqrt.pop %v1594
    %v1659 = vrsqrt.pop %v1595
    %v1660 = vrsqrt.pop %v1596
    %v1661 = vrsqrt.pop %v1597
    %v1662 = vrsqrt.pop %v1598
    %v1663 = vrsqrt.pop %v1599
    %v1664 = vrsqrt.pop %v1600
    %v1665 = vrsqrt.pop %v1601
    %v1666 = vrsqrt.pop %v1602
    %v1667 = vrsqrt.pop %v1603
    %v1668 = vrsqrt.pop %v1604
    %v1669 = vrsqrt.pop %v1605
    %v1670 = vrsqrt.pop %v1606
    %v1671 = vrsqrt.pop %v1607
    %v1672 = vrsqrt.pop %v1608
    %v1673 = vrsqrt.pop %v1609
    %v1674 = vrsqrt.pop %v1610
    %v1675 = vrsqrt.pop %v1611
    %v1676 = vrsqrt.pop %v1612
    %v1677 = vrsqrt.pop %v1613
    %v1678 = vrsqrt.pop %v1614
    %v1679 = vrsqrt.pop %v1615
    %v1680 = vrsqrt.pop %v1616
    %v1681 = vrsqrt.pop %v1617
    %v1682 = vrsqrt.pop %v1618
    %v1683 = vrsqrt.pop %v1619
    %v1684 = vmul.f32 %v1492, %v1620
    %v1685 = vmul.f32 %v1493, %v1621
    %v1686 = vmul.f32 %v1494, %v1622
    %v1687 = vmul.f32 %v1495, %v1623
    %v1688 = vmul.f32 %v1496, %v1624
    %v1689 = vmul.f32 %v1497, %v1625
    %v1690 = vmul.f32 %v1498, %v1626
    %v1691 = vmul.f32 %v1499, %v1627
    %v1692 = vmul.f32 %v1500, %v1628
    %v1693 = vmul.f32 %v1501, %v1629
    %v1694 = vmul.f32 %v1502, %v1630
    %v1695 = vmul.f32 %v1503, %v1631
    %v1696 = vmul.f32 %v1504, %v1632
    %v1697 = vmul.f32 %v1505, %v1633
    %v1698 = vmul.f32 %v1506, %v1634
    %v1699 = vmul.f32 %v1507, %v1635
    %v1700 = vmul.f32 %v1508, %v1636
    %v1701 = vmul.f32 %v1509, %v1637
    %v1702 = vmul.f32 %v1510, %v1638
    %v1703 = vmul.f32 %v1511, %v1639
    %v1704 = vmul.f32 %v1512, %v1640
    %v1705 = vmul.f32 %v1513, %v1641
    %v1706 = vmul.f32 %v1514, %v1642
    %v1707 = vmul.f32 %v1515, %v1643
    %v1708 = vmul.f32 %v1516, %v1644
    %v1709 = vmul.f32 %v1517, %v1645
    %v1710 = vmul.f32 %v1518, %v1646
    %v1711 = vmul.f32 %v1519, %v1647
    %v1712 = vmul.f32 %v1520, %v1648
    %v1713 = vmul.f32 %v1521, %v1649
    %v1714 = vmul.f32 %v1522, %v1650
    %v1715 = vmul.f32 %v1523, %v1651
    %v1716 = vmul.f32 %v1524, %v1652
    %v1717 = vmul.f32 %v1525, %v1653
    %v1718 = vmul.f32 %v1526, %v1654
    %v1719 = vmul.f32 %v1527, %v1655
    %v1720 = vmul.f32 %v1528, %v1656
    %v1721 = vmul.f32 %v1529, %v1657
    %v1722 = vmul.f32 %v1530, %v1658
    %v1723 = vmul.f32 %v1531, %v1659
    %v1724 = vmul.f32 %v1532, %v1660
    %v1725 = vmul.f32 %v1533, %v1661
    %v1726 = vmul.f32 %v1534, %v1662
    %v1727 = vmul.f32 %v1535, %v1663
    %v1728 = vmul.f32 %v1536, %v1664
    %v1729 = vmul.f32 %v1537, %v1665
    %v1730 = vmul.f32 %v1538, %v1666
    %v1731 = vmul.f32 %v1539, %v1667
    %v1732 = vmul.f32 %v1540, %v1668
    %v1733 = vmul.f32 %v1541, %v1669
    %v1734 = vmul.f32 %v1542, %v1670
    %v1735 = vmul.f32 %v1543, %v1671
    %v1736 = vmul.f32 %v1544, %v1672
    %v1737 = vmul.f32 %v1545, %v1673
    %v1738 = vmul.f32 %v1546, %v1674
    %v1739 = vmul.f32 %v1547, %v1675
    %v1740 = vmul.f32 %v1548, %v1676
    %v1741 = vmul.f32 %v1549, %v1677
    %v1742 = vmul.f32 %v1550, %v1678
    %v1743 = vmul.f32 %v1551, %v1679
    %v1744 = vmul.f32 %v1552, %v1680
    %v1745 = vmul.f32 %v1553, %v1681
    %v1746 = vmul.f32 %v1554, %v1682
    %v1747 = vmul.f32 %v1555, %v1683
    %v1748 = vld [vmem:[%s4] sm:$0x1]
    %v1750 = vlaneseq
    %v1751 = vshrl.u32 %v1750, 7
    %v1752 = vsub.s32 0, %v1751
    %v1753 = vrot.slane %v1748, %v1752
    %v1755 = vmul.f32 %v1684, %v1753
    %v1756 = vmul.f32 %v1685, %v1753
    %v1757 = vmul.f32 %v1686, %v1753
    %v1758 = vmul.f32 %v1687, %v1753
    %v1759 = vmul.f32 %v1688, %v1753
    %v1760 = vmul.f32 %v1689, %v1753
    %v1761 = vmul.f32 %v1690, %v1753
    %v1762 = vmul.f32 %v1691, %v1753
    %v1763 = vmul.f32 %v1692, %v1753
    %v1764 = vmul.f32 %v1693, %v1753
    %v1765 = vmul.f32 %v1694, %v1753
    %v1766 = vmul.f32 %v1695, %v1753
    %v1767 = vmul.f32 %v1696, %v1753
    %v1768 = vmul.f32 %v1697, %v1753
    %v1769 = vmul.f32 %v1698, %v1753
    %v1770 = vmul.f32 %v1699, %v1753
    %v1771 = vmul.f32 %v1700, %v1753
    %v1772 = vmul.f32 %v1701, %v1753
    %v1773 = vmul.f32 %v1702, %v1753
    %v1774 = vmul.f32 %v1703, %v1753
    %v1775 = vmul.f32 %v1704, %v1753
    %v1776 = vmul.f32 %v1705, %v1753
    %v1777 = vmul.f32 %v1706, %v1753
    %v1778 = vmul.f32 %v1707, %v1753
    %v1779 = vmul.f32 %v1708, %v1753
    %v1780 = vmul.f32 %v1709, %v1753
    %v1781 = vmul.f32 %v1710, %v1753
    %v1782 = vmul.f32 %v1711, %v1753
    %v1783 = vmul.f32 %v1712, %v1753
    %v1784 = vmul.f32 %v1713, %v1753
    %v1785 = vmul.f32 %v1714, %v1753
    %v1786 = vmul.f32 %v1715, %v1753
    %v1787 = vmul.f32 %v1716, %v1753
    %v1788 = vmul.f32 %v1717, %v1753
    %v1789 = vmul.f32 %v1718, %v1753
    %v1790 = vmul.f32 %v1719, %v1753
    %v1791 = vmul.f32 %v1720, %v1753
    %v1792 = vmul.f32 %v1721, %v1753
    %v1793 = vmul.f32 %v1722, %v1753
    %v1794 = vmul.f32 %v1723, %v1753
    %v1795 = vmul.f32 %v1724, %v1753
    %v1796 = vmul.f32 %v1725, %v1753
    %v1797 = vmul.f32 %v1726, %v1753
    %v1798 = vmul.f32 %v1727, %v1753
    %v1799 = vmul.f32 %v1728, %v1753
    %v1800 = vmul.f32 %v1729, %v1753
    %v1801 = vmul.f32 %v1730, %v1753
    %v1802 = vmul.f32 %v1731, %v1753
    %v1803 = vmul.f32 %v1732, %v1753
    %v1804 = vmul.f32 %v1733, %v1753
    %v1805 = vmul.f32 %v1734, %v1753
    %v1806 = vmul.f32 %v1735, %v1753
    %v1807 = vmul.f32 %v1736, %v1753
    %v1808 = vmul.f32 %v1737, %v1753
    %v1809 = vmul.f32 %v1738, %v1753
    %v1810 = vmul.f32 %v1739, %v1753
    %v1811 = vmul.f32 %v1740, %v1753
    %v1812 = vmul.f32 %v1741, %v1753
    %v1813 = vmul.f32 %v1742, %v1753
    %v1814 = vmul.f32 %v1743, %v1753
    %v1815 = vmul.f32 %v1744, %v1753
    %v1816 = vmul.f32 %v1745, %v1753
    %v1817 = vmul.f32 %v1746, %v1753
    %v1818 = vmul.f32 %v1747, %v1753
    %v1819 = vld [vmem:[%s5] sm:$0x1]
    %v1821 = vlaneseq
    %v1822 = vshrl.u32 %v1821, 7
    %v1823 = vsub.s32 0, %v1822
    %v1824 = vrot.slane %v1819, %v1823
    %v1826 = vadd.f32 %v1755, %v1824
    %v1827 = vadd.f32 %v1756, %v1824
    %v1828 = vadd.f32 %v1757, %v1824
    %v1829 = vadd.f32 %v1758, %v1824
    %v1830 = vadd.f32 %v1759, %v1824
    %v1831 = vadd.f32 %v1760, %v1824
    %v1832 = vadd.f32 %v1761, %v1824
    %v1833 = vadd.f32 %v1762, %v1824
    %v1834 = vadd.f32 %v1763, %v1824
    %v1835 = vadd.f32 %v1764, %v1824
    %v1836 = vadd.f32 %v1765, %v1824
    %v1837 = vadd.f32 %v1766, %v1824
    %v1838 = vadd.f32 %v1767, %v1824
    %v1839 = vadd.f32 %v1768, %v1824
    %v1840 = vadd.f32 %v1769, %v1824
    %v1841 = vadd.f32 %v1770, %v1824
    %v1842 = vadd.f32 %v1771, %v1824
    %v1843 = vadd.f32 %v1772, %v1824
    %v1844 = vadd.f32 %v1773, %v1824
    %v1845 = vadd.f32 %v1774, %v1824
    %v1846 = vadd.f32 %v1775, %v1824
    %v1847 = vadd.f32 %v1776, %v1824
    %v1848 = vadd.f32 %v1777, %v1824
    %v1849 = vadd.f32 %v1778, %v1824
    %v1850 = vadd.f32 %v1779, %v1824
    %v1851 = vadd.f32 %v1780, %v1824
    %v1852 = vadd.f32 %v1781, %v1824
    %v1853 = vadd.f32 %v1782, %v1824
    %v1854 = vadd.f32 %v1783, %v1824
    %v1855 = vadd.f32 %v1784, %v1824
    %v1856 = vadd.f32 %v1785, %v1824
    %v1857 = vadd.f32 %v1786, %v1824
    %v1858 = vadd.f32 %v1787, %v1824
    %v1859 = vadd.f32 %v1788, %v1824
    %v1860 = vadd.f32 %v1789, %v1824
    %v1861 = vadd.f32 %v1790, %v1824
    %v1862 = vadd.f32 %v1791, %v1824
    %v1863 = vadd.f32 %v1792, %v1824
    %v1864 = vadd.f32 %v1793, %v1824
    %v1865 = vadd.f32 %v1794, %v1824
    %v1866 = vadd.f32 %v1795, %v1824
    %v1867 = vadd.f32 %v1796, %v1824
    %v1868 = vadd.f32 %v1797, %v1824
    %v1869 = vadd.f32 %v1798, %v1824
    %v1870 = vadd.f32 %v1799, %v1824
    %v1871 = vadd.f32 %v1800, %v1824
    %v1872 = vadd.f32 %v1801, %v1824
    %v1873 = vadd.f32 %v1802, %v1824
    %v1874 = vadd.f32 %v1803, %v1824
    %v1875 = vadd.f32 %v1804, %v1824
    %v1876 = vadd.f32 %v1805, %v1824
    %v1877 = vadd.f32 %v1806, %v1824
    %v1878 = vadd.f32 %v1807, %v1824
    %v1879 = vadd.f32 %v1808, %v1824
    %v1880 = vadd.f32 %v1809, %v1824
    %v1881 = vadd.f32 %v1810, %v1824
    %v1882 = vadd.f32 %v1811, %v1824
    %v1883 = vadd.f32 %v1812, %v1824
    %v1884 = vadd.f32 %v1813, %v1824
    %v1885 = vadd.f32 %v1814, %v1824
    %v1886 = vadd.f32 %v1815, %v1824
    %v1887 = vadd.f32 %v1816, %v1824
    %v1888 = vadd.f32 %v1817, %v1824
    %v1889 = vadd.f32 %v1818, %v1824
    %v1890 = vmax.f32 %v1826, 0.0
    %v1891 = vmax.f32 %v1827, 0.0
    %v1892 = vmax.f32 %v1828, 0.0
    %v1893 = vmax.f32 %v1829, 0.0
    %v1894 = vmax.f32 %v1830, 0.0
    %v1895 = vmax.f32 %v1831, 0.0
    %v1896 = vmax.f32 %v1832, 0.0
    %v1897 = vmax.f32 %v1833, 0.0
    %v1898 = vmax.f32 %v1834, 0.0
    %v1899 = vmax.f32 %v1835, 0.0
    %v1900 = vmax.f32 %v1836, 0.0
    %v1901 = vmax.f32 %v1837, 0.0
    %v1902 = vmax.f32 %v1838, 0.0
    %v1903 = vmax.f32 %v1839, 0.0
    %v1904 = vmax.f32 %v1840, 0.0
    %v1905 = vmax.f32 %v1841, 0.0
    %v1906 = vmax.f32 %v1842, 0.0
    %v1907 = vmax.f32 %v1843, 0.0
    %v1908 = vmax.f32 %v1844, 0.0
    %v1909 = vmax.f32 %v1845, 0.0
    %v1910 = vmax.f32 %v1846, 0.0
    %v1911 = vmax.f32 %v1847, 0.0
    %v1912 = vmax.f32 %v1848, 0.0
    %v1913 = vmax.f32 %v1849, 0.0
    %v1914 = vmax.f32 %v1850, 0.0
    %v1915 = vmax.f32 %v1851, 0.0
    %v1916 = vmax.f32 %v1852, 0.0
    %v1917 = vmax.f32 %v1853, 0.0
    %v1918 = vmax.f32 %v1854, 0.0
    %v1919 = vmax.f32 %v1855, 0.0
    %v1920 = vmax.f32 %v1856, 0.0
    %v1921 = vmax.f32 %v1857, 0.0
    %v1922 = vmax.f32 %v1858, 0.0
    %v1923 = vmax.f32 %v1859, 0.0
    %v1924 = vmax.f32 %v1860, 0.0
    %v1925 = vmax.f32 %v1861, 0.0
    %v1926 = vmax.f32 %v1862, 0.0
    %v1927 = vmax.f32 %v1863, 0.0
    %v1928 = vmax.f32 %v1864, 0.0
    %v1929 = vmax.f32 %v1865, 0.0
    %v1930 = vmax.f32 %v1866, 0.0
    %v1931 = vmax.f32 %v1867, 0.0
    %v1932 = vmax.f32 %v1868, 0.0
    %v1933 = vmax.f32 %v1869, 0.0
    %v1934 = vmax.f32 %v1870, 0.0
    %v1935 = vmax.f32 %v1871, 0.0
    %v1936 = vmax.f32 %v1872, 0.0
    %v1937 = vmax.f32 %v1873, 0.0
    %v1938 = vmax.f32 %v1874, 0.0
    %v1939 = vmax.f32 %v1875, 0.0
    %v1940 = vmax.f32 %v1876, 0.0
    %v1941 = vmax.f32 %v1877, 0.0
    %v1942 = vmax.f32 %v1878, 0.0
    %v1943 = vmax.f32 %v1879, 0.0
    %v1944 = vmax.f32 %v1880, 0.0
    %v1945 = vmax.f32 %v1881, 0.0
    %v1946 = vmax.f32 %v1882, 0.0
    %v1947 = vmax.f32 %v1883, 0.0
    %v1948 = vmax.f32 %v1884, 0.0
    %v1949 = vmax.f32 %v1885, 0.0
    %v1950 = vmax.f32 %v1886, 0.0
    %v1951 = vmax.f32 %v1887, 0.0
    %v1952 = vmax.f32 %v1888, 0.0
    %v1953 = vmax.f32 %v1889, 0.0
    %v1954 = vld [vmem:[%s6] sm:$0xff]
    %v1955 = vld [vmem:[%s6 + $0x8] sm:$0xff]
    %v1956 = vld [vmem:[%s6 + $0x10] sm:$0xff]
    %v1957 = vld [vmem:[%s6 + $0x18] sm:$0xff]
    %v1958 = vld [vmem:[%s6 + $0x20] sm:$0xff]
    %v1959 = vld [vmem:[%s6 + $0x28] sm:$0xff]
    %v1960 = vld [vmem:[%s6 + $0x30] sm:$0xff]
    %v1961 = vld [vmem:[%s6 + $0x38] sm:$0xff]
    %v1962 = vld [vmem:[%s7] sm:$0x1]
    %v1964 = vlaneseq
    %v1965 = vshrl.u32 %v1964, 7
    %v1966 = vsub.s32 0, %v1965
    %v1967 = vrot.slane %v1962, %v1966
    %v1970 = vsel %vm787, %v1890, 0
    %v1973 = vsel %vm787, %v1891, 0
    %v1976 = vsel %vm787, %v1892, 0
    %v1979 = vsel %vm787, %v1893, 0
    %v1982 = vsel %vm787, %v1894, 0
    %v1985 = vsel %vm787, %v1895, 0
    %v1988 = vsel %vm787, %v1896, 0
    %v1991 = vsel %vm787, %v1897, 0
    %v1994 = vsel %vm787, %v1898, 0
    %v1997 = vsel %vm787, %v1899, 0
    %v2000 = vsel %vm787, %v1900, 0
    %v2003 = vsel %vm787, %v1901, 0
    %v2006 = vsel %vm787, %v1902, 0
    %v2009 = vsel %vm787, %v1903, 0
    %v2012 = vsel %vm787, %v1904, 0
    %v2015 = vsel %vm787, %v1905, 0
    %v2018 = vsel %vm787, %v1906, 0
    %v2021 = vsel %vm787, %v1907, 0
    %v2024 = vsel %vm787, %v1908, 0
    %v2027 = vsel %vm787, %v1909, 0
    %v2030 = vsel %vm787, %v1910, 0
    %v2033 = vsel %vm787, %v1911, 0
    %v2036 = vsel %vm787, %v1912, 0
    %v2039 = vsel %vm787, %v1913, 0
    %v2042 = vsel %vm787, %v1914, 0
    %v2045 = vsel %vm787, %v1915, 0
    %v2048 = vsel %vm787, %v1916, 0
    %v2051 = vsel %vm787, %v1917, 0
    %v2054 = vsel %vm787, %v1918, 0
    %v2057 = vsel %vm787, %v1919, 0
    %v2060 = vsel %vm787, %v1920, 0
    %v2063 = vsel %vm787, %v1921, 0
    %v2066 = vsel %vm787, %v1922, 0
    %v2069 = vsel %vm787, %v1923, 0
    %v2072 = vsel %vm787, %v1924, 0
    %v2075 = vsel %vm787, %v1925, 0
    %v2078 = vsel %vm787, %v1926, 0
    %v2081 = vsel %vm787, %v1927, 0
    %v2084 = vsel %vm787, %v1928, 0
    %v2087 = vsel %vm787, %v1929, 0
    %v2090 = vsel %vm787, %v1930, 0
    %v2093 = vsel %vm787, %v1931, 0
    %v2096 = vsel %vm787, %v1932, 0
    %v2099 = vsel %vm787, %v1933, 0
    %v2102 = vsel %vm787, %v1934, 0
    %v2105 = vsel %vm787, %v1935, 0
    %v2108 = vsel %vm787, %v1936, 0
    %v2111 = vsel %vm787, %v1937, 0
    %v2114 = vsel %vm787, %v1938, 0
    %v2117 = vsel %vm787, %v1939, 0
    %v2120 = vsel %vm787, %v1940, 0
    %v2123 = vsel %vm787, %v1941, 0
    %v2126 = vsel %vm787, %v1942, 0
    %v2129 = vsel %vm787, %v1943, 0
    %v2132 = vsel %vm787, %v1944, 0
    %v2135 = vsel %vm787, %v1945, 0
    %v2138 = vsel %vm787, %v1946, 0
    %v2141 = vsel %vm787, %v1947, 0
    %v2144 = vsel %vm787, %v1948, 0
    %v2147 = vsel %vm787, %v1949, 0
    %v2150 = vsel %vm787, %v1950, 0
    %v2153 = vsel %vm787, %v1951, 0
    %v2156 = vsel %vm787, %v1952, 0
    %v2159 = vsel %vm787, %v1953, 0
    %2161 = vmatprep.subr.mxu0 0.0
    %2162 = vmatpush1.msra.mxu0 %v1954
    %2163 = vmatprep.subr.mxu0 0.0
    %2164 = vmatpush1.msra.mxu0 %v1955
    %2165 = vmatprep.subr.mxu0 0.0
    %2166 = vmatpush1.msra.mxu0 %v1956
    %2167 = vmatprep.subr.mxu0 0.0
    %2168 = vmatpush1.msra.mxu0 %v1957
    %2169 = vmatprep.subr.mxu0 0.0
    %2170 = vmatpush1.msra.mxu0 %v1958
    %2171 = vmatprep.subr.mxu0 0.0
    %2172 = vmatpush1.msra.mxu0 %v1959
    %2173 = vmatprep.subr.mxu0 0.0
    %2174 = vmatpush1.msra.mxu0 %v1960
    %2175 = vmatprep.subr.mxu0 0.0
    %2176 = vmatpush1.msra.mxu0 %v1961
    %2177 = vmatprep.subr.mxu0 0.0
    %2178 = vmatpush1.msra.mxu0 0.0
    %2179 = vmatprep.subr.mxu0 0.0
    %2180 = vmatpush1.msra.mxu0 0.0
    %2181 = vmatprep.subr.mxu0 0.0
    %2182 = vmatpush1.msra.mxu0 0.0
    %2183 = vmatprep.subr.mxu0 0.0
    %2184 = vmatpush1.msra.mxu0 0.0
    %2185 = vmatprep.subr.mxu0 0.0
    %2186 = vmatpush1.msra.mxu0 0.0
    %2187 = vmatprep.subr.mxu0 0.0
    %2188 = vmatpush1.msra.mxu0 0.0
    %2189 = vmatprep.subr.mxu0 0.0
    %2190 = vmatpush1.msra.mxu0 0.0
    %2191 = vmatprep.subr.mxu0 0.0
    %2192 = vmatpush1.msra.mxu0 0.0
    %2193 = vmatprep.subr.mxu0 0.0
    %2194 = vmatpush1.msra.mxu0 0.0
    %2195 = vmatprep.subr.mxu0 0.0
    %2196 = vmatpush1.msra.mxu0 0.0
    %2197 = vmatprep.subr.mxu0 0.0
    %2198 = vmatpush1.msra.mxu0 0.0
    %2199 = vmatprep.subr.mxu0 0.0
    %2200 = vmatpush1.msra.mxu0 0.0
    %2201 = vmatprep.subr.mxu0 0.0
    %2202 = vmatpush1.msra.mxu0 0.0
    %2203 = vmatprep.subr.mxu0 0.0
    %2204 = vmatpush1.msra.mxu0 0.0
    %2205 = vmatprep.subr.mxu0 0.0
    %2206 = vmatpush1.msra.mxu0 0.0
    %2207 = vmatprep.subr.mxu0 0.0
    %2208 = vmatpush1.msra.mxu0 0.0
    %2209 = vmatprep.subr.mxu0 0.0
    %2210 = vmatpush1.msra.mxu0 0.0
    %2211 = vmatprep.subr.mxu0 0.0
    %2212 = vmatpush1.msra.mxu0 0.0
    %2213 = vmatprep.subr.mxu0 0.0
    %2214 = vmatpush1.msra.mxu0 0.0
    %2215 = vmatprep.subr.mxu0 0.0
    %2216 = vmatpush1.msra.mxu0 0.0
    %2217 = vmatprep.subr.mxu0 0.0
    %2218 = vmatpush1.msra.mxu0 0.0
    %2219 = vmatprep.subr.mxu0 0.0
    %2220 = vmatpush1.msra.mxu0 0.0
    %2221 = vmatprep.subr.mxu0 0.0
    %2222 = vmatpush1.msra.mxu0 0.0
    %2223 = vmatprep.subr.mxu0 0.0
    %2224 = vmatpush1.msra.mxu0 0.0
    %2225 = vmatprep.mubr.f32.mxu0 0.0
    %2226 = vmatmul.mubr.f32.gmra.mrb[0].mxu0 %v1970
    %v2227 = vpop.f32.mrb[0].mxu0
    %v2228 = vadd.f32 %v1967, %v2227
    %v2229 = vpop.f32.mrb[0].mxu0
    %2230 = vmatprep.mubr.f32.mxu0 0.0
    %2231 = vmatmul.mubr.f32.gmra.mrb[0].mxu0 %v1973
    %v2232 = vpop.f32.mrb[0].mxu0
    %v2233 = vadd.f32 %v1967, %v2232
    %v2234 = vpop.f32.mrb[0].mxu0
    %2235 = vmatprep.mubr.f32.mxu0 0.0
    %2236 = vmatmul.mubr.f32.gmra.mrb[0].mxu0 %v1976
    %v2237 = vpop.f32.mrb[0].mxu0
    %v2238 = vadd.f32 %v1967, %v2237
    %v2239 = vpop.f32.mrb[0].mxu0
    %2240 = vmatprep.mubr.f32.mxu0 0.0
    %2241 = vmatmul.mubr.f32.gmra.mrb[0].mxu0 %v1979
    %v2242 = vpop.f32.mrb[0].mxu0
    %v2243 = vadd.f32 %v1967, %v2242
    %v2244 = vpop.f32.mrb[0].mxu0
    %2245 = vmatprep.mubr.f32.mxu0 0.0
    %2246 = vmatmul.mubr.f32.gmra.mrb[0].mxu0 %v1982
    %v2247 = vpop.f32.mrb[0].mxu0
    %v2248 = vadd.f32 %v1967, %v2247
    %v2249 = vpop.f32.mrb[0].mxu0
    %2250 = vmatprep.mubr.f32.mxu0 0.0
    %2251 = vmatmul.mubr.f32.gmra.mrb[0].mxu0 %v1985
    %v2252 = vpop.f32.mrb[0].mxu0
    %v2253 = vadd.f32 %v1967, %v2252
    %v2254 = vpop.f32.mrb[0].mxu0
    %2255 = vmatprep.mubr.f32.mxu0 0.0
    %2256 = vmatmul.mubr.f32.gmra.mrb[0].mxu0 %v1988
    %v2257 = vpop.f32.mrb[0].mxu0
    %v2258 = vadd.f32 %v1967, %v2257
    %v2259 = vpop.f32.mrb[0].mxu0
    %2260 = vmatprep.mubr.f32.mxu0 0.0
    %2261 = vmatmul.mubr.f32.gmra.mrb[0].mxu0 %v1991
    %v2262 = vpop.f32.mrb[0].mxu0
    %v2263 = vadd.f32 %v1967, %v2262
    %v2264 = vpop.f32.mrb[0].mxu0
    %2265 = vmatprep.mubr.f32.mxu0 0.0
    %2266 = vmatmul.mubr.f32.gmra.mrb[0].mxu0 %v1994
    %v2267 = vpop.f32.mrb[0].mxu0
    %v2268 = vadd.f32 %v1967, %v2267
    %v2269 = vpop.f32.mrb[0].mxu0
    %2270 = vmatprep.mubr.f32.mxu0 0.0
    %2271 = vmatmul.mubr.f32.gmra.mrb[0].mxu0 %v1997
    %v2272 = vpop.f32.mrb[0].mxu0
    %v2273 = vadd.f32 %v1967, %v2272
    %v2274 = vpop.f32.mrb[0].mxu0
    %2275 = vmatprep.mubr.f32.mxu0 0.0
    %2276 = vmatmul.mubr.f32.gmra.mrb[0].mxu0 %v2000
    %v2277 = vpop.f32.mrb[0].mxu0
    %v2278 = vadd.f32 %v1967, %v2277
    %v2279 = vpop.f32.mrb[0].mxu0
    %2280 = vmatprep.mubr.f32.mxu0 0.0
    %2281 = vmatmul.mubr.f32.gmra.mrb[0].mxu0 %v2003
    %v2282 = vpop.f32.mrb[0].mxu0
    %v2283 = vadd.f32 %v1967, %v2282
    %v2284 = vpop.f32.mrb[0].mxu0
    %2285 = vmatprep.mubr.f32.mxu0 0.0
    %2286 = vmatmul.mubr.f32.gmra.mrb[0].mxu0 %v2006
    %v2287 = vpop.f32.mrb[0].mxu0
    %v2288 = vadd.f32 %v1967, %v2287
    %v2289 = vpop.f32.mrb[0].mxu0
    %2290 = vmatprep.mubr.f32.mxu0 0.0
    %2291 = vmatmul.mubr.f32.gmra.mrb[0].mxu0 %v2009
    %v2292 = vpop.f32.mrb[0].mxu0
    %v2293 = vadd.f32 %v1967, %v2292
    %v2294 = vpop.f32.mrb[0].mxu0
    %2295 = vmatprep.mubr.f32.mxu0 0.0
    %2296 = vmatmul.mubr.f32.gmra.mrb[0].mxu0 %v2012
    %v2297 = vpop.f32.mrb[0].mxu0
    %v2298 = vadd.f32 %v1967, %v2297
    %v2299 = vpop.f32.mrb[0].mxu0
    %2300 = vmatprep.mubr.f32.mxu0 0.0
    %2301 = vmatmul.mubr.f32.gmra.mrb[0].mxu0 %v2015
    %v2302 = vpop.f32.mrb[0].mxu0
    %v2303 = vadd.f32 %v1967, %v2302
    %v2304 = vpop.f32.mrb[0].mxu0
    %2305 = vmatprep.mubr.f32.mxu0 0.0
    %2306 = vmatmul.mubr.f32.gmra.mrb[0].mxu0 %v2018
    %v2307 = vpop.f32.mrb[0].mxu0
    %v2308 = vadd.f32 %v1967, %v2307
    %v2309 = vpop.f32.mrb[0].mxu0
    %2310 = vmatprep.mubr.f32.mxu0 0.0
    %2311 = vmatmul.mubr.f32.gmra.mrb[0].mxu0 %v2021
    %v2312 = vpop.f32.mrb[0].mxu0
    %v2313 = vadd.f32 %v1967, %v2312
    %v2314 = vpop.f32.mrb[0].mxu0
    %2315 = vmatprep.mubr.f32.mxu0 0.0
    %2316 = vmatmul.mubr.f32.gmra.mrb[0].mxu0 %v2024
    %v2317 = vpop.f32.mrb[0].mxu0
    %v2318 = vadd.f32 %v1967, %v2317
    %v2319 = vpop.f32.mrb[0].mxu0
    %2320 = vmatprep.mubr.f32.mxu0 0.0
    %2321 = vmatmul.mubr.f32.gmra.mrb[0].mxu0 %v2027
    %v2322 = vpop.f32.mrb[0].mxu0
    %v2323 = vadd.f32 %v1967, %v2322
    %v2324 = vpop.f32.mrb[0].mxu0
    %2325 = vmatprep.mubr.f32.mxu0 0.0
    %2326 = vmatmul.mubr.f32.gmra.mrb[0].mxu0 %v2030
    %v2327 = vpop.f32.mrb[0].mxu0
    %v2328 = vadd.f32 %v1967, %v2327
    %v2329 = vpop.f32.mrb[0].mxu0
    %2330 = vmatprep.mubr.f32.mxu0 0.0
    %2331 = vmatmul.mubr.f32.gmra.mrb[0].mxu0 %v2033
    %v2332 = vpop.f32.mrb[0].mxu0
    %v2333 = vadd.f32 %v1967, %v2332
    %v2334 = vpop.f32.mrb[0].mxu0
    %2335 = vmatprep.mubr.f32.mxu0 0.0
    %2336 = vmatmul.mubr.f32.gmra.mrb[0].mxu0 %v2036
    %v2337 = vpop.f32.mrb[0].mxu0
    %v2338 = vadd.f32 %v1967, %v2337
    %v2339 = vpop.f32.mrb[0].mxu0
    %2340 = vmatprep.mubr.f32.mxu0 0.0
    %2341 = vmatmul.mubr.f32.gmra.mrb[0].mxu0 %v2039
    %v2342 = vpop.f32.mrb[0].mxu0
    %v2343 = vadd.f32 %v1967, %v2342
    %v2344 = vpop.f32.mrb[0].mxu0
    %2345 = vmatprep.mubr.f32.mxu0 0.0
    %2346 = vmatmul.mubr.f32.gmra.mrb[0].mxu0 %v2042
    %v2347 = vpop.f32.mrb[0].mxu0
    %v2348 = vadd.f32 %v1967, %v2347
    %v2349 = vpop.f32.mrb[0].mxu0
    %2350 = vmatprep.mubr.f32.mxu0 0.0
    %2351 = vmatmul.mubr.f32.gmra.mrb[0].mxu0 %v2045
    %v2352 = vpop.f32.mrb[0].mxu0
    %v2353 = vadd.f32 %v1967, %v2352
    %v2354 = vpop.f32.mrb[0].mxu0
    %2355 = vmatprep.mubr.f32.mxu0 0.0
    %2356 = vmatmul.mubr.f32.gmra.mrb[0].mxu0 %v2048
    %v2357 = vpop.f32.mrb[0].mxu0
    %v2358 = vadd.f32 %v1967, %v2357
    %v2359 = vpop.f32.mrb[0].mxu0
    %2360 = vmatprep.mubr.f32.mxu0 0.0
    %2361 = vmatmul.mubr.f32.gmra.mrb[0].mxu0 %v2051
    %v2362 = vpop.f32.mrb[0].mxu0
    %v2363 = vadd.f32 %v1967, %v2362
    %v2364 = vpop.f32.mrb[0].mxu0
    %2365 = vmatprep.mubr.f32.mxu0 0.0
    %2366 = vmatmul.mubr.f32.gmra.mrb[0].mxu0 %v2054
    %v2367 = vpop.f32.mrb[0].mxu0
    %v2368 = vadd.f32 %v1967, %v2367
    %v2369 = vpop.f32.mrb[0].mxu0
    %2370 = vmatprep.mubr.f32.mxu0 0.0
    %2371 = vmatmul.mubr.f32.gmra.mrb[0].mxu0 %v2057
    %v2372 = vpop.f32.mrb[0].mxu0
    %v2373 = vadd.f32 %v1967, %v2372
    %v2374 = vpop.f32.mrb[0].mxu0
    %2375 = vmatprep.mubr.f32.mxu0 0.0
    %2376 = vmatmul.mubr.f32.gmra.mrb[0].mxu0 %v2060
    %v2377 = vpop.f32.mrb[0].mxu0
    %v2378 = vadd.f32 %v1967, %v2377
    %v2379 = vpop.f32.mrb[0].mxu0
    %2380 = vmatprep.mubr.f32.mxu0 0.0
    %2381 = vmatmul.mubr.f32.gmra.mrb[0].mxu0 %v2063
    %v2382 = vpop.f32.mrb[0].mxu0
    %v2383 = vadd.f32 %v1967, %v2382
    %v2384 = vpop.f32.mrb[0].mxu0
    %2385 = vmatprep.mubr.f32.mxu0 0.0
    %2386 = vmatmul.mubr.f32.gmra.mrb[0].mxu0 %v2066
    %v2387 = vpop.f32.mrb[0].mxu0
    %v2388 = vadd.f32 %v1967, %v2387
    %v2389 = vpop.f32.mrb[0].mxu0
    %2390 = vmatprep.mubr.f32.mxu0 0.0
    %2391 = vmatmul.mubr.f32.gmra.mrb[0].mxu0 %v2069
    %v2392 = vpop.f32.mrb[0].mxu0
    %v2393 = vadd.f32 %v1967, %v2392
    %v2394 = vpop.f32.mrb[0].mxu0
    %2395 = vmatprep.mubr.f32.mxu0 0.0
    %2396 = vmatmul.mubr.f32.gmra.mrb[0].mxu0 %v2072
    %v2397 = vpop.f32.mrb[0].mxu0
    %v2398 = vadd.f32 %v1967, %v2397
    %v2399 = vpop.f32.mrb[0].mxu0
    %2400 = vmatprep.mubr.f32.mxu0 0.0
    %2401 = vmatmul.mubr.f32.gmra.mrb[0].mxu0 %v2075
    %v2402 = vpop.f32.mrb[0].mxu0
    %v2403 = vadd.f32 %v1967, %v2402
    %v2404 = vpop.f32.mrb[0].mxu0
    %2405 = vmatprep.mubr.f32.mxu0 0.0
    %2406 = vmatmul.mubr.f32.gmra.mrb[0].mxu0 %v2078
    %v2407 = vpop.f32.mrb[0].mxu0
    %v2408 = vadd.f32 %v1967, %v2407
    %v2409 = vpop.f32.mrb[0].mxu0
    %2410 = vmatprep.mubr.f32.mxu0 0.0
    %2411 = vmatmul.mubr.f32.gmra.mrb[0].mxu0 %v2081
    %v2412 = vpop.f32.mrb[0].mxu0
    %v2413 = vadd.f32 %v1967, %v2412
    %v2414 = vpop.f32.mrb[0].mxu0
    %2415 = vmatprep.mubr.f32.mxu0 0.0
    %2416 = vmatmul.mubr.f32.gmra.mrb[0].mxu0 %v2084
    %v2417 = vpop.f32.mrb[0].mxu0
    %v2418 = vadd.f32 %v1967, %v2417
    %v2419 = vpop.f32.mrb[0].mxu0
    %2420 = vmatprep.mubr.f32.mxu0 0.0
    %2421 = vmatmul.mubr.f32.gmra.mrb[0].mxu0 %v2087
    %v2422 = vpop.f32.mrb[0].mxu0
    %v2423 = vadd.f32 %v1967, %v2422
    %v2424 = vpop.f32.mrb[0].mxu0
    %2425 = vmatprep.mubr.f32.mxu0 0.0
    %2426 = vmatmul.mubr.f32.gmra.mrb[0].mxu0 %v2090
    %v2427 = vpop.f32.mrb[0].mxu0
    %v2428 = vadd.f32 %v1967, %v2427
    %v2429 = vpop.f32.mrb[0].mxu0
    %2430 = vmatprep.mubr.f32.mxu0 0.0
    %2431 = vmatmul.mubr.f32.gmra.mrb[0].mxu0 %v2093
    %v2432 = vpop.f32.mrb[0].mxu0
    %v2433 = vadd.f32 %v1967, %v2432
    %v2434 = vpop.f32.mrb[0].mxu0
    %2435 = vmatprep.mubr.f32.mxu0 0.0
    %2436 = vmatmul.mubr.f32.gmra.mrb[0].mxu0 %v2096
    %v2437 = vpop.f32.mrb[0].mxu0
    %v2438 = vadd.f32 %v1967, %v2437
    %v2439 = vpop.f32.mrb[0].mxu0
    %2440 = vmatprep.mubr.f32.mxu0 0.0
    %2441 = vmatmul.mubr.f32.gmra.mrb[0].mxu0 %v2099
    %v2442 = vpop.f32.mrb[0].mxu0
    %v2443 = vadd.f32 %v1967, %v2442
    %v2444 = vpop.f32.mrb[0].mxu0
    %2445 = vmatprep.mubr.f32.mxu0 0.0
    %2446 = vmatmul.mubr.f32.gmra.mrb[0].mxu0 %v2102
    %v2447 = vpop.f32.mrb[0].mxu0
    %v2448 = vadd.f32 %v1967, %v2447
    %v2449 = vpop.f32.mrb[0].mxu0
    %2450 = vmatprep.mubr.f32.mxu0 0.0
    %2451 = vmatmul.mubr.f32.gmra.mrb[0].mxu0 %v2105
    %v2452 = vpop.f32.mrb[0].mxu0
    %v2453 = vadd.f32 %v1967, %v2452
    %v2454 = vpop.f32.mrb[0].mxu0
    %2455 = vmatprep.mubr.f32.mxu0 0.0
    %2456 = vmatmul.mubr.f32.gmra.mrb[0].mxu0 %v2108
    %v2457 = vpop.f32.mrb[0].mxu0
    %v2458 = vadd.f32 %v1967, %v2457
    %v2459 = vpop.f32.mrb[0].mxu0
    %2460 = vmatprep.mubr.f32.mxu0 0.0
    %2461 = vmatmul.mubr.f32.gmra.mrb[0].mxu0 %v2111
    %v2462 = vpop.f32.mrb[0].mxu0
    %v2463 = vadd.f32 %v1967, %v2462
    %v2464 = vpop.f32.mrb[0].mxu0
    %2465 = vmatprep.mubr.f32.mxu0 0.0
    %2466 = vmatmul.mubr.f32.gmra.mrb[0].mxu0 %v2114
    %v2467 = vpop.f32.mrb[0].mxu0
    %v2468 = vadd.f32 %v1967, %v2467
    %v2469 = vpop.f32.mrb[0].mxu0
    %2470 = vmatprep.mubr.f32.mxu0 0.0
    %2471 = vmatmul.mubr.f32.gmra.mrb[0].mxu0 %v2117
    %v2472 = vpop.f32.mrb[0].mxu0
    %v2473 = vadd.f32 %v1967, %v2472
    %v2474 = vpop.f32.mrb[0].mxu0
    %2475 = vmatprep.mubr.f32.mxu0 0.0
    %2476 = vmatmul.mubr.f32.gmra.mrb[0].mxu0 %v2120
    %v2477 = vpop.f32.mrb[0].mxu0
    %v2478 = vadd.f32 %v1967, %v2477
    %v2479 = vpop.f32.mrb[0].mxu0
    %2480 = vmatprep.mubr.f32.mxu0 0.0
    %2481 = vmatmul.mubr.f32.gmra.mrb[0].mxu0 %v2123
    %v2482 = vpop.f32.mrb[0].mxu0
    %v2483 = vadd.f32 %v1967, %v2482
    %v2484 = vpop.f32.mrb[0].mxu0
    %2485 = vmatprep.mubr.f32.mxu0 0.0
    %2486 = vmatmul.mubr.f32.gmra.mrb[0].mxu0 %v2126
    %v2487 = vpop.f32.mrb[0].mxu0
    %v2488 = vadd.f32 %v1967, %v2487
    %v2489 = vpop.f32.mrb[0].mxu0
    %2490 = vmatprep.mubr.f32.mxu0 0.0
    %2491 = vmatmul.mubr.f32.gmra.mrb[0].mxu0 %v2129
    %v2492 = vpop.f32.mrb[0].mxu0
    %v2493 = vadd.f32 %v1967, %v2492
    %v2494 = vpop.f32.mrb[0].mxu0
    %2495 = vmatprep.mubr.f32.mxu0 0.0
    %2496 = vmatmul.mubr.f32.gmra.mrb[0].mxu0 %v2132
    %v2497 = vpop.f32.mrb[0].mxu0
    %v2498 = vadd.f32 %v1967, %v2497
    %v2499 = vpop.f32.mrb[0].mxu0
    %2500 = vmatprep.mubr.f32.mxu0 0.0
    %2501 = vmatmul.mubr.f32.gmra.mrb[0].mxu0 %v2135
    %v2502 = vpop.f32.mrb[0].mxu0
    %v2503 = vadd.f32 %v1967, %v2502
    %v2504 = vpop.f32.mrb[0].mxu0
    %2505 = vmatprep.mubr.f32.mxu0 0.0
    %2506 = vmatmul.mubr.f32.gmra.mrb[0].mxu0 %v2138
    %v2507 = vpop.f32.mrb[0].mxu0
    %v2508 = vadd.f32 %v1967, %v2507
    %v2509 = vpop.f32.mrb[0].mxu0
    %2510 = vmatprep.mubr.f32.mxu0 0.0
    %2511 = vmatmul.mubr.f32.gmra.mrb[0].mxu0 %v2141
    %v2512 = vpop.f32.mrb[0].mxu0
    %v2513 = vadd.f32 %v1967, %v2512
    %v2514 = vpop.f32.mrb[0].mxu0
    %2515 = vmatprep.mubr.f32.mxu0 0.0
    %2516 = vmatmul.mubr.f32.gmra.mrb[0].mxu0 %v2144
    %v2517 = vpop.f32.mrb[0].mxu0
    %v2518 = vadd.f32 %v1967, %v2517
    %v2519 = vpop.f32.mrb[0].mxu0
    %2520 = vmatprep.mubr.f32.mxu0 0.0
    %2521 = vmatmul.mubr.f32.gmra.mrb[0].mxu0 %v2147
    %v2522 = vpop.f32.mrb[0].mxu0
    %v2523 = vadd.f32 %v1967, %v2522
    %v2524 = vpop.f32.mrb[0].mxu0
    %2525 = vmatprep.mubr.f32.mxu0 0.0
    %2526 = vmatmul.mubr.f32.gmra.mrb[0].mxu0 %v2150
    %v2527 = vpop.f32.mrb[0].mxu0
    %v2528 = vadd.f32 %v1967, %v2527
    %v2529 = vpop.f32.mrb[0].mxu0
    %2530 = vmatprep.mubr.f32.mxu0 0.0
    %2531 = vmatmul.mubr.f32.gmra.mrb[0].mxu0 %v2153
    %v2532 = vpop.f32.mrb[0].mxu0
    %v2533 = vadd.f32 %v1967, %v2532
    %v2534 = vpop.f32.mrb[0].mxu0
    %2535 = vmatprep.mubr.f32.mxu0 0.0
    %2536 = vmatmul.mubr.f32.gmra.mrb[0].mxu0 %v2156
    %v2537 = vpop.f32.mrb[0].mxu0
    %v2538 = vadd.f32 %v1967, %v2537
    %v2539 = vpop.f32.mrb[0].mxu0
    %2540 = vmatprep.mubr.f32.mxu0 0.0
    %2541 = vmatmul.mubr.f32.gmra.mrb[0].mxu0 %v2159
    %v2542 = vpop.f32.mrb[0].mxu0
    %v2543 = vadd.f32 %v1967, %v2542
    %v2544 = vpop.f32.mrb[0].mxu0
    %2545 = vdwg.mxu0
    %2546 = vadd.xlane.f32.xlu0 %v2228
    %v2547 = vpop.xlane.xlu0 %2546
    %2548 = vadd.xlane.f32.xlu0 %v2233
    %v2549 = vpop.xlane.xlu0 %2548
    %2550 = vadd.xlane.f32.xlu0 %v2238
    %v2551 = vpop.xlane.xlu0 %2550
    %2552 = vadd.xlane.f32.xlu0 %v2243
    %v2553 = vpop.xlane.xlu0 %2552
    %2554 = vadd.xlane.f32.xlu0 %v2248
    %v2555 = vpop.xlane.xlu0 %2554
    %2556 = vadd.xlane.f32.xlu0 %v2253
    %v2557 = vpop.xlane.xlu0 %2556
    %2558 = vadd.xlane.f32.xlu0 %v2258
    %v2559 = vpop.xlane.xlu0 %2558
    %2560 = vadd.xlane.f32.xlu0 %v2263
    %v2561 = vpop.xlane.xlu0 %2560
    %2562 = vadd.xlane.f32.xlu0 %v2268
    %v2563 = vpop.xlane.xlu0 %2562
    %2564 = vadd.xlane.f32.xlu0 %v2273
    %v2565 = vpop.xlane.xlu0 %2564
    %2566 = vadd.xlane.f32.xlu0 %v2278
    %v2567 = vpop.xlane.xlu0 %2566
    %2568 = vadd.xlane.f32.xlu0 %v2283
    %v2569 = vpop.xlane.xlu0 %2568
    %2570 = vadd.xlane.f32.xlu0 %v2288
    %v2571 = vpop.xlane.xlu0 %2570
    %2572 = vadd.xlane.f32.xlu0 %v2293
    %v2573 = vpop.xlane.xlu0 %2572
    %2574 = vadd.xlane.f32.xlu0 %v2298
    %v2575 = vpop.xlane.xlu0 %2574
    %2576 = vadd.xlane.f32.xlu0 %v2303
    %v2577 = vpop.xlane.xlu0 %2576
    %2578 = vadd.xlane.f32.xlu0 %v2308
    %v2579 = vpop.xlane.xlu0 %2578
    %2580 = vadd.xlane.f32.xlu0 %v2313
    %v2581 = vpop.xlane.xlu0 %2580
    %2582 = vadd.xlane.f32.xlu0 %v2318
    %v2583 = vpop.xlane.xlu0 %2582
    %2584 = vadd.xlane.f32.xlu0 %v2323
    %v2585 = vpop.xlane.xlu0 %2584
    %2586 = vadd.xlane.f32.xlu0 %v2328
    %v2587 = vpop.xlane.xlu0 %2586
    %2588 = vadd.xlane.f32.xlu0 %v2333
    %v2589 = vpop.xlane.xlu0 %2588
    %2590 = vadd.xlane.f32.xlu0 %v2338
    %v2591 = vpop.xlane.xlu0 %2590
    %2592 = vadd.xlane.f32.xlu0 %v2343
    %v2593 = vpop.xlane.xlu0 %2592
    %2594 = vadd.xlane.f32.xlu0 %v2348
    %v2595 = vpop.xlane.xlu0 %2594
    %2596 = vadd.xlane.f32.xlu0 %v2353
    %v2597 = vpop.xlane.xlu0 %2596
    %2598 = vadd.xlane.f32.xlu0 %v2358
    %v2599 = vpop.xlane.xlu0 %2598
    %2600 = vadd.xlane.f32.xlu0 %v2363
    %v2601 = vpop.xlane.xlu0 %2600
    %2602 = vadd.xlane.f32.xlu0 %v2368
    %v2603 = vpop.xlane.xlu0 %2602
    %2604 = vadd.xlane.f32.xlu0 %v2373
    %v2605 = vpop.xlane.xlu0 %2604
    %2606 = vadd.xlane.f32.xlu0 %v2378
    %v2607 = vpop.xlane.xlu0 %2606
    %2608 = vadd.xlane.f32.xlu0 %v2383
    %v2609 = vpop.xlane.xlu0 %2608
    %2610 = vadd.xlane.f32.xlu0 %v2388
    %v2611 = vpop.xlane.xlu0 %2610
    %2612 = vadd.xlane.f32.xlu0 %v2393
    %v2613 = vpop.xlane.xlu0 %2612
    %2614 = vadd.xlane.f32.xlu0 %v2398
    %v2615 = vpop.xlane.xlu0 %2614
    %2616 = vadd.xlane.f32.xlu0 %v2403
    %v2617 = vpop.xlane.xlu0 %2616
    %2618 = vadd.xlane.f32.xlu0 %v2408
    %v2619 = vpop.xlane.xlu0 %2618
    %2620 = vadd.xlane.f32.xlu0 %v2413
    %v2621 = vpop.xlane.xlu0 %2620
    %2622 = vadd.xlane.f32.xlu0 %v2418
    %v2623 = vpop.xlane.xlu0 %2622
    %2624 = vadd.xlane.f32.xlu0 %v2423
    %v2625 = vpop.xlane.xlu0 %2624
    %2626 = vadd.xlane.f32.xlu0 %v2428
    %v2627 = vpop.xlane.xlu0 %2626
    %2628 = vadd.xlane.f32.xlu0 %v2433
    %v2629 = vpop.xlane.xlu0 %2628
    %2630 = vadd.xlane.f32.xlu0 %v2438
    %v2631 = vpop.xlane.xlu0 %2630
    %2632 = vadd.xlane.f32.xlu0 %v2443
    %v2633 = vpop.xlane.xlu0 %2632
    %2634 = vadd.xlane.f32.xlu0 %v2448
    %v2635 = vpop.xlane.xlu0 %2634
    %2636 = vadd.xlane.f32.xlu0 %v2453
    %v2637 = vpop.xlane.xlu0 %2636
    %2638 = vadd.xlane.f32.xlu0 %v2458
    %v2639 = vpop.xlane.xlu0 %2638
    %2640 = vadd.xlane.f32.xlu0 %v2463
    %v2641 = vpop.xlane.xlu0 %2640
    %2642 = vadd.xlane.f32.xlu0 %v2468
    %v2643 = vpop.xlane.xlu0 %2642
    %2644 = vadd.xlane.f32.xlu0 %v2473
    %v2645 = vpop.xlane.xlu0 %2644
    %2646 = vadd.xlane.f32.xlu0 %v2478
    %v2647 = vpop.xlane.xlu0 %2646
    %2648 = vadd.xlane.f32.xlu0 %v2483
    %v2649 = vpop.xlane.xlu0 %2648
    %2650 = vadd.xlane.f32.xlu0 %v2488
    %v2651 = vpop.xlane.xlu0 %2650
    %2652 = vadd.xlane.f32.xlu0 %v2493
    %v2653 = vpop.xlane.xlu0 %2652
    %2654 = vadd.xlane.f32.xlu0 %v2498
    %v2655 = vpop.xlane.xlu0 %2654
    %2656 = vadd.xlane.f32.xlu0 %v2503
    %v2657 = vpop.xlane.xlu0 %2656
    %2658 = vadd.xlane.f32.xlu0 %v2508
    %v2659 = vpop.xlane.xlu0 %2658
    %2660 = vadd.xlane.f32.xlu0 %v2513
    %v2661 = vpop.xlane.xlu0 %2660
    %2662 = vadd.xlane.f32.xlu0 %v2518
    %v2663 = vpop.xlane.xlu0 %2662
    %2664 = vadd.xlane.f32.xlu0 %v2523
    %v2665 = vpop.xlane.xlu0 %2664
    %2666 = vadd.xlane.f32.xlu0 %v2528
    %v2667 = vpop.xlane.xlu0 %2666
    %2668 = vadd.xlane.f32.xlu0 %v2533
    %v2669 = vpop.xlane.xlu0 %2668
    %2670 = vadd.xlane.f32.xlu0 %v2538
    %v2671 = vpop.xlane.xlu0 %2670
    %2672 = vadd.xlane.f32.xlu0 %v2543
    %v2673 = vpop.xlane.xlu0 %2672
    %v2674 = vmul.f32 %v2228, %v2228
    %v2675 = vmul.f32 %v2233, %v2233
    %v2676 = vmul.f32 %v2238, %v2238
    %v2677 = vmul.f32 %v2243, %v2243
    %v2678 = vmul.f32 %v2248, %v2248
    %v2679 = vmul.f32 %v2253, %v2253
    %v2680 = vmul.f32 %v2258, %v2258
    %v2681 = vmul.f32 %v2263, %v2263
    %v2682 = vmul.f32 %v2268, %v2268
    %v2683 = vmul.f32 %v2273, %v2273
    %v2684 = vmul.f32 %v2278, %v2278
    %v2685 = vmul.f32 %v2283, %v2283
    %v2686 = vmul.f32 %v2288, %v2288
    %v2687 = vmul.f32 %v2293, %v2293
    %v2688 = vmul.f32 %v2298, %v2298
    %v2689 = vmul.f32 %v2303, %v2303
    %v2690 = vmul.f32 %v2308, %v2308
    %v2691 = vmul.f32 %v2313, %v2313
    %v2692 = vmul.f32 %v2318, %v2318
    %v2693 = vmul.f32 %v2323, %v2323
    %v2694 = vmul.f32 %v2328, %v2328
    %v2695 = vmul.f32 %v2333, %v2333
    %v2696 = vmul.f32 %v2338, %v2338
    %v2697 = vmul.f32 %v2343, %v2343
    %v2698 = vmul.f32 %v2348, %v2348
    %v2699 = vmul.f32 %v2353, %v2353
    %v2700 = vmul.f32 %v2358, %v2358
    %v2701 = vmul.f32 %v2363, %v2363
    %v2702 = vmul.f32 %v2368, %v2368
    %v2703 = vmul.f32 %v2373, %v2373
    %v2704 = vmul.f32 %v2378, %v2378
    %v2705 = vmul.f32 %v2383, %v2383
    %v2706 = vmul.f32 %v2388, %v2388
    %v2707 = vmul.f32 %v2393, %v2393
    %v2708 = vmul.f32 %v2398, %v2398
    %v2709 = vmul.f32 %v2403, %v2403
    %v2710 = vmul.f32 %v2408, %v2408
    %v2711 = vmul.f32 %v2413, %v2413
    %v2712 = vmul.f32 %v2418, %v2418
    %v2713 = vmul.f32 %v2423, %v2423
    %v2714 = vmul.f32 %v2428, %v2428
    %v2715 = vmul.f32 %v2433, %v2433
    %v2716 = vmul.f32 %v2438, %v2438
    %v2717 = vmul.f32 %v2443, %v2443
    %v2718 = vmul.f32 %v2448, %v2448
    %v2719 = vmul.f32 %v2453, %v2453
    %v2720 = vmul.f32 %v2458, %v2458
    %v2721 = vmul.f32 %v2463, %v2463
    %v2722 = vmul.f32 %v2468, %v2468
    %v2723 = vmul.f32 %v2473, %v2473
    %v2724 = vmul.f32 %v2478, %v2478
    %v2725 = vmul.f32 %v2483, %v2483
    %v2726 = vmul.f32 %v2488, %v2488
    %v2727 = vmul.f32 %v2493, %v2493
    %v2728 = vmul.f32 %v2498, %v2498
    %v2729 = vmul.f32 %v2503, %v2503
    %v2730 = vmul.f32 %v2508, %v2508
    %v2731 = vmul.f32 %v2513, %v2513
    %v2732 = vmul.f32 %v2518, %v2518
    %v2733 = vmul.f32 %v2523, %v2523
    %v2734 = vmul.f32 %v2528, %v2528
    %v2735 = vmul.f32 %v2533, %v2533
    %v2736 = vmul.f32 %v2538, %v2538
    %v2737 = vmul.f32 %v2543, %v2543
    %2738 = vadd.xlane.f32.xlu0 %v2674
    %v2739 = vpop.xlane.xlu0 %2738
    %2740 = vadd.xlane.f32.xlu0 %v2675
    %v2741 = vpop.xlane.xlu0 %2740
    %2742 = vadd.xlane.f32.xlu0 %v2676
    %v2743 = vpop.xlane.xlu0 %2742
    %2744 = vadd.xlane.f32.xlu0 %v2677
    %v2745 = vpop.xlane.xlu0 %2744
    %2746 = vadd.xlane.f32.xlu0 %v2678
    %v2747 = vpop.xlane.xlu0 %2746
    %2748 = vadd.xlane.f32.xlu0 %v2679
    %v2749 = vpop.xlane.xlu0 %2748
    %2750 = vadd.xlane.f32.xlu0 %v2680
    %v2751 = vpop.xlane.xlu0 %2750
    %2752 = vadd.xlane.f32.xlu0 %v2681
    %v2753 = vpop.xlane.xlu0 %2752
    %2754 = vadd.xlane.f32.xlu0 %v2682
    %v2755 = vpop.xlane.xlu0 %2754
    %2756 = vadd.xlane.f32.xlu0 %v2683
    %v2757 = vpop.xlane.xlu0 %2756
    %2758 = vadd.xlane.f32.xlu0 %v2684
    %v2759 = vpop.xlane.xlu0 %2758
    %2760 = vadd.xlane.f32.xlu0 %v2685
    %v2761 = vpop.xlane.xlu0 %2760
    %2762 = vadd.xlane.f32.xlu0 %v2686
    %v2763 = vpop.xlane.xlu0 %2762
    %2764 = vadd.xlane.f32.xlu0 %v2687
    %v2765 = vpop.xlane.xlu0 %2764
    %2766 = vadd.xlane.f32.xlu0 %v2688
    %v2767 = vpop.xlane.xlu0 %2766
    %2768 = vadd.xlane.f32.xlu0 %v2689
    %v2769 = vpop.xlane.xlu0 %2768
    %2770 = vadd.xlane.f32.xlu0 %v2690
    %v2771 = vpop.xlane.xlu0 %2770
    %2772 = vadd.xlane.f32.xlu0 %v2691
    %v2773 = vpop.xlane.xlu0 %2772
    %2774 = vadd.xlane.f32.xlu0 %v2692
    %v2775 = vpop.xlane.xlu0 %2774
    %2776 = vadd.xlane.f32.xlu0 %v2693
    %v2777 = vpop.xlane.xlu0 %2776
    %2778 = vadd.xlane.f32.xlu0 %v2694
    %v2779 = vpop.xlane.xlu0 %2778
    %2780 = vadd.xlane.f32.xlu0 %v2695
    %v2781 = vpop.xlane.xlu0 %2780
    %2782 = vadd.xlane.f32.xlu0 %v2696
    %v2783 = vpop.xlane.xlu0 %2782
    %2784 = vadd.xlane.f32.xlu0 %v2697
    %v2785 = vpop.xlane.xlu0 %2784
    %2786 = vadd.xlane.f32.xlu0 %v2698
    %v2787 = vpop.xlane.xlu0 %2786
    %2788 = vadd.xlane.f32.xlu0 %v2699
    %v2789 = vpop.xlane.xlu0 %2788
    %2790 = vadd.xlane.f32.xlu0 %v2700
    %v2791 = vpop.xlane.xlu0 %2790
    %2792 = vadd.xlane.f32.xlu0 %v2701
    %v2793 = vpop.xlane.xlu0 %2792
    %2794 = vadd.xlane.f32.xlu0 %v2702
    %v2795 = vpop.xlane.xlu0 %2794
    %2796 = vadd.xlane.f32.xlu0 %v2703
    %v2797 = vpop.xlane.xlu0 %2796
    %2798 = vadd.xlane.f32.xlu0 %v2704
    %v2799 = vpop.xlane.xlu0 %2798
    %2800 = vadd.xlane.f32.xlu0 %v2705
    %v2801 = vpop.xlane.xlu0 %2800
    %2802 = vadd.xlane.f32.xlu0 %v2706
    %v2803 = vpop.xlane.xlu0 %2802
    %2804 = vadd.xlane.f32.xlu0 %v2707
    %v2805 = vpop.xlane.xlu0 %2804
    %2806 = vadd.xlane.f32.xlu0 %v2708
    %v2807 = vpop.xlane.xlu0 %2806
    %2808 = vadd.xlane.f32.xlu0 %v2709
    %v2809 = vpop.xlane.xlu0 %2808
    %2810 = vadd.xlane.f32.xlu0 %v2710
    %v2811 = vpop.xlane.xlu0 %2810
    %2812 = vadd.xlane.f32.xlu0 %v2711
    %v2813 = vpop.xlane.xlu0 %2812
    %2814 = vadd.xlane.f32.xlu0 %v2712
    %v2815 = vpop.xlane.xlu0 %2814
    %2816 = vadd.xlane.f32.xlu0 %v2713
    %v2817 = vpop.xlane.xlu0 %2816
    %2818 = vadd.xlane.f32.xlu0 %v2714
    %v2819 = vpop.xlane.xlu0 %2818
    %2820 = vadd.xlane.f32.xlu0 %v2715
    %v2821 = vpop.xlane.xlu0 %2820
    %2822 = vadd.xlane.f32.xlu0 %v2716
    %v2823 = vpop.xlane.xlu0 %2822
    %2824 = vadd.xlane.f32.xlu0 %v2717
    %v2825 = vpop.xlane.xlu0 %2824
    %2826 = vadd.xlane.f32.xlu0 %v2718
    %v2827 = vpop.xlane.xlu0 %2826
    %2828 = vadd.xlane.f32.xlu0 %v2719
    %v2829 = vpop.xlane.xlu0 %2828
    %2830 = vadd.xlane.f32.xlu0 %v2720
    %v2831 = vpop.xlane.xlu0 %2830
    %2832 = vadd.xlane.f32.xlu0 %v2721
    %v2833 = vpop.xlane.xlu0 %2832
    %2834 = vadd.xlane.f32.xlu0 %v2722
    %v2835 = vpop.xlane.xlu0 %2834
    %2836 = vadd.xlane.f32.xlu0 %v2723
    %v2837 = vpop.xlane.xlu0 %2836
    %2838 = vadd.xlane.f32.xlu0 %v2724
    %v2839 = vpop.xlane.xlu0 %2838
    %2840 = vadd.xlane.f32.xlu0 %v2725
    %v2841 = vpop.xlane.xlu0 %2840
    %2842 = vadd.xlane.f32.xlu0 %v2726
    %v2843 = vpop.xlane.xlu0 %2842
    %2844 = vadd.xlane.f32.xlu0 %v2727
    %v2845 = vpop.xlane.xlu0 %2844
    %2846 = vadd.xlane.f32.xlu0 %v2728
    %v2847 = vpop.xlane.xlu0 %2846
    %2848 = vadd.xlane.f32.xlu0 %v2729
    %v2849 = vpop.xlane.xlu0 %2848
    %2850 = vadd.xlane.f32.xlu0 %v2730
    %v2851 = vpop.xlane.xlu0 %2850
    %2852 = vadd.xlane.f32.xlu0 %v2731
    %v2853 = vpop.xlane.xlu0 %2852
    %2854 = vadd.xlane.f32.xlu0 %v2732
    %v2855 = vpop.xlane.xlu0 %2854
    %2856 = vadd.xlane.f32.xlu0 %v2733
    %v2857 = vpop.xlane.xlu0 %2856
    %2858 = vadd.xlane.f32.xlu0 %v2734
    %v2859 = vpop.xlane.xlu0 %2858
    %2860 = vadd.xlane.f32.xlu0 %v2735
    %v2861 = vpop.xlane.xlu0 %2860
    %2862 = vadd.xlane.f32.xlu0 %v2736
    %v2863 = vpop.xlane.xlu0 %2862
    %2864 = vadd.xlane.f32.xlu0 %v2737
    %v2865 = vpop.xlane.xlu0 %2864
    %v2866 = vmul.f32 %v2547, 0.0078125
    %v2867 = vmul.f32 %v2549, 0.0078125
    %v2868 = vmul.f32 %v2551, 0.0078125
    %v2869 = vmul.f32 %v2553, 0.0078125
    %v2870 = vmul.f32 %v2555, 0.0078125
    %v2871 = vmul.f32 %v2557, 0.0078125
    %v2872 = vmul.f32 %v2559, 0.0078125
    %v2873 = vmul.f32 %v2561, 0.0078125
    %v2874 = vmul.f32 %v2563, 0.0078125
    %v2875 = vmul.f32 %v2565, 0.0078125
    %v2876 = vmul.f32 %v2567, 0.0078125
    %v2877 = vmul.f32 %v2569, 0.0078125
    %v2878 = vmul.f32 %v2571, 0.0078125
    %v2879 = vmul.f32 %v2573, 0.0078125
    %v2880 = vmul.f32 %v2575, 0.0078125
    %v2881 = vmul.f32 %v2577, 0.0078125
    %v2882 = vmul.f32 %v2579, 0.0078125
    %v2883 = vmul.f32 %v2581, 0.0078125
    %v2884 = vmul.f32 %v2583, 0.0078125
    %v2885 = vmul.f32 %v2585, 0.0078125
    %v2886 = vmul.f32 %v2587, 0.0078125
    %v2887 = vmul.f32 %v2589, 0.0078125
    %v2888 = vmul.f32 %v2591, 0.0078125
    %v2889 = vmul.f32 %v2593, 0.0078125
    %v2890 = vmul.f32 %v2595, 0.0078125
    %v2891 = vmul.f32 %v2597, 0.0078125
    %v2892 = vmul.f32 %v2599, 0.0078125
    %v2893 = vmul.f32 %v2601, 0.0078125
    %v2894 = vmul.f32 %v2603, 0.0078125
    %v2895 = vmul.f32 %v2605, 0.0078125
    %v2896 = vmul.f32 %v2607, 0.0078125
    %v2897 = vmul.f32 %v2609, 0.0078125
    %v2898 = vmul.f32 %v2611, 0.0078125
    %v2899 = vmul.f32 %v2613, 0.0078125
    %v2900 = vmul.f32 %v2615, 0.0078125
    %v2901 = vmul.f32 %v2617, 0.0078125
    %v2902 = vmul.f32 %v2619, 0.0078125
    %v2903 = vmul.f32 %v2621, 0.0078125
    %v2904 = vmul.f32 %v2623, 0.0078125
    %v2905 = vmul.f32 %v2625, 0.0078125
    %v2906 = vmul.f32 %v2627, 0.0078125
    %v2907 = vmul.f32 %v2629, 0.0078125
    %v2908 = vmul.f32 %v2631, 0.0078125
    %v2909 = vmul.f32 %v2633, 0.0078125
    %v2910 = vmul.f32 %v2635, 0.0078125
    %v2911 = vmul.f32 %v2637, 0.0078125
    %v2912 = vmul.f32 %v2639, 0.0078125
    %v2913 = vmul.f32 %v2641, 0.0078125
    %v2914 = vmul.f32 %v2643, 0.0078125
    %v2915 = vmul.f32 %v2645, 0.0078125
    %v2916 = vmul.f32 %v2647, 0.0078125
    %v2917 = vmul.f32 %v2649, 0.0078125
    %v2918 = vmul.f32 %v2651, 0.0078125
    %v2919 = vmul.f32 %v2653, 0.0078125
    %v2920 = vmul.f32 %v2655, 0.0078125
    %v2921 = vmul.f32 %v2657, 0.0078125
    %v2922 = vmul.f32 %v2659, 0.0078125
    %v2923 = vmul.f32 %v2661, 0.0078125
    %v2924 = vmul.f32 %v2663, 0.0078125
    %v2925 = vmul.f32 %v2665, 0.0078125
    %v2926 = vmul.f32 %v2667, 0.0078125
    %v2927 = vmul.f32 %v2669, 0.0078125
    %v2928 = vmul.f32 %v2671, 0.0078125
    %v2929 = vmul.f32 %v2673, 0.0078125
    %v2930 = vmul.f32 %v2739, 0.0078125
    %v2931 = vmul.f32 %v2741, 0.0078125
    %v2932 = vmul.f32 %v2743, 0.0078125
    %v2933 = vmul.f32 %v2745, 0.0078125
    %v2934 = vmul.f32 %v2747, 0.0078125
    %v2935 = vmul.f32 %v2749, 0.0078125
    %v2936 = vmul.f32 %v2751, 0.0078125
    %v2937 = vmul.f32 %v2753, 0.0078125
    %v2938 = vmul.f32 %v2755, 0.0078125
    %v2939 = vmul.f32 %v2757, 0.0078125
    %v2940 = vmul.f32 %v2759, 0.0078125
    %v2941 = vmul.f32 %v2761, 0.0078125
    %v2942 = vmul.f32 %v2763, 0.0078125
    %v2943 = vmul.f32 %v2765, 0.0078125
    %v2944 = vmul.f32 %v2767, 0.0078125
    %v2945 = vmul.f32 %v2769, 0.0078125
    %v2946 = vmul.f32 %v2771, 0.0078125
    %v2947 = vmul.f32 %v2773, 0.0078125
    %v2948 = vmul.f32 %v2775, 0.0078125
    %v2949 = vmul.f32 %v2777, 0.0078125
    %v2950 = vmul.f32 %v2779, 0.0078125
    %v2951 = vmul.f32 %v2781, 0.0078125
    %v2952 = vmul.f32 %v2783, 0.0078125
    %v2953 = vmul.f32 %v2785, 0.0078125
    %v2954 = vmul.f32 %v2787, 0.0078125
    %v2955 = vmul.f32 %v2789, 0.0078125
    %v2956 = vmul.f32 %v2791, 0.0078125
    %v2957 = vmul.f32 %v2793, 0.0078125
    %v2958 = vmul.f32 %v2795, 0.0078125
    %v2959 = vmul.f32 %v2797, 0.0078125
    %v2960 = vmul.f32 %v2799, 0.0078125
    %v2961 = vmul.f32 %v2801, 0.0078125
    %v2962 = vmul.f32 %v2803, 0.0078125
    %v2963 = vmul.f32 %v2805, 0.0078125
    %v2964 = vmul.f32 %v2807, 0.0078125
    %v2965 = vmul.f32 %v2809, 0.0078125
    %v2966 = vmul.f32 %v2811, 0.0078125
    %v2967 = vmul.f32 %v2813, 0.0078125
    %v2968 = vmul.f32 %v2815, 0.0078125
    %v2969 = vmul.f32 %v2817, 0.0078125
    %v2970 = vmul.f32 %v2819, 0.0078125
    %v2971 = vmul.f32 %v2821, 0.0078125
    %v2972 = vmul.f32 %v2823, 0.0078125
    %v2973 = vmul.f32 %v2825, 0.0078125
    %v2974 = vmul.f32 %v2827, 0.0078125
    %v2975 = vmul.f32 %v2829, 0.0078125
    %v2976 = vmul.f32 %v2831, 0.0078125
    %v2977 = vmul.f32 %v2833, 0.0078125
    %v2978 = vmul.f32 %v2835, 0.0078125
    %v2979 = vmul.f32 %v2837, 0.0078125
    %v2980 = vmul.f32 %v2839, 0.0078125
    %v2981 = vmul.f32 %v2841, 0.0078125
    %v2982 = vmul.f32 %v2843, 0.0078125
    %v2983 = vmul.f32 %v2845, 0.0078125
    %v2984 = vmul.f32 %v2847, 0.0078125
    %v2985 = vmul.f32 %v2849, 0.0078125
    %v2986 = vmul.f32 %v2851, 0.0078125
    %v2987 = vmul.f32 %v2853, 0.0078125
    %v2988 = vmul.f32 %v2855, 0.0078125
    %v2989 = vmul.f32 %v2857, 0.0078125
    %v2990 = vmul.f32 %v2859, 0.0078125
    %v2991 = vmul.f32 %v2861, 0.0078125
    %v2992 = vmul.f32 %v2863, 0.0078125
    %v2993 = vmul.f32 %v2865, 0.0078125
    %v2994 = vmul.f32 %v2866, %v2866
    %v2995 = vmul.f32 %v2867, %v2867
    %v2996 = vmul.f32 %v2868, %v2868
    %v2997 = vmul.f32 %v2869, %v2869
    %v2998 = vmul.f32 %v2870, %v2870
    %v2999 = vmul.f32 %v2871, %v2871
    %v3000 = vmul.f32 %v2872, %v2872
    %v3001 = vmul.f32 %v2873, %v2873
    %v3002 = vmul.f32 %v2874, %v2874
    %v3003 = vmul.f32 %v2875, %v2875
    %v3004 = vmul.f32 %v2876, %v2876
    %v3005 = vmul.f32 %v2877, %v2877
    %v3006 = vmul.f32 %v2878, %v2878
    %v3007 = vmul.f32 %v2879, %v2879
    %v3008 = vmul.f32 %v2880, %v2880
    %v3009 = vmul.f32 %v2881, %v2881
    %v3010 = vmul.f32 %v2882, %v2882
    %v3011 = vmul.f32 %v2883, %v2883
    %v3012 = vmul.f32 %v2884, %v2884
    %v3013 = vmul.f32 %v2885, %v2885
    %v3014 = vmul.f32 %v2886, %v2886
    %v3015 = vmul.f32 %v2887, %v2887
    %v3016 = vmul.f32 %v2888, %v2888
    %v3017 = vmul.f32 %v2889, %v2889
    %v3018 = vmul.f32 %v2890, %v2890
    %v3019 = vmul.f32 %v2891, %v2891
    %v3020 = vmul.f32 %v2892, %v2892
    %v3021 = vmul.f32 %v2893, %v2893
    %v3022 = vmul.f32 %v2894, %v2894
    %v3023 = vmul.f32 %v2895, %v2895
    %v3024 = vmul.f32 %v2896, %v2896
    %v3025 = vmul.f32 %v2897, %v2897
    %v3026 = vmul.f32 %v2898, %v2898
    %v3027 = vmul.f32 %v2899, %v2899
    %v3028 = vmul.f32 %v2900, %v2900
    %v3029 = vmul.f32 %v2901, %v2901
    %v3030 = vmul.f32 %v2902, %v2902
    %v3031 = vmul.f32 %v2903, %v2903
    %v3032 = vmul.f32 %v2904, %v2904
    %v3033 = vmul.f32 %v2905, %v2905
    %v3034 = vmul.f32 %v2906, %v2906
    %v3035 = vmul.f32 %v2907, %v2907
    %v3036 = vmul.f32 %v2908, %v2908
    %v3037 = vmul.f32 %v2909, %v2909
    %v3038 = vmul.f32 %v2910, %v2910
    %v3039 = vmul.f32 %v2911, %v2911
    %v3040 = vmul.f32 %v2912, %v2912
    %v3041 = vmul.f32 %v2913, %v2913
    %v3042 = vmul.f32 %v2914, %v2914
    %v3043 = vmul.f32 %v2915, %v2915
    %v3044 = vmul.f32 %v2916, %v2916
    %v3045 = vmul.f32 %v2917, %v2917
    %v3046 = vmul.f32 %v2918, %v2918
    %v3047 = vmul.f32 %v2919, %v2919
    %v3048 = vmul.f32 %v2920, %v2920
    %v3049 = vmul.f32 %v2921, %v2921
    %v3050 = vmul.f32 %v2922, %v2922
    %v3051 = vmul.f32 %v2923, %v2923
    %v3052 = vmul.f32 %v2924, %v2924
    %v3053 = vmul.f32 %v2925, %v2925
    %v3054 = vmul.f32 %v2926, %v2926
    %v3055 = vmul.f32 %v2927, %v2927
    %v3056 = vmul.f32 %v2928, %v2928
    %v3057 = vmul.f32 %v2929, %v2929
    %v3058 = vsub.f32 %v2930, %v2994
    %v3059 = vsub.f32 %v2931, %v2995
    %v3060 = vsub.f32 %v2932, %v2996
    %v3061 = vsub.f32 %v2933, %v2997
    %v3062 = vsub.f32 %v2934, %v2998
    %v3063 = vsub.f32 %v2935, %v2999
    %v3064 = vsub.f32 %v2936, %v3000
    %v3065 = vsub.f32 %v2937, %v3001
    %v3066 = vsub.f32 %v2938, %v3002
    %v3067 = vsub.f32 %v2939, %v3003
    %v3068 = vsub.f32 %v2940, %v3004
    %v3069 = vsub.f32 %v2941, %v3005
    %v3070 = vsub.f32 %v2942, %v3006
    %v3071 = vsub.f32 %v2943, %v3007
    %v3072 = vsub.f32 %v2944, %v3008
    %v3073 = vsub.f32 %v2945, %v3009
    %v3074 = vsub.f32 %v2946, %v3010
    %v3075 = vsub.f32 %v2947, %v3011
    %v3076 = vsub.f32 %v2948, %v3012
    %v3077 = vsub.f32 %v2949, %v3013
    %v3078 = vsub.f32 %v2950, %v3014
    %v3079 = vsub.f32 %v2951, %v3015
    %v3080 = vsub.f32 %v2952, %v3016
    %v3081 = vsub.f32 %v2953, %v3017
    %v3082 = vsub.f32 %v2954, %v3018
    %v3083 = vsub.f32 %v2955, %v3019
    %v3084 = vsub.f32 %v2956, %v3020
    %v3085 = vsub.f32 %v2957, %v3021
    %v3086 = vsub.f32 %v2958, %v3022
    %v3087 = vsub.f32 %v2959, %v3023
    %v3088 = vsub.f32 %v2960, %v3024
    %v3089 = vsub.f32 %v2961, %v3025
    %v3090 = vsub.f32 %v2962, %v3026
    %v3091 = vsub.f32 %v2963, %v3027
    %v3092 = vsub.f32 %v2964, %v3028
    %v3093 = vsub.f32 %v2965, %v3029
    %v3094 = vsub.f32 %v2966, %v3030
    %v3095 = vsub.f32 %v2967, %v3031
    %v3096 = vsub.f32 %v2968, %v3032
    %v3097 = vsub.f32 %v2969, %v3033
    %v3098 = vsub.f32 %v2970, %v3034
    %v3099 = vsub.f32 %v2971, %v3035
    %v3100 = vsub.f32 %v2972, %v3036
    %v3101 = vsub.f32 %v2973, %v3037
    %v3102 = vsub.f32 %v2974, %v3038
    %v3103 = vsub.f32 %v2975, %v3039
    %v3104 = vsub.f32 %v2976, %v3040
    %v3105 = vsub.f32 %v2977, %v3041
    %v3106 = vsub.f32 %v2978, %v3042
    %v3107 = vsub.f32 %v2979, %v3043
    %v3108 = vsub.f32 %v2980, %v3044
    %v3109 = vsub.f32 %v2981, %v3045
    %v3110 = vsub.f32 %v2982, %v3046
    %v3111 = vsub.f32 %v2983, %v3047
    %v3112 = vsub.f32 %v2984, %v3048
    %v3113 = vsub.f32 %v2985, %v3049
    %v3114 = vsub.f32 %v2986, %v3050
    %v3115 = vsub.f32 %v2987, %v3051
    %v3116 = vsub.f32 %v2988, %v3052
    %v3117 = vsub.f32 %v2989, %v3053
    %v3118 = vsub.f32 %v2990, %v3054
    %v3119 = vsub.f32 %v2991, %v3055
    %v3120 = vsub.f32 %v2992, %v3056
    %v3121 = vsub.f32 %v2993, %v3057
    %v3122 = vsub.f32 %v2228, %v2866
    %v3123 = vsub.f32 %v2233, %v2867
    %v3124 = vsub.f32 %v2238, %v2868
    %v3125 = vsub.f32 %v2243, %v2869
    %v3126 = vsub.f32 %v2248, %v2870
    %v3127 = vsub.f32 %v2253, %v2871
    %v3128 = vsub.f32 %v2258, %v2872
    %v3129 = vsub.f32 %v2263, %v2873
    %v3130 = vsub.f32 %v2268, %v2874
    %v3131 = vsub.f32 %v2273, %v2875
    %v3132 = vsub.f32 %v2278, %v2876
    %v3133 = vsub.f32 %v2283, %v2877
    %v3134 = vsub.f32 %v2288, %v2878
    %v3135 = vsub.f32 %v2293, %v2879
    %v3136 = vsub.f32 %v2298, %v2880
    %v3137 = vsub.f32 %v2303, %v2881
    %v3138 = vsub.f32 %v2308, %v2882
    %v3139 = vsub.f32 %v2313, %v2883
    %v3140 = vsub.f32 %v2318, %v2884
    %v3141 = vsub.f32 %v2323, %v2885
    %v3142 = vsub.f32 %v2328, %v2886
    %v3143 = vsub.f32 %v2333, %v2887
    %v3144 = vsub.f32 %v2338, %v2888
    %v3145 = vsub.f32 %v2343, %v2889
    %v3146 = vsub.f32 %v2348, %v2890
    %v3147 = vsub.f32 %v2353, %v2891
    %v3148 = vsub.f32 %v2358, %v2892
    %v3149 = vsub.f32 %v2363, %v2893
    %v3150 = vsub.f32 %v2368, %v2894
    %v3151 = vsub.f32 %v2373, %v2895
    %v3152 = vsub.f32 %v2378, %v2896
    %v3153 = vsub.f32 %v2383, %v2897
    %v3154 = vsub.f32 %v2388, %v2898
    %v3155 = vsub.f32 %v2393, %v2899
    %v3156 = vsub.f32 %v2398, %v2900
    %v3157 = vsub.f32 %v2403, %v2901
    %v3158 = vsub.f32 %v2408, %v2902
    %v3159 = vsub.f32 %v2413, %v2903
    %v3160 = vsub.f32 %v2418, %v2904
    %v3161 = vsub.f32 %v2423, %v2905
    %v3162 = vsub.f32 %v2428, %v2906
    %v3163 = vsub.f32 %v2433, %v2907
    %v3164 = vsub.f32 %v2438, %v2908
    %v3165 = vsub.f32 %v2443, %v2909
    %v3166 = vsub.f32 %v2448, %v2910
    %v3167 = vsub.f32 %v2453, %v2911
    %v3168 = vsub.f32 %v2458, %v2912
    %v3169 = vsub.f32 %v2463, %v2913
    %v3170 = vsub.f32 %v2468, %v2914
    %v3171 = vsub.f32 %v2473, %v2915
    %v3172 = vsub.f32 %v2478, %v2916
    %v3173 = vsub.f32 %v2483, %v2917
    %v3174 = vsub.f32 %v2488, %v2918
    %v3175 = vsub.f32 %v2493, %v2919
    %v3176 = vsub.f32 %v2498, %v2920
    %v3177 = vsub.f32 %v2503, %v2921
    %v3178 = vsub.f32 %v2508, %v2922
    %v3179 = vsub.f32 %v2513, %v2923
    %v3180 = vsub.f32 %v2518, %v2924
    %v3181 = vsub.f32 %v2523, %v2925
    %v3182 = vsub.f32 %v2528, %v2926
    %v3183 = vsub.f32 %v2533, %v2927
    %v3184 = vsub.f32 %v2538, %v2928
    %v3185 = vsub.f32 %v2543, %v2929
    %v3186 = vadd.f32 %v3058, 1e-05
    %v3187 = vadd.f32 %v3059, 1e-05
    %v3188 = vadd.f32 %v3060, 1e-05
    %v3189 = vadd.f32 %v3061, 1e-05
    %v3190 = vadd.f32 %v3062, 1e-05
    %v3191 = vadd.f32 %v3063, 1e-05
    %v3192 = vadd.f32 %v3064, 1e-05
    %v3193 = vadd.f32 %v3065, 1e-05
    %v3194 = vadd.f32 %v3066, 1e-05
    %v3195 = vadd.f32 %v3067, 1e-05
    %v3196 = vadd.f32 %v3068, 1e-05
    %v3197 = vadd.f32 %v3069, 1e-05
    %v3198 = vadd.f32 %v3070, 1e-05
    %v3199 = vadd.f32 %v3071, 1e-05
    %v3200 = vadd.f32 %v3072, 1e-05
    %v3201 = vadd.f32 %v3073, 1e-05
    %v3202 = vadd.f32 %v3074, 1e-05
    %v3203 = vadd.f32 %v3075, 1e-05
    %v3204 = vadd.f32 %v3076, 1e-05
    %v3205 = vadd.f32 %v3077, 1e-05
    %v3206 = vadd.f32 %v3078, 1e-05
    %v3207 = vadd.f32 %v3079, 1e-05
    %v3208 = vadd.f32 %v3080, 1e-05
    %v3209 = vadd.f32 %v3081, 1e-05
    %v3210 = vadd.f32 %v3082, 1e-05
    %v3211 = vadd.f32 %v3083, 1e-05
    %v3212 = vadd.f32 %v3084, 1e-05
    %v3213 = vadd.f32 %v3085, 1e-05
    %v3214 = vadd.f32 %v3086, 1e-05
    %v3215 = vadd.f32 %v3087, 1e-05
    %v3216 = vadd.f32 %v3088, 1e-05
    %v3217 = vadd.f32 %v3089, 1e-05
    %v3218 = vadd.f32 %v3090, 1e-05
    %v3219 = vadd.f32 %v3091, 1e-05
    %v3220 = vadd.f32 %v3092, 1e-05
    %v3221 = vadd.f32 %v3093, 1e-05
    %v3222 = vadd.f32 %v3094, 1e-05
    %v3223 = vadd.f32 %v3095, 1e-05
    %v3224 = vadd.f32 %v3096, 1e-05
    %v3225 = vadd.f32 %v3097, 1e-05
    %v3226 = vadd.f32 %v3098, 1e-05
    %v3227 = vadd.f32 %v3099, 1e-05
    %v3228 = vadd.f32 %v3100, 1e-05
    %v3229 = vadd.f32 %v3101, 1e-05
    %v3230 = vadd.f32 %v3102, 1e-05
    %v3231 = vadd.f32 %v3103, 1e-05
    %v3232 = vadd.f32 %v3104, 1e-05
    %v3233 = vadd.f32 %v3105, 1e-05
    %v3234 = vadd.f32 %v3106, 1e-05
    %v3235 = vadd.f32 %v3107, 1e-05
    %v3236 = vadd.f32 %v3108, 1e-05
    %v3237 = vadd.f32 %v3109, 1e-05
    %v3238 = vadd.f32 %v3110, 1e-05
    %v3239 = vadd.f32 %v3111, 1e-05
    %v3240 = vadd.f32 %v3112, 1e-05
    %v3241 = vadd.f32 %v3113, 1e-05
    %v3242 = vadd.f32 %v3114, 1e-05
    %v3243 = vadd.f32 %v3115, 1e-05
    %v3244 = vadd.f32 %v3116, 1e-05
    %v3245 = vadd.f32 %v3117, 1e-05
    %v3246 = vadd.f32 %v3118, 1e-05
    %v3247 = vadd.f32 %v3119, 1e-05
    %v3248 = vadd.f32 %v3120, 1e-05
    %v3249 = vadd.f32 %v3121, 1e-05
    %v3250 = vrsqrt.pop %v3186
    %v3251 = vrsqrt.pop %v3187
    %v3252 = vrsqrt.pop %v3188
    %v3253 = vrsqrt.pop %v3189
    %v3254 = vrsqrt.pop %v3190
    %v3255 = vrsqrt.pop %v3191
    %v3256 = vrsqrt.pop %v3192
    %v3257 = vrsqrt.pop %v3193
    %v3258 = vrsqrt.pop %v3194
    %v3259 = vrsqrt.pop %v3195
    %v3260 = vrsqrt.pop %v3196
    %v3261 = vrsqrt.pop %v3197
    %v3262 = vrsqrt.pop %v3198
    %v3263 = vrsqrt.pop %v3199
    %v3264 = vrsqrt.pop %v3200
    %v3265 = vrsqrt.pop %v3201
    %v3266 = vrsqrt.pop %v3202
    %v3267 = vrsqrt.pop %v3203
    %v3268 = vrsqrt.pop %v3204
    %v3269 = vrsqrt.pop %v3205
    %v3270 = vrsqrt.pop %v3206
    %v3271 = vrsqrt.pop %v3207
    %v3272 = vrsqrt.pop %v3208
    %v3273 = vrsqrt.pop %v3209
    %v3274 = vrsqrt.pop %v3210
    %v3275 = vrsqrt.pop %v3211
    %v3276 = vrsqrt.pop %v3212
    %v3277 = vrsqrt.pop %v3213
    %v3278 = vrsqrt.pop %v3214
    %v3279 = vrsqrt.pop %v3215
    %v3280 = vrsqrt.pop %v3216
    %v3281 = vrsqrt.pop %v3217
    %v3282 = vrsqrt.pop %v3218
    %v3283 = vrsqrt.pop %v3219
    %v3284 = vrsqrt.pop %v3220
    %v3285 = vrsqrt.pop %v3221
    %v3286 = vrsqrt.pop %v3222
    %v3287 = vrsqrt.pop %v3223
    %v3288 = vrsqrt.pop %v3224
    %v3289 = vrsqrt.pop %v3225
    %v3290 = vrsqrt.pop %v3226
    %v3291 = vrsqrt.pop %v3227
    %v3292 = vrsqrt.pop %v3228
    %v3293 = vrsqrt.pop %v3229
    %v3294 = vrsqrt.pop %v3230
    %v3295 = vrsqrt.pop %v3231
    %v3296 = vrsqrt.pop %v3232
    %v3297 = vrsqrt.pop %v3233
    %v3298 = vrsqrt.pop %v3234
    %v3299 = vrsqrt.pop %v3235
    %v3300 = vrsqrt.pop %v3236
    %v3301 = vrsqrt.pop %v3237
    %v3302 = vrsqrt.pop %v3238
    %v3303 = vrsqrt.pop %v3239
    %v3304 = vrsqrt.pop %v3240
    %v3305 = vrsqrt.pop %v3241
    %v3306 = vrsqrt.pop %v3242
    %v3307 = vrsqrt.pop %v3243
    %v3308 = vrsqrt.pop %v3244
    %v3309 = vrsqrt.pop %v3245
    %v3310 = vrsqrt.pop %v3246
    %v3311 = vrsqrt.pop %v3247
    %v3312 = vrsqrt.pop %v3248
    %v3313 = vrsqrt.pop %v3249
    %v3314 = vmul.f32 %v3122, %v3250
    %v3315 = vmul.f32 %v3123, %v3251
    %v3316 = vmul.f32 %v3124, %v3252
    %v3317 = vmul.f32 %v3125, %v3253
    %v3318 = vmul.f32 %v3126, %v3254
    %v3319 = vmul.f32 %v3127, %v3255
    %v3320 = vmul.f32 %v3128, %v3256
    %v3321 = vmul.f32 %v3129, %v3257
    %v3322 = vmul.f32 %v3130, %v3258
    %v3323 = vmul.f32 %v3131, %v3259
    %v3324 = vmul.f32 %v3132, %v3260
    %v3325 = vmul.f32 %v3133, %v3261
    %v3326 = vmul.f32 %v3134, %v3262
    %v3327 = vmul.f32 %v3135, %v3263
    %v3328 = vmul.f32 %v3136, %v3264
    %v3329 = vmul.f32 %v3137, %v3265
    %v3330 = vmul.f32 %v3138, %v3266
    %v3331 = vmul.f32 %v3139, %v3267
    %v3332 = vmul.f32 %v3140, %v3268
    %v3333 = vmul.f32 %v3141, %v3269
    %v3334 = vmul.f32 %v3142, %v3270
    %v3335 = vmul.f32 %v3143, %v3271
    %v3336 = vmul.f32 %v3144, %v3272
    %v3337 = vmul.f32 %v3145, %v3273
    %v3338 = vmul.f32 %v3146, %v3274
    %v3339 = vmul.f32 %v3147, %v3275
    %v3340 = vmul.f32 %v3148, %v3276
    %v3341 = vmul.f32 %v3149, %v3277
    %v3342 = vmul.f32 %v3150, %v3278
    %v3343 = vmul.f32 %v3151, %v3279
    %v3344 = vmul.f32 %v3152, %v3280
    %v3345 = vmul.f32 %v3153, %v3281
    %v3346 = vmul.f32 %v3154, %v3282
    %v3347 = vmul.f32 %v3155, %v3283
    %v3348 = vmul.f32 %v3156, %v3284
    %v3349 = vmul.f32 %v3157, %v3285
    %v3350 = vmul.f32 %v3158, %v3286
    %v3351 = vmul.f32 %v3159, %v3287
    %v3352 = vmul.f32 %v3160, %v3288
    %v3353 = vmul.f32 %v3161, %v3289
    %v3354 = vmul.f32 %v3162, %v3290
    %v3355 = vmul.f32 %v3163, %v3291
    %v3356 = vmul.f32 %v3164, %v3292
    %v3357 = vmul.f32 %v3165, %v3293
    %v3358 = vmul.f32 %v3166, %v3294
    %v3359 = vmul.f32 %v3167, %v3295
    %v3360 = vmul.f32 %v3168, %v3296
    %v3361 = vmul.f32 %v3169, %v3297
    %v3362 = vmul.f32 %v3170, %v3298
    %v3363 = vmul.f32 %v3171, %v3299
    %v3364 = vmul.f32 %v3172, %v3300
    %v3365 = vmul.f32 %v3173, %v3301
    %v3366 = vmul.f32 %v3174, %v3302
    %v3367 = vmul.f32 %v3175, %v3303
    %v3368 = vmul.f32 %v3176, %v3304
    %v3369 = vmul.f32 %v3177, %v3305
    %v3370 = vmul.f32 %v3178, %v3306
    %v3371 = vmul.f32 %v3179, %v3307
    %v3372 = vmul.f32 %v3180, %v3308
    %v3373 = vmul.f32 %v3181, %v3309
    %v3374 = vmul.f32 %v3182, %v3310
    %v3375 = vmul.f32 %v3183, %v3311
    %v3376 = vmul.f32 %v3184, %v3312
    %v3377 = vmul.f32 %v3185, %v3313
    %v3378 = vld [vmem:[%s8] sm:$0x1]
    %v3380 = vlaneseq
    %v3381 = vshrl.u32 %v3380, 7
    %v3382 = vsub.s32 0, %v3381
    %v3383 = vrot.slane %v3378, %v3382
    %v3385 = vmul.f32 %v3314, %v3383
    %v3386 = vmul.f32 %v3315, %v3383
    %v3387 = vmul.f32 %v3316, %v3383
    %v3388 = vmul.f32 %v3317, %v3383
    %v3389 = vmul.f32 %v3318, %v3383
    %v3390 = vmul.f32 %v3319, %v3383
    %v3391 = vmul.f32 %v3320, %v3383
    %v3392 = vmul.f32 %v3321, %v3383
    %v3393 = vmul.f32 %v3322, %v3383
    %v3394 = vmul.f32 %v3323, %v3383
    %v3395 = vmul.f32 %v3324, %v3383
    %v3396 = vmul.f32 %v3325, %v3383
    %v3397 = vmul.f32 %v3326, %v3383
    %v3398 = vmul.f32 %v3327, %v3383
    %v3399 = vmul.f32 %v3328, %v3383
    %v3400 = vmul.f32 %v3329, %v3383
    %v3401 = vmul.f32 %v3330, %v3383
    %v3402 = vmul.f32 %v3331, %v3383
    %v3403 = vmul.f32 %v3332, %v3383
    %v3404 = vmul.f32 %v3333, %v3383
    %v3405 = vmul.f32 %v3334, %v3383
    %v3406 = vmul.f32 %v3335, %v3383
    %v3407 = vmul.f32 %v3336, %v3383
    %v3408 = vmul.f32 %v3337, %v3383
    %v3409 = vmul.f32 %v3338, %v3383
    %v3410 = vmul.f32 %v3339, %v3383
    %v3411 = vmul.f32 %v3340, %v3383
    %v3412 = vmul.f32 %v3341, %v3383
    %v3413 = vmul.f32 %v3342, %v3383
    %v3414 = vmul.f32 %v3343, %v3383
    %v3415 = vmul.f32 %v3344, %v3383
    %v3416 = vmul.f32 %v3345, %v3383
    %v3417 = vmul.f32 %v3346, %v3383
    %v3418 = vmul.f32 %v3347, %v3383
    %v3419 = vmul.f32 %v3348, %v3383
    %v3420 = vmul.f32 %v3349, %v3383
    %v3421 = vmul.f32 %v3350, %v3383
    %v3422 = vmul.f32 %v3351, %v3383
    %v3423 = vmul.f32 %v3352, %v3383
    %v3424 = vmul.f32 %v3353, %v3383
    %v3425 = vmul.f32 %v3354, %v3383
    %v3426 = vmul.f32 %v3355, %v3383
    %v3427 = vmul.f32 %v3356, %v3383
    %v3428 = vmul.f32 %v3357, %v3383
    %v3429 = vmul.f32 %v3358, %v3383
    %v3430 = vmul.f32 %v3359, %v3383
    %v3431 = vmul.f32 %v3360, %v3383
    %v3432 = vmul.f32 %v3361, %v3383
    %v3433 = vmul.f32 %v3362, %v3383
    %v3434 = vmul.f32 %v3363, %v3383
    %v3435 = vmul.f32 %v3364, %v3383
    %v3436 = vmul.f32 %v3365, %v3383
    %v3437 = vmul.f32 %v3366, %v3383
    %v3438 = vmul.f32 %v3367, %v3383
    %v3439 = vmul.f32 %v3368, %v3383
    %v3440 = vmul.f32 %v3369, %v3383
    %v3441 = vmul.f32 %v3370, %v3383
    %v3442 = vmul.f32 %v3371, %v3383
    %v3443 = vmul.f32 %v3372, %v3383
    %v3444 = vmul.f32 %v3373, %v3383
    %v3445 = vmul.f32 %v3374, %v3383
    %v3446 = vmul.f32 %v3375, %v3383
    %v3447 = vmul.f32 %v3376, %v3383
    %v3448 = vmul.f32 %v3377, %v3383
    %v3449 = vld [vmem:[%s9] sm:$0x1]
    %v3451 = vlaneseq
    %v3452 = vshrl.u32 %v3451, 7
    %v3453 = vsub.s32 0, %v3452
    %v3454 = vrot.slane %v3449, %v3453
    %v3456 = vadd.f32 %v3385, %v3454
    %v3457 = vadd.f32 %v3386, %v3454
    %v3458 = vadd.f32 %v3387, %v3454
    %v3459 = vadd.f32 %v3388, %v3454
    %v3460 = vadd.f32 %v3389, %v3454
    %v3461 = vadd.f32 %v3390, %v3454
    %v3462 = vadd.f32 %v3391, %v3454
    %v3463 = vadd.f32 %v3392, %v3454
    %v3464 = vadd.f32 %v3393, %v3454
    %v3465 = vadd.f32 %v3394, %v3454
    %v3466 = vadd.f32 %v3395, %v3454
    %v3467 = vadd.f32 %v3396, %v3454
    %v3468 = vadd.f32 %v3397, %v3454
    %v3469 = vadd.f32 %v3398, %v3454
    %v3470 = vadd.f32 %v3399, %v3454
    %v3471 = vadd.f32 %v3400, %v3454
    %v3472 = vadd.f32 %v3401, %v3454
    %v3473 = vadd.f32 %v3402, %v3454
    %v3474 = vadd.f32 %v3403, %v3454
    %v3475 = vadd.f32 %v3404, %v3454
    %v3476 = vadd.f32 %v3405, %v3454
    %v3477 = vadd.f32 %v3406, %v3454
    %v3478 = vadd.f32 %v3407, %v3454
    %v3479 = vadd.f32 %v3408, %v3454
    %v3480 = vadd.f32 %v3409, %v3454
    %v3481 = vadd.f32 %v3410, %v3454
    %v3482 = vadd.f32 %v3411, %v3454
    %v3483 = vadd.f32 %v3412, %v3454
    %v3484 = vadd.f32 %v3413, %v3454
    %v3485 = vadd.f32 %v3414, %v3454
    %v3486 = vadd.f32 %v3415, %v3454
    %v3487 = vadd.f32 %v3416, %v3454
    %v3488 = vadd.f32 %v3417, %v3454
    %v3489 = vadd.f32 %v3418, %v3454
    %v3490 = vadd.f32 %v3419, %v3454
    %v3491 = vadd.f32 %v3420, %v3454
    %v3492 = vadd.f32 %v3421, %v3454
    %v3493 = vadd.f32 %v3422, %v3454
    %v3494 = vadd.f32 %v3423, %v3454
    %v3495 = vadd.f32 %v3424, %v3454
    %v3496 = vadd.f32 %v3425, %v3454
    %v3497 = vadd.f32 %v3426, %v3454
    %v3498 = vadd.f32 %v3427, %v3454
    %v3499 = vadd.f32 %v3428, %v3454
    %v3500 = vadd.f32 %v3429, %v3454
    %v3501 = vadd.f32 %v3430, %v3454
    %v3502 = vadd.f32 %v3431, %v3454
    %v3503 = vadd.f32 %v3432, %v3454
    %v3504 = vadd.f32 %v3433, %v3454
    %v3505 = vadd.f32 %v3434, %v3454
    %v3506 = vadd.f32 %v3435, %v3454
    %v3507 = vadd.f32 %v3436, %v3454
    %v3508 = vadd.f32 %v3437, %v3454
    %v3509 = vadd.f32 %v3438, %v3454
    %v3510 = vadd.f32 %v3439, %v3454
    %v3511 = vadd.f32 %v3440, %v3454
    %v3512 = vadd.f32 %v3441, %v3454
    %v3513 = vadd.f32 %v3442, %v3454
    %v3514 = vadd.f32 %v3443, %v3454
    %v3515 = vadd.f32 %v3444, %v3454
    %v3516 = vadd.f32 %v3445, %v3454
    %v3517 = vadd.f32 %v3446, %v3454
    %v3518 = vadd.f32 %v3447, %v3454
    %v3519 = vadd.f32 %v3448, %v3454
    %v3520 = vmax.f32 %v3456, 0.0
    %v3521 = vmax.f32 %v3457, 0.0
    %v3522 = vmax.f32 %v3458, 0.0
    %v3523 = vmax.f32 %v3459, 0.0
    %v3524 = vmax.f32 %v3460, 0.0
    %v3525 = vmax.f32 %v3461, 0.0
    %v3526 = vmax.f32 %v3462, 0.0
    %v3527 = vmax.f32 %v3463, 0.0
    %v3528 = vmax.f32 %v3464, 0.0
    %v3529 = vmax.f32 %v3465, 0.0
    %v3530 = vmax.f32 %v3466, 0.0
    %v3531 = vmax.f32 %v3467, 0.0
    %v3532 = vmax.f32 %v3468, 0.0
    %v3533 = vmax.f32 %v3469, 0.0
    %v3534 = vmax.f32 %v3470, 0.0
    %v3535 = vmax.f32 %v3471, 0.0
    %v3536 = vmax.f32 %v3472, 0.0
    %v3537 = vmax.f32 %v3473, 0.0
    %v3538 = vmax.f32 %v3474, 0.0
    %v3539 = vmax.f32 %v3475, 0.0
    %v3540 = vmax.f32 %v3476, 0.0
    %v3541 = vmax.f32 %v3477, 0.0
    %v3542 = vmax.f32 %v3478, 0.0
    %v3543 = vmax.f32 %v3479, 0.0
    %v3544 = vmax.f32 %v3480, 0.0
    %v3545 = vmax.f32 %v3481, 0.0
    %v3546 = vmax.f32 %v3482, 0.0
    %v3547 = vmax.f32 %v3483, 0.0
    %v3548 = vmax.f32 %v3484, 0.0
    %v3549 = vmax.f32 %v3485, 0.0
    %v3550 = vmax.f32 %v3486, 0.0
    %v3551 = vmax.f32 %v3487, 0.0
    %v3552 = vmax.f32 %v3488, 0.0
    %v3553 = vmax.f32 %v3489, 0.0
    %v3554 = vmax.f32 %v3490, 0.0
    %v3555 = vmax.f32 %v3491, 0.0
    %v3556 = vmax.f32 %v3492, 0.0
    %v3557 = vmax.f32 %v3493, 0.0
    %v3558 = vmax.f32 %v3494, 0.0
    %v3559 = vmax.f32 %v3495, 0.0
    %v3560 = vmax.f32 %v3496, 0.0
    %v3561 = vmax.f32 %v3497, 0.0
    %v3562 = vmax.f32 %v3498, 0.0
    %v3563 = vmax.f32 %v3499, 0.0
    %v3564 = vmax.f32 %v3500, 0.0
    %v3565 = vmax.f32 %v3501, 0.0
    %v3566 = vmax.f32 %v3502, 0.0
    %v3567 = vmax.f32 %v3503, 0.0
    %v3568 = vmax.f32 %v3504, 0.0
    %v3569 = vmax.f32 %v3505, 0.0
    %v3570 = vmax.f32 %v3506, 0.0
    %v3571 = vmax.f32 %v3507, 0.0
    %v3572 = vmax.f32 %v3508, 0.0
    %v3573 = vmax.f32 %v3509, 0.0
    %v3574 = vmax.f32 %v3510, 0.0
    %v3575 = vmax.f32 %v3511, 0.0
    %v3576 = vmax.f32 %v3512, 0.0
    %v3577 = vmax.f32 %v3513, 0.0
    %v3578 = vmax.f32 %v3514, 0.0
    %v3579 = vmax.f32 %v3515, 0.0
    %v3580 = vmax.f32 %v3516, 0.0
    %v3581 = vmax.f32 %v3517, 0.0
    %v3582 = vmax.f32 %v3518, 0.0
    %v3583 = vmax.f32 %v3519, 0.0
    %v3584 = vld [vmem:[#allocation5] sm:$0xff]
    %v3585 = vld [vmem:[#allocation5 + $0x8] sm:$0xff]
    %v3586 = vld [vmem:[#allocation5 + $0x10] sm:$0xff]
    %v3587 = vld [vmem:[#allocation5 + $0x18] sm:$0xff]
    %v3588 = vld [vmem:[#allocation5 + $0x20] sm:$0xff]
    %v3589 = vld [vmem:[#allocation5 + $0x28] sm:$0xff]
    %v3590 = vld [vmem:[#allocation5 + $0x30] sm:$0xff]
    %v3591 = vld [vmem:[#allocation5 + $0x38] sm:$0xff]
    %v3592 = vld [vmem:[#allocation5 + $0x40] sm:$0xff]
    %v3593 = vld [vmem:[#allocation5 + $0x48] sm:$0xff]
    %v3594 = vld [vmem:[#allocation5 + $0x50] sm:$0xff]
    %v3595 = vld [vmem:[#allocation5 + $0x58] sm:$0xff]
    %v3596 = vld [vmem:[#allocation5 + $0x60] sm:$0xff]
    %v3597 = vld [vmem:[#allocation5 + $0x68] sm:$0xff]
    %v3598 = vld [vmem:[#allocation5 + $0x70] sm:$0xff]
    %v3599 = vld [vmem:[#allocation5 + $0x78] sm:$0xff]
    %v3600 = vld [vmem:[#allocation5 + $0x80] sm:$0xff]
    %v3601 = vld [vmem:[#allocation5 + $0x88] sm:$0xff]
    %v3602 = vld [vmem:[#allocation5 + $0x90] sm:$0xff]
    %v3603 = vld [vmem:[#allocation5 + $0x98] sm:$0xff]
    %v3604 = vld [vmem:[#allocation5 + $0xa0] sm:$0xff]
    %v3605 = vld [vmem:[#allocation5 + $0xa8] sm:$0xff]
    %v3606 = vld [vmem:[#allocation5 + $0xb0] sm:$0xff]
    %v3607 = vld [vmem:[#allocation5 + $0xb8] sm:$0xff]
    %v3608 = vld [vmem:[#allocation5 + $0xc0] sm:$0xff]
    %v3609 = vld [vmem:[#allocation5 + $0xc8] sm:$0xff]
    %v3610 = vld [vmem:[#allocation5 + $0xd0] sm:$0xff]
    %v3611 = vld [vmem:[#allocation5 + $0xd8] sm:$0xff]
    %v3612 = vld [vmem:[#allocation5 + $0xe0] sm:$0xff]
    %v3613 = vld [vmem:[#allocation5 + $0xe8] sm:$0xff]
    %v3614 = vld [vmem:[#allocation5 + $0xf0] sm:$0xff]
    %v3615 = vld [vmem:[#allocation5 + $0xf8] sm:$0xff]
    %v3616 = vld [vmem:[%s11] sm:$0x3]
    %v3618 = vlaneseq
    %v3619 = vshrl.u32 %v3618, 7
    %v3620 = vsub.s32 0, %v3619
    %v3621 = vrot.slane %v3616, %v3620
    %v3622 = vlaneseq
    %v3623 = vshrl.u32 %v3622, 7
    %v3624 = vsub.s32 1, %v3623
    %v3625 = vrot.slane %v3616, %v3624
    %3628 = vmatprep.subr.mxu0 %v3585
    %3629 = vmatpush1.msra.mxu0 %v3584
    %3630 = vmatprep.subr.mxu0 %v3587
    %3631 = vmatpush1.msra.mxu0 %v3586
    %3632 = vmatprep.subr.mxu0 %v3589
    %3633 = vmatpush1.msra.mxu0 %v3588
    %3634 = vmatprep.subr.mxu0 %v3591
    %3635 = vmatpush1.msra.mxu0 %v3590
    %3636 = vmatprep.subr.mxu0 %v3593
    %3637 = vmatpush1.msra.mxu0 %v3592
    %3638 = vmatprep.subr.mxu0 %v3595
    %3639 = vmatpush1.msra.mxu0 %v3594
    %3640 = vmatprep.subr.mxu0 %v3597
    %3641 = vmatpush1.msra.mxu0 %v3596
    %3642 = vmatprep.subr.mxu0 %v3599
    %3643 = vmatpush1.msra.mxu0 %v3598
    %3644 = vmatprep.subr.mxu0 %v3601
    %3645 = vmatpush1.msra.mxu0 %v3600
    %3646 = vmatprep.subr.mxu0 %v3603
    %3647 = vmatpush1.msra.mxu0 %v3602
    %3648 = vmatprep.subr.mxu0 %v3605
    %3649 = vmatpush1.msra.mxu0 %v3604
    %3650 = vmatprep.subr.mxu0 %v3607
    %3651 = vmatpush1.msra.mxu0 %v3606
    %3652 = vmatprep.subr.mxu0 %v3609
    %3653 = vmatpush1.msra.mxu0 %v3608
    %3654 = vmatprep.subr.mxu0 %v3611
    %3655 = vmatpush1.msra.mxu0 %v3610
    %3656 = vmatprep.subr.mxu0 %v3613
    %3657 = vmatpush1.msra.mxu0 %v3612
    %3658 = vmatprep.subr.mxu0 %v3615
    %3659 = vmatpush1.msra.mxu0 %v3614
    %3660 = vmatprep.subr.mxu0 0.0
    %3661 = vmatpush1.msra.mxu0 0.0
    %3662 = vmatprep.subr.mxu0 0.0
    %3663 = vmatpush1.msra.mxu0 0.0
    %3664 = vmatprep.subr.mxu0 0.0
    %3665 = vmatpush1.msra.mxu0 0.0
    %3666 = vmatprep.subr.mxu0 0.0
    %3667 = vmatpush1.msra.mxu0 0.0
    %3668 = vmatprep.subr.mxu0 0.0
    %3669 = vmatpush1.msra.mxu0 0.0
    %3670 = vmatprep.subr.mxu0 0.0
    %3671 = vmatpush1.msra.mxu0 0.0
    %3672 = vmatprep.subr.mxu0 0.0
    %3673 = vmatpush1.msra.mxu0 0.0
    %3674 = vmatprep.subr.mxu0 0.0
    %3675 = vmatpush1.msra.mxu0 0.0
    %3676 = vmatprep.subr.mxu0 0.0
    %3677 = vmatpush1.msra.mxu0 0.0
    %3678 = vmatprep.subr.mxu0 0.0
    %3679 = vmatpush1.msra.mxu0 0.0
    %3680 = vmatprep.subr.mxu0 0.0
    %3681 = vmatpush1.msra.mxu0 0.0
    %3682 = vmatprep.subr.mxu0 0.0
    %3683 = vmatpush1.msra.mxu0 0.0
    %3684 = vmatprep.subr.mxu0 0.0
    %3685 = vmatpush1.msra.mxu0 0.0
    %3686 = vmatprep.subr.mxu0 0.0
    %3687 = vmatpush1.msra.mxu0 0.0
    %3688 = vmatprep.subr.mxu0 0.0
    %3689 = vmatpush1.msra.mxu0 0.0
    %3690 = vmatprep.subr.mxu0 0.0
    %3691 = vmatpush1.msra.mxu0 0.0
    %3692 = vmatprep.mubr.f32.mxu0 0.0
    %3693 = vmatmul.mubr.f32.gmra.mrb[0].mxu0 %v3520
    %v3694 = vpop.f32.mrb[0].mxu0
    %v3695 = vadd.f32 %v3621, %v3694
    %v3696 = vpop.f32.mrb[0].mxu0
    %v3697 = vadd.f32 %v3625, %v3696
    %3698 = vmatprep.mubr.f32.mxu0 0.0
    %3699 = vmatmul.mubr.f32.gmra.mrb[0].mxu0 %v3521
    %v3700 = vpop.f32.mrb[0].mxu0
    %v3701 = vadd.f32 %v3621, %v3700
    %v3702 = vpop.f32.mrb[0].mxu0
    %v3703 = vadd.f32 %v3625, %v3702
    %3704 = vmatprep.mubr.f32.mxu0 0.0
    %3705 = vmatmul.mubr.f32.gmra.mrb[0].mxu0 %v3522
    %v3706 = vpop.f32.mrb[0].mxu0
    %v3707 = vadd.f32 %v3621, %v3706
    %v3708 = vpop.f32.mrb[0].mxu0
    %v3709 = vadd.f32 %v3625, %v3708
    %3710 = vmatprep.mubr.f32.mxu0 0.0
    %3711 = vmatmul.mubr.f32.gmra.mrb[0].mxu0 %v3523
    %v3712 = vpop.f32.mrb[0].mxu0
    %v3713 = vadd.f32 %v3621, %v3712
    %v3714 = vpop.f32.mrb[0].mxu0
    %v3715 = vadd.f32 %v3625, %v3714
    %3716 = vmatprep.mubr.f32.mxu0 0.0
    %3717 = vmatmul.mubr.f32.gmra.mrb[0].mxu0 %v3524
    %v3718 = vpop.f32.mrb[0].mxu0
    %v3719 = vadd.f32 %v3621, %v3718
    %v3720 = vpop.f32.mrb[0].mxu0
    %v3721 = vadd.f32 %v3625, %v3720
    %3722 = vmatprep.mubr.f32.mxu0 0.0
    %3723 = vmatmul.mubr.f32.gmra.mrb[0].mxu0 %v3525
    %v3724 = vpop.f32.mrb[0].mxu0
    %v3725 = vadd.f32 %v3621, %v3724
    %v3726 = vpop.f32.mrb[0].mxu0
    %v3727 = vadd.f32 %v3625, %v3726
    %3728 = vmatprep.mubr.f32.mxu0 0.0
    %3729 = vmatmul.mubr.f32.gmra.mrb[0].mxu0 %v3526
    %v3730 = vpop.f32.mrb[0].mxu0
    %v3731 = vadd.f32 %v3621, %v3730
    %v3732 = vpop.f32.mrb[0].mxu0
    %v3733 = vadd.f32 %v3625, %v3732
    %3734 = vmatprep.mubr.f32.mxu0 0.0
    %3735 = vmatmul.mubr.f32.gmra.mrb[0].mxu0 %v3527
    %v3736 = vpop.f32.mrb[0].mxu0
    %v3737 = vadd.f32 %v3621, %v3736
    %v3738 = vpop.f32.mrb[0].mxu0
    %v3739 = vadd.f32 %v3625, %v3738
    %3740 = vmatprep.mubr.f32.mxu0 0.0
    %3741 = vmatmul.mubr.f32.gmra.mrb[0].mxu0 %v3528
    %v3742 = vpop.f32.mrb[0].mxu0
    %v3743 = vadd.f32 %v3621, %v3742
    %v3744 = vpop.f32.mrb[0].mxu0
    %v3745 = vadd.f32 %v3625, %v3744
    %3746 = vmatprep.mubr.f32.mxu0 0.0
    %3747 = vmatmul.mubr.f32.gmra.mrb[0].mxu0 %v3529
    %v3748 = vpop.f32.mrb[0].mxu0
    %v3749 = vadd.f32 %v3621, %v3748
    %v3750 = vpop.f32.mrb[0].mxu0
    %v3751 = vadd.f32 %v3625, %v3750
    %3752 = vmatprep.mubr.f32.mxu0 0.0
    %3753 = vmatmul.mubr.f32.gmra.mrb[0].mxu0 %v3530
    %v3754 = vpop.f32.mrb[0].mxu0
    %v3755 = vadd.f32 %v3621, %v3754
    %v3756 = vpop.f32.mrb[0].mxu0
    %v3757 = vadd.f32 %v3625, %v3756
    %3758 = vmatprep.mubr.f32.mxu0 0.0
    %3759 = vmatmul.mubr.f32.gmra.mrb[0].mxu0 %v3531
    %v3760 = vpop.f32.mrb[0].mxu0
    %v3761 = vadd.f32 %v3621, %v3760
    %v3762 = vpop.f32.mrb[0].mxu0
    %v3763 = vadd.f32 %v3625, %v3762
    %3764 = vmatprep.mubr.f32.mxu0 0.0
    %3765 = vmatmul.mubr.f32.gmra.mrb[0].mxu0 %v3532
    %v3766 = vpop.f32.mrb[0].mxu0
    %v3767 = vadd.f32 %v3621, %v3766
    %v3768 = vpop.f32.mrb[0].mxu0
    %v3769 = vadd.f32 %v3625, %v3768
    %3770 = vmatprep.mubr.f32.mxu0 0.0
    %3771 = vmatmul.mubr.f32.gmra.mrb[0].mxu0 %v3533
    %v3772 = vpop.f32.mrb[0].mxu0
    %v3773 = vadd.f32 %v3621, %v3772
    %v3774 = vpop.f32.mrb[0].mxu0
    %v3775 = vadd.f32 %v3625, %v3774
    %3776 = vmatprep.mubr.f32.mxu0 0.0
    %3777 = vmatmul.mubr.f32.gmra.mrb[0].mxu0 %v3534
    %v3778 = vpop.f32.mrb[0].mxu0
    %v3779 = vadd.f32 %v3621, %v3778
    %v3780 = vpop.f32.mrb[0].mxu0
    %v3781 = vadd.f32 %v3625, %v3780
    %3782 = vmatprep.mubr.f32.mxu0 0.0
    %3783 = vmatmul.mubr.f32.gmra.mrb[0].mxu0 %v3535
    %v3784 = vpop.f32.mrb[0].mxu0
    %v3785 = vadd.f32 %v3621, %v3784
    %v3786 = vpop.f32.mrb[0].mxu0
    %v3787 = vadd.f32 %v3625, %v3786
    %3788 = vmatprep.mubr.f32.mxu0 0.0
    %3789 = vmatmul.mubr.f32.gmra.mrb[0].mxu0 %v3536
    %v3790 = vpop.f32.mrb[0].mxu0
    %v3791 = vadd.f32 %v3621, %v3790
    %v3792 = vpop.f32.mrb[0].mxu0
    %v3793 = vadd.f32 %v3625, %v3792
    %3794 = vmatprep.mubr.f32.mxu0 0.0
    %3795 = vmatmul.mubr.f32.gmra.mrb[0].mxu0 %v3537
    %v3796 = vpop.f32.mrb[0].mxu0
    %v3797 = vadd.f32 %v3621, %v3796
    %v3798 = vpop.f32.mrb[0].mxu0
    %v3799 = vadd.f32 %v3625, %v3798
    %3800 = vmatprep.mubr.f32.mxu0 0.0
    %3801 = vmatmul.mubr.f32.gmra.mrb[0].mxu0 %v3538
    %v3802 = vpop.f32.mrb[0].mxu0
    %v3803 = vadd.f32 %v3621, %v3802
    %v3804 = vpop.f32.mrb[0].mxu0
    %v3805 = vadd.f32 %v3625, %v3804
    %3806 = vmatprep.mubr.f32.mxu0 0.0
    %3807 = vmatmul.mubr.f32.gmra.mrb[0].mxu0 %v3539
    %v3808 = vpop.f32.mrb[0].mxu0
    %v3809 = vadd.f32 %v3621, %v3808
    %v3810 = vpop.f32.mrb[0].mxu0
    %v3811 = vadd.f32 %v3625, %v3810
    %3812 = vmatprep.mubr.f32.mxu0 0.0
    %3813 = vmatmul.mubr.f32.gmra.mrb[0].mxu0 %v3540
    %v3814 = vpop.f32.mrb[0].mxu0
    %v3815 = vadd.f32 %v3621, %v3814
    %v3816 = vpop.f32.mrb[0].mxu0
    %v3817 = vadd.f32 %v3625, %v3816
    %3818 = vmatprep.mubr.f32.mxu0 0.0
    %3819 = vmatmul.mubr.f32.gmra.mrb[0].mxu0 %v3541
    %v3820 = vpop.f32.mrb[0].mxu0
    %v3821 = vadd.f32 %v3621, %v3820
    %v3822 = vpop.f32.mrb[0].mxu0
    %v3823 = vadd.f32 %v3625, %v3822
    %3824 = vmatprep.mubr.f32.mxu0 0.0
    %3825 = vmatmul.mubr.f32.gmra.mrb[0].mxu0 %v3542
    %v3826 = vpop.f32.mrb[0].mxu0
    %v3827 = vadd.f32 %v3621, %v3826
    %v3828 = vpop.f32.mrb[0].mxu0
    %v3829 = vadd.f32 %v3625, %v3828
    %3830 = vmatprep.mubr.f32.mxu0 0.0
    %3831 = vmatmul.mubr.f32.gmra.mrb[0].mxu0 %v3543
    %v3832 = vpop.f32.mrb[0].mxu0
    %v3833 = vadd.f32 %v3621, %v3832
    %v3834 = vpop.f32.mrb[0].mxu0
    %v3835 = vadd.f32 %v3625, %v3834
    %3836 = vmatprep.mubr.f32.mxu0 0.0
    %3837 = vmatmul.mubr.f32.gmra.mrb[0].mxu0 %v3544
    %v3838 = vpop.f32.mrb[0].mxu0
    %v3839 = vadd.f32 %v3621, %v3838
    %v3840 = vpop.f32.mrb[0].mxu0
    %v3841 = vadd.f32 %v3625, %v3840
    %3842 = vmatprep.mubr.f32.mxu0 0.0
    %3843 = vmatmul.mubr.f32.gmra.mrb[0].mxu0 %v3545
    %v3844 = vpop.f32.mrb[0].mxu0
    %v3845 = vadd.f32 %v3621, %v3844
    %v3846 = vpop.f32.mrb[0].mxu0
    %v3847 = vadd.f32 %v3625, %v3846
    %3848 = vmatprep.mubr.f32.mxu0 0.0
    %3849 = vmatmul.mubr.f32.gmra.mrb[0].mxu0 %v3546
    %v3850 = vpop.f32.mrb[0].mxu0
    %v3851 = vadd.f32 %v3621, %v3850
    %v3852 = vpop.f32.mrb[0].mxu0
    %v3853 = vadd.f32 %v3625, %v3852
    %3854 = vmatprep.mubr.f32.mxu0 0.0
    %3855 = vmatmul.mubr.f32.gmra.mrb[0].mxu0 %v3547
    %v3856 = vpop.f32.mrb[0].mxu0
    %v3857 = vadd.f32 %v3621, %v3856
    %v3858 = vpop.f32.mrb[0].mxu0
    %v3859 = vadd.f32 %v3625, %v3858
    %3860 = vmatprep.mubr.f32.mxu0 0.0
    %3861 = vmatmul.mubr.f32.gmra.mrb[0].mxu0 %v3548
    %v3862 = vpop.f32.mrb[0].mxu0
    %v3863 = vadd.f32 %v3621, %v3862
    %v3864 = vpop.f32.mrb[0].mxu0
    %v3865 = vadd.f32 %v3625, %v3864
    %3866 = vmatprep.mubr.f32.mxu0 0.0
    %3867 = vmatmul.mubr.f32.gmra.mrb[0].mxu0 %v3549
    %v3868 = vpop.f32.mrb[0].mxu0
    %v3869 = vadd.f32 %v3621, %v3868
    %v3870 = vpop.f32.mrb[0].mxu0
    %v3871 = vadd.f32 %v3625, %v3870
    %3872 = vmatprep.mubr.f32.mxu0 0.0
    %3873 = vmatmul.mubr.f32.gmra.mrb[0].mxu0 %v3550
    %v3874 = vpop.f32.mrb[0].mxu0
    %v3875 = vadd.f32 %v3621, %v3874
    %v3876 = vpop.f32.mrb[0].mxu0
    %v3877 = vadd.f32 %v3625, %v3876
    %3878 = vmatprep.mubr.f32.mxu0 0.0
    %3879 = vmatmul.mubr.f32.gmra.mrb[0].mxu0 %v3551
    %v3880 = vpop.f32.mrb[0].mxu0
    %v3881 = vadd.f32 %v3621, %v3880
    %v3882 = vpop.f32.mrb[0].mxu0
    %v3883 = vadd.f32 %v3625, %v3882
    %3884 = vmatprep.mubr.f32.mxu0 0.0
    %3885 = vmatmul.mubr.f32.gmra.mrb[0].mxu0 %v3552
    %v3886 = vpop.f32.mrb[0].mxu0
    %v3887 = vadd.f32 %v3621, %v3886
    %v3888 = vpop.f32.mrb[0].mxu0
    %v3889 = vadd.f32 %v3625, %v3888
    %3890 = vmatprep.mubr.f32.mxu0 0.0
    %3891 = vmatmul.mubr.f32.gmra.mrb[0].mxu0 %v3553
    %v3892 = vpop.f32.mrb[0].mxu0
    %v3893 = vadd.f32 %v3621, %v3892
    %v3894 = vpop.f32.mrb[0].mxu0
    %v3895 = vadd.f32 %v3625, %v3894
    %3896 = vmatprep.mubr.f32.mxu0 0.0
    %3897 = vmatmul.mubr.f32.gmra.mrb[0].mxu0 %v3554
    %v3898 = vpop.f32.mrb[0].mxu0
    %v3899 = vadd.f32 %v3621, %v3898
    %v3900 = vpop.f32.mrb[0].mxu0
    %v3901 = vadd.f32 %v3625, %v3900
    %3902 = vmatprep.mubr.f32.mxu0 0.0
    %3903 = vmatmul.mubr.f32.gmra.mrb[0].mxu0 %v3555
    %v3904 = vpop.f32.mrb[0].mxu0
    %v3905 = vadd.f32 %v3621, %v3904
    %v3906 = vpop.f32.mrb[0].mxu0
    %v3907 = vadd.f32 %v3625, %v3906
    %3908 = vmatprep.mubr.f32.mxu0 0.0
    %3909 = vmatmul.mubr.f32.gmra.mrb[0].mxu0 %v3556
    %v3910 = vpop.f32.mrb[0].mxu0
    %v3911 = vadd.f32 %v3621, %v3910
    %v3912 = vpop.f32.mrb[0].mxu0
    %v3913 = vadd.f32 %v3625, %v3912
    %3914 = vmatprep.mubr.f32.mxu0 0.0
    %3915 = vmatmul.mubr.f32.gmra.mrb[0].mxu0 %v3557
    %v3916 = vpop.f32.mrb[0].mxu0
    %v3917 = vadd.f32 %v3621, %v3916
    %v3918 = vpop.f32.mrb[0].mxu0
    %v3919 = vadd.f32 %v3625, %v3918
    %3920 = vmatprep.mubr.f32.mxu0 0.0
    %3921 = vmatmul.mubr.f32.gmra.mrb[0].mxu0 %v3558
    %v3922 = vpop.f32.mrb[0].mxu0
    %v3923 = vadd.f32 %v3621, %v3922
    %v3924 = vpop.f32.mrb[0].mxu0
    %v3925 = vadd.f32 %v3625, %v3924
    %3926 = vmatprep.mubr.f32.mxu0 0.0
    %3927 = vmatmul.mubr.f32.gmra.mrb[0].mxu0 %v3559
    %v3928 = vpop.f32.mrb[0].mxu0
    %v3929 = vadd.f32 %v3621, %v3928
    %v3930 = vpop.f32.mrb[0].mxu0
    %v3931 = vadd.f32 %v3625, %v3930
    %3932 = vmatprep.mubr.f32.mxu0 0.0
    %3933 = vmatmul.mubr.f32.gmra.mrb[0].mxu0 %v3560
    %v3934 = vpop.f32.mrb[0].mxu0
    %v3935 = vadd.f32 %v3621, %v3934
    %v3936 = vpop.f32.mrb[0].mxu0
    %v3937 = vadd.f32 %v3625, %v3936
    %3938 = vmatprep.mubr.f32.mxu0 0.0
    %3939 = vmatmul.mubr.f32.gmra.mrb[0].mxu0 %v3561
    %v3940 = vpop.f32.mrb[0].mxu0
    %v3941 = vadd.f32 %v3621, %v3940
    %v3942 = vpop.f32.mrb[0].mxu0
    %v3943 = vadd.f32 %v3625, %v3942
    %3944 = vmatprep.mubr.f32.mxu0 0.0
    %3945 = vmatmul.mubr.f32.gmra.mrb[0].mxu0 %v3562
    %v3946 = vpop.f32.mrb[0].mxu0
    %v3947 = vadd.f32 %v3621, %v3946
    %v3948 = vpop.f32.mrb[0].mxu0
    %v3949 = vadd.f32 %v3625, %v3948
    %3950 = vmatprep.mubr.f32.mxu0 0.0
    %3951 = vmatmul.mubr.f32.gmra.mrb[0].mxu0 %v3563
    %v3952 = vpop.f32.mrb[0].mxu0
    %v3953 = vadd.f32 %v3621, %v3952
    %v3954 = vpop.f32.mrb[0].mxu0
    %v3955 = vadd.f32 %v3625, %v3954
    %3956 = vmatprep.mubr.f32.mxu0 0.0
    %3957 = vmatmul.mubr.f32.gmra.mrb[0].mxu0 %v3564
    %v3958 = vpop.f32.mrb[0].mxu0
    %v3959 = vadd.f32 %v3621, %v3958
    %v3960 = vpop.f32.mrb[0].mxu0
    %v3961 = vadd.f32 %v3625, %v3960
    %3962 = vmatprep.mubr.f32.mxu0 0.0
    %3963 = vmatmul.mubr.f32.gmra.mrb[0].mxu0 %v3565
    %v3964 = vpop.f32.mrb[0].mxu0
    %v3965 = vadd.f32 %v3621, %v3964
    %v3966 = vpop.f32.mrb[0].mxu0
    %v3967 = vadd.f32 %v3625, %v3966
    %3968 = vmatprep.mubr.f32.mxu0 0.0
    %3969 = vmatmul.mubr.f32.gmra.mrb[0].mxu0 %v3566
    %v3970 = vpop.f32.mrb[0].mxu0
    %v3971 = vadd.f32 %v3621, %v3970
    %v3972 = vpop.f32.mrb[0].mxu0
    %v3973 = vadd.f32 %v3625, %v3972
    %3974 = vmatprep.mubr.f32.mxu0 0.0
    %3975 = vmatmul.mubr.f32.gmra.mrb[0].mxu0 %v3567
    %v3976 = vpop.f32.mrb[0].mxu0
    %v3977 = vadd.f32 %v3621, %v3976
    %v3978 = vpop.f32.mrb[0].mxu0
    %v3979 = vadd.f32 %v3625, %v3978
    %3980 = vmatprep.mubr.f32.mxu0 0.0
    %3981 = vmatmul.mubr.f32.gmra.mrb[0].mxu0 %v3568
    %v3982 = vpop.f32.mrb[0].mxu0
    %v3983 = vadd.f32 %v3621, %v3982
    %v3984 = vpop.f32.mrb[0].mxu0
    %v3985 = vadd.f32 %v3625, %v3984
    %3986 = vmatprep.mubr.f32.mxu0 0.0
    %3987 = vmatmul.mubr.f32.gmra.mrb[0].mxu0 %v3569
    %v3988 = vpop.f32.mrb[0].mxu0
    %v3989 = vadd.f32 %v3621, %v3988
    %v3990 = vpop.f32.mrb[0].mxu0
    %v3991 = vadd.f32 %v3625, %v3990
    %3992 = vmatprep.mubr.f32.mxu0 0.0
    %3993 = vmatmul.mubr.f32.gmra.mrb[0].mxu0 %v3570
    %v3994 = vpop.f32.mrb[0].mxu0
    %v3995 = vadd.f32 %v3621, %v3994
    %v3996 = vpop.f32.mrb[0].mxu0
    %v3997 = vadd.f32 %v3625, %v3996
    %3998 = vmatprep.mubr.f32.mxu0 0.0
    %3999 = vmatmul.mubr.f32.gmra.mrb[0].mxu0 %v3571
    %v4000 = vpop.f32.mrb[0].mxu0
    %v4001 = vadd.f32 %v3621, %v4000
    %v4002 = vpop.f32.mrb[0].mxu0
    %v4003 = vadd.f32 %v3625, %v4002
    %4004 = vmatprep.mubr.f32.mxu0 0.0
    %4005 = vmatmul.mubr.f32.gmra.mrb[0].mxu0 %v3572
    %v4006 = vpop.f32.mrb[0].mxu0
    %v4007 = vadd.f32 %v3621, %v4006
    %v4008 = vpop.f32.mrb[0].mxu0
    %v4009 = vadd.f32 %v3625, %v4008
    %4010 = vmatprep.mubr.f32.mxu0 0.0
    %4011 = vmatmul.mubr.f32.gmra.mrb[0].mxu0 %v3573
    %v4012 = vpop.f32.mrb[0].mxu0
    %v4013 = vadd.f32 %v3621, %v4012
    %v4014 = vpop.f32.mrb[0].mxu0
    %v4015 = vadd.f32 %v3625, %v4014
    %4016 = vmatprep.mubr.f32.mxu0 0.0
    %4017 = vmatmul.mubr.f32.gmra.mrb[0].mxu0 %v3574
    %v4018 = vpop.f32.mrb[0].mxu0
    %v4019 = vadd.f32 %v3621, %v4018
    %v4020 = vpop.f32.mrb[0].mxu0
    %v4021 = vadd.f32 %v3625, %v4020
    %4022 = vmatprep.mubr.f32.mxu0 0.0
    %4023 = vmatmul.mubr.f32.gmra.mrb[0].mxu0 %v3575
    %v4024 = vpop.f32.mrb[0].mxu0
    %v4025 = vadd.f32 %v3621, %v4024
    %v4026 = vpop.f32.mrb[0].mxu0
    %v4027 = vadd.f32 %v3625, %v4026
    %4028 = vmatprep.mubr.f32.mxu0 0.0
    %4029 = vmatmul.mubr.f32.gmra.mrb[0].mxu0 %v3576
    %v4030 = vpop.f32.mrb[0].mxu0
    %v4031 = vadd.f32 %v3621, %v4030
    %v4032 = vpop.f32.mrb[0].mxu0
    %v4033 = vadd.f32 %v3625, %v4032
    %4034 = vmatprep.mubr.f32.mxu0 0.0
    %4035 = vmatmul.mubr.f32.gmra.mrb[0].mxu0 %v3577
    %v4036 = vpop.f32.mrb[0].mxu0
    %v4037 = vadd.f32 %v3621, %v4036
    %v4038 = vpop.f32.mrb[0].mxu0
    %v4039 = vadd.f32 %v3625, %v4038
    %4040 = vmatprep.mubr.f32.mxu0 0.0
    %4041 = vmatmul.mubr.f32.gmra.mrb[0].mxu0 %v3578
    %v4042 = vpop.f32.mrb[0].mxu0
    %v4043 = vadd.f32 %v3621, %v4042
    %v4044 = vpop.f32.mrb[0].mxu0
    %v4045 = vadd.f32 %v3625, %v4044
    %4046 = vmatprep.mubr.f32.mxu0 0.0
    %4047 = vmatmul.mubr.f32.gmra.mrb[0].mxu0 %v3579
    %v4048 = vpop.f32.mrb[0].mxu0
    %v4049 = vadd.f32 %v3621, %v4048
    %v4050 = vpop.f32.mrb[0].mxu0
    %v4051 = vadd.f32 %v3625, %v4050
    %4052 = vmatprep.mubr.f32.mxu0 0.0
    %4053 = vmatmul.mubr.f32.gmra.mrb[0].mxu0 %v3580
    %v4054 = vpop.f32.mrb[0].mxu0
    %v4055 = vadd.f32 %v3621, %v4054
    %v4056 = vpop.f32.mrb[0].mxu0
    %v4057 = vadd.f32 %v3625, %v4056
    %4058 = vmatprep.mubr.f32.mxu0 0.0
    %4059 = vmatmul.mubr.f32.gmra.mrb[0].mxu0 %v3581
    %v4060 = vpop.f32.mrb[0].mxu0
    %v4061 = vadd.f32 %v3621, %v4060
    %v4062 = vpop.f32.mrb[0].mxu0
    %v4063 = vadd.f32 %v3625, %v4062
    %4064 = vmatprep.mubr.f32.mxu0 0.0
    %4065 = vmatmul.mubr.f32.gmra.mrb[0].mxu0 %v3582
    %v4066 = vpop.f32.mrb[0].mxu0
    %v4067 = vadd.f32 %v3621, %v4066
    %v4068 = vpop.f32.mrb[0].mxu0
    %v4069 = vadd.f32 %v3625, %v4068
    %4070 = vmatprep.mubr.f32.mxu0 0.0
    %4071 = vmatmul.mubr.f32.gmra.mrb[0].mxu0 %v3583
    %v4072 = vpop.f32.mrb[0].mxu0
    %v4073 = vadd.f32 %v3621, %v4072
    %v4074 = vpop.f32.mrb[0].mxu0
    %v4075 = vadd.f32 %v3625, %v4074
    %4076 = vdwg.mxu0
    %v4077 = vadd.f32 %v3695, %v3697
    %4078 = vadd.xlane.f32.xlu0 %v4077
    %v4079 = vpop.xlane.xlu0 %4078
    %v4080 = vadd.f32 %v3701, %v3703
    %4081 = vadd.xlane.f32.xlu0 %v4080
    %v4082 = vpop.xlane.xlu0 %4081
    %v4083 = vadd.f32 %v3707, %v3709
    %4084 = vadd.xlane.f32.xlu0 %v4083
    %v4085 = vpop.xlane.xlu0 %4084
    %v4086 = vadd.f32 %v3713, %v3715
    %4087 = vadd.xlane.f32.xlu0 %v4086
    %v4088 = vpop.xlane.xlu0 %4087
    %v4089 = vadd.f32 %v3719, %v3721
    %4090 = vadd.xlane.f32.xlu0 %v4089
    %v4091 = vpop.xlane.xlu0 %4090
    %v4092 = vadd.f32 %v3725, %v3727
    %4093 = vadd.xlane.f32.xlu0 %v4092
    %v4094 = vpop.xlane.xlu0 %4093
    %v4095 = vadd.f32 %v3731, %v3733
    %4096 = vadd.xlane.f32.xlu0 %v4095
    %v4097 = vpop.xlane.xlu0 %4096
    %v4098 = vadd.f32 %v3737, %v3739
    %4099 = vadd.xlane.f32.xlu0 %v4098
    %v4100 = vpop.xlane.xlu0 %4099
    %v4101 = vadd.f32 %v3743, %v3745
    %4102 = vadd.xlane.f32.xlu0 %v4101
    %v4103 = vpop.xlane.xlu0 %4102
    %v4104 = vadd.f32 %v3749, %v3751
    %4105 = vadd.xlane.f32.xlu0 %v4104
    %v4106 = vpop.xlane.xlu0 %4105
    %v4107 = vadd.f32 %v3755, %v3757
    %4108 = vadd.xlane.f32.xlu0 %v4107
    %v4109 = vpop.xlane.xlu0 %4108
    %v4110 = vadd.f32 %v3761, %v3763
    %4111 = vadd.xlane.f32.xlu0 %v4110
    %v4112 = vpop.xlane.xlu0 %4111
    %v4113 = vadd.f32 %v3767, %v3769
    %4114 = vadd.xlane.f32.xlu0 %v4113
    %v4115 = vpop.xlane.xlu0 %4114
    %v4116 = vadd.f32 %v3773, %v3775
    %4117 = vadd.xlane.f32.xlu0 %v4116
    %v4118 = vpop.xlane.xlu0 %4117
    %v4119 = vadd.f32 %v3779, %v3781
    %4120 = vadd.xlane.f32.xlu0 %v4119
    %v4121 = vpop.xlane.xlu0 %4120
    %v4122 = vadd.f32 %v3785, %v3787
    %4123 = vadd.xlane.f32.xlu0 %v4122
    %v4124 = vpop.xlane.xlu0 %4123
    %v4125 = vadd.f32 %v3791, %v3793
    %4126 = vadd.xlane.f32.xlu0 %v4125
    %v4127 = vpop.xlane.xlu0 %4126
    %v4128 = vadd.f32 %v3797, %v3799
    %4129 = vadd.xlane.f32.xlu0 %v4128
    %v4130 = vpop.xlane.xlu0 %4129
    %v4131 = vadd.f32 %v3803, %v3805
    %4132 = vadd.xlane.f32.xlu0 %v4131
    %v4133 = vpop.xlane.xlu0 %4132
    %v4134 = vadd.f32 %v3809, %v3811
    %4135 = vadd.xlane.f32.xlu0 %v4134
    %v4136 = vpop.xlane.xlu0 %4135
    %v4137 = vadd.f32 %v3815, %v3817
    %4138 = vadd.xlane.f32.xlu0 %v4137
    %v4139 = vpop.xlane.xlu0 %4138
    %v4140 = vadd.f32 %v3821, %v3823
    %4141 = vadd.xlane.f32.xlu0 %v4140
    %v4142 = vpop.xlane.xlu0 %4141
    %v4143 = vadd.f32 %v3827, %v3829
    %4144 = vadd.xlane.f32.xlu0 %v4143
    %v4145 = vpop.xlane.xlu0 %4144
    %v4146 = vadd.f32 %v3833, %v3835
    %4147 = vadd.xlane.f32.xlu0 %v4146
    %v4148 = vpop.xlane.xlu0 %4147
    %v4149 = vadd.f32 %v3839, %v3841
    %4150 = vadd.xlane.f32.xlu0 %v4149
    %v4151 = vpop.xlane.xlu0 %4150
    %v4152 = vadd.f32 %v3845, %v3847
    %4153 = vadd.xlane.f32.xlu0 %v4152
    %v4154 = vpop.xlane.xlu0 %4153
    %v4155 = vadd.f32 %v3851, %v3853
    %4156 = vadd.xlane.f32.xlu0 %v4155
    %v4157 = vpop.xlane.xlu0 %4156
    %v4158 = vadd.f32 %v3857, %v3859
    %4159 = vadd.xlane.f32.xlu0 %v4158
    %v4160 = vpop.xlane.xlu0 %4159
    %v4161 = vadd.f32 %v3863, %v3865
    %4162 = vadd.xlane.f32.xlu0 %v4161
    %v4163 = vpop.xlane.xlu0 %4162
    %v4164 = vadd.f32 %v3869, %v3871
    %4165 = vadd.xlane.f32.xlu0 %v4164
    %v4166 = vpop.xlane.xlu0 %4165
    %v4167 = vadd.f32 %v3875, %v3877
    %4168 = vadd.xlane.f32.xlu0 %v4167
    %v4169 = vpop.xlane.xlu0 %4168
    %v4170 = vadd.f32 %v3881, %v3883
    %4171 = vadd.xlane.f32.xlu0 %v4170
    %v4172 = vpop.xlane.xlu0 %4171
    %v4173 = vadd.f32 %v3887, %v3889
    %4174 = vadd.xlane.f32.xlu0 %v4173
    %v4175 = vpop.xlane.xlu0 %4174
    %v4176 = vadd.f32 %v3893, %v3895
    %4177 = vadd.xlane.f32.xlu0 %v4176
    %v4178 = vpop.xlane.xlu0 %4177
    %v4179 = vadd.f32 %v3899, %v3901
    %4180 = vadd.xlane.f32.xlu0 %v4179
    %v4181 = vpop.xlane.xlu0 %4180
    %v4182 = vadd.f32 %v3905, %v3907
    %4183 = vadd.xlane.f32.xlu0 %v4182
    %v4184 = vpop.xlane.xlu0 %4183
    %v4185 = vadd.f32 %v3911, %v3913
    %4186 = vadd.xlane.f32.xlu0 %v4185
    %v4187 = vpop.xlane.xlu0 %4186
    %v4188 = vadd.f32 %v3917, %v3919
    %4189 = vadd.xlane.f32.xlu0 %v4188
    %v4190 = vpop.xlane.xlu0 %4189
    %v4191 = vadd.f32 %v3923, %v3925
    %4192 = vadd.xlane.f32.xlu0 %v4191
    %v4193 = vpop.xlane.xlu0 %4192
    %v4194 = vadd.f32 %v3929, %v3931
    %4195 = vadd.xlane.f32.xlu0 %v4194
    %v4196 = vpop.xlane.xlu0 %4195
    %v4197 = vadd.f32 %v3935, %v3937
    %4198 = vadd.xlane.f32.xlu0 %v4197
    %v4199 = vpop.xlane.xlu0 %4198
    %v4200 = vadd.f32 %v3941, %v3943
    %4201 = vadd.xlane.f32.xlu0 %v4200
    %v4202 = vpop.xlane.xlu0 %4201
    %v4203 = vadd.f32 %v3947, %v3949
    %4204 = vadd.xlane.f32.xlu0 %v4203
    %v4205 = vpop.xlane.xlu0 %4204
    %v4206 = vadd.f32 %v3953, %v3955
    %4207 = vadd.xlane.f32.xlu0 %v4206
    %v4208 = vpop.xlane.xlu0 %4207
    %v4209 = vadd.f32 %v3959, %v3961
    %4210 = vadd.xlane.f32.xlu0 %v4209
    %v4211 = vpop.xlane.xlu0 %4210
    %v4212 = vadd.f32 %v3965, %v3967
    %4213 = vadd.xlane.f32.xlu0 %v4212
    %v4214 = vpop.xlane.xlu0 %4213
    %v4215 = vadd.f32 %v3971, %v3973
    %4216 = vadd.xlane.f32.xlu0 %v4215
    %v4217 = vpop.xlane.xlu0 %4216
    %v4218 = vadd.f32 %v3977, %v3979
    %4219 = vadd.xlane.f32.xlu0 %v4218
    %v4220 = vpop.xlane.xlu0 %4219
    %v4221 = vadd.f32 %v3983, %v3985
    %4222 = vadd.xlane.f32.xlu0 %v4221
    %v4223 = vpop.xlane.xlu0 %4222
    %v4224 = vadd.f32 %v3989, %v3991
    %4225 = vadd.xlane.f32.xlu0 %v4224
    %v4226 = vpop.xlane.xlu0 %4225
    %v4227 = vadd.f32 %v3995, %v3997
    %4228 = vadd.xlane.f32.xlu0 %v4227
    %v4229 = vpop.xlane.xlu0 %4228
    %v4230 = vadd.f32 %v4001, %v4003
    %4231 = vadd.xlane.f32.xlu0 %v4230
    %v4232 = vpop.xlane.xlu0 %4231
    %v4233 = vadd.f32 %v4007, %v4009
    %4234 = vadd.xlane.f32.xlu0 %v4233
    %v4235 = vpop.xlane.xlu0 %4234
    %v4236 = vadd.f32 %v4013, %v4015
    %4237 = vadd.xlane.f32.xlu0 %v4236
    %v4238 = vpop.xlane.xlu0 %4237
    %v4239 = vadd.f32 %v4019, %v4021
    %4240 = vadd.xlane.f32.xlu0 %v4239
    %v4241 = vpop.xlane.xlu0 %4240
    %v4242 = vadd.f32 %v4025, %v4027
    %4243 = vadd.xlane.f32.xlu0 %v4242
    %v4244 = vpop.xlane.xlu0 %4243
    %v4245 = vadd.f32 %v4031, %v4033
    %4246 = vadd.xlane.f32.xlu0 %v4245
    %v4247 = vpop.xlane.xlu0 %4246
    %v4248 = vadd.f32 %v4037, %v4039
    %4249 = vadd.xlane.f32.xlu0 %v4248
    %v4250 = vpop.xlane.xlu0 %4249
    %v4251 = vadd.f32 %v4043, %v4045
    %4252 = vadd.xlane.f32.xlu0 %v4251
    %v4253 = vpop.xlane.xlu0 %4252
    %v4254 = vadd.f32 %v4049, %v4051
    %4255 = vadd.xlane.f32.xlu0 %v4254
    %v4256 = vpop.xlane.xlu0 %4255
    %v4257 = vadd.f32 %v4055, %v4057
    %4258 = vadd.xlane.f32.xlu0 %v4257
    %v4259 = vpop.xlane.xlu0 %4258
    %v4260 = vadd.f32 %v4061, %v4063
    %4261 = vadd.xlane.f32.xlu0 %v4260
    %v4262 = vpop.xlane.xlu0 %4261
    %v4263 = vadd.f32 %v4067, %v4069
    %4264 = vadd.xlane.f32.xlu0 %v4263
    %v4265 = vpop.xlane.xlu0 %4264
    %v4266 = vadd.f32 %v4073, %v4075
    %4267 = vadd.xlane.f32.xlu0 %v4266
    %v4268 = vpop.xlane.xlu0 %4267
    %v4269 = vmul.f32 %v3695, %v3695
    %v4270 = vmul.f32 %v3697, %v3697
    %v4271 = vmul.f32 %v3701, %v3701
    %v4272 = vmul.f32 %v3703, %v3703
    %v4273 = vmul.f32 %v3707, %v3707
    %v4274 = vmul.f32 %v3709, %v3709
    %v4275 = vmul.f32 %v3713, %v3713
    %v4276 = vmul.f32 %v3715, %v3715
    %v4277 = vmul.f32 %v3719, %v3719
    %v4278 = vmul.f32 %v3721, %v3721
    %v4279 = vmul.f32 %v3725, %v3725
    %v4280 = vmul.f32 %v3727, %v3727
    %v4281 = vmul.f32 %v3731, %v3731
    %v4282 = vmul.f32 %v3733, %v3733
    %v4283 = vmul.f32 %v3737, %v3737
    %v4284 = vmul.f32 %v3739, %v3739
    %v4285 = vmul.f32 %v3743, %v3743
    %v4286 = vmul.f32 %v3745, %v3745
    %v4287 = vmul.f32 %v3749, %v3749
    %v4288 = vmul.f32 %v3751, %v3751
    %v4289 = vmul.f32 %v3755, %v3755
    %v4290 = vmul.f32 %v3757, %v3757
    %v4291 = vmul.f32 %v3761, %v3761
    %v4292 = vmul.f32 %v3763, %v3763
    %v4293 = vmul.f32 %v3767, %v3767
    %v4294 = vmul.f32 %v3769, %v3769
    %v4295 = vmul.f32 %v3773, %v3773
    %v4296 = vmul.f32 %v3775, %v3775
    %v4297 = vmul.f32 %v3779, %v3779
    %v4298 = vmul.f32 %v3781, %v3781
    %v4299 = vmul.f32 %v3785, %v3785
    %v4300 = vmul.f32 %v3787, %v3787
    %v4301 = vmul.f32 %v3791, %v3791
    %v4302 = vmul.f32 %v3793, %v3793
    %v4303 = vmul.f32 %v3797, %v3797
    %v4304 = vmul.f32 %v3799, %v3799
    %v4305 = vmul.f32 %v3803, %v3803
    %v4306 = vmul.f32 %v3805, %v3805
    %v4307 = vmul.f32 %v3809, %v3809
    %v4308 = vmul.f32 %v3811, %v3811
    %v4309 = vmul.f32 %v3815, %v3815
    %v4310 = vmul.f32 %v3817, %v3817
    %v4311 = vmul.f32 %v3821, %v3821
    %v4312 = vmul.f32 %v3823, %v3823
    %v4313 = vmul.f32 %v3827, %v3827
    %v4314 = vmul.f32 %v3829, %v3829
    %v4315 = vmul.f32 %v3833, %v3833
    %v4316 = vmul.f32 %v3835, %v3835
    %v4317 = vmul.f32 %v3839, %v3839
    %v4318 = vmul.f32 %v3841, %v3841
    %v4319 = vmul.f32 %v3845, %v3845
    %v4320 = vmul.f32 %v3847, %v3847
    %v4321 = vmul.f32 %v3851, %v3851
    %v4322 = vmul.f32 %v3853, %v3853
    %v4323 = vmul.f32 %v3857, %v3857
    %v4324 = vmul.f32 %v3859, %v3859
    %v4325 = vmul.f32 %v3863, %v3863
    %v4326 = vmul.f32 %v3865, %v3865
    %v4327 = vmul.f32 %v3869, %v3869
    %v4328 = vmul.f32 %v3871, %v3871
    %v4329 = vmul.f32 %v3875, %v3875
    %v4330 = vmul.f32 %v3877, %v3877
    %v4331 = vmul.f32 %v3881, %v3881
    %v4332 = vmul.f32 %v3883, %v3883
    %v4333 = vmul.f32 %v3887, %v3887
    %v4334 = vmul.f32 %v3889, %v3889
    %v4335 = vmul.f32 %v3893, %v3893
    %v4336 = vmul.f32 %v3895, %v3895
    %v4337 = vmul.f32 %v3899, %v3899
    %v4338 = vmul.f32 %v3901, %v3901
    %v4339 = vmul.f32 %v3905, %v3905
    %v4340 = vmul.f32 %v3907, %v3907
    %v4341 = vmul.f32 %v3911, %v3911
    %v4342 = vmul.f32 %v3913, %v3913
    %v4343 = vmul.f32 %v3917, %v3917
    %v4344 = vmul.f32 %v3919, %v3919
    %v4345 = vmul.f32 %v3923, %v3923
    %v4346 = vmul.f32 %v3925, %v3925
    %v4347 = vmul.f32 %v3929, %v3929
    %v4348 = vmul.f32 %v3931, %v3931
    %v4349 = vmul.f32 %v3935, %v3935
    %v4350 = vmul.f32 %v3937, %v3937
    %v4351 = vmul.f32 %v3941, %v3941
    %v4352 = vmul.f32 %v3943, %v3943
    %v4353 = vmul.f32 %v3947, %v3947
    %v4354 = vmul.f32 %v3949, %v3949
    %v4355 = vmul.f32 %v3953, %v3953
    %v4356 = vmul.f32 %v3955, %v3955
    %v4357 = vmul.f32 %v3959, %v3959
    %v4358 = vmul.f32 %v3961, %v3961
    %v4359 = vmul.f32 %v3965, %v3965
    %v4360 = vmul.f32 %v3967, %v3967
    %v4361 = vmul.f32 %v3971, %v3971
    %v4362 = vmul.f32 %v3973, %v3973
    %v4363 = vmul.f32 %v3977, %v3977
    %v4364 = vmul.f32 %v3979, %v3979
    %v4365 = vmul.f32 %v3983, %v3983
    %v4366 = vmul.f32 %v3985, %v3985
    %v4367 = vmul.f32 %v3989, %v3989
    %v4368 = vmul.f32 %v3991, %v3991
    %v4369 = vmul.f32 %v3995, %v3995
    %v4370 = vmul.f32 %v3997, %v3997
    %v4371 = vmul.f32 %v4001, %v4001
    %v4372 = vmul.f32 %v4003, %v4003
    %v4373 = vmul.f32 %v4007, %v4007
    %v4374 = vmul.f32 %v4009, %v4009
    %v4375 = vmul.f32 %v4013, %v4013
    %v4376 = vmul.f32 %v4015, %v4015
    %v4377 = vmul.f32 %v4019, %v4019
    %v4378 = vmul.f32 %v4021, %v4021
    %v4379 = vmul.f32 %v4025, %v4025
    %v4380 = vmul.f32 %v4027, %v4027
    %v4381 = vmul.f32 %v4031, %v4031
    %v4382 = vmul.f32 %v4033, %v4033
    %v4383 = vmul.f32 %v4037, %v4037
    %v4384 = vmul.f32 %v4039, %v4039
    %v4385 = vmul.f32 %v4043, %v4043
    %v4386 = vmul.f32 %v4045, %v4045
    %v4387 = vmul.f32 %v4049, %v4049
    %v4388 = vmul.f32 %v4051, %v4051
    %v4389 = vmul.f32 %v4055, %v4055
    %v4390 = vmul.f32 %v4057, %v4057
    %v4391 = vmul.f32 %v4061, %v4061
    %v4392 = vmul.f32 %v4063, %v4063
    %v4393 = vmul.f32 %v4067, %v4067
    %v4394 = vmul.f32 %v4069, %v4069
    %v4395 = vmul.f32 %v4073, %v4073
    %v4396 = vmul.f32 %v4075, %v4075
    %v4397 = vadd.f32 %v4269, %v4270
    %4398 = vadd.xlane.f32.xlu0 %v4397
    %v4399 = vpop.xlane.xlu0 %4398
    %v4400 = vadd.f32 %v4271, %v4272
    %4401 = vadd.xlane.f32.xlu0 %v4400
    %v4402 = vpop.xlane.xlu0 %4401
    %v4403 = vadd.f32 %v4273, %v4274
    %4404 = vadd.xlane.f32.xlu0 %v4403
    %v4405 = vpop.xlane.xlu0 %4404
    %v4406 = vadd.f32 %v4275, %v4276
    %4407 = vadd.xlane.f32.xlu0 %v4406
    %v4408 = vpop.xlane.xlu0 %4407
    %v4409 = vadd.f32 %v4277, %v4278
    %4410 = vadd.xlane.f32.xlu0 %v4409
    %v4411 = vpop.xlane.xlu0 %4410
    %v4412 = vadd.f32 %v4279, %v4280
    %4413 = vadd.xlane.f32.xlu0 %v4412
    %v4414 = vpop.xlane.xlu0 %4413
    %v4415 = vadd.f32 %v4281, %v4282
    %4416 = vadd.xlane.f32.xlu0 %v4415
    %v4417 = vpop.xlane.xlu0 %4416
    %v4418 = vadd.f32 %v4283, %v4284
    %4419 = vadd.xlane.f32.xlu0 %v4418
    %v4420 = vpop.xlane.xlu0 %4419
    %v4421 = vadd.f32 %v4285, %v4286
    %4422 = vadd.xlane.f32.xlu0 %v4421
    %v4423 = vpop.xlane.xlu0 %4422
    %v4424 = vadd.f32 %v4287, %v4288
    %4425 = vadd.xlane.f32.xlu0 %v4424
    %v4426 = vpop.xlane.xlu0 %4425
    %v4427 = vadd.f32 %v4289, %v4290
    %4428 = vadd.xlane.f32.xlu0 %v4427
    %v4429 = vpop.xlane.xlu0 %4428
    %v4430 = vadd.f32 %v4291, %v4292
    %4431 = vadd.xlane.f32.xlu0 %v4430
    %v4432 = vpop.xlane.xlu0 %4431
    %v4433 = vadd.f32 %v4293, %v4294
    %4434 = vadd.xlane.f32.xlu0 %v4433
    %v4435 = vpop.xlane.xlu0 %4434
    %v4436 = vadd.f32 %v4295, %v4296
    %4437 = vadd.xlane.f32.xlu0 %v4436
    %v4438 = vpop.xlane.xlu0 %4437
    %v4439 = vadd.f32 %v4297, %v4298
    %4440 = vadd.xlane.f32.xlu0 %v4439
    %v4441 = vpop.xlane.xlu0 %4440
    %v4442 = vadd.f32 %v4299, %v4300
    %4443 = vadd.xlane.f32.xlu0 %v4442
    %v4444 = vpop.xlane.xlu0 %4443
    %v4445 = vadd.f32 %v4301, %v4302
    %4446 = vadd.xlane.f32.xlu0 %v4445
    %v4447 = vpop.xlane.xlu0 %4446
    %v4448 = vadd.f32 %v4303, %v4304
    %4449 = vadd.xlane.f32.xlu0 %v4448
    %v4450 = vpop.xlane.xlu0 %4449
    %v4451 = vadd.f32 %v4305, %v4306
    %4452 = vadd.xlane.f32.xlu0 %v4451
    %v4453 = vpop.xlane.xlu0 %4452
    %v4454 = vadd.f32 %v4307, %v4308
    %4455 = vadd.xlane.f32.xlu0 %v4454
    %v4456 = vpop.xlane.xlu0 %4455
    %v4457 = vadd.f32 %v4309, %v4310
    %4458 = vadd.xlane.f32.xlu0 %v4457
    %v4459 = vpop.xlane.xlu0 %4458
    %v4460 = vadd.f32 %v4311, %v4312
    %4461 = vadd.xlane.f32.xlu0 %v4460
    %v4462 = vpop.xlane.xlu0 %4461
    %v4463 = vadd.f32 %v4313, %v4314
    %4464 = vadd.xlane.f32.xlu0 %v4463
    %v4465 = vpop.xlane.xlu0 %4464
    %v4466 = vadd.f32 %v4315, %v4316
    %4467 = vadd.xlane.f32.xlu0 %v4466
    %v4468 = vpop.xlane.xlu0 %4467
    %v4469 = vadd.f32 %v4317, %v4318
    %4470 = vadd.xlane.f32.xlu0 %v4469
    %v4471 = vpop.xlane.xlu0 %4470
    %v4472 = vadd.f32 %v4319, %v4320
    %4473 = vadd.xlane.f32.xlu0 %v4472
    %v4474 = vpop.xlane.xlu0 %4473
    %v4475 = vadd.f32 %v4321, %v4322
    %4476 = vadd.xlane.f32.xlu0 %v4475
    %v4477 = vpop.xlane.xlu0 %4476
    %v4478 = vadd.f32 %v4323, %v4324
    %4479 = vadd.xlane.f32.xlu0 %v4478
    %v4480 = vpop.xlane.xlu0 %4479
    %v4481 = vadd.f32 %v4325, %v4326
    %4482 = vadd.xlane.f32.xlu0 %v4481
    %v4483 = vpop.xlane.xlu0 %4482
    %v4484 = vadd.f32 %v4327, %v4328
    %4485 = vadd.xlane.f32.xlu0 %v4484
    %v4486 = vpop.xlane.xlu0 %4485
    %v4487 = vadd.f32 %v4329, %v4330
    %4488 = vadd.xlane.f32.xlu0 %v4487
    %v4489 = vpop.xlane.xlu0 %4488
    %v4490 = vadd.f32 %v4331, %v4332
    %4491 = vadd.xlane.f32.xlu0 %v4490
    %v4492 = vpop.xlane.xlu0 %4491
    %v4493 = vadd.f32 %v4333, %v4334
    %4494 = vadd.xlane.f32.xlu0 %v4493
    %v4495 = vpop.xlane.xlu0 %4494
    %v4496 = vadd.f32 %v4335, %v4336
    %4497 = vadd.xlane.f32.xlu0 %v4496
    %v4498 = vpop.xlane.xlu0 %4497
    %v4499 = vadd.f32 %v4337, %v4338
    %4500 = vadd.xlane.f32.xlu0 %v4499
    %v4501 = vpop.xlane.xlu0 %4500
    %v4502 = vadd.f32 %v4339, %v4340
    %4503 = vadd.xlane.f32.xlu0 %v4502
    %v4504 = vpop.xlane.xlu0 %4503
    %v4505 = vadd.f32 %v4341, %v4342
    %4506 = vadd.xlane.f32.xlu0 %v4505
    %v4507 = vpop.xlane.xlu0 %4506
    %v4508 = vadd.f32 %v4343, %v4344
    %4509 = vadd.xlane.f32.xlu0 %v4508
    %v4510 = vpop.xlane.xlu0 %4509
    %v4511 = vadd.f32 %v4345, %v4346
    %4512 = vadd.xlane.f32.xlu0 %v4511
    %v4513 = vpop.xlane.xlu0 %4512
    %v4514 = vadd.f32 %v4347, %v4348
    %4515 = vadd.xlane.f32.xlu0 %v4514
    %v4516 = vpop.xlane.xlu0 %4515
    %v4517 = vadd.f32 %v4349, %v4350
    %4518 = vadd.xlane.f32.xlu0 %v4517
    %v4519 = vpop.xlane.xlu0 %4518
    %v4520 = vadd.f32 %v4351, %v4352
    %4521 = vadd.xlane.f32.xlu0 %v4520
    %v4522 = vpop.xlane.xlu0 %4521
    %v4523 = vadd.f32 %v4353, %v4354
    %4524 = vadd.xlane.f32.xlu0 %v4523
    %v4525 = vpop.xlane.xlu0 %4524
    %v4526 = vadd.f32 %v4355, %v4356
    %4527 = vadd.xlane.f32.xlu0 %v4526
    %v4528 = vpop.xlane.xlu0 %4527
    %v4529 = vadd.f32 %v4357, %v4358
    %4530 = vadd.xlane.f32.xlu0 %v4529
    %v4531 = vpop.xlane.xlu0 %4530
    %v4532 = vadd.f32 %v4359, %v4360
    %4533 = vadd.xlane.f32.xlu0 %v4532
    %v4534 = vpop.xlane.xlu0 %4533
    %v4535 = vadd.f32 %v4361, %v4362
    %4536 = vadd.xlane.f32.xlu0 %v4535
    %v4537 = vpop.xlane.xlu0 %4536
    %v4538 = vadd.f32 %v4363, %v4364
    %4539 = vadd.xlane.f32.xlu0 %v4538
    %v4540 = vpop.xlane.xlu0 %4539
    %v4541 = vadd.f32 %v4365, %v4366
    %4542 = vadd.xlane.f32.xlu0 %v4541
    %v4543 = vpop.xlane.xlu0 %4542
    %v4544 = vadd.f32 %v4367, %v4368
    %4545 = vadd.xlane.f32.xlu0 %v4544
    %v4546 = vpop.xlane.xlu0 %4545
    %v4547 = vadd.f32 %v4369, %v4370
    %4548 = vadd.xlane.f32.xlu0 %v4547
    %v4549 = vpop.xlane.xlu0 %4548
    %v4550 = vadd.f32 %v4371, %v4372
    %4551 = vadd.xlane.f32.xlu0 %v4550
    %v4552 = vpop.xlane.xlu0 %4551
    %v4553 = vadd.f32 %v4373, %v4374
    %4554 = vadd.xlane.f32.xlu0 %v4553
    %v4555 = vpop.xlane.xlu0 %4554
    %v4556 = vadd.f32 %v4375, %v4376
    %4557 = vadd.xlane.f32.xlu0 %v4556
    %v4558 = vpop.xlane.xlu0 %4557
    %v4559 = vadd.f32 %v4377, %v4378
    %4560 = vadd.xlane.f32.xlu0 %v4559
    %v4561 = vpop.xlane.xlu0 %4560
    %v4562 = vadd.f32 %v4379, %v4380
    %4563 = vadd.xlane.f32.xlu0 %v4562
    %v4564 = vpop.xlane.xlu0 %4563
    %v4565 = vadd.f32 %v4381, %v4382
    %4566 = vadd.xlane.f32.xlu0 %v4565
    %v4567 = vpop.xlane.xlu0 %4566
    %v4568 = vadd.f32 %v4383, %v4384
    %4569 = vadd.xlane.f32.xlu0 %v4568
    %v4570 = vpop.xlane.xlu0 %4569
    %v4571 = vadd.f32 %v4385, %v4386
    %4572 = vadd.xlane.f32.xlu0 %v4571
    %v4573 = vpop.xlane.xlu0 %4572
    %v4574 = vadd.f32 %v4387, %v4388
    %4575 = vadd.xlane.f32.xlu0 %v4574
    %v4576 = vpop.xlane.xlu0 %4575
    %v4577 = vadd.f32 %v4389, %v4390
    %4578 = vadd.xlane.f32.xlu0 %v4577
    %v4579 = vpop.xlane.xlu0 %4578
    %v4580 = vadd.f32 %v4391, %v4392
    %4581 = vadd.xlane.f32.xlu0 %v4580
    %v4582 = vpop.xlane.xlu0 %4581
    %v4583 = vadd.f32 %v4393, %v4394
    %4584 = vadd.xlane.f32.xlu0 %v4583
    %v4585 = vpop.xlane.xlu0 %4584
    %v4586 = vadd.f32 %v4395, %v4396
    %4587 = vadd.xlane.f32.xlu0 %v4586
    %v4588 = vpop.xlane.xlu0 %4587
    %v4589 = vmul.f32 %v4079, 0.00390625
    %v4590 = vmul.f32 %v4082, 0.00390625
    %v4591 = vmul.f32 %v4085, 0.00390625
    %v4592 = vmul.f32 %v4088, 0.00390625
    %v4593 = vmul.f32 %v4091, 0.00390625
    %v4594 = vmul.f32 %v4094, 0.00390625
    %v4595 = vmul.f32 %v4097, 0.00390625
    %v4596 = vmul.f32 %v4100, 0.00390625
    %v4597 = vmul.f32 %v4103, 0.00390625
    %v4598 = vmul.f32 %v4106, 0.00390625
    %v4599 = vmul.f32 %v4109, 0.00390625
    %v4600 = vmul.f32 %v4112, 0.00390625
    %v4601 = vmul.f32 %v4115, 0.00390625
    %v4602 = vmul.f32 %v4118, 0.00390625
    %v4603 = vmul.f32 %v4121, 0.00390625
    %v4604 = vmul.f32 %v4124, 0.00390625
    %v4605 = vmul.f32 %v4127, 0.00390625
    %v4606 = vmul.f32 %v4130, 0.00390625
    %v4607 = vmul.f32 %v4133, 0.00390625
    %v4608 = vmul.f32 %v4136, 0.00390625
    %v4609 = vmul.f32 %v4139, 0.00390625
    %v4610 = vmul.f32 %v4142, 0.00390625
    %v4611 = vmul.f32 %v4145, 0.00390625
    %v4612 = vmul.f32 %v4148, 0.00390625
    %v4613 = vmul.f32 %v4151, 0.00390625
    %v4614 = vmul.f32 %v4154, 0.00390625
    %v4615 = vmul.f32 %v4157, 0.00390625
    %v4616 = vmul.f32 %v4160, 0.00390625
    %v4617 = vmul.f32 %v4163, 0.00390625
    %v4618 = vmul.f32 %v4166, 0.00390625
    %v4619 = vmul.f32 %v4169, 0.00390625
    %v4620 = vmul.f32 %v4172, 0.00390625
    %v4621 = vmul.f32 %v4175, 0.00390625
    %v4622 = vmul.f32 %v4178, 0.00390625
    %v4623 = vmul.f32 %v4181, 0.00390625
    %v4624 = vmul.f32 %v4184, 0.00390625
    %v4625 = vmul.f32 %v4187, 0.00390625
    %v4626 = vmul.f32 %v4190, 0.00390625
    %v4627 = vmul.f32 %v4193, 0.00390625
    %v4628 = vmul.f32 %v4196, 0.00390625
    %v4629 = vmul.f32 %v4199, 0.00390625
    %v4630 = vmul.f32 %v4202, 0.00390625
    %v4631 = vmul.f32 %v4205, 0.00390625
    %v4632 = vmul.f32 %v4208, 0.00390625
    %v4633 = vmul.f32 %v4211, 0.00390625
    %v4634 = vmul.f32 %v4214, 0.00390625
    %v4635 = vmul.f32 %v4217, 0.00390625
    %v4636 = vmul.f32 %v4220, 0.00390625
    %v4637 = vmul.f32 %v4223, 0.00390625
    %v4638 = vmul.f32 %v4226, 0.00390625
    %v4639 = vmul.f32 %v4229, 0.00390625
    %v4640 = vmul.f32 %v4232, 0.00390625
    %v4641 = vmul.f32 %v4235, 0.00390625
    %v4642 = vmul.f32 %v4238, 0.00390625
    %v4643 = vmul.f32 %v4241, 0.00390625
    %v4644 = vmul.f32 %v4244, 0.00390625
    %v4645 = vmul.f32 %v4247, 0.00390625
    %v4646 = vmul.f32 %v4250, 0.00390625
    %v4647 = vmul.f32 %v4253, 0.00390625
    %v4648 = vmul.f32 %v4256, 0.00390625
    %v4649 = vmul.f32 %v4259, 0.00390625
    %v4650 = vmul.f32 %v4262, 0.00390625
    %v4651 = vmul.f32 %v4265, 0.00390625
    %v4652 = vmul.f32 %v4268, 0.00390625
    %v4653 = vmul.f32 %v4399, 0.00390625
    %v4654 = vmul.f32 %v4402, 0.00390625
    %v4655 = vmul.f32 %v4405, 0.00390625
    %v4656 = vmul.f32 %v4408, 0.00390625
    %v4657 = vmul.f32 %v4411, 0.00390625
    %v4658 = vmul.f32 %v4414, 0.00390625
    %v4659 = vmul.f32 %v4417, 0.00390625
    %v4660 = vmul.f32 %v4420, 0.00390625
    %v4661 = vmul.f32 %v4423, 0.00390625
    %v4662 = vmul.f32 %v4426, 0.00390625
    %v4663 = vmul.f32 %v4429, 0.00390625
    %v4664 = vmul.f32 %v4432, 0.00390625
    %v4665 = vmul.f32 %v4435, 0.00390625
    %v4666 = vmul.f32 %v4438, 0.00390625
    %v4667 = vmul.f32 %v4441, 0.00390625
    %v4668 = vmul.f32 %v4444, 0.00390625
    %v4669 = vmul.f32 %v4447, 0.00390625
    %v4670 = vmul.f32 %v4450, 0.00390625
    %v4671 = vmul.f32 %v4453, 0.00390625
    %v4672 = vmul.f32 %v4456, 0.00390625
    %v4673 = vmul.f32 %v4459, 0.00390625
    %v4674 = vmul.f32 %v4462, 0.00390625
    %v4675 = vmul.f32 %v4465, 0.00390625
    %v4676 = vmul.f32 %v4468, 0.00390625
    %v4677 = vmul.f32 %v4471, 0.00390625
    %v4678 = vmul.f32 %v4474, 0.00390625
    %v4679 = vmul.f32 %v4477, 0.00390625
    %v4680 = vmul.f32 %v4480, 0.00390625
    %v4681 = vmul.f32 %v4483, 0.00390625
    %v4682 = vmul.f32 %v4486, 0.00390625
    %v4683 = vmul.f32 %v4489, 0.00390625
    %v4684 = vmul.f32 %v4492, 0.00390625
    %v4685 = vmul.f32 %v4495, 0.00390625
    %v4686 = vmul.f32 %v4498, 0.00390625
    %v4687 = vmul.f32 %v4501, 0.00390625
    %v4688 = vmul.f32 %v4504, 0.00390625
    %v4689 = vmul.f32 %v4507, 0.00390625
    %v4690 = vmul.f32 %v4510, 0.00390625
    %v4691 = vmul.f32 %v4513, 0.00390625
    %v4692 = vmul.f32 %v4516, 0.00390625
    %v4693 = vmul.f32 %v4519, 0.00390625
    %v4694 = vmul.f32 %v4522, 0.00390625
    %v4695 = vmul.f32 %v4525, 0.00390625
    %v4696 = vmul.f32 %v4528, 0.00390625
    %v4697 = vmul.f32 %v4531, 0.00390625
    %v4698 = vmul.f32 %v4534, 0.00390625
    %v4699 = vmul.f32 %v4537, 0.00390625
    %v4700 = vmul.f32 %v4540, 0.00390625
    %v4701 = vmul.f32 %v4543, 0.00390625
    %v4702 = vmul.f32 %v4546, 0.00390625
    %v4703 = vmul.f32 %v4549, 0.00390625
    %v4704 = vmul.f32 %v4552, 0.00390625
    %v4705 = vmul.f32 %v4555, 0.00390625
    %v4706 = vmul.f32 %v4558, 0.00390625
    %v4707 = vmul.f32 %v4561, 0.00390625
    %v4708 = vmul.f32 %v4564, 0.00390625
    %v4709 = vmul.f32 %v4567, 0.00390625
    %v4710 = vmul.f32 %v4570, 0.00390625
    %v4711 = vmul.f32 %v4573, 0.00390625
    %v4712 = vmul.f32 %v4576, 0.00390625
    %v4713 = vmul.f32 %v4579, 0.00390625
    %v4714 = vmul.f32 %v4582, 0.00390625
    %v4715 = vmul.f32 %v4585, 0.00390625
    %v4716 = vmul.f32 %v4588, 0.00390625
    %v4717 = vmul.f32 %v4589, %v4589
    %v4718 = vmul.f32 %v4590, %v4590
    %v4719 = vmul.f32 %v4591, %v4591
    %v4720 = vmul.f32 %v4592, %v4592
    %v4721 = vmul.f32 %v4593, %v4593
    %v4722 = vmul.f32 %v4594, %v4594
    %v4723 = vmul.f32 %v4595, %v4595
    %v4724 = vmul.f32 %v4596, %v4596
    %v4725 = vmul.f32 %v4597, %v4597
    %v4726 = vmul.f32 %v4598, %v4598
    %v4727 = vmul.f32 %v4599, %v4599
    %v4728 = vmul.f32 %v4600, %v4600
    %v4729 = vmul.f32 %v4601, %v4601
    %v4730 = vmul.f32 %v4602, %v4602
    %v4731 = vmul.f32 %v4603, %v4603
    %v4732 = vmul.f32 %v4604, %v4604
    %v4733 = vmul.f32 %v4605, %v4605
    %v4734 = vmul.f32 %v4606, %v4606
    %v4735 = vmul.f32 %v4607, %v4607
    %v4736 = vmul.f32 %v4608, %v4608
    %v4737 = vmul.f32 %v4609, %v4609
    %v4738 = vmul.f32 %v4610, %v4610
    %v4739 = vmul.f32 %v4611, %v4611
    %v4740 = vmul.f32 %v4612, %v4612
    %v4741 = vmul.f32 %v4613, %v4613
    %v4742 = vmul.f32 %v4614, %v4614
    %v4743 = vmul.f32 %v4615, %v4615
    %v4744 = vmul.f32 %v4616, %v4616
    %v4745 = vmul.f32 %v4617, %v4617
    %v4746 = vmul.f32 %v4618, %v4618
    %v4747 = vmul.f32 %v4619, %v4619
    %v4748 = vmul.f32 %v4620, %v4620
    %v4749 = vmul.f32 %v4621, %v4621
    %v4750 = vmul.f32 %v4622, %v4622
    %v4751 = vmul.f32 %v4623, %v4623
    %v4752 = vmul.f32 %v4624, %v4624
    %v4753 = vmul.f32 %v4625, %v4625
    %v4754 = vmul.f32 %v4626, %v4626
    %v4755 = vmul.f32 %v4627, %v4627
    %v4756 = vmul.f32 %v4628, %v4628
    %v4757 = vmul.f32 %v4629, %v4629
    %v4758 = vmul.f32 %v4630, %v4630
    %v4759 = vmul.f32 %v4631, %v4631
    %v4760 = vmul.f32 %v4632, %v4632
    %v4761 = vmul.f32 %v4633, %v4633
    %v4762 = vmul.f32 %v4634, %v4634
    %v4763 = vmul.f32 %v4635, %v4635
    %v4764 = vmul.f32 %v4636, %v4636
    %v4765 = vmul.f32 %v4637, %v4637
    %v4766 = vmul.f32 %v4638, %v4638
    %v4767 = vmul.f32 %v4639, %v4639
    %v4768 = vmul.f32 %v4640, %v4640
    %v4769 = vmul.f32 %v4641, %v4641
    %v4770 = vmul.f32 %v4642, %v4642
    %v4771 = vmul.f32 %v4643, %v4643
    %v4772 = vmul.f32 %v4644, %v4644
    %v4773 = vmul.f32 %v4645, %v4645
    %v4774 = vmul.f32 %v4646, %v4646
    %v4775 = vmul.f32 %v4647, %v4647
    %v4776 = vmul.f32 %v4648, %v4648
    %v4777 = vmul.f32 %v4649, %v4649
    %v4778 = vmul.f32 %v4650, %v4650
    %v4779 = vmul.f32 %v4651, %v4651
    %v4780 = vmul.f32 %v4652, %v4652
    %v4781 = vsub.f32 %v4653, %v4717
    %v4782 = vsub.f32 %v4654, %v4718
    %v4783 = vsub.f32 %v4655, %v4719
    %v4784 = vsub.f32 %v4656, %v4720
    %v4785 = vsub.f32 %v4657, %v4721
    %v4786 = vsub.f32 %v4658, %v4722
    %v4787 = vsub.f32 %v4659, %v4723
    %v4788 = vsub.f32 %v4660, %v4724
    %v4789 = vsub.f32 %v4661, %v4725
    %v4790 = vsub.f32 %v4662, %v4726
    %v4791 = vsub.f32 %v4663, %v4727
    %v4792 = vsub.f32 %v4664, %v4728
    %v4793 = vsub.f32 %v4665, %v4729
    %v4794 = vsub.f32 %v4666, %v4730
    %v4795 = vsub.f32 %v4667, %v4731
    %v4796 = vsub.f32 %v4668, %v4732
    %v4797 = vsub.f32 %v4669, %v4733
    %v4798 = vsub.f32 %v4670, %v4734
    %v4799 = vsub.f32 %v4671, %v4735
    %v4800 = vsub.f32 %v4672, %v4736
    %v4801 = vsub.f32 %v4673, %v4737
    %v4802 = vsub.f32 %v4674, %v4738
    %v4803 = vsub.f32 %v4675, %v4739
    %v4804 = vsub.f32 %v4676, %v4740
    %v4805 = vsub.f32 %v4677, %v4741
    %v4806 = vsub.f32 %v4678, %v4742
    %v4807 = vsub.f32 %v4679, %v4743
    %v4808 = vsub.f32 %v4680, %v4744
    %v4809 = vsub.f32 %v4681, %v4745
    %v4810 = vsub.f32 %v4682, %v4746
    %v4811 = vsub.f32 %v4683, %v4747
    %v4812 = vsub.f32 %v4684, %v4748
    %v4813 = vsub.f32 %v4685, %v4749
    %v4814 = vsub.f32 %v4686, %v4750
    %v4815 = vsub.f32 %v4687, %v4751
    %v4816 = vsub.f32 %v4688, %v4752
    %v4817 = vsub.f32 %v4689, %v4753
    %v4818 = vsub.f32 %v4690, %v4754
    %v4819 = vsub.f32 %v4691, %v4755
    %v4820 = vsub.f32 %v4692, %v4756
    %v4821 = vsub.f32 %v4693, %v4757
    %v4822 = vsub.f32 %v4694, %v4758
    %v4823 = vsub.f32 %v4695, %v4759
    %v4824 = vsub.f32 %v4696, %v4760
    %v4825 = vsub.f32 %v4697, %v4761
    %v4826 = vsub.f32 %v4698, %v4762
    %v4827 = vsub.f32 %v4699, %v4763
    %v4828 = vsub.f32 %v4700, %v4764
    %v4829 = vsub.f32 %v4701, %v4765
    %v4830 = vsub.f32 %v4702, %v4766
    %v4831 = vsub.f32 %v4703, %v4767
    %v4832 = vsub.f32 %v4704, %v4768
    %v4833 = vsub.f32 %v4705, %v4769
    %v4834 = vsub.f32 %v4706, %v4770
    %v4835 = vsub.f32 %v4707, %v4771
    %v4836 = vsub.f32 %v4708, %v4772
    %v4837 = vsub.f32 %v4709, %v4773
    %v4838 = vsub.f32 %v4710, %v4774
    %v4839 = vsub.f32 %v4711, %v4775
    %v4840 = vsub.f32 %v4712, %v4776
    %v4841 = vsub.f32 %v4713, %v4777
    %v4842 = vsub.f32 %v4714, %v4778
    %v4843 = vsub.f32 %v4715, %v4779
    %v4844 = vsub.f32 %v4716, %v4780
    %v4845 = vsub.f32 %v3695, %v4589
    %v4846 = vsub.f32 %v3697, %v4589
    %v4847 = vsub.f32 %v3701, %v4590
    %v4848 = vsub.f32 %v3703, %v4590
    %v4849 = vsub.f32 %v3707, %v4591
    %v4850 = vsub.f32 %v3709, %v4591
    %v4851 = vsub.f32 %v3713, %v4592
    %v4852 = vsub.f32 %v3715, %v4592
    %v4853 = vsub.f32 %v3719, %v4593
    %v4854 = vsub.f32 %v3721, %v4593
    %v4855 = vsub.f32 %v3725, %v4594
    %v4856 = vsub.f32 %v3727, %v4594
    %v4857 = vsub.f32 %v3731, %v4595
    %v4858 = vsub.f32 %v3733, %v4595
    %v4859 = vsub.f32 %v3737, %v4596
    %v4860 = vsub.f32 %v3739, %v4596
    %v4861 = vsub.f32 %v3743, %v4597
    %v4862 = vsub.f32 %v3745, %v4597
    %v4863 = vsub.f32 %v3749, %v4598
    %v4864 = vsub.f32 %v3751, %v4598
    %v4865 = vsub.f32 %v3755, %v4599
    %v4866 = vsub.f32 %v3757, %v4599
    %v4867 = vsub.f32 %v3761, %v4600
    %v4868 = vsub.f32 %v3763, %v4600
    %v4869 = vsub.f32 %v3767, %v4601
    %v4870 = vsub.f32 %v3769, %v4601
    %v4871 = vsub.f32 %v3773, %v4602
    %v4872 = vsub.f32 %v3775, %v4602
    %v4873 = vsub.f32 %v3779, %v4603
    %v4874 = vsub.f32 %v3781, %v4603
    %v4875 = vsub.f32 %v3785, %v4604
    %v4876 = vsub.f32 %v3787, %v4604
    %v4877 = vsub.f32 %v3791, %v4605
    %v4878 = vsub.f32 %v3793, %v4605
    %v4879 = vsub.f32 %v3797, %v4606
    %v4880 = vsub.f32 %v3799, %v4606
    %v4881 = vsub.f32 %v3803, %v4607
    %v4882 = vsub.f32 %v3805, %v4607
    %v4883 = vsub.f32 %v3809, %v4608
    %v4884 = vsub.f32 %v3811, %v4608
    %v4885 = vsub.f32 %v3815, %v4609
    %v4886 = vsub.f32 %v3817, %v4609
    %v4887 = vsub.f32 %v3821, %v4610
    %v4888 = vsub.f32 %v3823, %v4610
    %v4889 = vsub.f32 %v3827, %v4611
    %v4890 = vsub.f32 %v3829, %v4611
    %v4891 = vsub.f32 %v3833, %v4612
    %v4892 = vsub.f32 %v3835, %v4612
    %v4893 = vsub.f32 %v3839, %v4613
    %v4894 = vsub.f32 %v3841, %v4613
    %v4895 = vsub.f32 %v3845, %v4614
    %v4896 = vsub.f32 %v3847, %v4614
    %v4897 = vsub.f32 %v3851, %v4615
    %v4898 = vsub.f32 %v3853, %v4615
    %v4899 = vsub.f32 %v3857, %v4616
    %v4900 = vsub.f32 %v3859, %v4616
    %v4901 = vsub.f32 %v3863, %v4617
    %v4902 = vsub.f32 %v3865, %v4617
    %v4903 = vsub.f32 %v3869, %v4618
    %v4904 = vsub.f32 %v3871, %v4618
    %v4905 = vsub.f32 %v3875, %v4619
    %v4906 = vsub.f32 %v3877, %v4619
    %v4907 = vsub.f32 %v3881, %v4620
    %v4908 = vsub.f32 %v3883, %v4620
    %v4909 = vsub.f32 %v3887, %v4621
    %v4910 = vsub.f32 %v3889, %v4621
    %v4911 = vsub.f32 %v3893, %v4622
    %v4912 = vsub.f32 %v3895, %v4622
    %v4913 = vsub.f32 %v3899, %v4623
    %v4914 = vsub.f32 %v3901, %v4623
    %v4915 = vsub.f32 %v3905, %v4624
    %v4916 = vsub.f32 %v3907, %v4624
    %v4917 = vsub.f32 %v3911, %v4625
    %v4918 = vsub.f32 %v3913, %v4625
    %v4919 = vsub.f32 %v3917, %v4626
    %v4920 = vsub.f32 %v3919, %v4626
    %v4921 = vsub.f32 %v3923, %v4627
    %v4922 = vsub.f32 %v3925, %v4627
    %v4923 = vsub.f32 %v3929, %v4628
    %v4924 = vsub.f32 %v3931, %v4628
    %v4925 = vsub.f32 %v3935, %v4629
    %v4926 = vsub.f32 %v3937, %v4629
    %v4927 = vsub.f32 %v3941, %v4630
    %v4928 = vsub.f32 %v3943, %v4630
    %v4929 = vsub.f32 %v3947, %v4631
    %v4930 = vsub.f32 %v3949, %v4631
    %v4931 = vsub.f32 %v3953, %v4632
    %v4932 = vsub.f32 %v3955, %v4632
    %v4933 = vsub.f32 %v3959, %v4633
    %v4934 = vsub.f32 %v3961, %v4633
    %v4935 = vsub.f32 %v3965, %v4634
    %v4936 = vsub.f32 %v3967, %v4634
    %v4937 = vsub.f32 %v3971, %v4635
    %v4938 = vsub.f32 %v3973, %v4635
    %v4939 = vsub.f32 %v3977, %v4636
    %v4940 = vsub.f32 %v3979, %v4636
    %v4941 = vsub.f32 %v3983, %v4637
    %v4942 = vsub.f32 %v3985, %v4637
    %v4943 = vsub.f32 %v3989, %v4638
    %v4944 = vsub.f32 %v3991, %v4638
    %v4945 = vsub.f32 %v3995, %v4639
    %v4946 = vsub.f32 %v3997, %v4639
    %v4947 = vsub.f32 %v4001, %v4640
    %v4948 = vsub.f32 %v4003, %v4640
    %v4949 = vsub.f32 %v4007, %v4641
    %v4950 = vsub.f32 %v4009, %v4641
    %v4951 = vsub.f32 %v4013, %v4642
    %v4952 = vsub.f32 %v4015, %v4642
    %v4953 = vsub.f32 %v4019, %v4643
    %v4954 = vsub.f32 %v4021, %v4643
    %v4955 = vsub.f32 %v4025, %v4644
    %v4956 = vsub.f32 %v4027, %v4644
    %v4957 = vsub.f32 %v4031, %v4645
    %v4958 = vsub.f32 %v4033, %v4645
    %v4959 = vsub.f32 %v4037, %v4646
    %v4960 = vsub.f32 %v4039, %v4646
    %v4961 = vsub.f32 %v4043, %v4647
    %v4962 = vsub.f32 %v4045, %v4647
    %v4963 = vsub.f32 %v4049, %v4648
    %v4964 = vsub.f32 %v4051, %v4648
    %v4965 = vsub.f32 %v4055, %v4649
    %v4966 = vsub.f32 %v4057, %v4649
    %v4967 = vsub.f32 %v4061, %v4650
    %v4968 = vsub.f32 %v4063, %v4650
    %v4969 = vsub.f32 %v4067, %v4651
    %v4970 = vsub.f32 %v4069, %v4651
    %v4971 = vsub.f32 %v4073, %v4652
    %v4972 = vsub.f32 %v4075, %v4652
    %v4973 = vadd.f32 %v4781, 1e-05
    %v4974 = vadd.f32 %v4782, 1e-05
    %v4975 = vadd.f32 %v4783, 1e-05
    %v4976 = vadd.f32 %v4784, 1e-05
    %v4977 = vadd.f32 %v4785, 1e-05
    %v4978 = vadd.f32 %v4786, 1e-05
    %v4979 = vadd.f32 %v4787, 1e-05
    %v4980 = vadd.f32 %v4788, 1e-05
    %v4981 = vadd.f32 %v4789, 1e-05
    %v4982 = vadd.f32 %v4790, 1e-05
    %v4983 = vadd.f32 %v4791, 1e-05
    %v4984 = vadd.f32 %v4792, 1e-05
    %v4985 = vadd.f32 %v4793, 1e-05
    %v4986 = vadd.f32 %v4794, 1e-05
    %v4987 = vadd.f32 %v4795, 1e-05
    %v4988 = vadd.f32 %v4796, 1e-05
    %v4989 = vadd.f32 %v4797, 1e-05
    %v4990 = vadd.f32 %v4798, 1e-05
    %v4991 = vadd.f32 %v4799, 1e-05
    %v4992 = vadd.f32 %v4800, 1e-05
    %v4993 = vadd.f32 %v4801, 1e-05
    %v4994 = vadd.f32 %v4802, 1e-05
    %v4995 = vadd.f32 %v4803, 1e-05
    %v4996 = vadd.f32 %v4804, 1e-05
    %v4997 = vadd.f32 %v4805, 1e-05
    %v4998 = vadd.f32 %v4806, 1e-05
    %v4999 = vadd.f32 %v4807, 1e-05
    %v5000 = vadd.f32 %v4808, 1e-05
    %v5001 = vadd.f32 %v4809, 1e-05
    %v5002 = vadd.f32 %v4810, 1e-05
    %v5003 = vadd.f32 %v4811, 1e-05
    %v5004 = vadd.f32 %v4812, 1e-05
    %v5005 = vadd.f32 %v4813, 1e-05
    %v5006 = vadd.f32 %v4814, 1e-05
    %v5007 = vadd.f32 %v4815, 1e-05
    %v5008 = vadd.f32 %v4816, 1e-05
    %v5009 = vadd.f32 %v4817, 1e-05
    %v5010 = vadd.f32 %v4818, 1e-05
    %v5011 = vadd.f32 %v4819, 1e-05
    %v5012 = vadd.f32 %v4820, 1e-05
    %v5013 = vadd.f32 %v4821, 1e-05
    %v5014 = vadd.f32 %v4822, 1e-05
    %v5015 = vadd.f32 %v4823, 1e-05
    %v5016 = vadd.f32 %v4824, 1e-05
    %v5017 = vadd.f32 %v4825, 1e-05
    %v5018 = vadd.f32 %v4826, 1e-05
    %v5019 = vadd.f32 %v4827, 1e-05
    %v5020 = vadd.f32 %v4828, 1e-05
    %v5021 = vadd.f32 %v4829, 1e-05
    %v5022 = vadd.f32 %v4830, 1e-05
    %v5023 = vadd.f32 %v4831, 1e-05
    %v5024 = vadd.f32 %v4832, 1e-05
    %v5025 = vadd.f32 %v4833, 1e-05
    %v5026 = vadd.f32 %v4834, 1e-05
    %v5027 = vadd.f32 %v4835, 1e-05
    %v5028 = vadd.f32 %v4836, 1e-05
    %v5029 = vadd.f32 %v4837, 1e-05
    %v5030 = vadd.f32 %v4838, 1e-05
    %v5031 = vadd.f32 %v4839, 1e-05
    %v5032 = vadd.f32 %v4840, 1e-05
    %v5033 = vadd.f32 %v4841, 1e-05
    %v5034 = vadd.f32 %v4842, 1e-05
    %v5035 = vadd.f32 %v4843, 1e-05
    %v5036 = vadd.f32 %v4844, 1e-05
    %v5037 = vrsqrt.pop %v4973
    %v5038 = vrsqrt.pop %v4974
    %v5039 = vrsqrt.pop %v4975
    %v5040 = vrsqrt.pop %v4976
    %v5041 = vrsqrt.pop %v4977
    %v5042 = vrsqrt.pop %v4978
    %v5043 = vrsqrt.pop %v4979
    %v5044 = vrsqrt.pop %v4980
    %v5045 = vrsqrt.pop %v4981
    %v5046 = vrsqrt.pop %v4982
    %v5047 = vrsqrt.pop %v4983
    %v5048 = vrsqrt.pop %v4984
    %v5049 = vrsqrt.pop %v4985
    %v5050 = vrsqrt.pop %v4986
    %v5051 = vrsqrt.pop %v4987
    %v5052 = vrsqrt.pop %v4988
    %v5053 = vrsqrt.pop %v4989
    %v5054 = vrsqrt.pop %v4990
    %v5055 = vrsqrt.pop %v4991
    %v5056 = vrsqrt.pop %v4992
    %v5057 = vrsqrt.pop %v4993
    %v5058 = vrsqrt.pop %v4994
    %v5059 = vrsqrt.pop %v4995
    %v5060 = vrsqrt.pop %v4996
    %v5061 = vrsqrt.pop %v4997
    %v5062 = vrsqrt.pop %v4998
    %v5063 = vrsqrt.pop %v4999
    %v5064 = vrsqrt.pop %v5000
    %v5065 = vrsqrt.pop %v5001
    %v5066 = vrsqrt.pop %v5002
    %v5067 = vrsqrt.pop %v5003
    %v5068 = vrsqrt.pop %v5004
    %v5069 = vrsqrt.pop %v5005
    %v5070 = vrsqrt.pop %v5006
    %v5071 = vrsqrt.pop %v5007
    %v5072 = vrsqrt.pop %v5008
    %v5073 = vrsqrt.pop %v5009
    %v5074 = vrsqrt.pop %v5010
    %v5075 = vrsqrt.pop %v5011
    %v5076 = vrsqrt.pop %v5012
    %v5077 = vrsqrt.pop %v5013
    %v5078 = vrsqrt.pop %v5014
    %v5079 = vrsqrt.pop %v5015
    %v5080 = vrsqrt.pop %v5016
    %v5081 = vrsqrt.pop %v5017
    %v5082 = vrsqrt.pop %v5018
    %v5083 = vrsqrt.pop %v5019
    %v5084 = vrsqrt.pop %v5020
    %v5085 = vrsqrt.pop %v5021
    %v5086 = vrsqrt.pop %v5022
    %v5087 = vrsqrt.pop %v5023
    %v5088 = vrsqrt.pop %v5024
    %v5089 = vrsqrt.pop %v5025
    %v5090 = vrsqrt.pop %v5026
    %v5091 = vrsqrt.pop %v5027
    %v5092 = vrsqrt.pop %v5028
    %v5093 = vrsqrt.pop %v5029
    %v5094 = vrsqrt.pop %v5030
    %v5095 = vrsqrt.pop %v5031
    %v5096 = vrsqrt.pop %v5032
    %v5097 = vrsqrt.pop %v5033
    %v5098 = vrsqrt.pop %v5034
    %v5099 = vrsqrt.pop %v5035
    %v5100 = vrsqrt.pop %v5036
    %v5101 = vmul.f32 %v4845, %v5037
    %v5102 = vmul.f32 %v4846, %v5037
    %v5103 = vmul.f32 %v4847, %v5038
    %v5104 = vmul.f32 %v4848, %v5038
    %v5105 = vmul.f32 %v4849, %v5039
    %v5106 = vmul.f32 %v4850, %v5039
    %v5107 = vmul.f32 %v4851, %v5040
    %v5108 = vmul.f32 %v4852, %v5040
    %v5109 = vmul.f32 %v4853, %v5041
    %v5110 = vmul.f32 %v4854, %v5041
    %v5111 = vmul.f32 %v4855, %v5042
    %v5112 = vmul.f32 %v4856, %v5042
    %v5113 = vmul.f32 %v4857, %v5043
    %v5114 = vmul.f32 %v4858, %v5043
    %v5115 = vmul.f32 %v4859, %v5044
    %v5116 = vmul.f32 %v4860, %v5044
    %v5117 = vmul.f32 %v4861, %v5045
    %v5118 = vmul.f32 %v4862, %v5045
    %v5119 = vmul.f32 %v4863, %v5046
    %v5120 = vmul.f32 %v4864, %v5046
    %v5121 = vmul.f32 %v4865, %v5047
    %v5122 = vmul.f32 %v4866, %v5047
    %v5123 = vmul.f32 %v4867, %v5048
    %v5124 = vmul.f32 %v4868, %v5048
    %v5125 = vmul.f32 %v4869, %v5049
    %v5126 = vmul.f32 %v4870, %v5049
    %v5127 = vmul.f32 %v4871, %v5050
    %v5128 = vmul.f32 %v4872, %v5050
    %v5129 = vmul.f32 %v4873, %v5051
    %v5130 = vmul.f32 %v4874, %v5051
    %v5131 = vmul.f32 %v4875, %v5052
    %v5132 = vmul.f32 %v4876, %v5052
    %v5133 = vmul.f32 %v4877, %v5053
    %v5134 = vmul.f32 %v4878, %v5053
    %v5135 = vmul.f32 %v4879, %v5054
    %v5136 = vmul.f32 %v4880, %v5054
    %v5137 = vmul.f32 %v4881, %v5055
    %v5138 = vmul.f32 %v4882, %v5055
    %v5139 = vmul.f32 %v4883, %v5056
    %v5140 = vmul.f32 %v4884, %v5056
    %v5141 = vmul.f32 %v4885, %v5057
    %v5142 = vmul.f32 %v4886, %v5057
    %v5143 = vmul.f32 %v4887, %v5058
    %v5144 = vmul.f32 %v4888, %v5058
    %v5145 = vmul.f32 %v4889, %v5059
    %v5146 = vmul.f32 %v4890, %v5059
    %v5147 = vmul.f32 %v4891, %v5060
    %v5148 = vmul.f32 %v4892, %v5060
    %v5149 = vmul.f32 %v4893, %v5061
    %v5150 = vmul.f32 %v4894, %v5061
    %v5151 = vmul.f32 %v4895, %v5062
    %v5152 = vmul.f32 %v4896, %v5062
    %v5153 = vmul.f32 %v4897, %v5063
    %v5154 = vmul.f32 %v4898, %v5063
    %v5155 = vmul.f32 %v4899, %v5064
    %v5156 = vmul.f32 %v4900, %v5064
    %v5157 = vmul.f32 %v4901, %v5065
    %v5158 = vmul.f32 %v4902, %v5065
    %v5159 = vmul.f32 %v4903, %v5066
    %v5160 = vmul.f32 %v4904, %v5066
    %v5161 = vmul.f32 %v4905, %v5067
    %v5162 = vmul.f32 %v4906, %v5067
    %v5163 = vmul.f32 %v4907, %v5068
    %v5164 = vmul.f32 %v4908, %v5068
    %v5165 = vmul.f32 %v4909, %v5069
    %v5166 = vmul.f32 %v4910, %v5069
    %v5167 = vmul.f32 %v4911, %v5070
    %v5168 = vmul.f32 %v4912, %v5070
    %v5169 = vmul.f32 %v4913, %v5071
    %v5170 = vmul.f32 %v4914, %v5071
    %v5171 = vmul.f32 %v4915, %v5072
    %v5172 = vmul.f32 %v4916, %v5072
    %v5173 = vmul.f32 %v4917, %v5073
    %v5174 = vmul.f32 %v4918, %v5073
    %v5175 = vmul.f32 %v4919, %v5074
    %v5176 = vmul.f32 %v4920, %v5074
    %v5177 = vmul.f32 %v4921, %v5075
    %v5178 = vmul.f32 %v4922, %v5075
    %v5179 = vmul.f32 %v4923, %v5076
    %v5180 = vmul.f32 %v4924, %v5076
    %v5181 = vmul.f32 %v4925, %v5077
    %v5182 = vmul.f32 %v4926, %v5077
    %v5183 = vmul.f32 %v4927, %v5078
    %v5184 = vmul.f32 %v4928, %v5078
    %v5185 = vmul.f32 %v4929, %v5079
    %v5186 = vmul.f32 %v4930, %v5079
    %v5187 = vmul.f32 %v4931, %v5080
    %v5188 = vmul.f32 %v4932, %v5080
    %v5189 = vmul.f32 %v4933, %v5081
    %v5190 = vmul.f32 %v4934, %v5081
    %v5191 = vmul.f32 %v4935, %v5082
    %v5192 = vmul.f32 %v4936, %v5082
    %v5193 = vmul.f32 %v4937, %v5083
    %v5194 = vmul.f32 %v4938, %v5083
    %v5195 = vmul.f32 %v4939, %v5084
    %v5196 = vmul.f32 %v4940, %v5084
    %v5197 = vmul.f32 %v4941, %v5085
    %v5198 = vmul.f32 %v4942, %v5085
    %v5199 = vmul.f32 %v4943, %v5086
    %v5200 = vmul.f32 %v4944, %v5086
    %v5201 = vmul.f32 %v4945, %v5087
    %v5202 = vmul.f32 %v4946, %v5087
    %v5203 = vmul.f32 %v4947, %v5088
    %v5204 = vmul.f32 %v4948, %v5088
    %v5205 = vmul.f32 %v4949, %v5089
    %v5206 = vmul.f32 %v4950, %v5089
    %v5207 = vmul.f32 %v4951, %v5090
    %v5208 = vmul.f32 %v4952, %v5090
    %v5209 = vmul.f32 %v4953, %v5091
    %v5210 = vmul.f32 %v4954, %v5091
    %v5211 = vmul.f32 %v4955, %v5092
    %v5212 = vmul.f32 %v4956, %v5092
    %v5213 = vmul.f32 %v4957, %v5093
    %v5214 = vmul.f32 %v4958, %v5093
    %v5215 = vmul.f32 %v4959, %v5094
    %v5216 = vmul.f32 %v4960, %v5094
    %v5217 = vmul.f32 %v4961, %v5095
    %v5218 = vmul.f32 %v4962, %v5095
    %v5219 = vmul.f32 %v4963, %v5096
    %v5220 = vmul.f32 %v4964, %v5096
    %v5221 = vmul.f32 %v4965, %v5097
    %v5222 = vmul.f32 %v4966, %v5097
    %v5223 = vmul.f32 %v4967, %v5098
    %v5224 = vmul.f32 %v4968, %v5098
    %v5225 = vmul.f32 %v4969, %v5099
    %v5226 = vmul.f32 %v4970, %v5099
    %v5227 = vmul.f32 %v4971, %v5100
    %v5228 = vmul.f32 %v4972, %v5100
    %v5229 = vld [vmem:[%s12] sm:$0x3]
    %v5231 = vlaneseq
    %v5232 = vshrl.u32 %v5231, 7
    %v5233 = vsub.s32 0, %v5232
    %v5234 = vrot.slane %v5229, %v5233
    %v5235 = vlaneseq
    %v5236 = vshrl.u32 %v5235, 7
    %v5237 = vsub.s32 1, %v5236
    %v5238 = vrot.slane %v5229, %v5237
    %v5241 = vmul.f32 %v5101, %v5234
    %v5242 = vmul.f32 %v5102, %v5238
    %v5243 = vmul.f32 %v5103, %v5234
    %v5244 = vmul.f32 %v5104, %v5238
    %v5245 = vmul.f32 %v5105, %v5234
    %v5246 = vmul.f32 %v5106, %v5238
    %v5247 = vmul.f32 %v5107, %v5234
    %v5248 = vmul.f32 %v5108, %v5238
    %v5249 = vmul.f32 %v5109, %v5234
    %v5250 = vmul.f32 %v5110, %v5238
    %v5251 = vmul.f32 %v5111, %v5234
    %v5252 = vmul.f32 %v5112, %v5238
    %v5253 = vmul.f32 %v5113, %v5234
    %v5254 = vmul.f32 %v5114, %v5238
    %v5255 = vmul.f32 %v5115, %v5234
    %v5256 = vmul.f32 %v5116, %v5238
    %v5257 = vmul.f32 %v5117, %v5234
    %v5258 = vmul.f32 %v5118, %v5238
    %v5259 = vmul.f32 %v5119, %v5234
    %v5260 = vmul.f32 %v5120, %v5238
    %v5261 = vmul.f32 %v5121, %v5234
    %v5262 = vmul.f32 %v5122, %v5238
    %v5263 = vmul.f32 %v5123, %v5234
    %v5264 = vmul.f32 %v5124, %v5238
    %v5265 = vmul.f32 %v5125, %v5234
    %v5266 = vmul.f32 %v5126, %v5238
    %v5267 = vmul.f32 %v5127, %v5234
    %v5268 = vmul.f32 %v5128, %v5238
    %v5269 = vmul.f32 %v5129, %v5234
    %v5270 = vmul.f32 %v5130, %v5238
    %v5271 = vmul.f32 %v5131, %v5234
    %v5272 = vmul.f32 %v5132, %v5238
    %v5273 = vmul.f32 %v5133, %v5234
    %v5274 = vmul.f32 %v5134, %v5238
    %v5275 = vmul.f32 %v5135, %v5234
    %v5276 = vmul.f32 %v5136, %v5238
    %v5277 = vmul.f32 %v5137, %v5234
    %v5278 = vmul.f32 %v5138, %v5238
    %v5279 = vmul.f32 %v5139, %v5234
    %v5280 = vmul.f32 %v5140, %v5238
    %v5281 = vmul.f32 %v5141, %v5234
    %v5282 = vmul.f32 %v5142, %v5238
    %v5283 = vmul.f32 %v5143, %v5234
    %v5284 = vmul.f32 %v5144, %v5238
    %v5285 = vmul.f32 %v5145, %v5234
    %v5286 = vmul.f32 %v5146, %v5238
    %v5287 = vmul.f32 %v5147, %v5234
    %v5288 = vmul.f32 %v5148, %v5238
    %v5289 = vmul.f32 %v5149, %v5234
    %v5290 = vmul.f32 %v5150, %v5238
    %v5291 = vmul.f32 %v5151, %v5234
    %v5292 = vmul.f32 %v5152, %v5238
    %v5293 = vmul.f32 %v5153, %v5234
    %v5294 = vmul.f32 %v5154, %v5238
    %v5295 = vmul.f32 %v5155, %v5234
    %v5296 = vmul.f32 %v5156, %v5238
    %v5297 = vmul.f32 %v5157, %v5234
    %v5298 = vmul.f32 %v5158, %v5238
    %v5299 = vmul.f32 %v5159, %v5234
    %v5300 = vmul.f32 %v5160, %v5238
    %v5301 = vmul.f32 %v5161, %v5234
    %v5302 = vmul.f32 %v5162, %v5238
    %v5303 = vmul.f32 %v5163, %v5234
    %v5304 = vmul.f32 %v5164, %v5238
    %v5305 = vmul.f32 %v5165, %v5234
    %v5306 = vmul.f32 %v5166, %v5238
    %v5307 = vmul.f32 %v5167, %v5234
    %v5308 = vmul.f32 %v5168, %v5238
    %v5309 = vmul.f32 %v5169, %v5234
    %v5310 = vmul.f32 %v5170, %v5238
    %v5311 = vmul.f32 %v5171, %v5234
    %v5312 = vmul.f32 %v5172, %v5238
    %v5313 = vmul.f32 %v5173, %v5234
    %v5314 = vmul.f32 %v5174, %v5238
    %v5315 = vmul.f32 %v5175, %v5234
    %v5316 = vmul.f32 %v5176, %v5238
    %v5317 = vmul.f32 %v5177, %v5234
    %v5318 = vmul.f32 %v5178, %v5238
    %v5319 = vmul.f32 %v5179, %v5234
    %v5320 = vmul.f32 %v5180, %v5238
    %v5321 = vmul.f32 %v5181, %v5234
    %v5322 = vmul.f32 %v5182, %v5238
    %v5323 = vmul.f32 %v5183, %v5234
    %v5324 = vmul.f32 %v5184, %v5238
    %v5325 = vmul.f32 %v5185, %v5234
    %v5326 = vmul.f32 %v5186, %v5238
    %v5327 = vmul.f32 %v5187, %v5234
    %v5328 = vmul.f32 %v5188, %v5238
    %v5329 = vmul.f32 %v5189, %v5234
    %v5330 = vmul.f32 %v5190, %v5238
    %v5331 = vmul.f32 %v5191, %v5234
    %v5332 = vmul.f32 %v5192, %v5238
    %v5333 = vmul.f32 %v5193, %v5234
    %v5334 = vmul.f32 %v5194, %v5238
    %v5335 = vmul.f32 %v5195, %v5234
    %v5336 = vmul.f32 %v5196, %v5238
    %v5337 = vmul.f32 %v5197, %v5234
    %v5338 = vmul.f32 %v5198, %v5238
    %v5339 = vmul.f32 %v5199, %v5234
    %v5340 = vmul.f32 %v5200, %v5238
    %v5341 = vmul.f32 %v5201, %v5234
    %v5342 = vmul.f32 %v5202, %v5238
    %v5343 = vmul.f32 %v5203, %v5234
    %v5344 = vmul.f32 %v5204, %v5238
    %v5345 = vmul.f32 %v5205, %v5234
    %v5346 = vmul.f32 %v5206, %v5238
    %v5347 = vmul.f32 %v5207, %v5234
    %v5348 = vmul.f32 %v5208, %v5238
    %v5349 = vmul.f32 %v5209, %v5234
    %v5350 = vmul.f32 %v5210, %v5238
    %v5351 = vmul.f32 %v5211, %v5234
    %v5352 = vmul.f32 %v5212, %v5238
    %v5353 = vmul.f32 %v5213, %v5234
    %v5354 = vmul.f32 %v5214, %v5238
    %v5355 = vmul.f32 %v5215, %v5234
    %v5356 = vmul.f32 %v5216, %v5238
    %v5357 = vmul.f32 %v5217, %v5234
    %v5358 = vmul.f32 %v5218, %v5238
    %v5359 = vmul.f32 %v5219, %v5234
    %v5360 = vmul.f32 %v5220, %v5238
    %v5361 = vmul.f32 %v5221, %v5234
    %v5362 = vmul.f32 %v5222, %v5238
    %v5363 = vmul.f32 %v5223, %v5234
    %v5364 = vmul.f32 %v5224, %v5238
    %v5365 = vmul.f32 %v5225, %v5234
    %v5366 = vmul.f32 %v5226, %v5238
    %v5367 = vmul.f32 %v5227, %v5234
    %v5368 = vmul.f32 %v5228, %v5238
    %v5369 = vld [vmem:[%s13] sm:$0x3]
    %v5371 = vlaneseq
    %v5372 = vshrl.u32 %v5371, 7
    %v5373 = vsub.s32 0, %v5372
    %v5374 = vrot.slane %v5369, %v5373
    %v5375 = vlaneseq
    %v5376 = vshrl.u32 %v5375, 7
    %v5377 = vsub.s32 1, %v5376
    %v5378 = vrot.slane %v5369, %v5377
    %v5381 = vadd.f32 %v5241, %v5374
    %v5382 = vadd.f32 %v5242, %v5378
    %v5383 = vadd.f32 %v5243, %v5374
    %v5384 = vadd.f32 %v5244, %v5378
    %v5385 = vadd.f32 %v5245, %v5374
    %v5386 = vadd.f32 %v5246, %v5378
    %v5387 = vadd.f32 %v5247, %v5374
    %v5388 = vadd.f32 %v5248, %v5378
    %v5389 = vadd.f32 %v5249, %v5374
    %v5390 = vadd.f32 %v5250, %v5378
    %v5391 = vadd.f32 %v5251, %v5374
    %v5392 = vadd.f32 %v5252, %v5378
    %v5393 = vadd.f32 %v5253, %v5374
    %v5394 = vadd.f32 %v5254, %v5378
    %v5395 = vadd.f32 %v5255, %v5374
    %v5396 = vadd.f32 %v5256, %v5378
    %v5397 = vadd.f32 %v5257, %v5374
    %v5398 = vadd.f32 %v5258, %v5378
    %v5399 = vadd.f32 %v5259, %v5374
    %v5400 = vadd.f32 %v5260, %v5378
    %v5401 = vadd.f32 %v5261, %v5374
    %v5402 = vadd.f32 %v5262, %v5378
    %v5403 = vadd.f32 %v5263, %v5374
    %v5404 = vadd.f32 %v5264, %v5378
    %v5405 = vadd.f32 %v5265, %v5374
    %v5406 = vadd.f32 %v5266, %v5378
    %v5407 = vadd.f32 %v5267, %v5374
    %v5408 = vadd.f32 %v5268, %v5378
    %v5409 = vadd.f32 %v5269, %v5374
    %v5410 = vadd.f32 %v5270, %v5378
    %v5411 = vadd.f32 %v5271, %v5374
    %v5412 = vadd.f32 %v5272, %v5378
    %v5413 = vadd.f32 %v5273, %v5374
    %v5414 = vadd.f32 %v5274, %v5378
    %v5415 = vadd.f32 %v5275, %v5374
    %v5416 = vadd.f32 %v5276, %v5378
    %v5417 = vadd.f32 %v5277, %v5374
    %v5418 = vadd.f32 %v5278, %v5378
    %v5419 = vadd.f32 %v5279, %v5374
    %v5420 = vadd.f32 %v5280, %v5378
    %v5421 = vadd.f32 %v5281, %v5374
    %v5422 = vadd.f32 %v5282, %v5378
    %v5423 = vadd.f32 %v5283, %v5374
    %v5424 = vadd.f32 %v5284, %v5378
    %v5425 = vadd.f32 %v5285, %v5374
    %v5426 = vadd.f32 %v5286, %v5378
    %v5427 = vadd.f32 %v5287, %v5374
    %v5428 = vadd.f32 %v5288, %v5378
    %v5429 = vadd.f32 %v5289, %v5374
    %v5430 = vadd.f32 %v5290, %v5378
    %v5431 = vadd.f32 %v5291, %v5374
    %v5432 = vadd.f32 %v5292, %v5378
    %v5433 = vadd.f32 %v5293, %v5374
    %v5434 = vadd.f32 %v5294, %v5378
    %v5435 = vadd.f32 %v5295, %v5374
    %v5436 = vadd.f32 %v5296, %v5378
    %v5437 = vadd.f32 %v5297, %v5374
    %v5438 = vadd.f32 %v5298, %v5378
    %v5439 = vadd.f32 %v5299, %v5374
    %v5440 = vadd.f32 %v5300, %v5378
    %v5441 = vadd.f32 %v5301, %v5374
    %v5442 = vadd.f32 %v5302, %v5378
    %v5443 = vadd.f32 %v5303, %v5374
    %v5444 = vadd.f32 %v5304, %v5378
    %v5445 = vadd.f32 %v5305, %v5374
    %v5446 = vadd.f32 %v5306, %v5378
    %v5447 = vadd.f32 %v5307, %v5374
    %v5448 = vadd.f32 %v5308, %v5378
    %v5449 = vadd.f32 %v5309, %v5374
    %v5450 = vadd.f32 %v5310, %v5378
    %v5451 = vadd.f32 %v5311, %v5374
    %v5452 = vadd.f32 %v5312, %v5378
    %v5453 = vadd.f32 %v5313, %v5374
    %v5454 = vadd.f32 %v5314, %v5378
    %v5455 = vadd.f32 %v5315, %v5374
    %v5456 = vadd.f32 %v5316, %v5378
    %v5457 = vadd.f32 %v5317, %v5374
    %v5458 = vadd.f32 %v5318, %v5378
    %v5459 = vadd.f32 %v5319, %v5374
    %v5460 = vadd.f32 %v5320, %v5378
    %v5461 = vadd.f32 %v5321, %v5374
    %v5462 = vadd.f32 %v5322, %v5378
    %v5463 = vadd.f32 %v5323, %v5374
    %v5464 = vadd.f32 %v5324, %v5378
    %v5465 = vadd.f32 %v5325, %v5374
    %v5466 = vadd.f32 %v5326, %v5378
    %v5467 = vadd.f32 %v5327, %v5374
    %v5468 = vadd.f32 %v5328, %v5378
    %v5469 = vadd.f32 %v5329, %v5374
    %v5470 = vadd.f32 %v5330, %v5378
    %v5471 = vadd.f32 %v5331, %v5374
    %v5472 = vadd.f32 %v5332, %v5378
    %v5473 = vadd.f32 %v5333, %v5374
    %v5474 = vadd.f32 %v5334, %v5378
    %v5475 = vadd.f32 %v5335, %v5374
    %v5476 = vadd.f32 %v5336, %v5378
    %v5477 = vadd.f32 %v5337, %v5374
    %v5478 = vadd.f32 %v5338, %v5378
    %v5479 = vadd.f32 %v5339, %v5374
    %v5480 = vadd.f32 %v5340, %v5378
    %v5481 = vadd.f32 %v5341, %v5374
    %v5482 = vadd.f32 %v5342, %v5378
    %v5483 = vadd.f32 %v5343, %v5374
    %v5484 = vadd.f32 %v5344, %v5378
    %v5485 = vadd.f32 %v5345, %v5374
    %v5486 = vadd.f32 %v5346, %v5378
    %v5487 = vadd.f32 %v5347, %v5374
    %v5488 = vadd.f32 %v5348, %v5378
    %v5489 = vadd.f32 %v5349, %v5374
    %v5490 = vadd.f32 %v5350, %v5378
    %v5491 = vadd.f32 %v5351, %v5374
    %v5492 = vadd.f32 %v5352, %v5378
    %v5493 = vadd.f32 %v5353, %v5374
    %v5494 = vadd.f32 %v5354, %v5378
    %v5495 = vadd.f32 %v5355, %v5374
    %v5496 = vadd.f32 %v5356, %v5378
    %v5497 = vadd.f32 %v5357, %v5374
    %v5498 = vadd.f32 %v5358, %v5378
    %v5499 = vadd.f32 %v5359, %v5374
    %v5500 = vadd.f32 %v5360, %v5378
    %v5501 = vadd.f32 %v5361, %v5374
    %v5502 = vadd.f32 %v5362, %v5378
    %v5503 = vadd.f32 %v5363, %v5374
    %v5504 = vadd.f32 %v5364, %v5378
    %v5505 = vadd.f32 %v5365, %v5374
    %v5506 = vadd.f32 %v5366, %v5378
    %v5507 = vadd.f32 %v5367, %v5374
    %v5508 = vadd.f32 %v5368, %v5378
    %v5509 = vmax.f32 %v5381, 0.0
    %v5510 = vmax.f32 %v5382, 0.0
    %v5511 = vmax.f32 %v5383, 0.0
    %v5512 = vmax.f32 %v5384, 0.0
    %v5513 = vmax.f32 %v5385, 0.0
    %v5514 = vmax.f32 %v5386, 0.0
    %v5515 = vmax.f32 %v5387, 0.0
    %v5516 = vmax.f32 %v5388, 0.0
    %v5517 = vmax.f32 %v5389, 0.0
    %v5518 = vmax.f32 %v5390, 0.0
    %v5519 = vmax.f32 %v5391, 0.0
    %v5520 = vmax.f32 %v5392, 0.0
    %v5521 = vmax.f32 %v5393, 0.0
    %v5522 = vmax.f32 %v5394, 0.0
    %v5523 = vmax.f32 %v5395, 0.0
    %v5524 = vmax.f32 %v5396, 0.0
    %v5525 = vmax.f32 %v5397, 0.0
    %v5526 = vmax.f32 %v5398, 0.0
    %v5527 = vmax.f32 %v5399, 0.0
    %v5528 = vmax.f32 %v5400, 0.0
    %v5529 = vmax.f32 %v5401, 0.0
    %v5530 = vmax.f32 %v5402, 0.0
    %v5531 = vmax.f32 %v5403, 0.0
    %v5532 = vmax.f32 %v5404, 0.0
    %v5533 = vmax.f32 %v5405, 0.0
    %v5534 = vmax.f32 %v5406, 0.0
    %v5535 = vmax.f32 %v5407, 0.0
    %v5536 = vmax.f32 %v5408, 0.0
    %v5537 = vmax.f32 %v5409, 0.0
    %v5538 = vmax.f32 %v5410, 0.0
    %v5539 = vmax.f32 %v5411, 0.0
    %v5540 = vmax.f32 %v5412, 0.0
    %v5541 = vmax.f32 %v5413, 0.0
    %v5542 = vmax.f32 %v5414, 0.0
    %v5543 = vmax.f32 %v5415, 0.0
    %v5544 = vmax.f32 %v5416, 0.0
    %v5545 = vmax.f32 %v5417, 0.0
    %v5546 = vmax.f32 %v5418, 0.0
    %v5547 = vmax.f32 %v5419, 0.0
    %v5548 = vmax.f32 %v5420, 0.0
    %v5549 = vmax.f32 %v5421, 0.0
    %v5550 = vmax.f32 %v5422, 0.0
    %v5551 = vmax.f32 %v5423, 0.0
    %v5552 = vmax.f32 %v5424, 0.0
    %v5553 = vmax.f32 %v5425, 0.0
    %v5554 = vmax.f32 %v5426, 0.0
    %v5555 = vmax.f32 %v5427, 0.0
    %v5556 = vmax.f32 %v5428, 0.0
    %v5557 = vmax.f32 %v5429, 0.0
    %v5558 = vmax.f32 %v5430, 0.0
    %v5559 = vmax.f32 %v5431, 0.0
    %v5560 = vmax.f32 %v5432, 0.0
    %v5561 = vmax.f32 %v5433, 0.0
    %v5562 = vmax.f32 %v5434, 0.0
    %v5563 = vmax.f32 %v5435, 0.0
    %v5564 = vmax.f32 %v5436, 0.0
    %v5565 = vmax.f32 %v5437, 0.0
    %v5566 = vmax.f32 %v5438, 0.0
    %v5567 = vmax.f32 %v5439, 0.0
    %v5568 = vmax.f32 %v5440, 0.0
    %v5569 = vmax.f32 %v5441, 0.0
    %v5570 = vmax.f32 %v5442, 0.0
    %v5571 = vmax.f32 %v5443, 0.0
    %v5572 = vmax.f32 %v5444, 0.0
    %v5573 = vmax.f32 %v5445, 0.0
    %v5574 = vmax.f32 %v5446, 0.0
    %v5575 = vmax.f32 %v5447, 0.0
    %v5576 = vmax.f32 %v5448, 0.0
    %v5577 = vmax.f32 %v5449, 0.0
    %v5578 = vmax.f32 %v5450, 0.0
    %v5579 = vmax.f32 %v5451, 0.0
    %v5580 = vmax.f32 %v5452, 0.0
    %v5581 = vmax.f32 %v5453, 0.0
    %v5582 = vmax.f32 %v5454, 0.0
    %v5583 = vmax.f32 %v5455, 0.0
    %v5584 = vmax.f32 %v5456, 0.0
    %v5585 = vmax.f32 %v5457, 0.0
    %v5586 = vmax.f32 %v5458, 0.0
    %v5587 = vmax.f32 %v5459, 0.0
    %v5588 = vmax.f32 %v5460, 0.0
    %v5589 = vmax.f32 %v5461, 0.0
    %v5590 = vmax.f32 %v5462, 0.0
    %v5591 = vmax.f32 %v5463, 0.0
    %v5592 = vmax.f32 %v5464, 0.0
    %v5593 = vmax.f32 %v5465, 0.0
    %v5594 = vmax.f32 %v5466, 0.0
    %v5595 = vmax.f32 %v5467, 0.0
    %v5596 = vmax.f32 %v5468, 0.0
    %v5597 = vmax.f32 %v5469, 0.0
    %v5598 = vmax.f32 %v5470, 0.0
    %v5599 = vmax.f32 %v5471, 0.0
    %v5600 = vmax.f32 %v5472, 0.0
    %v5601 = vmax.f32 %v5473, 0.0
    %v5602 = vmax.f32 %v5474, 0.0
    %v5603 = vmax.f32 %v5475, 0.0
    %v5604 = vmax.f32 %v5476, 0.0
    %v5605 = vmax.f32 %v5477, 0.0
    %v5606 = vmax.f32 %v5478, 0.0
    %v5607 = vmax.f32 %v5479, 0.0
    %v5608 = vmax.f32 %v5480, 0.0
    %v5609 = vmax.f32 %v5481, 0.0
    %v5610 = vmax.f32 %v5482, 0.0
    %v5611 = vmax.f32 %v5483, 0.0
    %v5612 = vmax.f32 %v5484, 0.0
    %v5613 = vmax.f32 %v5485, 0.0
    %v5614 = vmax.f32 %v5486, 0.0
    %v5615 = vmax.f32 %v5487, 0.0
    %v5616 = vmax.f32 %v5488, 0.0
    %v5617 = vmax.f32 %v5489, 0.0
    %v5618 = vmax.f32 %v5490, 0.0
    %v5619 = vmax.f32 %v5491, 0.0
    %v5620 = vmax.f32 %v5492, 0.0
    %v5621 = vmax.f32 %v5493, 0.0
    %v5622 = vmax.f32 %v5494, 0.0
    %v5623 = vmax.f32 %v5495, 0.0
    %v5624 = vmax.f32 %v5496, 0.0
    %v5625 = vmax.f32 %v5497, 0.0
    %v5626 = vmax.f32 %v5498, 0.0
    %v5627 = vmax.f32 %v5499, 0.0
    %v5628 = vmax.f32 %v5500, 0.0
    %v5629 = vmax.f32 %v5501, 0.0
    %v5630 = vmax.f32 %v5502, 0.0
    %v5631 = vmax.f32 %v5503, 0.0
    %v5632 = vmax.f32 %v5504, 0.0
    %v5633 = vmax.f32 %v5505, 0.0
    %v5634 = vmax.f32 %v5506, 0.0
    %v5635 = vmax.f32 %v5507, 0.0
    %v5636 = vmax.f32 %v5508, 0.0
    %v5637 = vld [vmem:[#allocation3] sm:$0xff]
    %v5638 = vld [vmem:[#allocation3 + $0x8] sm:$0xff]
    %v5639 = vld [vmem:[#allocation3 + $0x10] sm:$0xff]
    %v5640 = vld [vmem:[#allocation3 + $0x18] sm:$0xff]
    %v5641 = vld [vmem:[#allocation3 + $0x20] sm:$0xff]
    %v5642 = vld [vmem:[#allocation3 + $0x28] sm:$0xff]
    %v5643 = vld [vmem:[#allocation3 + $0x30] sm:$0xff]
    %v5644 = vld [vmem:[#allocation3 + $0x38] sm:$0xff]
    %v5645 = vld [vmem:[#allocation3 + $0x40] sm:$0xff]
    %v5646 = vld [vmem:[#allocation3 + $0x48] sm:$0xff]
    %v5647 = vld [vmem:[#allocation3 + $0x50] sm:$0xff]
    %v5648 = vld [vmem:[#allocation3 + $0x58] sm:$0xff]
    %v5649 = vld [vmem:[#allocation3 + $0x60] sm:$0xff]
    %v5650 = vld [vmem:[#allocation3 + $0x68] sm:$0xff]
    %v5651 = vld [vmem:[#allocation3 + $0x70] sm:$0xff]
    %v5652 = vld [vmem:[#allocation3 + $0x78] sm:$0xff]
    %v5653 = vld [vmem:[#allocation3 + $0x80] sm:$0xff]
    %v5654 = vld [vmem:[#allocation3 + $0x88] sm:$0xff]
    %v5655 = vld [vmem:[#allocation3 + $0x90] sm:$0xff]
    %v5656 = vld [vmem:[#allocation3 + $0x98] sm:$0xff]
    %v5657 = vld [vmem:[#allocation3 + $0xa0] sm:$0xff]
    %v5658 = vld [vmem:[#allocation3 + $0xa8] sm:$0xff]
    %v5659 = vld [vmem:[#allocation3 + $0xb0] sm:$0xff]
    %v5660 = vld [vmem:[#allocation3 + $0xb8] sm:$0xff]
    %v5661 = vld [vmem:[#allocation3 + $0xc0] sm:$0xff]
    %v5662 = vld [vmem:[#allocation3 + $0xc8] sm:$0xff]
    %v5663 = vld [vmem:[#allocation3 + $0xd0] sm:$0xff]
    %v5664 = vld [vmem:[#allocation3 + $0xd8] sm:$0xff]
    %v5665 = vld [vmem:[#allocation3 + $0xe0] sm:$0xff]
    %v5666 = vld [vmem:[#allocation3 + $0xe8] sm:$0xff]
    %v5667 = vld [vmem:[#allocation3 + $0xf0] sm:$0xff]
    %v5668 = vld [vmem:[#allocation3 + $0xf8] sm:$0xff]
    %v5669 = vld [vmem:[#allocation3 + $0x100] sm:$0xff]
    %v5670 = vld [vmem:[#allocation3 + $0x108] sm:$0xff]
    %v5671 = vld [vmem:[#allocation3 + $0x110] sm:$0xff]
    %v5672 = vld [vmem:[#allocation3 + $0x118] sm:$0xff]
    %v5673 = vld [vmem:[#allocation3 + $0x120] sm:$0xff]
    %v5674 = vld [vmem:[#allocation3 + $0x128] sm:$0xff]
    %v5675 = vld [vmem:[#allocation3 + $0x130] sm:$0xff]
    %v5676 = vld [vmem:[#allocation3 + $0x138] sm:$0xff]
    %v5677 = vld [vmem:[#allocation3 + $0x140] sm:$0xff]
    %v5678 = vld [vmem:[#allocation3 + $0x148] sm:$0xff]
    %v5679 = vld [vmem:[#allocation3 + $0x150] sm:$0xff]
    %v5680 = vld [vmem:[#allocation3 + $0x158] sm:$0xff]
    %v5681 = vld [vmem:[#allocation3 + $0x160] sm:$0xff]
    %v5682 = vld [vmem:[#allocation3 + $0x168] sm:$0xff]
    %v5683 = vld [vmem:[#allocation3 + $0x170] sm:$0xff]
    %v5684 = vld [vmem:[#allocation3 + $0x178] sm:$0xff]
    %v5685 = vld [vmem:[#allocation3 + $0x180] sm:$0xff]
    %v5686 = vld [vmem:[#allocation3 + $0x188] sm:$0xff]
    %v5687 = vld [vmem:[#allocation3 + $0x190] sm:$0xff]
    %v5688 = vld [vmem:[#allocation3 + $0x198] sm:$0xff]
    %v5689 = vld [vmem:[#allocation3 + $0x1a0] sm:$0xff]
    %v5690 = vld [vmem:[#allocation3 + $0x1a8] sm:$0xff]
    %v5691 = vld [vmem:[#allocation3 + $0x1b0] sm:$0xff]
    %v5692 = vld [vmem:[#allocation3 + $0x1b8] sm:$0xff]
    %v5693 = vld [vmem:[#allocation3 + $0x1c0] sm:$0xff]
    %v5694 = vld [vmem:[#allocation3 + $0x1c8] sm:$0xff]
    %v5695 = vld [vmem:[#allocation3 + $0x1d0] sm:$0xff]
    %v5696 = vld [vmem:[#allocation3 + $0x1d8] sm:$0xff]
    %v5697 = vld [vmem:[#allocation3 + $0x1e0] sm:$0xff]
    %v5698 = vld [vmem:[#allocation3 + $0x1e8] sm:$0xff]
    %v5699 = vld [vmem:[#allocation3 + $0x1f0] sm:$0xff]
    %v5700 = vld [vmem:[#allocation3 + $0x1f8] sm:$0xff]
    %v5701 = vld [vmem:[#allocation3 + $0x200] sm:$0xff]
    %v5702 = vld [vmem:[#allocation3 + $0x208] sm:$0xff]
    %v5703 = vld [vmem:[#allocation3 + $0x210] sm:$0xff]
    %v5704 = vld [vmem:[#allocation3 + $0x218] sm:$0xff]
    %v5705 = vld [vmem:[#allocation3 + $0x220] sm:$0xff]
    %v5706 = vld [vmem:[#allocation3 + $0x228] sm:$0xff]
    %v5707 = vld [vmem:[#allocation3 + $0x230] sm:$0xff]
    %v5708 = vld [vmem:[#allocation3 + $0x238] sm:$0xff]
    %v5709 = vld [vmem:[#allocation3 + $0x240] sm:$0xff]
    %v5710 = vld [vmem:[#allocation3 + $0x248] sm:$0xff]
    %v5711 = vld [vmem:[#allocation3 + $0x250] sm:$0xff]
    %v5712 = vld [vmem:[#allocation3 + $0x258] sm:$0xff]
    %v5713 = vld [vmem:[#allocation3 + $0x260] sm:$0xff]
    %v5714 = vld [vmem:[#allocation3 + $0x268] sm:$0xff]
    %v5715 = vld [vmem:[#allocation3 + $0x270] sm:$0xff]
    %v5716 = vld [vmem:[#allocation3 + $0x278] sm:$0xff]
    %v5717 = vld [vmem:[#allocation3 + $0x280] sm:$0xff]
    %v5718 = vld [vmem:[#allocation3 + $0x288] sm:$0xff]
    %v5719 = vld [vmem:[#allocation3 + $0x290] sm:$0xff]
    %v5720 = vld [vmem:[#allocation3 + $0x298] sm:$0xff]
    %v5721 = vld [vmem:[#allocation3 + $0x2a0] sm:$0xff]
    %v5722 = vld [vmem:[#allocation3 + $0x2a8] sm:$0xff]
    %v5723 = vld [vmem:[#allocation3 + $0x2b0] sm:$0xff]
    %v5724 = vld [vmem:[#allocation3 + $0x2b8] sm:$0xff]
    %v5725 = vld [vmem:[#allocation3 + $0x2c0] sm:$0xff]
    %v5726 = vld [vmem:[#allocation3 + $0x2c8] sm:$0xff]
    %v5727 = vld [vmem:[#allocation3 + $0x2d0] sm:$0xff]
    %v5728 = vld [vmem:[#allocation3 + $0x2d8] sm:$0xff]
    %v5729 = vld [vmem:[#allocation3 + $0x2e0] sm:$0xff]
    %v5730 = vld [vmem:[#allocation3 + $0x2e8] sm:$0xff]
    %v5731 = vld [vmem:[#allocation3 + $0x2f0] sm:$0xff]
    %v5732 = vld [vmem:[#allocation3 + $0x2f8] sm:$0xff]
    %v5733 = vld [vmem:[#allocation3 + $0x300] sm:$0xff]
    %v5734 = vld [vmem:[#allocation3 + $0x308] sm:$0xff]
    %v5735 = vld [vmem:[#allocation3 + $0x310] sm:$0xff]
    %v5736 = vld [vmem:[#allocation3 + $0x318] sm:$0xff]
    %v5737 = vld [vmem:[#allocation3 + $0x320] sm:$0xff]
    %v5738 = vld [vmem:[#allocation3 + $0x328] sm:$0xff]
    %v5739 = vld [vmem:[#allocation3 + $0x330] sm:$0xff]
    %v5740 = vld [vmem:[#allocation3 + $0x338] sm:$0xff]
    %v5741 = vld [vmem:[#allocation3 + $0x340] sm:$0xff]
    %v5742 = vld [vmem:[#allocation3 + $0x348] sm:$0xff]
    %v5743 = vld [vmem:[#allocation3 + $0x350] sm:$0xff]
    %v5744 = vld [vmem:[#allocation3 + $0x358] sm:$0xff]
    %v5745 = vld [vmem:[#allocation3 + $0x360] sm:$0xff]
    %v5746 = vld [vmem:[#allocation3 + $0x368] sm:$0xff]
    %v5747 = vld [vmem:[#allocation3 + $0x370] sm:$0xff]
    %v5748 = vld [vmem:[#allocation3 + $0x378] sm:$0xff]
    %v5749 = vld [vmem:[#allocation3 + $0x380] sm:$0xff]
    %v5750 = vld [vmem:[#allocation3 + $0x388] sm:$0xff]
    %v5751 = vld [vmem:[#allocation3 + $0x390] sm:$0xff]
    %v5752 = vld [vmem:[#allocation3 + $0x398] sm:$0xff]
    %v5753 = vld [vmem:[#allocation3 + $0x3a0] sm:$0xff]
    %v5754 = vld [vmem:[#allocation3 + $0x3a8] sm:$0xff]
    %v5755 = vld [vmem:[#allocation3 + $0x3b0] sm:$0xff]
    %v5756 = vld [vmem:[#allocation3 + $0x3b8] sm:$0xff]
    %v5757 = vld [vmem:[#allocation3 + $0x3c0] sm:$0xff]
    %v5758 = vld [vmem:[#allocation3 + $0x3c8] sm:$0xff]
    %v5759 = vld [vmem:[#allocation3 + $0x3d0] sm:$0xff]
    %v5760 = vld [vmem:[#allocation3 + $0x3d8] sm:$0xff]
    %v5761 = vld [vmem:[#allocation3 + $0x3e0] sm:$0xff]
    %v5762 = vld [vmem:[#allocation3 + $0x3e8] sm:$0xff]
    %v5763 = vld [vmem:[#allocation3 + $0x3f0] sm:$0xff]
    %v5764 = vld [vmem:[#allocation3 + $0x3f8] sm:$0xff]
    %v5765 = vld [vmem:[%s14] sm:$0xff]
    %v5766 = vld [vmem:[%s14 + $0x8] sm:$0xff]
    %v5767 = vld [vmem:[%s14 + $0x10] sm:$0xff]
    %v5768 = vld [vmem:[%s14 + $0x18] sm:$0xff]
    %v5769 = vld [vmem:[%s14 + $0x20] sm:$0xff]
    %v5770 = vld [vmem:[%s14 + $0x28] sm:$0xff]
    %v5771 = vld [vmem:[%s14 + $0x30] sm:$0xff]
    %v5772 = vld [vmem:[%s14 + $0x38] sm:$0xff]
    %v5773 = vld [vmem:[%s14 + $0x40] sm:$0xff]
    %v5774 = vld [vmem:[%s14 + $0x48] sm:$0xff]
    %v5775 = vld [vmem:[%s14 + $0x50] sm:$0xff]
    %v5776 = vld [vmem:[%s14 + $0x58] sm:$0xff]
    %v5777 = vld [vmem:[%s14 + $0x60] sm:$0xff]
    %v5778 = vld [vmem:[%s14 + $0x68] sm:$0xff]
    %v5779 = vld [vmem:[%s14 + $0x70] sm:$0xff]
    %v5780 = vld [vmem:[%s14 + $0x78] sm:$0xff]
    %v5781 = vld [vmem:[%s14 + $0x80] sm:$0xff]
    %v5782 = vld [vmem:[%s14 + $0x88] sm:$0xff]
    %v5783 = vld [vmem:[%s14 + $0x90] sm:$0xff]
    %v5784 = vld [vmem:[%s14 + $0x98] sm:$0xff]
    %v5785 = vld [vmem:[%s14 + $0xa0] sm:$0xff]
    %v5786 = vld [vmem:[%s14 + $0xa8] sm:$0xff]
    %v5787 = vld [vmem:[%s14 + $0xb0] sm:$0xff]
    %v5788 = vld [vmem:[%s14 + $0xb8] sm:$0xff]
    %v5789 = vld [vmem:[%s14 + $0xc0] sm:$0xff]
    %v5790 = vld [vmem:[%s14 + $0xc8] sm:$0xff]
    %v5791 = vld [vmem:[%s14 + $0xd0] sm:$0xff]
    %v5792 = vld [vmem:[%s14 + $0xd8] sm:$0xff]
    %v5793 = vld [vmem:[%s14 + $0xe0] sm:$0xff]
    %v5794 = vld [vmem:[%s14 + $0xe8] sm:$0xff]
    %v5795 = vld [vmem:[%s14 + $0xf0] sm:$0xff]
    %v5796 = vld [vmem:[%s14 + $0xf8] sm:$0xff]
    %v5797 = vld [vmem:[%s14 + $0x100] sm:$0xff]
    %v5798 = vld [vmem:[%s14 + $0x108] sm:$0xff]
    %v5799 = vld [vmem:[%s14 + $0x110] sm:$0xff]
    %v5800 = vld [vmem:[%s14 + $0x118] sm:$0xff]
    %v5801 = vld [vmem:[%s14 + $0x120] sm:$0xff]
    %v5802 = vld [vmem:[%s14 + $0x128] sm:$0xff]
    %v5803 = vld [vmem:[%s14 + $0x130] sm:$0xff]
    %v5804 = vld [vmem:[%s14 + $0x138] sm:$0xff]
    %v5805 = vld [vmem:[%s14 + $0x140] sm:$0xff]
    %v5806 = vld [vmem:[%s14 + $0x148] sm:$0xff]
    %v5807 = vld [vmem:[%s14 + $0x150] sm:$0xff]
    %v5808 = vld [vmem:[%s14 + $0x158] sm:$0xff]
    %v5809 = vld [vmem:[%s14 + $0x160] sm:$0xff]
    %v5810 = vld [vmem:[%s14 + $0x168] sm:$0xff]
    %v5811 = vld [vmem:[%s14 + $0x170] sm:$0xff]
    %v5812 = vld [vmem:[%s14 + $0x178] sm:$0xff]
    %v5813 = vld [vmem:[%s14 + $0x180] sm:$0xff]
    %v5814 = vld [vmem:[%s14 + $0x188] sm:$0xff]
    %v5815 = vld [vmem:[%s14 + $0x190] sm:$0xff]
    %v5816 = vld [vmem:[%s14 + $0x198] sm:$0xff]
    %v5817 = vld [vmem:[%s14 + $0x1a0] sm:$0xff]
    %v5818 = vld [vmem:[%s14 + $0x1a8] sm:$0xff]
    %v5819 = vld [vmem:[%s14 + $0x1b0] sm:$0xff]
    %v5820 = vld [vmem:[%s14 + $0x1b8] sm:$0xff]
    %v5821 = vld [vmem:[%s14 + $0x1c0] sm:$0xff]
    %v5822 = vld [vmem:[%s14 + $0x1c8] sm:$0xff]
    %v5823 = vld [vmem:[%s14 + $0x1d0] sm:$0xff]
    %v5824 = vld [vmem:[%s14 + $0x1d8] sm:$0xff]
    %v5825 = vld [vmem:[%s14 + $0x1e0] sm:$0xff]
    %v5826 = vld [vmem:[%s14 + $0x1e8] sm:$0xff]
    %v5827 = vld [vmem:[%s14 + $0x1f0] sm:$0xff]
    %v5828 = vld [vmem:[%s14 + $0x1f8] sm:$0xff]
    %v5829 = vld [vmem:[#allocation7] sm:$0xff]
    %v5830 = vld [vmem:[#allocation7 + $0x8] sm:$0xff]
    %v5831 = vld [vmem:[#allocation7 + $0x10] sm:$0xff]
    %v5832 = vld [vmem:[#allocation7 + $0x18] sm:$0xff]
    %v5833 = vld [vmem:[#allocation7 + $0x20] sm:$0xff]
    %v5834 = vld [vmem:[#allocation7 + $0x28] sm:$0xff]
    %v5835 = vld [vmem:[#allocation7 + $0x30] sm:$0xff]
    %v5836 = vld [vmem:[#allocation7 + $0x38] sm:$0xff]
    %v5837 = vld [vmem:[#allocation7 + $0x40] sm:$0xff]
    %v5838 = vld [vmem:[#allocation7 + $0x48] sm:$0xff]
    %v5839 = vld [vmem:[#allocation7 + $0x50] sm:$0xff]
    %v5840 = vld [vmem:[#allocation7 + $0x58] sm:$0xff]
    %v5841 = vld [vmem:[#allocation7 + $0x60] sm:$0xff]
    %v5842 = vld [vmem:[#allocation7 + $0x68] sm:$0xff]
    %v5843 = vld [vmem:[#allocation7 + $0x70] sm:$0xff]
    %v5844 = vld [vmem:[#allocation7 + $0x78] sm:$0xff]
    %v5845 = vld [vmem:[#allocation7 + $0x80] sm:$0xff]
    %v5846 = vld [vmem:[#allocation7 + $0x88] sm:$0xff]
    %v5847 = vld [vmem:[#allocation7 + $0x90] sm:$0xff]
    %v5848 = vld [vmem:[#allocation7 + $0x98] sm:$0xff]
    %v5849 = vld [vmem:[#allocation7 + $0xa0] sm:$0xff]
    %v5850 = vld [vmem:[#allocation7 + $0xa8] sm:$0xff]
    %v5851 = vld [vmem:[#allocation7 + $0xb0] sm:$0xff]
    %v5852 = vld [vmem:[#allocation7 + $0xb8] sm:$0xff]
    %v5853 = vld [vmem:[#allocation7 + $0xc0] sm:$0xff]
    %v5854 = vld [vmem:[#allocation7 + $0xc8] sm:$0xff]
    %v5855 = vld [vmem:[#allocation7 + $0xd0] sm:$0xff]
    %v5856 = vld [vmem:[#allocation7 + $0xd8] sm:$0xff]
    %v5857 = vld [vmem:[#allocation7 + $0xe0] sm:$0xff]
    %v5858 = vld [vmem:[#allocation7 + $0xe8] sm:$0xff]
    %v5859 = vld [vmem:[#allocation7 + $0xf0] sm:$0xff]
    %v5860 = vld [vmem:[#allocation7 + $0xf8] sm:$0xff]
    %v5861 = vld [vmem:[#allocation7 + $0x100] sm:$0xff]
    %v5862 = vld [vmem:[#allocation7 + $0x108] sm:$0xff]
    %v5863 = vld [vmem:[#allocation7 + $0x110] sm:$0xff]
    %v5864 = vld [vmem:[#allocation7 + $0x118] sm:$0xff]
    %v5865 = vld [vmem:[#allocation7 + $0x120] sm:$0xff]
    %v5866 = vld [vmem:[#allocation7 + $0x128] sm:$0xff]
    %v5867 = vld [vmem:[#allocation7 + $0x130] sm:$0xff]
    %v5868 = vld [vmem:[#allocation7 + $0x138] sm:$0xff]
    %v5869 = vld [vmem:[#allocation7 + $0x140] sm:$0xff]
    %v5870 = vld [vmem:[#allocation7 + $0x148] sm:$0xff]
    %v5871 = vld [vmem:[#allocation7 + $0x150] sm:$0xff]
    %v5872 = vld [vmem:[#allocation7 + $0x158] sm:$0xff]
    %v5873 = vld [vmem:[#allocation7 + $0x160] sm:$0xff]
    %v5874 = vld [vmem:[#allocation7 + $0x168] sm:$0xff]
    %v5875 = vld [vmem:[#allocation7 + $0x170] sm:$0xff]
    %v5876 = vld [vmem:[#allocation7 + $0x178] sm:$0xff]
    %v5877 = vld [vmem:[#allocation7 + $0x180] sm:$0xff]
    %v5878 = vld [vmem:[#allocation7 + $0x188] sm:$0xff]
    %v5879 = vld [vmem:[#allocation7 + $0x190] sm:$0xff]
    %v5880 = vld [vmem:[#allocation7 + $0x198] sm:$0xff]
    %v5881 = vld [vmem:[#allocation7 + $0x1a0] sm:$0xff]
    %v5882 = vld [vmem:[#allocation7 + $0x1a8] sm:$0xff]
    %v5883 = vld [vmem:[#allocation7 + $0x1b0] sm:$0xff]
    %v5884 = vld [vmem:[#allocation7 + $0x1b8] sm:$0xff]
    %v5885 = vld [vmem:[#allocation7 + $0x1c0] sm:$0xff]
    %v5886 = vld [vmem:[#allocation7 + $0x1c8] sm:$0xff]
    %v5887 = vld [vmem:[#allocation7 + $0x1d0] sm:$0xff]
    %v5888 = vld [vmem:[#allocation7 + $0x1d8] sm:$0xff]
    %v5889 = vld [vmem:[#allocation7 + $0x1e0] sm:$0xff]
    %v5890 = vld [vmem:[#allocation7 + $0x1e8] sm:$0xff]
    %v5891 = vld [vmem:[#allocation7 + $0x1f0] sm:$0xff]
    %v5892 = vld [vmem:[#allocation7 + $0x1f8] sm:$0xff]
    %5893 = vmatprep.subr.mxu0 %v5830
    %5894 = vmatpush1.msra.mxu0 %v5829
    %5895 = vmatprep.subr.mxu0 %v5832
    %5896 = vmatpush1.msra.mxu0 %v5831
    %5897 = vmatprep.subr.mxu0 %v5834
    %5898 = vmatpush1.msra.mxu0 %v5833
    %5899 = vmatprep.subr.mxu0 %v5836
    %5900 = vmatpush1.msra.mxu0 %v5835
    %5901 = vmatprep.subr.mxu0 %v5838
    %5902 = vmatpush1.msra.mxu0 %v5837
    %5903 = vmatprep.subr.mxu0 %v5840
    %5904 = vmatpush1.msra.mxu0 %v5839
    %5905 = vmatprep.subr.mxu0 %v5842
    %5906 = vmatpush1.msra.mxu0 %v5841
    %5907 = vmatprep.subr.mxu0 %v5844
    %5908 = vmatpush1.msra.mxu0 %v5843
    %5909 = vmatprep.subr.mxu0 %v5846
    %5910 = vmatpush1.msra.mxu0 %v5845
    %5911 = vmatprep.subr.mxu0 %v5848
    %5912 = vmatpush1.msra.mxu0 %v5847
    %5913 = vmatprep.subr.mxu0 %v5850
    %5914 = vmatpush1.msra.mxu0 %v5849
    %5915 = vmatprep.subr.mxu0 %v5852
    %5916 = vmatpush1.msra.mxu0 %v5851
    %5917 = vmatprep.subr.mxu0 %v5854
    %5918 = vmatpush1.msra.mxu0 %v5853
    %5919 = vmatprep.subr.mxu0 %v5856
    %5920 = vmatpush1.msra.mxu0 %v5855
    %5921 = vmatprep.subr.mxu0 %v5858
    %5922 = vmatpush1.msra.mxu0 %v5857
    %5923 = vmatprep.subr.mxu0 %v5860
    %5924 = vmatpush1.msra.mxu0 %v5859
    %5925 = vmatprep.subr.mxu0 %v5862
    %5926 = vmatpush1.msra.mxu0 %v5861
    %5927 = vmatprep.subr.mxu0 %v5864
    %5928 = vmatpush1.msra.mxu0 %v5863
    %5929 = vmatprep.subr.mxu0 %v5866
    %5930 = vmatpush1.msra.mxu0 %v5865
    %5931 = vmatprep.subr.mxu0 %v5868
    %5932 = vmatpush1.msra.mxu0 %v5867
    %5933 = vmatprep.subr.mxu0 %v5870
    %5934 = vmatpush1.msra.mxu0 %v5869
    %5935 = vmatprep.subr.mxu0 %v5872
    %5936 = vmatpush1.msra.mxu0 %v5871
    %5937 = vmatprep.subr.mxu0 %v5874
    %5938 = vmatpush1.msra.mxu0 %v5873
    %5939 = vmatprep.subr.mxu0 %v5876
    %5940 = vmatpush1.msra.mxu0 %v5875
    %5941 = vmatprep.subr.mxu0 %v5878
    %5942 = vmatpush1.msra.mxu0 %v5877
    %5943 = vmatprep.subr.mxu0 %v5880
    %5944 = vmatpush1.msra.mxu0 %v5879
    %5945 = vmatprep.subr.mxu0 %v5882
    %5946 = vmatpush1.msra.mxu0 %v5881
    %5947 = vmatprep.subr.mxu0 %v5884
    %5948 = vmatpush1.msra.mxu0 %v5883
    %5949 = vmatprep.subr.mxu0 %v5886
    %5950 = vmatpush1.msra.mxu0 %v5885
    %5951 = vmatprep.subr.mxu0 %v5888
    %5952 = vmatpush1.msra.mxu0 %v5887
    %5953 = vmatprep.subr.mxu0 %v5890
    %5954 = vmatpush1.msra.mxu0 %v5889
    %5955 = vmatprep.subr.mxu0 %v5892
    %5956 = vmatpush1.msra.mxu0 %v5891
    %5957 = vmatprep.mubr.f32.mxu0 %v5510
    %5958 = vmatmul.mubr.f32.gmra.mrb[0].mxu0 %v5509
    %v5959 = vpop.f32.mrb[0].mxu0
    %v5960 = vadd.f32 0.0, %v5959
    %v5961 = vpop.f32.mrb[0].mxu0
    %v5962 = vadd.f32 0.0, %v5961
    %5963 = vmatprep.mubr.f32.mxu0 %v5512
    %5964 = vmatmul.mubr.f32.gmra.mrb[0].mxu0 %v5511
    %v5965 = vpop.f32.mrb[0].mxu0
    %v5966 = vadd.f32 0.0, %v5965
    %v5967 = vpop.f32.mrb[0].mxu0
    %v5968 = vadd.f32 0.0, %v5967
    %5969 = vmatprep.mubr.f32.mxu0 %v5514
    %5970 = vmatmul.mubr.f32.gmra.mrb[0].mxu0 %v5513
    %v5971 = vpop.f32.mrb[0].mxu0
    %v5972 = vadd.f32 0.0, %v5971
    %v5973 = vpop.f32.mrb[0].mxu0
    %v5974 = vadd.f32 0.0, %v5973
    %5975 = vmatprep.mubr.f32.mxu0 %v5516
    %5976 = vmatmul.mubr.f32.gmra.mrb[0].mxu0 %v5515
    %v5977 = vpop.f32.mrb[0].mxu0
    %v5978 = vadd.f32 0.0, %v5977
    %v5979 = vpop.f32.mrb[0].mxu0
    %v5980 = vadd.f32 0.0, %v5979
    %5981 = vmatprep.mubr.f32.mxu0 %v5518
    %5982 = vmatmul.mubr.f32.gmra.mrb[0].mxu0 %v5517
    %v5983 = vpop.f32.mrb[0].mxu0
    %v5984 = vadd.f32 0.0, %v5983
    %v5985 = vpop.f32.mrb[0].mxu0
    %v5986 = vadd.f32 0.0, %v5985
    %5987 = vmatprep.mubr.f32.mxu0 %v5520
    %5988 = vmatmul.mubr.f32.gmra.mrb[0].mxu0 %v5519
    %v5989 = vpop.f32.mrb[0].mxu0
    %v5990 = vadd.f32 0.0, %v5989
    %v5991 = vpop.f32.mrb[0].mxu0
    %v5992 = vadd.f32 0.0, %v5991
    %5993 = vmatprep.mubr.f32.mxu0 %v5522
    %5994 = vmatmul.mubr.f32.gmra.mrb[0].mxu0 %v5521
    %v5995 = vpop.f32.mrb[0].mxu0
    %v5996 = vadd.f32 0.0, %v5995
    %v5997 = vpop.f32.mrb[0].mxu0
    %v5998 = vadd.f32 0.0, %v5997
    %5999 = vmatprep.mubr.f32.mxu0 %v5524
    %6000 = vmatmul.mubr.f32.gmra.mrb[0].mxu0 %v5523
    %v6001 = vpop.f32.mrb[0].mxu0
    %v6002 = vadd.f32 0.0, %v6001
    %v6003 = vpop.f32.mrb[0].mxu0
    %v6004 = vadd.f32 0.0, %v6003
    %6005 = vmatprep.mubr.f32.mxu0 %v5526
    %6006 = vmatmul.mubr.f32.gmra.mrb[0].mxu0 %v5525
    %v6007 = vpop.f32.mrb[0].mxu0
    %v6008 = vadd.f32 0.0, %v6007
    %v6009 = vpop.f32.mrb[0].mxu0
    %v6010 = vadd.f32 0.0, %v6009
    %6011 = vmatprep.mubr.f32.mxu0 %v5528
    %6012 = vmatmul.mubr.f32.gmra.mrb[0].mxu0 %v5527
    %v6013 = vpop.f32.mrb[0].mxu0
    %v6014 = vadd.f32 0.0, %v6013
    %v6015 = vpop.f32.mrb[0].mxu0
    %v6016 = vadd.f32 0.0, %v6015
    %6017 = vmatprep.mubr.f32.mxu0 %v5530
    %6018 = vmatmul.mubr.f32.gmra.mrb[0].mxu0 %v5529
    %v6019 = vpop.f32.mrb[0].mxu0
    %v6020 = vadd.f32 0.0, %v6019
    %v6021 = vpop.f32.mrb[0].mxu0
    %v6022 = vadd.f32 0.0, %v6021
    %6023 = vmatprep.mubr.f32.mxu0 %v5532
    %6024 = vmatmul.mubr.f32.gmra.mrb[0].mxu0 %v5531
    %v6025 = vpop.f32.mrb[0].mxu0
    %v6026 = vadd.f32 0.0, %v6025
    %v6027 = vpop.f32.mrb[0].mxu0
    %v6028 = vadd.f32 0.0, %v6027
    %6029 = vmatprep.mubr.f32.mxu0 %v5534
    %6030 = vmatmul.mubr.f32.gmra.mrb[0].mxu0 %v5533
    %v6031 = vpop.f32.mrb[0].mxu0
    %v6032 = vadd.f32 0.0, %v6031
    %v6033 = vpop.f32.mrb[0].mxu0
    %v6034 = vadd.f32 0.0, %v6033
    %6035 = vmatprep.mubr.f32.mxu0 %v5536
    %6036 = vmatmul.mubr.f32.gmra.mrb[0].mxu0 %v5535
    %v6037 = vpop.f32.mrb[0].mxu0
    %v6038 = vadd.f32 0.0, %v6037
    %v6039 = vpop.f32.mrb[0].mxu0
    %v6040 = vadd.f32 0.0, %v6039
    %6041 = vmatprep.mubr.f32.mxu0 %v5538
    %6042 = vmatmul.mubr.f32.gmra.mrb[0].mxu0 %v5537
    %v6043 = vpop.f32.mrb[0].mxu0
    %v6044 = vadd.f32 0.0, %v6043
    %v6045 = vpop.f32.mrb[0].mxu0
    %v6046 = vadd.f32 0.0, %v6045
    %6047 = vmatprep.mubr.f32.mxu0 %v5540
    %6048 = vmatmul.mubr.f32.gmra.mrb[0].mxu0 %v5539
    %v6049 = vpop.f32.mrb[0].mxu0
    %v6050 = vadd.f32 0.0, %v6049
    %v6051 = vpop.f32.mrb[0].mxu0
    %v6052 = vadd.f32 0.0, %v6051
    %6053 = vmatprep.mubr.f32.mxu0 %v5542
    %6054 = vmatmul.mubr.f32.gmra.mrb[0].mxu0 %v5541
    %v6055 = vpop.f32.mrb[0].mxu0
    %v6056 = vadd.f32 0.0, %v6055
    %v6057 = vpop.f32.mrb[0].mxu0
    %v6058 = vadd.f32 0.0, %v6057
    %6059 = vmatprep.mubr.f32.mxu0 %v5544
    %6060 = vmatmul.mubr.f32.gmra.mrb[0].mxu0 %v5543
    %v6061 = vpop.f32.mrb[0].mxu0
    %v6062 = vadd.f32 0.0, %v6061
    %v6063 = vpop.f32.mrb[0].mxu0
    %v6064 = vadd.f32 0.0, %v6063
    %6065 = vmatprep.mubr.f32.mxu0 %v5546
    %6066 = vmatmul.mubr.f32.gmra.mrb[0].mxu0 %v5545
    %v6067 = vpop.f32.mrb[0].mxu0
    %v6068 = vadd.f32 0.0, %v6067
    %v6069 = vpop.f32.mrb[0].mxu0
    %v6070 = vadd.f32 0.0, %v6069
    %6071 = vmatprep.mubr.f32.mxu0 %v5548
    %6072 = vmatmul.mubr.f32.gmra.mrb[0].mxu0 %v5547
    %v6073 = vpop.f32.mrb[0].mxu0
    %v6074 = vadd.f32 0.0, %v6073
    %v6075 = vpop.f32.mrb[0].mxu0
    %v6076 = vadd.f32 0.0, %v6075
    %6077 = vmatprep.mubr.f32.mxu0 %v5550
    %6078 = vmatmul.mubr.f32.gmra.mrb[0].mxu0 %v5549
    %v6079 = vpop.f32.mrb[0].mxu0
    %v6080 = vadd.f32 0.0, %v6079
    %v6081 = vpop.f32.mrb[0].mxu0
    %v6082 = vadd.f32 0.0, %v6081
    %6083 = vmatprep.mubr.f32.mxu0 %v5552
    %6084 = vmatmul.mubr.f32.gmra.mrb[0].mxu0 %v5551
    %v6085 = vpop.f32.mrb[0].mxu0
    %v6086 = vadd.f32 0.0, %v6085
    %v6087 = vpop.f32.mrb[0].mxu0
    %v6088 = vadd.f32 0.0, %v6087
    %6089 = vmatprep.mubr.f32.mxu0 %v5554
    %6090 = vmatmul.mubr.f32.gmra.mrb[0].mxu0 %v5553
    %v6091 = vpop.f32.mrb[0].mxu0
    %v6092 = vadd.f32 0.0, %v6091
    %v6093 = vpop.f32.mrb[0].mxu0
    %v6094 = vadd.f32 0.0, %v6093
    %6095 = vmatprep.mubr.f32.mxu0 %v5556
    %6096 = vmatmul.mubr.f32.gmra.mrb[0].mxu0 %v5555
    %v6097 = vpop.f32.mrb[0].mxu0
    %v6098 = vadd.f32 0.0, %v6097
    %v6099 = vpop.f32.mrb[0].mxu0
    %v6100 = vadd.f32 0.0, %v6099
    %6101 = vmatprep.mubr.f32.mxu0 %v5558
    %6102 = vmatmul.mubr.f32.gmra.mrb[0].mxu0 %v5557
    %v6103 = vpop.f32.mrb[0].mxu0
    %v6104 = vadd.f32 0.0, %v6103
    %v6105 = vpop.f32.mrb[0].mxu0
    %v6106 = vadd.f32 0.0, %v6105
    %6107 = vmatprep.mubr.f32.mxu0 %v5560
    %6108 = vmatmul.mubr.f32.gmra.mrb[0].mxu0 %v5559
    %v6109 = vpop.f32.mrb[0].mxu0
    %v6110 = vadd.f32 0.0, %v6109
    %v6111 = vpop.f32.mrb[0].mxu0
    %v6112 = vadd.f32 0.0, %v6111
    %6113 = vmatprep.mubr.f32.mxu0 %v5562
    %6114 = vmatmul.mubr.f32.gmra.mrb[0].mxu0 %v5561
    %v6115 = vpop.f32.mrb[0].mxu0
    %v6116 = vadd.f32 0.0, %v6115
    %v6117 = vpop.f32.mrb[0].mxu0
    %v6118 = vadd.f32 0.0, %v6117
    %6119 = vmatprep.mubr.f32.mxu0 %v5564
    %6120 = vmatmul.mubr.f32.gmra.mrb[0].mxu0 %v5563
    %v6121 = vpop.f32.mrb[0].mxu0
    %v6122 = vadd.f32 0.0, %v6121
    %v6123 = vpop.f32.mrb[0].mxu0
    %v6124 = vadd.f32 0.0, %v6123
    %6125 = vmatprep.mubr.f32.mxu0 %v5566
    %6126 = vmatmul.mubr.f32.gmra.mrb[0].mxu0 %v5565
    %v6127 = vpop.f32.mrb[0].mxu0
    %v6128 = vadd.f32 0.0, %v6127
    %v6129 = vpop.f32.mrb[0].mxu0
    %v6130 = vadd.f32 0.0, %v6129
    %6131 = vmatprep.mubr.f32.mxu0 %v5568
    %6132 = vmatmul.mubr.f32.gmra.mrb[0].mxu0 %v5567
    %v6133 = vpop.f32.mrb[0].mxu0
    %v6134 = vadd.f32 0.0, %v6133
    %v6135 = vpop.f32.mrb[0].mxu0
    %v6136 = vadd.f32 0.0, %v6135
    %6137 = vmatprep.mubr.f32.mxu0 %v5570
    %6138 = vmatmul.mubr.f32.gmra.mrb[0].mxu0 %v5569
    %v6139 = vpop.f32.mrb[0].mxu0
    %v6140 = vadd.f32 0.0, %v6139
    %v6141 = vpop.f32.mrb[0].mxu0
    %v6142 = vadd.f32 0.0, %v6141
    %6143 = vmatprep.mubr.f32.mxu0 %v5572
    %6144 = vmatmul.mubr.f32.gmra.mrb[0].mxu0 %v5571
    %v6145 = vpop.f32.mrb[0].mxu0
    %v6146 = vadd.f32 0.0, %v6145
    %v6147 = vpop.f32.mrb[0].mxu0
    %v6148 = vadd.f32 0.0, %v6147
    %6149 = vmatprep.mubr.f32.mxu0 %v5574
    %6150 = vmatmul.mubr.f32.gmra.mrb[0].mxu0 %v5573
    %v6151 = vpop.f32.mrb[0].mxu0
    %v6152 = vadd.f32 0.0, %v6151
    %v6153 = vpop.f32.mrb[0].mxu0
    %v6154 = vadd.f32 0.0, %v6153
    %6155 = vmatprep.mubr.f32.mxu0 %v5576
    %6156 = vmatmul.mubr.f32.gmra.mrb[0].mxu0 %v5575
    %v6157 = vpop.f32.mrb[0].mxu0
    %v6158 = vadd.f32 0.0, %v6157
    %v6159 = vpop.f32.mrb[0].mxu0
    %v6160 = vadd.f32 0.0, %v6159
    %6161 = vmatprep.mubr.f32.mxu0 %v5578
    %6162 = vmatmul.mubr.f32.gmra.mrb[0].mxu0 %v5577
    %v6163 = vpop.f32.mrb[0].mxu0
    %v6164 = vadd.f32 0.0, %v6163
    %v6165 = vpop.f32.mrb[0].mxu0
    %v6166 = vadd.f32 0.0, %v6165
    %6167 = vmatprep.mubr.f32.mxu0 %v5580
    %6168 = vmatmul.mubr.f32.gmra.mrb[0].mxu0 %v5579
    %v6169 = vpop.f32.mrb[0].mxu0
    %v6170 = vadd.f32 0.0, %v6169
    %v6171 = vpop.f32.mrb[0].mxu0
    %v6172 = vadd.f32 0.0, %v6171
    %6173 = vmatprep.mubr.f32.mxu0 %v5582
    %6174 = vmatmul.mubr.f32.gmra.mrb[0].mxu0 %v5581
    %v6175 = vpop.f32.mrb[0].mxu0
    %v6176 = vadd.f32 0.0, %v6175
    %v6177 = vpop.f32.mrb[0].mxu0
    %v6178 = vadd.f32 0.0, %v6177
    %6179 = vmatprep.mubr.f32.mxu0 %v5584
    %6180 = vmatmul.mubr.f32.gmra.mrb[0].mxu0 %v5583
    %v6181 = vpop.f32.mrb[0].mxu0
    %v6182 = vadd.f32 0.0, %v6181
    %v6183 = vpop.f32.mrb[0].mxu0
    %v6184 = vadd.f32 0.0, %v6183
    %6185 = vmatprep.mubr.f32.mxu0 %v5586
    %6186 = vmatmul.mubr.f32.gmra.mrb[0].mxu0 %v5585
    %v6187 = vpop.f32.mrb[0].mxu0
    %v6188 = vadd.f32 0.0, %v6187
    %v6189 = vpop.f32.mrb[0].mxu0
    %v6190 = vadd.f32 0.0, %v6189
    %6191 = vmatprep.mubr.f32.mxu0 %v5588
    %6192 = vmatmul.mubr.f32.gmra.mrb[0].mxu0 %v5587
    %v6193 = vpop.f32.mrb[0].mxu0
    %v6194 = vadd.f32 0.0, %v6193
    %v6195 = vpop.f32.mrb[0].mxu0
    %v6196 = vadd.f32 0.0, %v6195
    %6197 = vmatprep.mubr.f32.mxu0 %v5590
    %6198 = vmatmul.mubr.f32.gmra.mrb[0].mxu0 %v5589
    %v6199 = vpop.f32.mrb[0].mxu0
    %v6200 = vadd.f32 0.0, %v6199
    %v6201 = vpop.f32.mrb[0].mxu0
    %v6202 = vadd.f32 0.0, %v6201
    %6203 = vmatprep.mubr.f32.mxu0 %v5592
    %6204 = vmatmul.mubr.f32.gmra.mrb[0].mxu0 %v5591
    %v6205 = vpop.f32.mrb[0].mxu0
    %v6206 = vadd.f32 0.0, %v6205
    %v6207 = vpop.f32.mrb[0].mxu0
    %v6208 = vadd.f32 0.0, %v6207
    %6209 = vmatprep.mubr.f32.mxu0 %v5594
    %6210 = vmatmul.mubr.f32.gmra.mrb[0].mxu0 %v5593
    %v6211 = vpop.f32.mrb[0].mxu0
    %v6212 = vadd.f32 0.0, %v6211
    %v6213 = vpop.f32.mrb[0].mxu0
    %v6214 = vadd.f32 0.0, %v6213
    %6215 = vmatprep.mubr.f32.mxu0 %v5596
    %6216 = vmatmul.mubr.f32.gmra.mrb[0].mxu0 %v5595
    %v6217 = vpop.f32.mrb[0].mxu0
    %v6218 = vadd.f32 0.0, %v6217
    %v6219 = vpop.f32.mrb[0].mxu0
    %v6220 = vadd.f32 0.0, %v6219
    %6221 = vmatprep.mubr.f32.mxu0 %v5598
    %6222 = vmatmul.mubr.f32.gmra.mrb[0].mxu0 %v5597
    %v6223 = vpop.f32.mrb[0].mxu0
    %v6224 = vadd.f32 0.0, %v6223
    %v6225 = vpop.f32.mrb[0].mxu0
    %v6226 = vadd.f32 0.0, %v6225
    %6227 = vmatprep.mubr.f32.mxu0 %v5600
    %6228 = vmatmul.mubr.f32.gmra.mrb[0].mxu0 %v5599
    %v6229 = vpop.f32.mrb[0].mxu0
    %v6230 = vadd.f32 0.0, %v6229
    %v6231 = vpop.f32.mrb[0].mxu0
    %v6232 = vadd.f32 0.0, %v6231
    %6233 = vmatprep.mubr.f32.mxu0 %v5602
    %6234 = vmatmul.mubr.f32.gmra.mrb[0].mxu0 %v5601
    %v6235 = vpop.f32.mrb[0].mxu0
    %v6236 = vadd.f32 0.0, %v6235
    %v6237 = vpop.f32.mrb[0].mxu0
    %v6238 = vadd.f32 0.0, %v6237
    %6239 = vmatprep.mubr.f32.mxu0 %v5604
    %6240 = vmatmul.mubr.f32.gmra.mrb[0].mxu0 %v5603
    %v6241 = vpop.f32.mrb[0].mxu0
    %v6242 = vadd.f32 0.0, %v6241
    %v6243 = vpop.f32.mrb[0].mxu0
    %v6244 = vadd.f32 0.0, %v6243
    %6245 = vmatprep.mubr.f32.mxu0 %v5606
    %6246 = vmatmul.mubr.f32.gmra.mrb[0].mxu0 %v5605
    %v6247 = vpop.f32.mrb[0].mxu0
    %v6248 = vadd.f32 0.0, %v6247
    %v6249 = vpop.f32.mrb[0].mxu0
    %v6250 = vadd.f32 0.0, %v6249
    %6251 = vmatprep.mubr.f32.mxu0 %v5608
    %6252 = vmatmul.mubr.f32.gmra.mrb[0].mxu0 %v5607
    %v6253 = vpop.f32.mrb[0].mxu0
    %v6254 = vadd.f32 0.0, %v6253
    %v6255 = vpop.f32.mrb[0].mxu0
    %v6256 = vadd.f32 0.0, %v6255
    %6257 = vmatprep.mubr.f32.mxu0 %v5610
    %6258 = vmatmul.mubr.f32.gmra.mrb[0].mxu0 %v5609
    %v6259 = vpop.f32.mrb[0].mxu0
    %v6260 = vadd.f32 0.0, %v6259
    %v6261 = vpop.f32.mrb[0].mxu0
    %v6262 = vadd.f32 0.0, %v6261
    %6263 = vmatprep.mubr.f32.mxu0 %v5612
    %6264 = vmatmul.mubr.f32.gmra.mrb[0].mxu0 %v5611
    %v6265 = vpop.f32.mrb[0].mxu0
    %v6266 = vadd.f32 0.0, %v6265
    %v6267 = vpop.f32.mrb[0].mxu0
    %v6268 = vadd.f32 0.0, %v6267
    %6269 = vmatprep.mubr.f32.mxu0 %v5614
    %6270 = vmatmul.mubr.f32.gmra.mrb[0].mxu0 %v5613
    %v6271 = vpop.f32.mrb[0].mxu0
    %v6272 = vadd.f32 0.0, %v6271
    %v6273 = vpop.f32.mrb[0].mxu0
    %v6274 = vadd.f32 0.0, %v6273
    %6275 = vmatprep.mubr.f32.mxu0 %v5616
    %6276 = vmatmul.mubr.f32.gmra.mrb[0].mxu0 %v5615
    %v6277 = vpop.f32.mrb[0].mxu0
    %v6278 = vadd.f32 0.0, %v6277
    %v6279 = vpop.f32.mrb[0].mxu0
    %v6280 = vadd.f32 0.0, %v6279
    %6281 = vmatprep.mubr.f32.mxu0 %v5618
    %6282 = vmatmul.mubr.f32.gmra.mrb[0].mxu0 %v5617
    %v6283 = vpop.f32.mrb[0].mxu0
    %v6284 = vadd.f32 0.0, %v6283
    %v6285 = vpop.f32.mrb[0].mxu0
    %v6286 = vadd.f32 0.0, %v6285
    %6287 = vmatprep.mubr.f32.mxu0 %v5620
    %6288 = vmatmul.mubr.f32.gmra.mrb[0].mxu0 %v5619
    %v6289 = vpop.f32.mrb[0].mxu0
    %v6290 = vadd.f32 0.0, %v6289
    %v6291 = vpop.f32.mrb[0].mxu0
    %v6292 = vadd.f32 0.0, %v6291
    %6293 = vmatprep.mubr.f32.mxu0 %v5622
    %6294 = vmatmul.mubr.f32.gmra.mrb[0].mxu0 %v5621
    %v6295 = vpop.f32.mrb[0].mxu0
    %v6296 = vadd.f32 0.0, %v6295
    %v6297 = vpop.f32.mrb[0].mxu0
    %v6298 = vadd.f32 0.0, %v6297
    %6299 = vmatprep.mubr.f32.mxu0 %v5624
    %6300 = vmatmul.mubr.f32.gmra.mrb[0].mxu0 %v5623
    %v6301 = vpop.f32.mrb[0].mxu0
    %v6302 = vadd.f32 0.0, %v6301
    %v6303 = vpop.f32.mrb[0].mxu0
    %v6304 = vadd.f32 0.0, %v6303
    %6305 = vmatprep.mubr.f32.mxu0 %v5626
    %6306 = vmatmul.mubr.f32.gmra.mrb[0].mxu0 %v5625
    %v6307 = vpop.f32.mrb[0].mxu0
    %v6308 = vadd.f32 0.0, %v6307
    %v6309 = vpop.f32.mrb[0].mxu0
    %v6310 = vadd.f32 0.0, %v6309
    %6311 = vmatprep.mubr.f32.mxu0 %v5628
    %6312 = vmatmul.mubr.f32.gmra.mrb[0].mxu0 %v5627
    %v6313 = vpop.f32.mrb[0].mxu0
    %v6314 = vadd.f32 0.0, %v6313
    %v6315 = vpop.f32.mrb[0].mxu0
    %v6316 = vadd.f32 0.0, %v6315
    %6317 = vmatprep.mubr.f32.mxu0 %v5630
    %6318 = vmatmul.mubr.f32.gmra.mrb[0].mxu0 %v5629
    %v6319 = vpop.f32.mrb[0].mxu0
    %v6320 = vadd.f32 0.0, %v6319
    %v6321 = vpop.f32.mrb[0].mxu0
    %v6322 = vadd.f32 0.0, %v6321
    %6323 = vmatprep.mubr.f32.mxu0 %v5632
    %6324 = vmatmul.mubr.f32.gmra.mrb[0].mxu0 %v5631
    %v6325 = vpop.f32.mrb[0].mxu0
    %v6326 = vadd.f32 0.0, %v6325
    %v6327 = vpop.f32.mrb[0].mxu0
    %v6328 = vadd.f32 0.0, %v6327
    %6329 = vmatprep.mubr.f32.mxu0 %v5634
    %6330 = vmatmul.mubr.f32.gmra.mrb[0].mxu0 %v5633
    %v6331 = vpop.f32.mrb[0].mxu0
    %v6332 = vadd.f32 0.0, %v6331
    %v6333 = vpop.f32.mrb[0].mxu0
    %v6334 = vadd.f32 0.0, %v6333
    %6335 = vmatprep.mubr.f32.mxu0 %v5636
    %6336 = vmatmul.mubr.f32.gmra.mrb[0].mxu0 %v5635
    %v6337 = vpop.f32.mrb[0].mxu0
    %v6338 = vadd.f32 0.0, %v6337
    %v6339 = vpop.f32.mrb[0].mxu0
    %v6340 = vadd.f32 0.0, %v6339
    %6341 = vdwg.mxu0
    %6342 = vmatprep.subr.mxu0 %v5766
    %6343 = vmatpush1.msra.mxu0 %v5765
    %6344 = vmatprep.subr.mxu0 %v5768
    %6345 = vmatpush1.msra.mxu0 %v5767
    %6346 = vmatprep.subr.mxu0 %v5770
    %6347 = vmatpush1.msra.mxu0 %v5769
    %6348 = vmatprep.subr.mxu0 %v5772
    %6349 = vmatpush1.msra.mxu0 %v5771
    %6350 = vmatprep.subr.mxu0 %v5774
    %6351 = vmatpush1.msra.mxu0 %v5773
    %6352 = vmatprep.subr.mxu0 %v5776
    %6353 = vmatpush1.msra.mxu0 %v5775
    %6354 = vmatprep.subr.mxu0 %v5778
    %6355 = vmatpush1.msra.mxu0 %v5777
    %6356 = vmatprep.subr.mxu0 %v5780
    %6357 = vmatpush1.msra.mxu0 %v5779
    %6358 = vmatprep.subr.mxu0 %v5782
    %6359 = vmatpush1.msra.mxu0 %v5781
    %6360 = vmatprep.subr.mxu0 %v5784
    %6361 = vmatpush1.msra.mxu0 %v5783
    %6362 = vmatprep.subr.mxu0 %v5786
    %6363 = vmatpush1.msra.mxu0 %v5785
    %6364 = vmatprep.subr.mxu0 %v5788
    %6365 = vmatpush1.msra.mxu0 %v5787
    %6366 = vmatprep.subr.mxu0 %v5790
    %6367 = vmatpush1.msra.mxu0 %v5789
    %6368 = vmatprep.subr.mxu0 %v5792
    %6369 = vmatpush1.msra.mxu0 %v5791
    %6370 = vmatprep.subr.mxu0 %v5794
    %6371 = vmatpush1.msra.mxu0 %v5793
    %6372 = vmatprep.subr.mxu0 %v5796
    %6373 = vmatpush1.msra.mxu0 %v5795
    %6374 = vmatprep.subr.mxu0 %v5798
    %6375 = vmatpush1.msra.mxu0 %v5797
    %6376 = vmatprep.subr.mxu0 %v5800
    %6377 = vmatpush1.msra.mxu0 %v5799
    %6378 = vmatprep.subr.mxu0 %v5802
    %6379 = vmatpush1.msra.mxu0 %v5801
    %6380 = vmatprep.subr.mxu0 %v5804
    %6381 = vmatpush1.msra.mxu0 %v5803
    %6382 = vmatprep.subr.mxu0 %v5806
    %6383 = vmatpush1.msra.mxu0 %v5805
    %6384 = vmatprep.subr.mxu0 %v5808
    %6385 = vmatpush1.msra.mxu0 %v5807
    %6386 = vmatprep.subr.mxu0 %v5810
    %6387 = vmatpush1.msra.mxu0 %v5809
    %6388 = vmatprep.subr.mxu0 %v5812
    %6389 = vmatpush1.msra.mxu0 %v5811
    %6390 = vmatprep.subr.mxu0 %v5814
    %6391 = vmatpush1.msra.mxu0 %v5813
    %6392 = vmatprep.subr.mxu0 %v5816
    %6393 = vmatpush1.msra.mxu0 %v5815
    %6394 = vmatprep.subr.mxu0 %v5818
    %6395 = vmatpush1.msra.mxu0 %v5817
    %6396 = vmatprep.subr.mxu0 %v5820
    %6397 = vmatpush1.msra.mxu0 %v5819
    %6398 = vmatprep.subr.mxu0 %v5822
    %6399 = vmatpush1.msra.mxu0 %v5821
    %6400 = vmatprep.subr.mxu0 %v5824
    %6401 = vmatpush1.msra.mxu0 %v5823
    %6402 = vmatprep.subr.mxu0 %v5826
    %6403 = vmatpush1.msra.mxu0 %v5825
    %6404 = vmatprep.subr.mxu0 %v5828
    %6405 = vmatpush1.msra.mxu0 %v5827
    %6406 = vmatprep.mubr.f32.mxu0 %v5638
    %6407 = vmatmul.mubr.f32.gmra.mrb[0].mxu0 %v5637
    %v6408 = vpop.f32.mrb[0].mxu0
    %v6409 = vadd.f32 %v5960, %v6408
    %v6410 = vpop.f32.mrb[0].mxu0
    %v6411 = vadd.f32 %v5962, %v6410
    %6412 = vmatprep.mubr.f32.mxu0 %v5640
    %6413 = vmatmul.mubr.f32.gmra.mrb[0].mxu0 %v5639
    %v6414 = vpop.f32.mrb[0].mxu0
    %v6415 = vadd.f32 %v5966, %v6414
    %v6416 = vpop.f32.mrb[0].mxu0
    %v6417 = vadd.f32 %v5968, %v6416
    %6418 = vmatprep.mubr.f32.mxu0 %v5642
    %6419 = vmatmul.mubr.f32.gmra.mrb[0].mxu0 %v5641
    %v6420 = vpop.f32.mrb[0].mxu0
    %v6421 = vadd.f32 %v5972, %v6420
    %v6422 = vpop.f32.mrb[0].mxu0
    %v6423 = vadd.f32 %v5974, %v6422
    %6424 = vmatprep.mubr.f32.mxu0 %v5644
    %6425 = vmatmul.mubr.f32.gmra.mrb[0].mxu0 %v5643
    %v6426 = vpop.f32.mrb[0].mxu0
    %v6427 = vadd.f32 %v5978, %v6426
    %v6428 = vpop.f32.mrb[0].mxu0
    %v6429 = vadd.f32 %v5980, %v6428
    %6430 = vmatprep.mubr.f32.mxu0 %v5646
    %6431 = vmatmul.mubr.f32.gmra.mrb[0].mxu0 %v5645
    %v6432 = vpop.f32.mrb[0].mxu0
    %v6433 = vadd.f32 %v5984, %v6432
    %v6434 = vpop.f32.mrb[0].mxu0
    %v6435 = vadd.f32 %v5986, %v6434
    %6436 = vmatprep.mubr.f32.mxu0 %v5648
    %6437 = vmatmul.mubr.f32.gmra.mrb[0].mxu0 %v5647
    %v6438 = vpop.f32.mrb[0].mxu0
    %v6439 = vadd.f32 %v5990, %v6438
    %v6440 = vpop.f32.mrb[0].mxu0
    %v6441 = vadd.f32 %v5992, %v6440
    %6442 = vmatprep.mubr.f32.mxu0 %v5650
    %6443 = vmatmul.mubr.f32.gmra.mrb[0].mxu0 %v5649
    %v6444 = vpop.f32.mrb[0].mxu0
    %v6445 = vadd.f32 %v5996, %v6444
    %v6446 = vpop.f32.mrb[0].mxu0
    %v6447 = vadd.f32 %v5998, %v6446
    %6448 = vmatprep.mubr.f32.mxu0 %v5652
    %6449 = vmatmul.mubr.f32.gmra.mrb[0].mxu0 %v5651
    %v6450 = vpop.f32.mrb[0].mxu0
    %v6451 = vadd.f32 %v6002, %v6450
    %v6452 = vpop.f32.mrb[0].mxu0
    %v6453 = vadd.f32 %v6004, %v6452
    %6454 = vmatprep.mubr.f32.mxu0 %v5654
    %6455 = vmatmul.mubr.f32.gmra.mrb[0].mxu0 %v5653
    %v6456 = vpop.f32.mrb[0].mxu0
    %v6457 = vadd.f32 %v6008, %v6456
    %v6458 = vpop.f32.mrb[0].mxu0
    %v6459 = vadd.f32 %v6010, %v6458
    %6460 = vmatprep.mubr.f32.mxu0 %v5656
    %6461 = vmatmul.mubr.f32.gmra.mrb[0].mxu0 %v5655
    %v6462 = vpop.f32.mrb[0].mxu0
    %v6463 = vadd.f32 %v6014, %v6462
    %v6464 = vpop.f32.mrb[0].mxu0
    %v6465 = vadd.f32 %v6016, %v6464
    %6466 = vmatprep.mubr.f32.mxu0 %v5658
    %6467 = vmatmul.mubr.f32.gmra.mrb[0].mxu0 %v5657
    %v6468 = vpop.f32.mrb[0].mxu0
    %v6469 = vadd.f32 %v6020, %v6468
    %v6470 = vpop.f32.mrb[0].mxu0
    %v6471 = vadd.f32 %v6022, %v6470
    %6472 = vmatprep.mubr.f32.mxu0 %v5660
    %6473 = vmatmul.mubr.f32.gmra.mrb[0].mxu0 %v5659
    %v6474 = vpop.f32.mrb[0].mxu0
    %v6475 = vadd.f32 %v6026, %v6474
    %v6476 = vpop.f32.mrb[0].mxu0
    %v6477 = vadd.f32 %v6028, %v6476
    %6478 = vmatprep.mubr.f32.mxu0 %v5662
    %6479 = vmatmul.mubr.f32.gmra.mrb[0].mxu0 %v5661
    %v6480 = vpop.f32.mrb[0].mxu0
    %v6481 = vadd.f32 %v6032, %v6480
    %v6482 = vpop.f32.mrb[0].mxu0
    %v6483 = vadd.f32 %v6034, %v6482
    %6484 = vmatprep.mubr.f32.mxu0 %v5664
    %6485 = vmatmul.mubr.f32.gmra.mrb[0].mxu0 %v5663
    %v6486 = vpop.f32.mrb[0].mxu0
    %v6487 = vadd.f32 %v6038, %v6486
    %v6488 = vpop.f32.mrb[0].mxu0
    %v6489 = vadd.f32 %v6040, %v6488
    %6490 = vmatprep.mubr.f32.mxu0 %v5666
    %6491 = vmatmul.mubr.f32.gmra.mrb[0].mxu0 %v5665
    %v6492 = vpop.f32.mrb[0].mxu0
    %v6493 = vadd.f32 %v6044, %v6492
    %v6494 = vpop.f32.mrb[0].mxu0
    %v6495 = vadd.f32 %v6046, %v6494
    %6496 = vmatprep.mubr.f32.mxu0 %v5668
    %6497 = vmatmul.mubr.f32.gmra.mrb[0].mxu0 %v5667
    %v6498 = vpop.f32.mrb[0].mxu0
    %v6499 = vadd.f32 %v6050, %v6498
    %v6500 = vpop.f32.mrb[0].mxu0
    %v6501 = vadd.f32 %v6052, %v6500
    %6502 = vmatprep.mubr.f32.mxu0 %v5670
    %6503 = vmatmul.mubr.f32.gmra.mrb[0].mxu0 %v5669
    %v6504 = vpop.f32.mrb[0].mxu0
    %v6505 = vadd.f32 %v6056, %v6504
    %v6506 = vpop.f32.mrb[0].mxu0
    %v6507 = vadd.f32 %v6058, %v6506
    %6508 = vmatprep.mubr.f32.mxu0 %v5672
    %6509 = vmatmul.mubr.f32.gmra.mrb[0].mxu0 %v5671
    %v6510 = vpop.f32.mrb[0].mxu0
    %v6511 = vadd.f32 %v6062, %v6510
    %v6512 = vpop.f32.mrb[0].mxu0
    %v6513 = vadd.f32 %v6064, %v6512
    %6514 = vmatprep.mubr.f32.mxu0 %v5674
    %6515 = vmatmul.mubr.f32.gmra.mrb[0].mxu0 %v5673
    %v6516 = vpop.f32.mrb[0].mxu0
    %v6517 = vadd.f32 %v6068, %v6516
    %v6518 = vpop.f32.mrb[0].mxu0
    %v6519 = vadd.f32 %v6070, %v6518
    %6520 = vmatprep.mubr.f32.mxu0 %v5676
    %6521 = vmatmul.mubr.f32.gmra.mrb[0].mxu0 %v5675
    %v6522 = vpop.f32.mrb[0].mxu0
    %v6523 = vadd.f32 %v6074, %v6522
    %v6524 = vpop.f32.mrb[0].mxu0
    %v6525 = vadd.f32 %v6076, %v6524
    %6526 = vmatprep.mubr.f32.mxu0 %v5678
    %6527 = vmatmul.mubr.f32.gmra.mrb[0].mxu0 %v5677
    %v6528 = vpop.f32.mrb[0].mxu0
    %v6529 = vadd.f32 %v6080, %v6528
    %v6530 = vpop.f32.mrb[0].mxu0
    %v6531 = vadd.f32 %v6082, %v6530
    %6532 = vmatprep.mubr.f32.mxu0 %v5680
    %6533 = vmatmul.mubr.f32.gmra.mrb[0].mxu0 %v5679
    %v6534 = vpop.f32.mrb[0].mxu0
    %v6535 = vadd.f32 %v6086, %v6534
    %v6536 = vpop.f32.mrb[0].mxu0
    %v6537 = vadd.f32 %v6088, %v6536
    %6538 = vmatprep.mubr.f32.mxu0 %v5682
    %6539 = vmatmul.mubr.f32.gmra.mrb[0].mxu0 %v5681
    %v6540 = vpop.f32.mrb[0].mxu0
    %v6541 = vadd.f32 %v6092, %v6540
    %v6542 = vpop.f32.mrb[0].mxu0
    %v6543 = vadd.f32 %v6094, %v6542
    %6544 = vmatprep.mubr.f32.mxu0 %v5684
    %6545 = vmatmul.mubr.f32.gmra.mrb[0].mxu0 %v5683
    %v6546 = vpop.f32.mrb[0].mxu0
    %v6547 = vadd.f32 %v6098, %v6546
    %v6548 = vpop.f32.mrb[0].mxu0
    %v6549 = vadd.f32 %v6100, %v6548
    %6550 = vmatprep.mubr.f32.mxu0 %v5686
    %6551 = vmatmul.mubr.f32.gmra.mrb[0].mxu0 %v5685
    %v6552 = vpop.f32.mrb[0].mxu0
    %v6553 = vadd.f32 %v6104, %v6552
    %v6554 = vpop.f32.mrb[0].mxu0
    %v6555 = vadd.f32 %v6106, %v6554
    %6556 = vmatprep.mubr.f32.mxu0 %v5688
    %6557 = vmatmul.mubr.f32.gmra.mrb[0].mxu0 %v5687
    %v6558 = vpop.f32.mrb[0].mxu0
    %v6559 = vadd.f32 %v6110, %v6558
    %v6560 = vpop.f32.mrb[0].mxu0
    %v6561 = vadd.f32 %v6112, %v6560
    %6562 = vmatprep.mubr.f32.mxu0 %v5690
    %6563 = vmatmul.mubr.f32.gmra.mrb[0].mxu0 %v5689
    %v6564 = vpop.f32.mrb[0].mxu0
    %v6565 = vadd.f32 %v6116, %v6564
    %v6566 = vpop.f32.mrb[0].mxu0
    %v6567 = vadd.f32 %v6118, %v6566
    %6568 = vmatprep.mubr.f32.mxu0 %v5692
    %6569 = vmatmul.mubr.f32.gmra.mrb[0].mxu0 %v5691
    %v6570 = vpop.f32.mrb[0].mxu0
    %v6571 = vadd.f32 %v6122, %v6570
    %v6572 = vpop.f32.mrb[0].mxu0
    %v6573 = vadd.f32 %v6124, %v6572
    %6574 = vmatprep.mubr.f32.mxu0 %v5694
    %6575 = vmatmul.mubr.f32.gmra.mrb[0].mxu0 %v5693
    %v6576 = vpop.f32.mrb[0].mxu0
    %v6577 = vadd.f32 %v6128, %v6576
    %v6578 = vpop.f32.mrb[0].mxu0
    %v6579 = vadd.f32 %v6130, %v6578
    %6580 = vmatprep.mubr.f32.mxu0 %v5696
    %6581 = vmatmul.mubr.f32.gmra.mrb[0].mxu0 %v5695
    %v6582 = vpop.f32.mrb[0].mxu0
    %v6583 = vadd.f32 %v6134, %v6582
    %v6584 = vpop.f32.mrb[0].mxu0
    %v6585 = vadd.f32 %v6136, %v6584
    %6586 = vmatprep.mubr.f32.mxu0 %v5698
    %6587 = vmatmul.mubr.f32.gmra.mrb[0].mxu0 %v5697
    %v6588 = vpop.f32.mrb[0].mxu0
    %v6589 = vadd.f32 %v6140, %v6588
    %v6590 = vpop.f32.mrb[0].mxu0
    %v6591 = vadd.f32 %v6142, %v6590
    %6592 = vmatprep.mubr.f32.mxu0 %v5700
    %6593 = vmatmul.mubr.f32.gmra.mrb[0].mxu0 %v5699
    %v6594 = vpop.f32.mrb[0].mxu0
    %v6595 = vadd.f32 %v6146, %v6594
    %v6596 = vpop.f32.mrb[0].mxu0
    %v6597 = vadd.f32 %v6148, %v6596
    %6598 = vmatprep.mubr.f32.mxu0 %v5702
    %6599 = vmatmul.mubr.f32.gmra.mrb[0].mxu0 %v5701
    %v6600 = vpop.f32.mrb[0].mxu0
    %v6601 = vadd.f32 %v6152, %v6600
    %v6602 = vpop.f32.mrb[0].mxu0
    %v6603 = vadd.f32 %v6154, %v6602
    %6604 = vmatprep.mubr.f32.mxu0 %v5704
    %6605 = vmatmul.mubr.f32.gmra.mrb[0].mxu0 %v5703
    %v6606 = vpop.f32.mrb[0].mxu0
    %v6607 = vadd.f32 %v6158, %v6606
    %v6608 = vpop.f32.mrb[0].mxu0
    %v6609 = vadd.f32 %v6160, %v6608
    %6610 = vmatprep.mubr.f32.mxu0 %v5706
    %6611 = vmatmul.mubr.f32.gmra.mrb[0].mxu0 %v5705
    %v6612 = vpop.f32.mrb[0].mxu0
    %v6613 = vadd.f32 %v6164, %v6612
    %v6614 = vpop.f32.mrb[0].mxu0
    %v6615 = vadd.f32 %v6166, %v6614
    %6616 = vmatprep.mubr.f32.mxu0 %v5708
    %6617 = vmatmul.mubr.f32.gmra.mrb[0].mxu0 %v5707
    %v6618 = vpop.f32.mrb[0].mxu0
    %v6619 = vadd.f32 %v6170, %v6618
    %v6620 = vpop.f32.mrb[0].mxu0
    %v6621 = vadd.f32 %v6172, %v6620
    %6622 = vmatprep.mubr.f32.mxu0 %v5710
    %6623 = vmatmul.mubr.f32.gmra.mrb[0].mxu0 %v5709
    %v6624 = vpop.f32.mrb[0].mxu0
    %v6625 = vadd.f32 %v6176, %v6624
    %v6626 = vpop.f32.mrb[0].mxu0
    %v6627 = vadd.f32 %v6178, %v6626
    %6628 = vmatprep.mubr.f32.mxu0 %v5712
    %6629 = vmatmul.mubr.f32.gmra.mrb[0].mxu0 %v5711
    %v6630 = vpop.f32.mrb[0].mxu0
    %v6631 = vadd.f32 %v6182, %v6630
    %v6632 = vpop.f32.mrb[0].mxu0
    %v6633 = vadd.f32 %v6184, %v6632
    %6634 = vmatprep.mubr.f32.mxu0 %v5714
    %6635 = vmatmul.mubr.f32.gmra.mrb[0].mxu0 %v5713
    %v6636 = vpop.f32.mrb[0].mxu0
    %v6637 = vadd.f32 %v6188, %v6636
    %v6638 = vpop.f32.mrb[0].mxu0
    %v6639 = vadd.f32 %v6190, %v6638
    %6640 = vmatprep.mubr.f32.mxu0 %v5716
    %6641 = vmatmul.mubr.f32.gmra.mrb[0].mxu0 %v5715
    %v6642 = vpop.f32.mrb[0].mxu0
    %v6643 = vadd.f32 %v6194, %v6642
    %v6644 = vpop.f32.mrb[0].mxu0
    %v6645 = vadd.f32 %v6196, %v6644
    %6646 = vmatprep.mubr.f32.mxu0 %v5718
    %6647 = vmatmul.mubr.f32.gmra.mrb[0].mxu0 %v5717
    %v6648 = vpop.f32.mrb[0].mxu0
    %v6649 = vadd.f32 %v6200, %v6648
    %v6650 = vpop.f32.mrb[0].mxu0
    %v6651 = vadd.f32 %v6202, %v6650
    %6652 = vmatprep.mubr.f32.mxu0 %v5720
    %6653 = vmatmul.mubr.f32.gmra.mrb[0].mxu0 %v5719
    %v6654 = vpop.f32.mrb[0].mxu0
    %v6655 = vadd.f32 %v6206, %v6654
    %v6656 = vpop.f32.mrb[0].mxu0
    %v6657 = vadd.f32 %v6208, %v6656
    %6658 = vmatprep.mubr.f32.mxu0 %v5722
    %6659 = vmatmul.mubr.f32.gmra.mrb[0].mxu0 %v5721
    %v6660 = vpop.f32.mrb[0].mxu0
    %v6661 = vadd.f32 %v6212, %v6660
    %v6662 = vpop.f32.mrb[0].mxu0
    %v6663 = vadd.f32 %v6214, %v6662
    %6664 = vmatprep.mubr.f32.mxu0 %v5724
    %6665 = vmatmul.mubr.f32.gmra.mrb[0].mxu0 %v5723
    %v6666 = vpop.f32.mrb[0].mxu0
    %v6667 = vadd.f32 %v6218, %v6666
    %v6668 = vpop.f32.mrb[0].mxu0
    %v6669 = vadd.f32 %v6220, %v6668
    %6670 = vmatprep.mubr.f32.mxu0 %v5726
    %6671 = vmatmul.mubr.f32.gmra.mrb[0].mxu0 %v5725
    %v6672 = vpop.f32.mrb[0].mxu0
    %v6673 = vadd.f32 %v6224, %v6672
    %v6674 = vpop.f32.mrb[0].mxu0
    %v6675 = vadd.f32 %v6226, %v6674
    %6676 = vmatprep.mubr.f32.mxu0 %v5728
    %6677 = vmatmul.mubr.f32.gmra.mrb[0].mxu0 %v5727
    %v6678 = vpop.f32.mrb[0].mxu0
    %v6679 = vadd.f32 %v6230, %v6678
    %v6680 = vpop.f32.mrb[0].mxu0
    %v6681 = vadd.f32 %v6232, %v6680
    %6682 = vmatprep.mubr.f32.mxu0 %v5730
    %6683 = vmatmul.mubr.f32.gmra.mrb[0].mxu0 %v5729
    %v6684 = vpop.f32.mrb[0].mxu0
    %v6685 = vadd.f32 %v6236, %v6684
    %v6686 = vpop.f32.mrb[0].mxu0
    %v6687 = vadd.f32 %v6238, %v6686
    %6688 = vmatprep.mubr.f32.mxu0 %v5732
    %6689 = vmatmul.mubr.f32.gmra.mrb[0].mxu0 %v5731
    %v6690 = vpop.f32.mrb[0].mxu0
    %v6691 = vadd.f32 %v6242, %v6690
    %v6692 = vpop.f32.mrb[0].mxu0
    %v6693 = vadd.f32 %v6244, %v6692
    %6694 = vmatprep.mubr.f32.mxu0 %v5734
    %6695 = vmatmul.mubr.f32.gmra.mrb[0].mxu0 %v5733
    %v6696 = vpop.f32.mrb[0].mxu0
    %v6697 = vadd.f32 %v6248, %v6696
    %v6698 = vpop.f32.mrb[0].mxu0
    %v6699 = vadd.f32 %v6250, %v6698
    %6700 = vmatprep.mubr.f32.mxu0 %v5736
    %6701 = vmatmul.mubr.f32.gmra.mrb[0].mxu0 %v5735
    %v6702 = vpop.f32.mrb[0].mxu0
    %v6703 = vadd.f32 %v6254, %v6702
    %v6704 = vpop.f32.mrb[0].mxu0
    %v6705 = vadd.f32 %v6256, %v6704
    %6706 = vmatprep.mubr.f32.mxu0 %v5738
    %6707 = vmatmul.mubr.f32.gmra.mrb[0].mxu0 %v5737
    %v6708 = vpop.f32.mrb[0].mxu0
    %v6709 = vadd.f32 %v6260, %v6708
    %v6710 = vpop.f32.mrb[0].mxu0
    %v6711 = vadd.f32 %v6262, %v6710
    %6712 = vmatprep.mubr.f32.mxu0 %v5740
    %6713 = vmatmul.mubr.f32.gmra.mrb[0].mxu0 %v5739
    %v6714 = vpop.f32.mrb[0].mxu0
    %v6715 = vadd.f32 %v6266, %v6714
    %v6716 = vpop.f32.mrb[0].mxu0
    %v6717 = vadd.f32 %v6268, %v6716
    %6718 = vmatprep.mubr.f32.mxu0 %v5742
    %6719 = vmatmul.mubr.f32.gmra.mrb[0].mxu0 %v5741
    %v6720 = vpop.f32.mrb[0].mxu0
    %v6721 = vadd.f32 %v6272, %v6720
    %v6722 = vpop.f32.mrb[0].mxu0
    %v6723 = vadd.f32 %v6274, %v6722
    %6724 = vmatprep.mubr.f32.mxu0 %v5744
    %6725 = vmatmul.mubr.f32.gmra.mrb[0].mxu0 %v5743
    %v6726 = vpop.f32.mrb[0].mxu0
    %v6727 = vadd.f32 %v6278, %v6726
    %v6728 = vpop.f32.mrb[0].mxu0
    %v6729 = vadd.f32 %v6280, %v6728
    %6730 = vmatprep.mubr.f32.mxu0 %v5746
    %6731 = vmatmul.mubr.f32.gmra.mrb[0].mxu0 %v5745
    %v6732 = vpop.f32.mrb[0].mxu0
    %v6733 = vadd.f32 %v6284, %v6732
    %v6734 = vpop.f32.mrb[0].mxu0
    %v6735 = vadd.f32 %v6286, %v6734
    %6736 = vmatprep.mubr.f32.mxu0 %v5748
    %6737 = vmatmul.mubr.f32.gmra.mrb[0].mxu0 %v5747
    %v6738 = vpop.f32.mrb[0].mxu0
    %v6739 = vadd.f32 %v6290, %v6738
    %v6740 = vpop.f32.mrb[0].mxu0
    %v6741 = vadd.f32 %v6292, %v6740
    %6742 = vmatprep.mubr.f32.mxu0 %v5750
    %6743 = vmatmul.mubr.f32.gmra.mrb[0].mxu0 %v5749
    %v6744 = vpop.f32.mrb[0].mxu0
    %v6745 = vadd.f32 %v6296, %v6744
    %v6746 = vpop.f32.mrb[0].mxu0
    %v6747 = vadd.f32 %v6298, %v6746
    %6748 = vmatprep.mubr.f32.mxu0 %v5752
    %6749 = vmatmul.mubr.f32.gmra.mrb[0].mxu0 %v5751
    %v6750 = vpop.f32.mrb[0].mxu0
    %v6751 = vadd.f32 %v6302, %v6750
    %v6752 = vpop.f32.mrb[0].mxu0
    %v6753 = vadd.f32 %v6304, %v6752
    %6754 = vmatprep.mubr.f32.mxu0 %v5754
    %6755 = vmatmul.mubr.f32.gmra.mrb[0].mxu0 %v5753
    %v6756 = vpop.f32.mrb[0].mxu0
    %v6757 = vadd.f32 %v6308, %v6756
    %v6758 = vpop.f32.mrb[0].mxu0
    %v6759 = vadd.f32 %v6310, %v6758
    %6760 = vmatprep.mubr.f32.mxu0 %v5756
    %6761 = vmatmul.mubr.f32.gmra.mrb[0].mxu0 %v5755
    %v6762 = vpop.f32.mrb[0].mxu0
    %v6763 = vadd.f32 %v6314, %v6762
    %v6764 = vpop.f32.mrb[0].mxu0
    %v6765 = vadd.f32 %v6316, %v6764
    %6766 = vmatprep.mubr.f32.mxu0 %v5758
    %6767 = vmatmul.mubr.f32.gmra.mrb[0].mxu0 %v5757
    %v6768 = vpop.f32.mrb[0].mxu0
    %v6769 = vadd.f32 %v6320, %v6768
    %v6770 = vpop.f32.mrb[0].mxu0
    %v6771 = vadd.f32 %v6322, %v6770
    %6772 = vmatprep.mubr.f32.mxu0 %v5760
    %6773 = vmatmul.mubr.f32.gmra.mrb[0].mxu0 %v5759
    %v6774 = vpop.f32.mrb[0].mxu0
    %v6775 = vadd.f32 %v6326, %v6774
    %v6776 = vpop.f32.mrb[0].mxu0
    %v6777 = vadd.f32 %v6328, %v6776
    %6778 = vmatprep.mubr.f32.mxu0 %v5762
    %6779 = vmatmul.mubr.f32.gmra.mrb[0].mxu0 %v5761
    %v6780 = vpop.f32.mrb[0].mxu0
    %v6781 = vadd.f32 %v6332, %v6780
    %v6782 = vpop.f32.mrb[0].mxu0
    %v6783 = vadd.f32 %v6334, %v6782
    %6784 = vmatprep.mubr.f32.mxu0 %v5764
    %6785 = vmatmul.mubr.f32.gmra.mrb[0].mxu0 %v5763
    %v6786 = vpop.f32.mrb[0].mxu0
    %v6787 = vadd.f32 %v6338, %v6786
    %v6788 = vpop.f32.mrb[0].mxu0
    %v6789 = vadd.f32 %v6340, %v6788
    %6790 = vdwg.mxu0
    %v6791 = vld [vmem:[%s16] sm:$0x3]
    %v6793 = vlaneseq
    %v6794 = vshrl.u32 %v6793, 7
    %v6795 = vsub.s32 0, %v6794
    %v6796 = vrot.slane %v6791, %v6795
    %v6797 = vlaneseq
    %v6798 = vshrl.u32 %v6797, 7
    %v6799 = vsub.s32 1, %v6798
    %v6800 = vrot.slane %v6791, %v6799
    %v6803 = vadd.f32 %v6409, %v6796
    %v6804 = vadd.f32 %v6411, %v6800
    %v6805 = vadd.f32 %v6415, %v6796
    %v6806 = vadd.f32 %v6417, %v6800
    %v6807 = vadd.f32 %v6421, %v6796
    %v6808 = vadd.f32 %v6423, %v6800
    %v6809 = vadd.f32 %v6427, %v6796
    %v6810 = vadd.f32 %v6429, %v6800
    %v6811 = vadd.f32 %v6433, %v6796
    %v6812 = vadd.f32 %v6435, %v6800
    %v6813 = vadd.f32 %v6439, %v6796
    %v6814 = vadd.f32 %v6441, %v6800
    %v6815 = vadd.f32 %v6445, %v6796
    %v6816 = vadd.f32 %v6447, %v6800
    %v6817 = vadd.f32 %v6451, %v6796
    %v6818 = vadd.f32 %v6453, %v6800
    %v6819 = vadd.f32 %v6457, %v6796
    %v6820 = vadd.f32 %v6459, %v6800
    %v6821 = vadd.f32 %v6463, %v6796
    %v6822 = vadd.f32 %v6465, %v6800
    %v6823 = vadd.f32 %v6469, %v6796
    %v6824 = vadd.f32 %v6471, %v6800
    %v6825 = vadd.f32 %v6475, %v6796
    %v6826 = vadd.f32 %v6477, %v6800
    %v6827 = vadd.f32 %v6481, %v6796
    %v6828 = vadd.f32 %v6483, %v6800
    %v6829 = vadd.f32 %v6487, %v6796
    %v6830 = vadd.f32 %v6489, %v6800
    %v6831 = vadd.f32 %v6493, %v6796
    %v6832 = vadd.f32 %v6495, %v6800
    %v6833 = vadd.f32 %v6499, %v6796
    %v6834 = vadd.f32 %v6501, %v6800
    %v6835 = vadd.f32 %v6505, %v6796
    %v6836 = vadd.f32 %v6507, %v6800
    %v6837 = vadd.f32 %v6511, %v6796
    %v6838 = vadd.f32 %v6513, %v6800
    %v6839 = vadd.f32 %v6517, %v6796
    %v6840 = vadd.f32 %v6519, %v6800
    %v6841 = vadd.f32 %v6523, %v6796
    %v6842 = vadd.f32 %v6525, %v6800
    %v6843 = vadd.f32 %v6529, %v6796
    %v6844 = vadd.f32 %v6531, %v6800
    %v6845 = vadd.f32 %v6535, %v6796
    %v6846 = vadd.f32 %v6537, %v6800
    %v6847 = vadd.f32 %v6541, %v6796
    %v6848 = vadd.f32 %v6543, %v6800
    %v6849 = vadd.f32 %v6547, %v6796
    %v6850 = vadd.f32 %v6549, %v6800
    %v6851 = vadd.f32 %v6553, %v6796
    %v6852 = vadd.f32 %v6555, %v6800
    %v6853 = vadd.f32 %v6559, %v6796
    %v6854 = vadd.f32 %v6561, %v6800
    %v6855 = vadd.f32 %v6565, %v6796
    %v6856 = vadd.f32 %v6567, %v6800
    %v6857 = vadd.f32 %v6571, %v6796
    %v6858 = vadd.f32 %v6573, %v6800
    %v6859 = vadd.f32 %v6577, %v6796
    %v6860 = vadd.f32 %v6579, %v6800
    %v6861 = vadd.f32 %v6583, %v6796
    %v6862 = vadd.f32 %v6585, %v6800
    %v6863 = vadd.f32 %v6589, %v6796
    %v6864 = vadd.f32 %v6591, %v6800
    %v6865 = vadd.f32 %v6595, %v6796
    %v6866 = vadd.f32 %v6597, %v6800
    %v6867 = vadd.f32 %v6601, %v6796
    %v6868 = vadd.f32 %v6603, %v6800
    %v6869 = vadd.f32 %v6607, %v6796
    %v6870 = vadd.f32 %v6609, %v6800
    %v6871 = vadd.f32 %v6613, %v6796
    %v6872 = vadd.f32 %v6615, %v6800
    %v6873 = vadd.f32 %v6619, %v6796
    %v6874 = vadd.f32 %v6621, %v6800
    %v6875 = vadd.f32 %v6625, %v6796
    %v6876 = vadd.f32 %v6627, %v6800
    %v6877 = vadd.f32 %v6631, %v6796
    %v6878 = vadd.f32 %v6633, %v6800
    %v6879 = vadd.f32 %v6637, %v6796
    %v6880 = vadd.f32 %v6639, %v6800
    %v6881 = vadd.f32 %v6643, %v6796
    %v6882 = vadd.f32 %v6645, %v6800
    %v6883 = vadd.f32 %v6649, %v6796
    %v6884 = vadd.f32 %v6651, %v6800
    %v6885 = vadd.f32 %v6655, %v6796
    %v6886 = vadd.f32 %v6657, %v6800
    %v6887 = vadd.f32 %v6661, %v6796
    %v6888 = vadd.f32 %v6663, %v6800
    %v6889 = vadd.f32 %v6667, %v6796
    %v6890 = vadd.f32 %v6669, %v6800
    %v6891 = vadd.f32 %v6673, %v6796
    %v6892 = vadd.f32 %v6675, %v6800
    %v6893 = vadd.f32 %v6679, %v6796
    %v6894 = vadd.f32 %v6681, %v6800
    %v6895 = vadd.f32 %v6685, %v6796
    %v6896 = vadd.f32 %v6687, %v6800
    %v6897 = vadd.f32 %v6691, %v6796
    %v6898 = vadd.f32 %v6693, %v6800
    %v6899 = vadd.f32 %v6697, %v6796
    %v6900 = vadd.f32 %v6699, %v6800
    %v6901 = vadd.f32 %v6703, %v6796
    %v6902 = vadd.f32 %v6705, %v6800
    %v6903 = vadd.f32 %v6709, %v6796
    %v6904 = vadd.f32 %v6711, %v6800
    %v6905 = vadd.f32 %v6715, %v6796
    %v6906 = vadd.f32 %v6717, %v6800
    %v6907 = vadd.f32 %v6721, %v6796
    %v6908 = vadd.f32 %v6723, %v6800
    %v6909 = vadd.f32 %v6727, %v6796
    %v6910 = vadd.f32 %v6729, %v6800
    %v6911 = vadd.f32 %v6733, %v6796
    %v6912 = vadd.f32 %v6735, %v6800
    %v6913 = vadd.f32 %v6739, %v6796
    %v6914 = vadd.f32 %v6741, %v6800
    %v6915 = vadd.f32 %v6745, %v6796
    %v6916 = vadd.f32 %v6747, %v6800
    %v6917 = vadd.f32 %v6751, %v6796
    %v6918 = vadd.f32 %v6753, %v6800
    %v6919 = vadd.f32 %v6757, %v6796
    %v6920 = vadd.f32 %v6759, %v6800
    %v6921 = vadd.f32 %v6763, %v6796
    %v6922 = vadd.f32 %v6765, %v6800
    %v6923 = vadd.f32 %v6769, %v6796
    %v6924 = vadd.f32 %v6771, %v6800
    %v6925 = vadd.f32 %v6775, %v6796
    %v6926 = vadd.f32 %v6777, %v6800
    %v6927 = vadd.f32 %v6781, %v6796
    %v6928 = vadd.f32 %v6783, %v6800
    %v6929 = vadd.f32 %v6787, %v6796
    %v6930 = vadd.f32 %v6789, %v6800
    %v6931 = vadd.f32 %v6803, %v6804
    %6932 = vadd.xlane.f32.xlu0 %v6931
    %v6933 = vpop.xlane.xlu0 %6932
    %v6934 = vadd.f32 %v6805, %v6806
    %6935 = vadd.xlane.f32.xlu0 %v6934
    %v6936 = vpop.xlane.xlu0 %6935
    %v6937 = vadd.f32 %v6807, %v6808
    %6938 = vadd.xlane.f32.xlu0 %v6937
    %v6939 = vpop.xlane.xlu0 %6938
    %v6940 = vadd.f32 %v6809, %v6810
    %6941 = vadd.xlane.f32.xlu0 %v6940
    %v6942 = vpop.xlane.xlu0 %6941
    %v6943 = vadd.f32 %v6811, %v6812
    %6944 = vadd.xlane.f32.xlu0 %v6943
    %v6945 = vpop.xlane.xlu0 %6944
    %v6946 = vadd.f32 %v6813, %v6814
    %6947 = vadd.xlane.f32.xlu0 %v6946
    %v6948 = vpop.xlane.xlu0 %6947
    %v6949 = vadd.f32 %v6815, %v6816
    %6950 = vadd.xlane.f32.xlu0 %v6949
    %v6951 = vpop.xlane.xlu0 %6950
    %v6952 = vadd.f32 %v6817, %v6818
    %6953 = vadd.xlane.f32.xlu0 %v6952
    %v6954 = vpop.xlane.xlu0 %6953
    %v6955 = vadd.f32 %v6819, %v6820
    %6956 = vadd.xlane.f32.xlu0 %v6955
    %v6957 = vpop.xlane.xlu0 %6956
    %v6958 = vadd.f32 %v6821, %v6822
    %6959 = vadd.xlane.f32.xlu0 %v6958
    %v6960 = vpop.xlane.xlu0 %6959
    %v6961 = vadd.f32 %v6823, %v6824
    %6962 = vadd.xlane.f32.xlu0 %v6961
    %v6963 = vpop.xlane.xlu0 %6962
    %v6964 = vadd.f32 %v6825, %v6826
    %6965 = vadd.xlane.f32.xlu0 %v6964
    %v6966 = vpop.xlane.xlu0 %6965
    %v6967 = vadd.f32 %v6827, %v6828
    %6968 = vadd.xlane.f32.xlu0 %v6967
    %v6969 = vpop.xlane.xlu0 %6968
    %v6970 = vadd.f32 %v6829, %v6830
    %6971 = vadd.xlane.f32.xlu0 %v6970
    %v6972 = vpop.xlane.xlu0 %6971
    %v6973 = vadd.f32 %v6831, %v6832
    %6974 = vadd.xlane.f32.xlu0 %v6973
    %v6975 = vpop.xlane.xlu0 %6974
    %v6976 = vadd.f32 %v6833, %v6834
    %6977 = vadd.xlane.f32.xlu0 %v6976
    %v6978 = vpop.xlane.xlu0 %6977
    %v6979 = vadd.f32 %v6835, %v6836
    %6980 = vadd.xlane.f32.xlu0 %v6979
    %v6981 = vpop.xlane.xlu0 %6980
    %v6982 = vadd.f32 %v6837, %v6838
    %6983 = vadd.xlane.f32.xlu0 %v6982
    %v6984 = vpop.xlane.xlu0 %6983
    %v6985 = vadd.f32 %v6839, %v6840
    %6986 = vadd.xlane.f32.xlu0 %v6985
    %v6987 = vpop.xlane.xlu0 %6986
    %v6988 = vadd.f32 %v6841, %v6842
    %6989 = vadd.xlane.f32.xlu0 %v6988
    %v6990 = vpop.xlane.xlu0 %6989
    %v6991 = vadd.f32 %v6843, %v6844
    %6992 = vadd.xlane.f32.xlu0 %v6991
    %v6993 = vpop.xlane.xlu0 %6992
    %v6994 = vadd.f32 %v6845, %v6846
    %6995 = vadd.xlane.f32.xlu0 %v6994
    %v6996 = vpop.xlane.xlu0 %6995
    %v6997 = vadd.f32 %v6847, %v6848
    %6998 = vadd.xlane.f32.xlu0 %v6997
    %v6999 = vpop.xlane.xlu0 %6998
    %v7000 = vadd.f32 %v6849, %v6850
    %7001 = vadd.xlane.f32.xlu0 %v7000
    %v7002 = vpop.xlane.xlu0 %7001
    %v7003 = vadd.f32 %v6851, %v6852
    %7004 = vadd.xlane.f32.xlu0 %v7003
    %v7005 = vpop.xlane.xlu0 %7004
    %v7006 = vadd.f32 %v6853, %v6854
    %7007 = vadd.xlane.f32.xlu0 %v7006
    %v7008 = vpop.xlane.xlu0 %7007
    %v7009 = vadd.f32 %v6855, %v6856
    %7010 = vadd.xlane.f32.xlu0 %v7009
    %v7011 = vpop.xlane.xlu0 %7010
    %v7012 = vadd.f32 %v6857, %v6858
    %7013 = vadd.xlane.f32.xlu0 %v7012
    %v7014 = vpop.xlane.xlu0 %7013
    %v7015 = vadd.f32 %v6859, %v6860
    %7016 = vadd.xlane.f32.xlu0 %v7015
    %v7017 = vpop.xlane.xlu0 %7016
    %v7018 = vadd.f32 %v6861, %v6862
    %7019 = vadd.xlane.f32.xlu0 %v7018
    %v7020 = vpop.xlane.xlu0 %7019
    %v7021 = vadd.f32 %v6863, %v6864
    %7022 = vadd.xlane.f32.xlu0 %v7021
    %v7023 = vpop.xlane.xlu0 %7022
    %v7024 = vadd.f32 %v6865, %v6866
    %7025 = vadd.xlane.f32.xlu0 %v7024
    %v7026 = vpop.xlane.xlu0 %7025
    %v7027 = vadd.f32 %v6867, %v6868
    %7028 = vadd.xlane.f32.xlu0 %v7027
    %v7029 = vpop.xlane.xlu0 %7028
    %v7030 = vadd.f32 %v6869, %v6870
    %7031 = vadd.xlane.f32.xlu0 %v7030
    %v7032 = vpop.xlane.xlu0 %7031
    %v7033 = vadd.f32 %v6871, %v6872
    %7034 = vadd.xlane.f32.xlu0 %v7033
    %v7035 = vpop.xlane.xlu0 %7034
    %v7036 = vadd.f32 %v6873, %v6874
    %7037 = vadd.xlane.f32.xlu0 %v7036
    %v7038 = vpop.xlane.xlu0 %7037
    %v7039 = vadd.f32 %v6875, %v6876
    %7040 = vadd.xlane.f32.xlu0 %v7039
    %v7041 = vpop.xlane.xlu0 %7040
    %v7042 = vadd.f32 %v6877, %v6878
    %7043 = vadd.xlane.f32.xlu0 %v7042
    %v7044 = vpop.xlane.xlu0 %7043
    %v7045 = vadd.f32 %v6879, %v6880
    %7046 = vadd.xlane.f32.xlu0 %v7045
    %v7047 = vpop.xlane.xlu0 %7046
    %v7048 = vadd.f32 %v6881, %v6882
    %7049 = vadd.xlane.f32.xlu0 %v7048
    %v7050 = vpop.xlane.xlu0 %7049
    %v7051 = vadd.f32 %v6883, %v6884
    %7052 = vadd.xlane.f32.xlu0 %v7051
    %v7053 = vpop.xlane.xlu0 %7052
    %v7054 = vadd.f32 %v6885, %v6886
    %7055 = vadd.xlane.f32.xlu0 %v7054
    %v7056 = vpop.xlane.xlu0 %7055
    %v7057 = vadd.f32 %v6887, %v6888
    %7058 = vadd.xlane.f32.xlu0 %v7057
    %v7059 = vpop.xlane.xlu0 %7058
    %v7060 = vadd.f32 %v6889, %v6890
    %7061 = vadd.xlane.f32.xlu0 %v7060
    %v7062 = vpop.xlane.xlu0 %7061
    %v7063 = vadd.f32 %v6891, %v6892
    %7064 = vadd.xlane.f32.xlu0 %v7063
    %v7065 = vpop.xlane.xlu0 %7064
    %v7066 = vadd.f32 %v6893, %v6894
    %7067 = vadd.xlane.f32.xlu0 %v7066
    %v7068 = vpop.xlane.xlu0 %7067
    %v7069 = vadd.f32 %v6895, %v6896
    %7070 = vadd.xlane.f32.xlu0 %v7069
    %v7071 = vpop.xlane.xlu0 %7070
    %v7072 = vadd.f32 %v6897, %v6898
    %7073 = vadd.xlane.f32.xlu0 %v7072
    %v7074 = vpop.xlane.xlu0 %7073
    %v7075 = vadd.f32 %v6899, %v6900
    %7076 = vadd.xlane.f32.xlu0 %v7075
    %v7077 = vpop.xlane.xlu0 %7076
    %v7078 = vadd.f32 %v6901, %v6902
    %7079 = vadd.xlane.f32.xlu0 %v7078
    %v7080 = vpop.xlane.xlu0 %7079
    %v7081 = vadd.f32 %v6903, %v6904
    %7082 = vadd.xlane.f32.xlu0 %v7081
    %v7083 = vpop.xlane.xlu0 %7082
    %v7084 = vadd.f32 %v6905, %v6906
    %7085 = vadd.xlane.f32.xlu0 %v7084
    %v7086 = vpop.xlane.xlu0 %7085
    %v7087 = vadd.f32 %v6907, %v6908
    %7088 = vadd.xlane.f32.xlu0 %v7087
    %v7089 = vpop.xlane.xlu0 %7088
    %v7090 = vadd.f32 %v6909, %v6910
    %7091 = vadd.xlane.f32.xlu0 %v7090
    %v7092 = vpop.xlane.xlu0 %7091
    %v7093 = vadd.f32 %v6911, %v6912
    %7094 = vadd.xlane.f32.xlu0 %v7093
    %v7095 = vpop.xlane.xlu0 %7094
    %v7096 = vadd.f32 %v6913, %v6914
    %7097 = vadd.xlane.f32.xlu0 %v7096
    %v7098 = vpop.xlane.xlu0 %7097
    %v7099 = vadd.f32 %v6915, %v6916
    %7100 = vadd.xlane.f32.xlu0 %v7099
    %v7101 = vpop.xlane.xlu0 %7100
    %v7102 = vadd.f32 %v6917, %v6918
    %7103 = vadd.xlane.f32.xlu0 %v7102
    %v7104 = vpop.xlane.xlu0 %7103
    %v7105 = vadd.f32 %v6919, %v6920
    %7106 = vadd.xlane.f32.xlu0 %v7105
    %v7107 = vpop.xlane.xlu0 %7106
    %v7108 = vadd.f32 %v6921, %v6922
    %7109 = vadd.xlane.f32.xlu0 %v7108
    %v7110 = vpop.xlane.xlu0 %7109
    %v7111 = vadd.f32 %v6923, %v6924
    %7112 = vadd.xlane.f32.xlu0 %v7111
    %v7113 = vpop.xlane.xlu0 %7112
    %v7114 = vadd.f32 %v6925, %v6926
    %7115 = vadd.xlane.f32.xlu0 %v7114
    %v7116 = vpop.xlane.xlu0 %7115
    %v7117 = vadd.f32 %v6927, %v6928
    %7118 = vadd.xlane.f32.xlu0 %v7117
    %v7119 = vpop.xlane.xlu0 %7118
    %v7120 = vadd.f32 %v6929, %v6930
    %7121 = vadd.xlane.f32.xlu0 %v7120
    %v7122 = vpop.xlane.xlu0 %7121
    %v7123 = vmul.f32 %v6803, %v6803
    %v7124 = vmul.f32 %v6804, %v6804
    %v7125 = vmul.f32 %v6805, %v6805
    %v7126 = vmul.f32 %v6806, %v6806
    %v7127 = vmul.f32 %v6807, %v6807
    %v7128 = vmul.f32 %v6808, %v6808
    %v7129 = vmul.f32 %v6809, %v6809
    %v7130 = vmul.f32 %v6810, %v6810
    %v7131 = vmul.f32 %v6811, %v6811
    %v7132 = vmul.f32 %v6812, %v6812
    %v7133 = vmul.f32 %v6813, %v6813
    %v7134 = vmul.f32 %v6814, %v6814
    %v7135 = vmul.f32 %v6815, %v6815
    %v7136 = vmul.f32 %v6816, %v6816
    %v7137 = vmul.f32 %v6817, %v6817
    %v7138 = vmul.f32 %v6818, %v6818
    %v7139 = vmul.f32 %v6819, %v6819
    %v7140 = vmul.f32 %v6820, %v6820
    %v7141 = vmul.f32 %v6821, %v6821
    %v7142 = vmul.f32 %v6822, %v6822
    %v7143 = vmul.f32 %v6823, %v6823
    %v7144 = vmul.f32 %v6824, %v6824
    %v7145 = vmul.f32 %v6825, %v6825
    %v7146 = vmul.f32 %v6826, %v6826
    %v7147 = vmul.f32 %v6827, %v6827
    %v7148 = vmul.f32 %v6828, %v6828
    %v7149 = vmul.f32 %v6829, %v6829
    %v7150 = vmul.f32 %v6830, %v6830
    %v7151 = vmul.f32 %v6831, %v6831
    %v7152 = vmul.f32 %v6832, %v6832
    %v7153 = vmul.f32 %v6833, %v6833
    %v7154 = vmul.f32 %v6834, %v6834
    %v7155 = vmul.f32 %v6835, %v6835
    %v7156 = vmul.f32 %v6836, %v6836
    %v7157 = vmul.f32 %v6837, %v6837
    %v7158 = vmul.f32 %v6838, %v6838
    %v7159 = vmul.f32 %v6839, %v6839
    %v7160 = vmul.f32 %v6840, %v6840
    %v7161 = vmul.f32 %v6841, %v6841
    %v7162 = vmul.f32 %v6842, %v6842
    %v7163 = vmul.f32 %v6843, %v6843
    %v7164 = vmul.f32 %v6844, %v6844
    %v7165 = vmul.f32 %v6845, %v6845
    %v7166 = vmul.f32 %v6846, %v6846
    %v7167 = vmul.f32 %v6847, %v6847
    %v7168 = vmul.f32 %v6848, %v6848
    %v7169 = vmul.f32 %v6849, %v6849
    %v7170 = vmul.f32 %v6850, %v6850
    %v7171 = vmul.f32 %v6851, %v6851
    %v7172 = vmul.f32 %v6852, %v6852
    %v7173 = vmul.f32 %v6853, %v6853
    %v7174 = vmul.f32 %v6854, %v6854
    %v7175 = vmul.f32 %v6855, %v6855
    %v7176 = vmul.f32 %v6856, %v6856
    %v7177 = vmul.f32 %v6857, %v6857
    %v7178 = vmul.f32 %v6858, %v6858
    %v7179 = vmul.f32 %v6859, %v6859
    %v7180 = vmul.f32 %v6860, %v6860
    %v7181 = vmul.f32 %v6861, %v6861
    %v7182 = vmul.f32 %v6862, %v6862
    %v7183 = vmul.f32 %v6863, %v6863
    %v7184 = vmul.f32 %v6864, %v6864
    %v7185 = vmul.f32 %v6865, %v6865
    %v7186 = vmul.f32 %v6866, %v6866
    %v7187 = vmul.f32 %v6867, %v6867
    %v7188 = vmul.f32 %v6868, %v6868
    %v7189 = vmul.f32 %v6869, %v6869
    %v7190 = vmul.f32 %v6870, %v6870
    %v7191 = vmul.f32 %v6871, %v6871
    %v7192 = vmul.f32 %v6872, %v6872
    %v7193 = vmul.f32 %v6873, %v6873
    %v7194 = vmul.f32 %v6874, %v6874
    %v7195 = vmul.f32 %v6875, %v6875
    %v7196 = vmul.f32 %v6876, %v6876
    %v7197 = vmul.f32 %v6877, %v6877
    %v7198 = vmul.f32 %v6878, %v6878
    %v7199 = vmul.f32 %v6879, %v6879
    %v7200 = vmul.f32 %v6880, %v6880
    %v7201 = vmul.f32 %v6881, %v6881
    %v7202 = vmul.f32 %v6882, %v6882
    %v7203 = vmul.f32 %v6883, %v6883
    %v7204 = vmul.f32 %v6884, %v6884
    %v7205 = vmul.f32 %v6885, %v6885
    %v7206 = vmul.f32 %v6886, %v6886
    %v7207 = vmul.f32 %v6887, %v6887
    %v7208 = vmul.f32 %v6888, %v6888
    %v7209 = vmul.f32 %v6889, %v6889
    %v7210 = vmul.f32 %v6890, %v6890
    %v7211 = vmul.f32 %v6891, %v6891
    %v7212 = vmul.f32 %v6892, %v6892
    %v7213 = vmul.f32 %v6893, %v6893
    %v7214 = vmul.f32 %v6894, %v6894
    %v7215 = vmul.f32 %v6895, %v6895
    %v7216 = vmul.f32 %v6896, %v6896
    %v7217 = vmul.f32 %v6897, %v6897
    %v7218 = vmul.f32 %v6898, %v6898
    %v7219 = vmul.f32 %v6899, %v6899
    %v7220 = vmul.f32 %v6900, %v6900
    %v7221 = vmul.f32 %v6901, %v6901
    %v7222 = vmul.f32 %v6902, %v6902
    %v7223 = vmul.f32 %v6903, %v6903
    %v7224 = vmul.f32 %v6904, %v6904
    %v7225 = vmul.f32 %v6905, %v6905
    %v7226 = vmul.f32 %v6906, %v6906
    %v7227 = vmul.f32 %v6907, %v6907
    %v7228 = vmul.f32 %v6908, %v6908
    %v7229 = vmul.f32 %v6909, %v6909
    %v7230 = vmul.f32 %v6910, %v6910
    %v7231 = vmul.f32 %v6911, %v6911
    %v7232 = vmul.f32 %v6912, %v6912
    %v7233 = vmul.f32 %v6913, %v6913
    %v7234 = vmul.f32 %v6914, %v6914
    %v7235 = vmul.f32 %v6915, %v6915
    %v7236 = vmul.f32 %v6916, %v6916
    %v7237 = vmul.f32 %v6917, %v6917
    %v7238 = vmul.f32 %v6918, %v6918
    %v7239 = vmul.f32 %v6919, %v6919
    %v7240 = vmul.f32 %v6920, %v6920
    %v7241 = vmul.f32 %v6921, %v6921
    %v7242 = vmul.f32 %v6922, %v6922
    %v7243 = vmul.f32 %v6923, %v6923
    %v7244 = vmul.f32 %v6924, %v6924
    %v7245 = vmul.f32 %v6925, %v6925
    %v7246 = vmul.f32 %v6926, %v6926
    %v7247 = vmul.f32 %v6927, %v6927
    %v7248 = vmul.f32 %v6928, %v6928
    %v7249 = vmul.f32 %v6929, %v6929
    %v7250 = vmul.f32 %v6930, %v6930
    %v7251 = vadd.f32 %v7123, %v7124
    %7252 = vadd.xlane.f32.xlu0 %v7251
    %v7253 = vpop.xlane.xlu0 %7252
    %v7254 = vadd.f32 %v7125, %v7126
    %7255 = vadd.xlane.f32.xlu0 %v7254
    %v7256 = vpop.xlane.xlu0 %7255
    %v7257 = vadd.f32 %v7127, %v7128
    %7258 = vadd.xlane.f32.xlu0 %v7257
    %v7259 = vpop.xlane.xlu0 %7258
    %v7260 = vadd.f32 %v7129, %v7130
    %7261 = vadd.xlane.f32.xlu0 %v7260
    %v7262 = vpop.xlane.xlu0 %7261
    %v7263 = vadd.f32 %v7131, %v7132
    %7264 = vadd.xlane.f32.xlu0 %v7263
    %v7265 = vpop.xlane.xlu0 %7264
    %v7266 = vadd.f32 %v7133, %v7134
    %7267 = vadd.xlane.f32.xlu0 %v7266
    %v7268 = vpop.xlane.xlu0 %7267
    %v7269 = vadd.f32 %v7135, %v7136
    %7270 = vadd.xlane.f32.xlu0 %v7269
    %v7271 = vpop.xlane.xlu0 %7270
    %v7272 = vadd.f32 %v7137, %v7138
    %7273 = vadd.xlane.f32.xlu0 %v7272
    %v7274 = vpop.xlane.xlu0 %7273
    %v7275 = vadd.f32 %v7139, %v7140
    %7276 = vadd.xlane.f32.xlu0 %v7275
    %v7277 = vpop.xlane.xlu0 %7276
    %v7278 = vadd.f32 %v7141, %v7142
    %7279 = vadd.xlane.f32.xlu0 %v7278
    %v7280 = vpop.xlane.xlu0 %7279
    %v7281 = vadd.f32 %v7143, %v7144
    %7282 = vadd.xlane.f32.xlu0 %v7281
    %v7283 = vpop.xlane.xlu0 %7282
    %v7284 = vadd.f32 %v7145, %v7146
    %7285 = vadd.xlane.f32.xlu0 %v7284
    %v7286 = vpop.xlane.xlu0 %7285
    %v7287 = vadd.f32 %v7147, %v7148
    %7288 = vadd.xlane.f32.xlu0 %v7287
    %v7289 = vpop.xlane.xlu0 %7288
    %v7290 = vadd.f32 %v7149, %v7150
    %7291 = vadd.xlane.f32.xlu0 %v7290
    %v7292 = vpop.xlane.xlu0 %7291
    %v7293 = vadd.f32 %v7151, %v7152
    %7294 = vadd.xlane.f32.xlu0 %v7293
    %v7295 = vpop.xlane.xlu0 %7294
    %v7296 = vadd.f32 %v7153, %v7154
    %7297 = vadd.xlane.f32.xlu0 %v7296
    %v7298 = vpop.xlane.xlu0 %7297
    %v7299 = vadd.f32 %v7155, %v7156
    %7300 = vadd.xlane.f32.xlu0 %v7299
    %v7301 = vpop.xlane.xlu0 %7300
    %v7302 = vadd.f32 %v7157, %v7158
    %7303 = vadd.xlane.f32.xlu0 %v7302
    %v7304 = vpop.xlane.xlu0 %7303
    %v7305 = vadd.f32 %v7159, %v7160
    %7306 = vadd.xlane.f32.xlu0 %v7305
    %v7307 = vpop.xlane.xlu0 %7306
    %v7308 = vadd.f32 %v7161, %v7162
    %7309 = vadd.xlane.f32.xlu0 %v7308
    %v7310 = vpop.xlane.xlu0 %7309
    %v7311 = vadd.f32 %v7163, %v7164
    %7312 = vadd.xlane.f32.xlu0 %v7311
    %v7313 = vpop.xlane.xlu0 %7312
    %v7314 = vadd.f32 %v7165, %v7166
    %7315 = vadd.xlane.f32.xlu0 %v7314
    %v7316 = vpop.xlane.xlu0 %7315
    %v7317 = vadd.f32 %v7167, %v7168
    %7318 = vadd.xlane.f32.xlu0 %v7317
    %v7319 = vpop.xlane.xlu0 %7318
    %v7320 = vadd.f32 %v7169, %v7170
    %7321 = vadd.xlane.f32.xlu0 %v7320
    %v7322 = vpop.xlane.xlu0 %7321
    %v7323 = vadd.f32 %v7171, %v7172
    %7324 = vadd.xlane.f32.xlu0 %v7323
    %v7325 = vpop.xlane.xlu0 %7324
    %v7326 = vadd.f32 %v7173, %v7174
    %7327 = vadd.xlane.f32.xlu0 %v7326
    %v7328 = vpop.xlane.xlu0 %7327
    %v7329 = vadd.f32 %v7175, %v7176
    %7330 = vadd.xlane.f32.xlu0 %v7329
    %v7331 = vpop.xlane.xlu0 %7330
    %v7332 = vadd.f32 %v7177, %v7178
    %7333 = vadd.xlane.f32.xlu0 %v7332
    %v7334 = vpop.xlane.xlu0 %7333
    %v7335 = vadd.f32 %v7179, %v7180
    %7336 = vadd.xlane.f32.xlu0 %v7335
    %v7337 = vpop.xlane.xlu0 %7336
    %v7338 = vadd.f32 %v7181, %v7182
    %7339 = vadd.xlane.f32.xlu0 %v7338
    %v7340 = vpop.xlane.xlu0 %7339
    %v7341 = vadd.f32 %v7183, %v7184
    %7342 = vadd.xlane.f32.xlu0 %v7341
    %v7343 = vpop.xlane.xlu0 %7342
    %v7344 = vadd.f32 %v7185, %v7186
    %7345 = vadd.xlane.f32.xlu0 %v7344
    %v7346 = vpop.xlane.xlu0 %7345
    %v7347 = vadd.f32 %v7187, %v7188
    %7348 = vadd.xlane.f32.xlu0 %v7347
    %v7349 = vpop.xlane.xlu0 %7348
    %v7350 = vadd.f32 %v7189, %v7190
    %7351 = vadd.xlane.f32.xlu0 %v7350
    %v7352 = vpop.xlane.xlu0 %7351
    %v7353 = vadd.f32 %v7191, %v7192
    %7354 = vadd.xlane.f32.xlu0 %v7353
    %v7355 = vpop.xlane.xlu0 %7354
    %v7356 = vadd.f32 %v7193, %v7194
    %7357 = vadd.xlane.f32.xlu0 %v7356
    %v7358 = vpop.xlane.xlu0 %7357
    %v7359 = vadd.f32 %v7195, %v7196
    %7360 = vadd.xlane.f32.xlu0 %v7359
    %v7361 = vpop.xlane.xlu0 %7360
    %v7362 = vadd.f32 %v7197, %v7198
    %7363 = vadd.xlane.f32.xlu0 %v7362
    %v7364 = vpop.xlane.xlu0 %7363
    %v7365 = vadd.f32 %v7199, %v7200
    %7366 = vadd.xlane.f32.xlu0 %v7365
    %v7367 = vpop.xlane.xlu0 %7366
    %v7368 = vadd.f32 %v7201, %v7202
    %7369 = vadd.xlane.f32.xlu0 %v7368
    %v7370 = vpop.xlane.xlu0 %7369
    %v7371 = vadd.f32 %v7203, %v7204
    %7372 = vadd.xlane.f32.xlu0 %v7371
    %v7373 = vpop.xlane.xlu0 %7372
    %v7374 = vadd.f32 %v7205, %v7206
    %7375 = vadd.xlane.f32.xlu0 %v7374
    %v7376 = vpop.xlane.xlu0 %7375
    %v7377 = vadd.f32 %v7207, %v7208
    %7378 = vadd.xlane.f32.xlu0 %v7377
    %v7379 = vpop.xlane.xlu0 %7378
    %v7380 = vadd.f32 %v7209, %v7210
    %7381 = vadd.xlane.f32.xlu0 %v7380
    %v7382 = vpop.xlane.xlu0 %7381
    %v7383 = vadd.f32 %v7211, %v7212
    %7384 = vadd.xlane.f32.xlu0 %v7383
    %v7385 = vpop.xlane.xlu0 %7384
    %v7386 = vadd.f32 %v7213, %v7214
    %7387 = vadd.xlane.f32.xlu0 %v7386
    %v7388 = vpop.xlane.xlu0 %7387
    %v7389 = vadd.f32 %v7215, %v7216
    %7390 = vadd.xlane.f32.xlu0 %v7389
    %v7391 = vpop.xlane.xlu0 %7390
    %v7392 = vadd.f32 %v7217, %v7218
    %7393 = vadd.xlane.f32.xlu0 %v7392
    %v7394 = vpop.xlane.xlu0 %7393
    %v7395 = vadd.f32 %v7219, %v7220
    %7396 = vadd.xlane.f32.xlu0 %v7395
    %v7397 = vpop.xlane.xlu0 %7396
    %v7398 = vadd.f32 %v7221, %v7222
    %7399 = vadd.xlane.f32.xlu0 %v7398
    %v7400 = vpop.xlane.xlu0 %7399
    %v7401 = vadd.f32 %v7223, %v7224
    %7402 = vadd.xlane.f32.xlu0 %v7401
    %v7403 = vpop.xlane.xlu0 %7402
    %v7404 = vadd.f32 %v7225, %v7226
    %7405 = vadd.xlane.f32.xlu0 %v7404
    %v7406 = vpop.xlane.xlu0 %7405
    %v7407 = vadd.f32 %v7227, %v7228
    %7408 = vadd.xlane.f32.xlu0 %v7407
    %v7409 = vpop.xlane.xlu0 %7408
    %v7410 = vadd.f32 %v7229, %v7230
    %7411 = vadd.xlane.f32.xlu0 %v7410
    %v7412 = vpop.xlane.xlu0 %7411
    %v7413 = vadd.f32 %v7231, %v7232
    %7414 = vadd.xlane.f32.xlu0 %v7413
    %v7415 = vpop.xlane.xlu0 %7414
    %v7416 = vadd.f32 %v7233, %v7234
    %7417 = vadd.xlane.f32.xlu0 %v7416
    %v7418 = vpop.xlane.xlu0 %7417
    %v7419 = vadd.f32 %v7235, %v7236
    %7420 = vadd.xlane.f32.xlu0 %v7419
    %v7421 = vpop.xlane.xlu0 %7420
    %v7422 = vadd.f32 %v7237, %v7238
    %7423 = vadd.xlane.f32.xlu0 %v7422
    %v7424 = vpop.xlane.xlu0 %7423
    %v7425 = vadd.f32 %v7239, %v7240
    %7426 = vadd.xlane.f32.xlu0 %v7425
    %v7427 = vpop.xlane.xlu0 %7426
    %v7428 = vadd.f32 %v7241, %v7242
    %7429 = vadd.xlane.f32.xlu0 %v7428
    %v7430 = vpop.xlane.xlu0 %7429
    %v7431 = vadd.f32 %v7243, %v7244
    %7432 = vadd.xlane.f32.xlu0 %v7431
    %v7433 = vpop.xlane.xlu0 %7432
    %v7434 = vadd.f32 %v7245, %v7246
    %7435 = vadd.xlane.f32.xlu0 %v7434
    %v7436 = vpop.xlane.xlu0 %7435
    %v7437 = vadd.f32 %v7247, %v7248
    %7438 = vadd.xlane.f32.xlu0 %v7437
    %v7439 = vpop.xlane.xlu0 %7438
    %v7440 = vadd.f32 %v7249, %v7250
    %7441 = vadd.xlane.f32.xlu0 %v7440
    %v7442 = vpop.xlane.xlu0 %7441
    %v7443 = vmul.f32 %v6933, 0.00390625
    %v7444 = vmul.f32 %v6936, 0.00390625
    %v7445 = vmul.f32 %v6939, 0.00390625
    %v7446 = vmul.f32 %v6942, 0.00390625
    %v7447 = vmul.f32 %v6945, 0.00390625
    %v7448 = vmul.f32 %v6948, 0.00390625
    %v7449 = vmul.f32 %v6951, 0.00390625
    %v7450 = vmul.f32 %v6954, 0.00390625
    %v7451 = vmul.f32 %v6957, 0.00390625
    %v7452 = vmul.f32 %v6960, 0.00390625
    %v7453 = vmul.f32 %v6963, 0.00390625
    %v7454 = vmul.f32 %v6966, 0.00390625
    %v7455 = vmul.f32 %v6969, 0.00390625
    %v7456 = vmul.f32 %v6972, 0.00390625
    %v7457 = vmul.f32 %v6975, 0.00390625
    %v7458 = vmul.f32 %v6978, 0.00390625
    %v7459 = vmul.f32 %v6981, 0.00390625
    %v7460 = vmul.f32 %v6984, 0.00390625
    %v7461 = vmul.f32 %v6987, 0.00390625
    %v7462 = vmul.f32 %v6990, 0.00390625
    %v7463 = vmul.f32 %v6993, 0.00390625
    %v7464 = vmul.f32 %v6996, 0.00390625
    %v7465 = vmul.f32 %v6999, 0.00390625
    %v7466 = vmul.f32 %v7002, 0.00390625
    %v7467 = vmul.f32 %v7005, 0.00390625
    %v7468 = vmul.f32 %v7008, 0.00390625
    %v7469 = vmul.f32 %v7011, 0.00390625
    %v7470 = vmul.f32 %v7014, 0.00390625
    %v7471 = vmul.f32 %v7017, 0.00390625
    %v7472 = vmul.f32 %v7020, 0.00390625
    %v7473 = vmul.f32 %v7023, 0.00390625
    %v7474 = vmul.f32 %v7026, 0.00390625
    %v7475 = vmul.f32 %v7029, 0.00390625
    %v7476 = vmul.f32 %v7032, 0.00390625
    %v7477 = vmul.f32 %v7035, 0.00390625
    %v7478 = vmul.f32 %v7038, 0.00390625
    %v7479 = vmul.f32 %v7041, 0.00390625
    %v7480 = vmul.f32 %v7044, 0.00390625
    %v7481 = vmul.f32 %v7047, 0.00390625
    %v7482 = vmul.f32 %v7050, 0.00390625
    %v7483 = vmul.f32 %v7053, 0.00390625
    %v7484 = vmul.f32 %v7056, 0.00390625
    %v7485 = vmul.f32 %v7059, 0.00390625
    %v7486 = vmul.f32 %v7062, 0.00390625
    %v7487 = vmul.f32 %v7065, 0.00390625
    %v7488 = vmul.f32 %v7068, 0.00390625
    %v7489 = vmul.f32 %v7071, 0.00390625
    %v7490 = vmul.f32 %v7074, 0.00390625
    %v7491 = vmul.f32 %v7077, 0.00390625
    %v7492 = vmul.f32 %v7080, 0.00390625
    %v7493 = vmul.f32 %v7083, 0.00390625
    %v7494 = vmul.f32 %v7086, 0.00390625
    %v7495 = vmul.f32 %v7089, 0.00390625
    %v7496 = vmul.f32 %v7092, 0.00390625
    %v7497 = vmul.f32 %v7095, 0.00390625
    %v7498 = vmul.f32 %v7098, 0.00390625
    %v7499 = vmul.f32 %v7101, 0.00390625
    %v7500 = vmul.f32 %v7104, 0.00390625
    %v7501 = vmul.f32 %v7107, 0.00390625
    %v7502 = vmul.f32 %v7110, 0.00390625
    %v7503 = vmul.f32 %v7113, 0.00390625
    %v7504 = vmul.f32 %v7116, 0.00390625
    %v7505 = vmul.f32 %v7119, 0.00390625
    %v7506 = vmul.f32 %v7122, 0.00390625
    %v7507 = vmul.f32 %v7253, 0.00390625
    %v7508 = vmul.f32 %v7256, 0.00390625
    %v7509 = vmul.f32 %v7259, 0.00390625
    %v7510 = vmul.f32 %v7262, 0.00390625
    %v7511 = vmul.f32 %v7265, 0.00390625
    %v7512 = vmul.f32 %v7268, 0.00390625
    %v7513 = vmul.f32 %v7271, 0.00390625
    %v7514 = vmul.f32 %v7274, 0.00390625
    %v7515 = vmul.f32 %v7277, 0.00390625
    %v7516 = vmul.f32 %v7280, 0.00390625
    %v7517 = vmul.f32 %v7283, 0.00390625
    %v7518 = vmul.f32 %v7286, 0.00390625
    %v7519 = vmul.f32 %v7289, 0.00390625
    %v7520 = vmul.f32 %v7292, 0.00390625
    %v7521 = vmul.f32 %v7295, 0.00390625
    %v7522 = vmul.f32 %v7298, 0.00390625
    %v7523 = vmul.f32 %v7301, 0.00390625
    %v7524 = vmul.f32 %v7304, 0.00390625
    %v7525 = vmul.f32 %v7307, 0.00390625
    %v7526 = vmul.f32 %v7310, 0.00390625
    %v7527 = vmul.f32 %v7313, 0.00390625
    %v7528 = vmul.f32 %v7316, 0.00390625
    %v7529 = vmul.f32 %v7319, 0.00390625
    %v7530 = vmul.f32 %v7322, 0.00390625
    %v7531 = vmul.f32 %v7325, 0.00390625
    %v7532 = vmul.f32 %v7328, 0.00390625
    %v7533 = vmul.f32 %v7331, 0.00390625
    %v7534 = vmul.f32 %v7334, 0.00390625
    %v7535 = vmul.f32 %v7337, 0.00390625
    %v7536 = vmul.f32 %v7340, 0.00390625
    %v7537 = vmul.f32 %v7343, 0.00390625
    %v7538 = vmul.f32 %v7346, 0.00390625
    %v7539 = vmul.f32 %v7349, 0.00390625
    %v7540 = vmul.f32 %v7352, 0.00390625
    %v7541 = vmul.f32 %v7355, 0.00390625
    %v7542 = vmul.f32 %v7358, 0.00390625
    %v7543 = vmul.f32 %v7361, 0.00390625
    %v7544 = vmul.f32 %v7364, 0.00390625
    %v7545 = vmul.f32 %v7367, 0.00390625
    %v7546 = vmul.f32 %v7370, 0.00390625
    %v7547 = vmul.f32 %v7373, 0.00390625
    %v7548 = vmul.f32 %v7376, 0.00390625
    %v7549 = vmul.f32 %v7379, 0.00390625
    %v7550 = vmul.f32 %v7382, 0.00390625
    %v7551 = vmul.f32 %v7385, 0.00390625
    %v7552 = vmul.f32 %v7388, 0.00390625
    %v7553 = vmul.f32 %v7391, 0.00390625
    %v7554 = vmul.f32 %v7394, 0.00390625
    %v7555 = vmul.f32 %v7397, 0.00390625
    %v7556 = vmul.f32 %v7400, 0.00390625
    %v7557 = vmul.f32 %v7403, 0.00390625
    %v7558 = vmul.f32 %v7406, 0.00390625
    %v7559 = vmul.f32 %v7409, 0.00390625
    %v7560 = vmul.f32 %v7412, 0.00390625
    %v7561 = vmul.f32 %v7415, 0.00390625
    %v7562 = vmul.f32 %v7418, 0.00390625
    %v7563 = vmul.f32 %v7421, 0.00390625
    %v7564 = vmul.f32 %v7424, 0.00390625
    %v7565 = vmul.f32 %v7427, 0.00390625
    %v7566 = vmul.f32 %v7430, 0.00390625
    %v7567 = vmul.f32 %v7433, 0.00390625
    %v7568 = vmul.f32 %v7436, 0.00390625
    %v7569 = vmul.f32 %v7439, 0.00390625
    %v7570 = vmul.f32 %v7442, 0.00390625
    %v7571 = vmul.f32 %v7443, %v7443
    %v7572 = vmul.f32 %v7444, %v7444
    %v7573 = vmul.f32 %v7445, %v7445
    %v7574 = vmul.f32 %v7446, %v7446
    %v7575 = vmul.f32 %v7447, %v7447
    %v7576 = vmul.f32 %v7448, %v7448
    %v7577 = vmul.f32 %v7449, %v7449
    %v7578 = vmul.f32 %v7450, %v7450
    %v7579 = vmul.f32 %v7451, %v7451
    %v7580 = vmul.f32 %v7452, %v7452
    %v7581 = vmul.f32 %v7453, %v7453
    %v7582 = vmul.f32 %v7454, %v7454
    %v7583 = vmul.f32 %v7455, %v7455
    %v7584 = vmul.f32 %v7456, %v7456
    %v7585 = vmul.f32 %v7457, %v7457
    %v7586 = vmul.f32 %v7458, %v7458
    %v7587 = vmul.f32 %v7459, %v7459
    %v7588 = vmul.f32 %v7460, %v7460
    %v7589 = vmul.f32 %v7461, %v7461
    %v7590 = vmul.f32 %v7462, %v7462
    %v7591 = vmul.f32 %v7463, %v7463
    %v7592 = vmul.f32 %v7464, %v7464
    %v7593 = vmul.f32 %v7465, %v7465
    %v7594 = vmul.f32 %v7466, %v7466
    %v7595 = vmul.f32 %v7467, %v7467
    %v7596 = vmul.f32 %v7468, %v7468
    %v7597 = vmul.f32 %v7469, %v7469
    %v7598 = vmul.f32 %v7470, %v7470
    %v7599 = vmul.f32 %v7471, %v7471
    %v7600 = vmul.f32 %v7472, %v7472
    %v7601 = vmul.f32 %v7473, %v7473
    %v7602 = vmul.f32 %v7474, %v7474
    %v7603 = vmul.f32 %v7475, %v7475
    %v7604 = vmul.f32 %v7476, %v7476
    %v7605 = vmul.f32 %v7477, %v7477
    %v7606 = vmul.f32 %v7478, %v7478
    %v7607 = vmul.f32 %v7479, %v7479
    %v7608 = vmul.f32 %v7480, %v7480
    %v7609 = vmul.f32 %v7481, %v7481
    %v7610 = vmul.f32 %v7482, %v7482
    %v7611 = vmul.f32 %v7483, %v7483
    %v7612 = vmul.f32 %v7484, %v7484
    %v7613 = vmul.f32 %v7485, %v7485
    %v7614 = vmul.f32 %v7486, %v7486
    %v7615 = vmul.f32 %v7487, %v7487
    %v7616 = vmul.f32 %v7488, %v7488
    %v7617 = vmul.f32 %v7489, %v7489
    %v7618 = vmul.f32 %v7490, %v7490
    %v7619 = vmul.f32 %v7491, %v7491
    %v7620 = vmul.f32 %v7492, %v7492
    %v7621 = vmul.f32 %v7493, %v7493
    %v7622 = vmul.f32 %v7494, %v7494
    %v7623 = vmul.f32 %v7495, %v7495
    %v7624 = vmul.f32 %v7496, %v7496
    %v7625 = vmul.f32 %v7497, %v7497
    %v7626 = vmul.f32 %v7498, %v7498
    %v7627 = vmul.f32 %v7499, %v7499
    %v7628 = vmul.f32 %v7500, %v7500
    %v7629 = vmul.f32 %v7501, %v7501
    %v7630 = vmul.f32 %v7502, %v7502
    %v7631 = vmul.f32 %v7503, %v7503
    %v7632 = vmul.f32 %v7504, %v7504
    %v7633 = vmul.f32 %v7505, %v7505
    %v7634 = vmul.f32 %v7506, %v7506
    %v7635 = vsub.f32 %v7507, %v7571
    %v7636 = vsub.f32 %v7508, %v7572
    %v7637 = vsub.f32 %v7509, %v7573
    %v7638 = vsub.f32 %v7510, %v7574
    %v7639 = vsub.f32 %v7511, %v7575
    %v7640 = vsub.f32 %v7512, %v7576
    %v7641 = vsub.f32 %v7513, %v7577
    %v7642 = vsub.f32 %v7514, %v7578
    %v7643 = vsub.f32 %v7515, %v7579
    %v7644 = vsub.f32 %v7516, %v7580
    %v7645 = vsub.f32 %v7517, %v7581
    %v7646 = vsub.f32 %v7518, %v7582
    %v7647 = vsub.f32 %v7519, %v7583
    %v7648 = vsub.f32 %v7520, %v7584
    %v7649 = vsub.f32 %v7521, %v7585
    %v7650 = vsub.f32 %v7522, %v7586
    %v7651 = vsub.f32 %v7523, %v7587
    %v7652 = vsub.f32 %v7524, %v7588
    %v7653 = vsub.f32 %v7525, %v7589
    %v7654 = vsub.f32 %v7526, %v7590
    %v7655 = vsub.f32 %v7527, %v7591
    %v7656 = vsub.f32 %v7528, %v7592
    %v7657 = vsub.f32 %v7529, %v7593
    %v7658 = vsub.f32 %v7530, %v7594
    %v7659 = vsub.f32 %v7531, %v7595
    %v7660 = vsub.f32 %v7532, %v7596
    %v7661 = vsub.f32 %v7533, %v7597
    %v7662 = vsub.f32 %v7534, %v7598
    %v7663 = vsub.f32 %v7535, %v7599
    %v7664 = vsub.f32 %v7536, %v7600
    %v7665 = vsub.f32 %v7537, %v7601
    %v7666 = vsub.f32 %v7538, %v7602
    %v7667 = vsub.f32 %v7539, %v7603
    %v7668 = vsub.f32 %v7540, %v7604
    %v7669 = vsub.f32 %v7541, %v7605
    %v7670 = vsub.f32 %v7542, %v7606
    %v7671 = vsub.f32 %v7543, %v7607
    %v7672 = vsub.f32 %v7544, %v7608
    %v7673 = vsub.f32 %v7545, %v7609
    %v7674 = vsub.f32 %v7546, %v7610
    %v7675 = vsub.f32 %v7547, %v7611
    %v7676 = vsub.f32 %v7548, %v7612
    %v7677 = vsub.f32 %v7549, %v7613
    %v7678 = vsub.f32 %v7550, %v7614
    %v7679 = vsub.f32 %v7551, %v7615
    %v7680 = vsub.f32 %v7552, %v7616
    %v7681 = vsub.f32 %v7553, %v7617
    %v7682 = vsub.f32 %v7554, %v7618
    %v7683 = vsub.f32 %v7555, %v7619
    %v7684 = vsub.f32 %v7556, %v7620
    %v7685 = vsub.f32 %v7557, %v7621
    %v7686 = vsub.f32 %v7558, %v7622
    %v7687 = vsub.f32 %v7559, %v7623
    %v7688 = vsub.f32 %v7560, %v7624
    %v7689 = vsub.f32 %v7561, %v7625
    %v7690 = vsub.f32 %v7562, %v7626
    %v7691 = vsub.f32 %v7563, %v7627
    %v7692 = vsub.f32 %v7564, %v7628
    %v7693 = vsub.f32 %v7565, %v7629
    %v7694 = vsub.f32 %v7566, %v7630
    %v7695 = vsub.f32 %v7567, %v7631
    %v7696 = vsub.f32 %v7568, %v7632
    %v7697 = vsub.f32 %v7569, %v7633
    %v7698 = vsub.f32 %v7570, %v7634
    %v7699 = vsub.f32 %v6803, %v7443
    %v7700 = vsub.f32 %v6804, %v7443
    %v7701 = vsub.f32 %v6805, %v7444
    %v7702 = vsub.f32 %v6806, %v7444
    %v7703 = vsub.f32 %v6807, %v7445
    %v7704 = vsub.f32 %v6808, %v7445
    %v7705 = vsub.f32 %v6809, %v7446
    %v7706 = vsub.f32 %v6810, %v7446
    %v7707 = vsub.f32 %v6811, %v7447
    %v7708 = vsub.f32 %v6812, %v7447
    %v7709 = vsub.f32 %v6813, %v7448
    %v7710 = vsub.f32 %v6814, %v7448
    %v7711 = vsub.f32 %v6815, %v7449
    %v7712 = vsub.f32 %v6816, %v7449
    %v7713 = vsub.f32 %v6817, %v7450
    %v7714 = vsub.f32 %v6818, %v7450
    %v7715 = vsub.f32 %v6819, %v7451
    %v7716 = vsub.f32 %v6820, %v7451
    %v7717 = vsub.f32 %v6821, %v7452
    %v7718 = vsub.f32 %v6822, %v7452
    %v7719 = vsub.f32 %v6823, %v7453
    %v7720 = vsub.f32 %v6824, %v7453
    %v7721 = vsub.f32 %v6825, %v7454
    %v7722 = vsub.f32 %v6826, %v7454
    %v7723 = vsub.f32 %v6827, %v7455
    %v7724 = vsub.f32 %v6828, %v7455
    %v7725 = vsub.f32 %v6829, %v7456
    %v7726 = vsub.f32 %v6830, %v7456
    %v7727 = vsub.f32 %v6831, %v7457
    %v7728 = vsub.f32 %v6832, %v7457
    %v7729 = vsub.f32 %v6833, %v7458
    %v7730 = vsub.f32 %v6834, %v7458
    %v7731 = vsub.f32 %v6835, %v7459
    %v7732 = vsub.f32 %v6836, %v7459
    %v7733 = vsub.f32 %v6837, %v7460
    %v7734 = vsub.f32 %v6838, %v7460
    %v7735 = vsub.f32 %v6839, %v7461
    %v7736 = vsub.f32 %v6840, %v7461
    %v7737 = vsub.f32 %v6841, %v7462
    %v7738 = vsub.f32 %v6842, %v7462
    %v7739 = vsub.f32 %v6843, %v7463
    %v7740 = vsub.f32 %v6844, %v7463
    %v7741 = vsub.f32 %v6845, %v7464
    %v7742 = vsub.f32 %v6846, %v7464
    %v7743 = vsub.f32 %v6847, %v7465
    %v7744 = vsub.f32 %v6848, %v7465
    %v7745 = vsub.f32 %v6849, %v7466
    %v7746 = vsub.f32 %v6850, %v7466
    %v7747 = vsub.f32 %v6851, %v7467
    %v7748 = vsub.f32 %v6852, %v7467
    %v7749 = vsub.f32 %v6853, %v7468
    %v7750 = vsub.f32 %v6854, %v7468
    %v7751 = vsub.f32 %v6855, %v7469
    %v7752 = vsub.f32 %v6856, %v7469
    %v7753 = vsub.f32 %v6857, %v7470
    %v7754 = vsub.f32 %v6858, %v7470
    %v7755 = vsub.f32 %v6859, %v7471
    %v7756 = vsub.f32 %v6860, %v7471
    %v7757 = vsub.f32 %v6861, %v7472
    %v7758 = vsub.f32 %v6862, %v7472
    %v7759 = vsub.f32 %v6863, %v7473
    %v7760 = vsub.f32 %v6864, %v7473
    %v7761 = vsub.f32 %v6865, %v7474
    %v7762 = vsub.f32 %v6866, %v7474
    %v7763 = vsub.f32 %v6867, %v7475
    %v7764 = vsub.f32 %v6868, %v7475
    %v7765 = vsub.f32 %v6869, %v7476
    %v7766 = vsub.f32 %v6870, %v7476
    %v7767 = vsub.f32 %v6871, %v7477
    %v7768 = vsub.f32 %v6872, %v7477
    %v7769 = vsub.f32 %v6873, %v7478
    %v7770 = vsub.f32 %v6874, %v7478
    %v7771 = vsub.f32 %v6875, %v7479
    %v7772 = vsub.f32 %v6876, %v7479
    %v7773 = vsub.f32 %v6877, %v7480
    %v7774 = vsub.f32 %v6878, %v7480
    %v7775 = vsub.f32 %v6879, %v7481
    %v7776 = vsub.f32 %v6880, %v7481
    %v7777 = vsub.f32 %v6881, %v7482
    %v7778 = vsub.f32 %v6882, %v7482
    %v7779 = vsub.f32 %v6883, %v7483
    %v7780 = vsub.f32 %v6884, %v7483
    %v7781 = vsub.f32 %v6885, %v7484
    %v7782 = vsub.f32 %v6886, %v7484
    %v7783 = vsub.f32 %v6887, %v7485
    %v7784 = vsub.f32 %v6888, %v7485
    %v7785 = vsub.f32 %v6889, %v7486
    %v7786 = vsub.f32 %v6890, %v7486
    %v7787 = vsub.f32 %v6891, %v7487
    %v7788 = vsub.f32 %v6892, %v7487
    %v7789 = vsub.f32 %v6893, %v7488
    %v7790 = vsub.f32 %v6894, %v7488
    %v7791 = vsub.f32 %v6895, %v7489
    %v7792 = vsub.f32 %v6896, %v7489
    %v7793 = vsub.f32 %v6897, %v7490
    %v7794 = vsub.f32 %v6898, %v7490
    %v7795 = vsub.f32 %v6899, %v7491
    %v7796 = vsub.f32 %v6900, %v7491
    %v7797 = vsub.f32 %v6901, %v7492
    %v7798 = vsub.f32 %v6902, %v7492
    %v7799 = vsub.f32 %v6903, %v7493
    %v7800 = vsub.f32 %v6904, %v7493
    %v7801 = vsub.f32 %v6905, %v7494
    %v7802 = vsub.f32 %v6906, %v7494
    %v7803 = vsub.f32 %v6907, %v7495
    %v7804 = vsub.f32 %v6908, %v7495
    %v7805 = vsub.f32 %v6909, %v7496
    %v7806 = vsub.f32 %v6910, %v7496
    %v7807 = vsub.f32 %v6911, %v7497
    %v7808 = vsub.f32 %v6912, %v7497
    %v7809 = vsub.f32 %v6913, %v7498
    %v7810 = vsub.f32 %v6914, %v7498
    %v7811 = vsub.f32 %v6915, %v7499
    %v7812 = vsub.f32 %v6916, %v7499
    %v7813 = vsub.f32 %v6917, %v7500
    %v7814 = vsub.f32 %v6918, %v7500
    %v7815 = vsub.f32 %v6919, %v7501
    %v7816 = vsub.f32 %v6920, %v7501
    %v7817 = vsub.f32 %v6921, %v7502
    %v7818 = vsub.f32 %v6922, %v7502
    %v7819 = vsub.f32 %v6923, %v7503
    %v7820 = vsub.f32 %v6924, %v7503
    %v7821 = vsub.f32 %v6925, %v7504
    %v7822 = vsub.f32 %v6926, %v7504
    %v7823 = vsub.f32 %v6927, %v7505
    %v7824 = vsub.f32 %v6928, %v7505
    %v7825 = vsub.f32 %v6929, %v7506
    %v7826 = vsub.f32 %v6930, %v7506
    %v7827 = vadd.f32 %v7635, 1e-05
    %v7828 = vadd.f32 %v7636, 1e-05
    %v7829 = vadd.f32 %v7637, 1e-05
    %v7830 = vadd.f32 %v7638, 1e-05
    %v7831 = vadd.f32 %v7639, 1e-05
    %v7832 = vadd.f32 %v7640, 1e-05
    %v7833 = vadd.f32 %v7641, 1e-05
    %v7834 = vadd.f32 %v7642, 1e-05
    %v7835 = vadd.f32 %v7643, 1e-05
    %v7836 = vadd.f32 %v7644, 1e-05
    %v7837 = vadd.f32 %v7645, 1e-05
    %v7838 = vadd.f32 %v7646, 1e-05
    %v7839 = vadd.f32 %v7647, 1e-05
    %v7840 = vadd.f32 %v7648, 1e-05
    %v7841 = vadd.f32 %v7649, 1e-05
    %v7842 = vadd.f32 %v7650, 1e-05
    %v7843 = vadd.f32 %v7651, 1e-05
    %v7844 = vadd.f32 %v7652, 1e-05
    %v7845 = vadd.f32 %v7653, 1e-05
    %v7846 = vadd.f32 %v7654, 1e-05
    %v7847 = vadd.f32 %v7655, 1e-05
    %v7848 = vadd.f32 %v7656, 1e-05
    %v7849 = vadd.f32 %v7657, 1e-05
    %v7850 = vadd.f32 %v7658, 1e-05
    %v7851 = vadd.f32 %v7659, 1e-05
    %v7852 = vadd.f32 %v7660, 1e-05
    %v7853 = vadd.f32 %v7661, 1e-05
    %v7854 = vadd.f32 %v7662, 1e-05
    %v7855 = vadd.f32 %v7663, 1e-05
    %v7856 = vadd.f32 %v7664, 1e-05
    %v7857 = vadd.f32 %v7665, 1e-05
    %v7858 = vadd.f32 %v7666, 1e-05
    %v7859 = vadd.f32 %v7667, 1e-05
    %v7860 = vadd.f32 %v7668, 1e-05
    %v7861 = vadd.f32 %v7669, 1e-05
    %v7862 = vadd.f32 %v7670, 1e-05
    %v7863 = vadd.f32 %v7671, 1e-05
    %v7864 = vadd.f32 %v7672, 1e-05
    %v7865 = vadd.f32 %v7673, 1e-05
    %v7866 = vadd.f32 %v7674, 1e-05
    %v7867 = vadd.f32 %v7675, 1e-05
    %v7868 = vadd.f32 %v7676, 1e-05
    %v7869 = vadd.f32 %v7677, 1e-05
    %v7870 = vadd.f32 %v7678, 1e-05
    %v7871 = vadd.f32 %v7679, 1e-05
    %v7872 = vadd.f32 %v7680, 1e-05
    %v7873 = vadd.f32 %v7681, 1e-05
    %v7874 = vadd.f32 %v7682, 1e-05
    %v7875 = vadd.f32 %v7683, 1e-05
    %v7876 = vadd.f32 %v7684, 1e-05
    %v7877 = vadd.f32 %v7685, 1e-05
    %v7878 = vadd.f32 %v7686, 1e-05
    %v7879 = vadd.f32 %v7687, 1e-05
    %v7880 = vadd.f32 %v7688, 1e-05
    %v7881 = vadd.f32 %v7689, 1e-05
    %v7882 = vadd.f32 %v7690, 1e-05
    %v7883 = vadd.f32 %v7691, 1e-05
    %v7884 = vadd.f32 %v7692, 1e-05
    %v7885 = vadd.f32 %v7693, 1e-05
    %v7886 = vadd.f32 %v7694, 1e-05
    %v7887 = vadd.f32 %v7695, 1e-05
    %v7888 = vadd.f32 %v7696, 1e-05
    %v7889 = vadd.f32 %v7697, 1e-05
    %v7890 = vadd.f32 %v7698, 1e-05
    %v7891 = vrsqrt.pop %v7827
    %v7892 = vrsqrt.pop %v7828
    %v7893 = vrsqrt.pop %v7829
    %v7894 = vrsqrt.pop %v7830
    %v7895 = vrsqrt.pop %v7831
    %v7896 = vrsqrt.pop %v7832
    %v7897 = vrsqrt.pop %v7833
    %v7898 = vrsqrt.pop %v7834
    %v7899 = vrsqrt.pop %v7835
    %v7900 = vrsqrt.pop %v7836
    %v7901 = vrsqrt.pop %v7837
    %v7902 = vrsqrt.pop %v7838
    %v7903 = vrsqrt.pop %v7839
    %v7904 = vrsqrt.pop %v7840
    %v7905 = vrsqrt.pop %v7841
    %v7906 = vrsqrt.pop %v7842
    %v7907 = vrsqrt.pop %v7843
    %v7908 = vrsqrt.pop %v7844
    %v7909 = vrsqrt.pop %v7845
    %v7910 = vrsqrt.pop %v7846
    %v7911 = vrsqrt.pop %v7847
    %v7912 = vrsqrt.pop %v7848
    %v7913 = vrsqrt.pop %v7849
    %v7914 = vrsqrt.pop %v7850
    %v7915 = vrsqrt.pop %v7851
    %v7916 = vrsqrt.pop %v7852
    %v7917 = vrsqrt.pop %v7853
    %v7918 = vrsqrt.pop %v7854
    %v7919 = vrsqrt.pop %v7855
    %v7920 = vrsqrt.pop %v7856
    %v7921 = vrsqrt.pop %v7857
    %v7922 = vrsqrt.pop %v7858
    %v7923 = vrsqrt.pop %v7859
    %v7924 = vrsqrt.pop %v7860
    %v7925 = vrsqrt.pop %v7861
    %v7926 = vrsqrt.pop %v7862
    %v7927 = vrsqrt.pop %v7863
    %v7928 = vrsqrt.pop %v7864
    %v7929 = vrsqrt.pop %v7865
    %v7930 = vrsqrt.pop %v7866
    %v7931 = vrsqrt.pop %v7867
    %v7932 = vrsqrt.pop %v7868
    %v7933 = vrsqrt.pop %v7869
    %v7934 = vrsqrt.pop %v7870
    %v7935 = vrsqrt.pop %v7871
    %v7936 = vrsqrt.pop %v7872
    %v7937 = vrsqrt.pop %v7873
    %v7938 = vrsqrt.pop %v7874
    %v7939 = vrsqrt.pop %v7875
    %v7940 = vrsqrt.pop %v7876
    %v7941 = vrsqrt.pop %v7877
    %v7942 = vrsqrt.pop %v7878
    %v7943 = vrsqrt.pop %v7879
    %v7944 = vrsqrt.pop %v7880
    %v7945 = vrsqrt.pop %v7881
    %v7946 = vrsqrt.pop %v7882
    %v7947 = vrsqrt.pop %v7883
    %v7948 = vrsqrt.pop %v7884
    %v7949 = vrsqrt.pop %v7885
    %v7950 = vrsqrt.pop %v7886
    %v7951 = vrsqrt.pop %v7887
    %v7952 = vrsqrt.pop %v7888
    %v7953 = vrsqrt.pop %v7889
    %v7954 = vrsqrt.pop %v7890
    %v7955 = vmul.f32 %v7699, %v7891
    %v7956 = vmul.f32 %v7700, %v7891
    %v7957 = vmul.f32 %v7701, %v7892
    %v7958 = vmul.f32 %v7702, %v7892
    %v7959 = vmul.f32 %v7703, %v7893
    %v7960 = vmul.f32 %v7704, %v7893
    %v7961 = vmul.f32 %v7705, %v7894
    %v7962 = vmul.f32 %v7706, %v7894
    %v7963 = vmul.f32 %v7707, %v7895
    %v7964 = vmul.f32 %v7708, %v7895
    %v7965 = vmul.f32 %v7709, %v7896
    %v7966 = vmul.f32 %v7710, %v7896
    %v7967 = vmul.f32 %v7711, %v7897
    %v7968 = vmul.f32 %v7712, %v7897
    %v7969 = vmul.f32 %v7713, %v7898
    %v7970 = vmul.f32 %v7714, %v7898
    %v7971 = vmul.f32 %v7715, %v7899
    %v7972 = vmul.f32 %v7716, %v7899
    %v7973 = vmul.f32 %v7717, %v7900
    %v7974 = vmul.f32 %v7718, %v7900
    %v7975 = vmul.f32 %v7719, %v7901
    %v7976 = vmul.f32 %v7720, %v7901
    %v7977 = vmul.f32 %v7721, %v7902
    %v7978 = vmul.f32 %v7722, %v7902
    %v7979 = vmul.f32 %v7723, %v7903
    %v7980 = vmul.f32 %v7724, %v7903
    %v7981 = vmul.f32 %v7725, %v7904
    %v7982 = vmul.f32 %v7726, %v7904
    %v7983 = vmul.f32 %v7727, %v7905
    %v7984 = vmul.f32 %v7728, %v7905
    %v7985 = vmul.f32 %v7729, %v7906
    %v7986 = vmul.f32 %v7730, %v7906
    %v7987 = vmul.f32 %v7731, %v7907
    %v7988 = vmul.f32 %v7732, %v7907
    %v7989 = vmul.f32 %v7733, %v7908
    %v7990 = vmul.f32 %v7734, %v7908
    %v7991 = vmul.f32 %v7735, %v7909
    %v7992 = vmul.f32 %v7736, %v7909
    %v7993 = vmul.f32 %v7737, %v7910
    %v7994 = vmul.f32 %v7738, %v7910
    %v7995 = vmul.f32 %v7739, %v7911
    %v7996 = vmul.f32 %v7740, %v7911
    %v7997 = vmul.f32 %v7741, %v7912
    %v7998 = vmul.f32 %v7742, %v7912
    %v7999 = vmul.f32 %v7743, %v7913
    %v8000 = vmul.f32 %v7744, %v7913
    %v8001 = vmul.f32 %v7745, %v7914
    %v8002 = vmul.f32 %v7746, %v7914
    %v8003 = vmul.f32 %v7747, %v7915
    %v8004 = vmul.f32 %v7748, %v7915
    %v8005 = vmul.f32 %v7749, %v7916
    %v8006 = vmul.f32 %v7750, %v7916
    %v8007 = vmul.f32 %v7751, %v7917
    %v8008 = vmul.f32 %v7752, %v7917
    %v8009 = vmul.f32 %v7753, %v7918
    %v8010 = vmul.f32 %v7754, %v7918
    %v8011 = vmul.f32 %v7755, %v7919
    %v8012 = vmul.f32 %v7756, %v7919
    %v8013 = vmul.f32 %v7757, %v7920
    %v8014 = vmul.f32 %v7758, %v7920
    %v8015 = vmul.f32 %v7759, %v7921
    %v8016 = vmul.f32 %v7760, %v7921
    %v8017 = vmul.f32 %v7761, %v7922
    %v8018 = vmul.f32 %v7762, %v7922
    %v8019 = vmul.f32 %v7763, %v7923
    %v8020 = vmul.f32 %v7764, %v7923
    %v8021 = vmul.f32 %v7765, %v7924
    %v8022 = vmul.f32 %v7766, %v7924
    %v8023 = vmul.f32 %v7767, %v7925
    %v8024 = vmul.f32 %v7768, %v7925
    %v8025 = vmul.f32 %v7769, %v7926
    %v8026 = vmul.f32 %v7770, %v7926
    %v8027 = vmul.f32 %v7771, %v7927
    %v8028 = vmul.f32 %v7772, %v7927
    %v8029 = vmul.f32 %v7773, %v7928
    %v8030 = vmul.f32 %v7774, %v7928
    %v8031 = vmul.f32 %v7775, %v7929
    %v8032 = vmul.f32 %v7776, %v7929
    %v8033 = vmul.f32 %v7777, %v7930
    %v8034 = vmul.f32 %v7778, %v7930
    %v8035 = vmul.f32 %v7779, %v7931
    %v8036 = vmul.f32 %v7780, %v7931
    %v8037 = vmul.f32 %v7781, %v7932
    %v8038 = vmul.f32 %v7782, %v7932
    %v8039 = vmul.f32 %v7783, %v7933
    %v8040 = vmul.f32 %v7784, %v7933
    %v8041 = vmul.f32 %v7785, %v7934
    %v8042 = vmul.f32 %v7786, %v7934
    %v8043 = vmul.f32 %v7787, %v7935
    %v8044 = vmul.f32 %v7788, %v7935
    %v8045 = vmul.f32 %v7789, %v7936
    %v8046 = vmul.f32 %v7790, %v7936
    %v8047 = vmul.f32 %v7791, %v7937
    %v8048 = vmul.f32 %v7792, %v7937
    %v8049 = vmul.f32 %v7793, %v7938
    %v8050 = vmul.f32 %v7794, %v7938
    %v8051 = vmul.f32 %v7795, %v7939
    %v8052 = vmul.f32 %v7796, %v7939
    %v8053 = vmul.f32 %v7797, %v7940
    %v8054 = vmul.f32 %v7798, %v7940
    %v8055 = vmul.f32 %v7799, %v7941
    %v8056 = vmul.f32 %v7800, %v7941
    %v8057 = vmul.f32 %v7801, %v7942
    %v8058 = vmul.f32 %v7802, %v7942
    %v8059 = vmul.f32 %v7803, %v7943
    %v8060 = vmul.f32 %v7804, %v7943
    %v8061 = vmul.f32 %v7805, %v7944
    %v8062 = vmul.f32 %v7806, %v7944
    %v8063 = vmul.f32 %v7807, %v7945
    %v8064 = vmul.f32 %v7808, %v7945
    %v8065 = vmul.f32 %v7809, %v7946
    %v8066 = vmul.f32 %v7810, %v7946
    %v8067 = vmul.f32 %v7811, %v7947
    %v8068 = vmul.f32 %v7812, %v7947
    %v8069 = vmul.f32 %v7813, %v7948
    %v8070 = vmul.f32 %v7814, %v7948
    %v8071 = vmul.f32 %v7815, %v7949
    %v8072 = vmul.f32 %v7816, %v7949
    %v8073 = vmul.f32 %v7817, %v7950
    %v8074 = vmul.f32 %v7818, %v7950
    %v8075 = vmul.f32 %v7819, %v7951
    %v8076 = vmul.f32 %v7820, %v7951
    %v8077 = vmul.f32 %v7821, %v7952
    %v8078 = vmul.f32 %v7822, %v7952
    %v8079 = vmul.f32 %v7823, %v7953
    %v8080 = vmul.f32 %v7824, %v7953
    %v8081 = vmul.f32 %v7825, %v7954
    %v8082 = vmul.f32 %v7826, %v7954
    %v8083 = vld [vmem:[%s17] sm:$0x3]
    %v8085 = vlaneseq
    %v8086 = vshrl.u32 %v8085, 7
    %v8087 = vsub.s32 0, %v8086
    %v8088 = vrot.slane %v8083, %v8087
    %v8089 = vlaneseq
    %v8090 = vshrl.u32 %v8089, 7
    %v8091 = vsub.s32 1, %v8090
    %v8092 = vrot.slane %v8083, %v8091
    %v8095 = vmul.f32 %v7955, %v8088
    %v8096 = vmul.f32 %v7956, %v8092
    %v8097 = vmul.f32 %v7957, %v8088
    %v8098 = vmul.f32 %v7958, %v8092
    %v8099 = vmul.f32 %v7959, %v8088
    %v8100 = vmul.f32 %v7960, %v8092
    %v8101 = vmul.f32 %v7961, %v8088
    %v8102 = vmul.f32 %v7962, %v8092
    %v8103 = vmul.f32 %v7963, %v8088
    %v8104 = vmul.f32 %v7964, %v8092
    %v8105 = vmul.f32 %v7965, %v8088
    %v8106 = vmul.f32 %v7966, %v8092
    %v8107 = vmul.f32 %v7967, %v8088
    %v8108 = vmul.f32 %v7968, %v8092
    %v8109 = vmul.f32 %v7969, %v8088
    %v8110 = vmul.f32 %v7970, %v8092
    %v8111 = vmul.f32 %v7971, %v8088
    %v8112 = vmul.f32 %v7972, %v8092
    %v8113 = vmul.f32 %v7973, %v8088
    %v8114 = vmul.f32 %v7974, %v8092
    %v8115 = vmul.f32 %v7975, %v8088
    %v8116 = vmul.f32 %v7976, %v8092
    %v8117 = vmul.f32 %v7977, %v8088
    %v8118 = vmul.f32 %v7978, %v8092
    %v8119 = vmul.f32 %v7979, %v8088
    %v8120 = vmul.f32 %v7980, %v8092
    %v8121 = vmul.f32 %v7981, %v8088
    %v8122 = vmul.f32 %v7982, %v8092
    %v8123 = vmul.f32 %v7983, %v8088
    %v8124 = vmul.f32 %v7984, %v8092
    %v8125 = vmul.f32 %v7985, %v8088
    %v8126 = vmul.f32 %v7986, %v8092
    %v8127 = vmul.f32 %v7987, %v8088
    %v8128 = vmul.f32 %v7988, %v8092
    %v8129 = vmul.f32 %v7989, %v8088
    %v8130 = vmul.f32 %v7990, %v8092
    %v8131 = vmul.f32 %v7991, %v8088
    %v8132 = vmul.f32 %v7992, %v8092
    %v8133 = vmul.f32 %v7993, %v8088
    %v8134 = vmul.f32 %v7994, %v8092
    %v8135 = vmul.f32 %v7995, %v8088
    %v8136 = vmul.f32 %v7996, %v8092
    %v8137 = vmul.f32 %v7997, %v8088
    %v8138 = vmul.f32 %v7998, %v8092
    %v8139 = vmul.f32 %v7999, %v8088
    %v8140 = vmul.f32 %v8000, %v8092
    %v8141 = vmul.f32 %v8001, %v8088
    %v8142 = vmul.f32 %v8002, %v8092
    %v8143 = vmul.f32 %v8003, %v8088
    %v8144 = vmul.f32 %v8004, %v8092
    %v8145 = vmul.f32 %v8005, %v8088
    %v8146 = vmul.f32 %v8006, %v8092
    %v8147 = vmul.f32 %v8007, %v8088
    %v8148 = vmul.f32 %v8008, %v8092
    %v8149 = vmul.f32 %v8009, %v8088
    %v8150 = vmul.f32 %v8010, %v8092
    %v8151 = vmul.f32 %v8011, %v8088
    %v8152 = vmul.f32 %v8012, %v8092
    %v8153 = vmul.f32 %v8013, %v8088
    %v8154 = vmul.f32 %v8014, %v8092
    %v8155 = vmul.f32 %v8015, %v8088
    %v8156 = vmul.f32 %v8016, %v8092
    %v8157 = vmul.f32 %v8017, %v8088
    %v8158 = vmul.f32 %v8018, %v8092
    %v8159 = vmul.f32 %v8019, %v8088
    %v8160 = vmul.f32 %v8020, %v8092
    %v8161 = vmul.f32 %v8021, %v8088
    %v8162 = vmul.f32 %v8022, %v8092
    %v8163 = vmul.f32 %v8023, %v8088
    %v8164 = vmul.f32 %v8024, %v8092
    %v8165 = vmul.f32 %v8025, %v8088
    %v8166 = vmul.f32 %v8026, %v8092
    %v8167 = vmul.f32 %v8027, %v8088
    %v8168 = vmul.f32 %v8028, %v8092
    %v8169 = vmul.f32 %v8029, %v8088
    %v8170 = vmul.f32 %v8030, %v8092
    %v8171 = vmul.f32 %v8031, %v8088
    %v8172 = vmul.f32 %v8032, %v8092
    %v8173 = vmul.f32 %v8033, %v8088
    %v8174 = vmul.f32 %v8034, %v8092
    %v8175 = vmul.f32 %v8035, %v8088
    %v8176 = vmul.f32 %v8036, %v8092
    %v8177 = vmul.f32 %v8037, %v8088
    %v8178 = vmul.f32 %v8038, %v8092
    %v8179 = vmul.f32 %v8039, %v8088
    %v8180 = vmul.f32 %v8040, %v8092
    %v8181 = vmul.f32 %v8041, %v8088
    %v8182 = vmul.f32 %v8042, %v8092
    %v8183 = vmul.f32 %v8043, %v8088
    %v8184 = vmul.f32 %v8044, %v8092
    %v8185 = vmul.f32 %v8045, %v8088
    %v8186 = vmul.f32 %v8046, %v8092
    %v8187 = vmul.f32 %v8047, %v8088
    %v8188 = vmul.f32 %v8048, %v8092
    %v8189 = vmul.f32 %v8049, %v8088
    %v8190 = vmul.f32 %v8050, %v8092
    %v8191 = vmul.f32 %v8051, %v8088
    %v8192 = vmul.f32 %v8052, %v8092
    %v8193 = vmul.f32 %v8053, %v8088
    %v8194 = vmul.f32 %v8054, %v8092
    %v8195 = vmul.f32 %v8055, %v8088
    %v8196 = vmul.f32 %v8056, %v8092
    %v8197 = vmul.f32 %v8057, %v8088
    %v8198 = vmul.f32 %v8058, %v8092
    %v8199 = vmul.f32 %v8059, %v8088
    %v8200 = vmul.f32 %v8060, %v8092
    %v8201 = vmul.f32 %v8061, %v8088
    %v8202 = vmul.f32 %v8062, %v8092
    %v8203 = vmul.f32 %v8063, %v8088
    %v8204 = vmul.f32 %v8064, %v8092
    %v8205 = vmul.f32 %v8065, %v8088
    %v8206 = vmul.f32 %v8066, %v8092
    %v8207 = vmul.f32 %v8067, %v8088
    %v8208 = vmul.f32 %v8068, %v8092
    %v8209 = vmul.f32 %v8069, %v8088
    %v8210 = vmul.f32 %v8070, %v8092
    %v8211 = vmul.f32 %v8071, %v8088
    %v8212 = vmul.f32 %v8072, %v8092
    %v8213 = vmul.f32 %v8073, %v8088
    %v8214 = vmul.f32 %v8074, %v8092
    %v8215 = vmul.f32 %v8075, %v8088
    %v8216 = vmul.f32 %v8076, %v8092
    %v8217 = vmul.f32 %v8077, %v8088
    %v8218 = vmul.f32 %v8078, %v8092
    %v8219 = vmul.f32 %v8079, %v8088
    %v8220 = vmul.f32 %v8080, %v8092
    %v8221 = vmul.f32 %v8081, %v8088
    %v8222 = vmul.f32 %v8082, %v8092
    %v8223 = vld [vmem:[%s18] sm:$0x3]
    %v8225 = vlaneseq
    %v8226 = vshrl.u32 %v8225, 7
    %v8227 = vsub.s32 0, %v8226
    %v8228 = vrot.slane %v8223, %v8227
    %v8229 = vlaneseq
    %v8230 = vshrl.u32 %v8229, 7
    %v8231 = vsub.s32 1, %v8230
    %v8232 = vrot.slane %v8223, %v8231
    %v8235 = vadd.f32 %v8095, %v8228
    %v8236 = vadd.f32 %v8096, %v8232
    %v8237 = vadd.f32 %v8097, %v8228
    %v8238 = vadd.f32 %v8098, %v8232
    %v8239 = vadd.f32 %v8099, %v8228
    %v8240 = vadd.f32 %v8100, %v8232
    %v8241 = vadd.f32 %v8101, %v8228
    %v8242 = vadd.f32 %v8102, %v8232
    %v8243 = vadd.f32 %v8103, %v8228
    %v8244 = vadd.f32 %v8104, %v8232
    %v8245 = vadd.f32 %v8105, %v8228
    %v8246 = vadd.f32 %v8106, %v8232
    %v8247 = vadd.f32 %v8107, %v8228
    %v8248 = vadd.f32 %v8108, %v8232
    %v8249 = vadd.f32 %v8109, %v8228
    %v8250 = vadd.f32 %v8110, %v8232
    %v8251 = vadd.f32 %v8111, %v8228
    %v8252 = vadd.f32 %v8112, %v8232
    %v8253 = vadd.f32 %v8113, %v8228
    %v8254 = vadd.f32 %v8114, %v8232
    %v8255 = vadd.f32 %v8115, %v8228
    %v8256 = vadd.f32 %v8116, %v8232
    %v8257 = vadd.f32 %v8117, %v8228
    %v8258 = vadd.f32 %v8118, %v8232
    %v8259 = vadd.f32 %v8119, %v8228
    %v8260 = vadd.f32 %v8120, %v8232
    %v8261 = vadd.f32 %v8121, %v8228
    %v8262 = vadd.f32 %v8122, %v8232
    %v8263 = vadd.f32 %v8123, %v8228
    %v8264 = vadd.f32 %v8124, %v8232
    %v8265 = vadd.f32 %v8125, %v8228
    %v8266 = vadd.f32 %v8126, %v8232
    %v8267 = vadd.f32 %v8127, %v8228
    %v8268 = vadd.f32 %v8128, %v8232
    %v8269 = vadd.f32 %v8129, %v8228
    %v8270 = vadd.f32 %v8130, %v8232
    %v8271 = vadd.f32 %v8131, %v8228
    %v8272 = vadd.f32 %v8132, %v8232
    %v8273 = vadd.f32 %v8133, %v8228
    %v8274 = vadd.f32 %v8134, %v8232
    %v8275 = vadd.f32 %v8135, %v8228
    %v8276 = vadd.f32 %v8136, %v8232
    %v8277 = vadd.f32 %v8137, %v8228
    %v8278 = vadd.f32 %v8138, %v8232
    %v8279 = vadd.f32 %v8139, %v8228
    %v8280 = vadd.f32 %v8140, %v8232
    %v8281 = vadd.f32 %v8141, %v8228
    %v8282 = vadd.f32 %v8142, %v8232
    %v8283 = vadd.f32 %v8143, %v8228
    %v8284 = vadd.f32 %v8144, %v8232
    %v8285 = vadd.f32 %v8145, %v8228
    %v8286 = vadd.f32 %v8146, %v8232
    %v8287 = vadd.f32 %v8147, %v8228
    %v8288 = vadd.f32 %v8148, %v8232
    %v8289 = vadd.f32 %v8149, %v8228
    %v8290 = vadd.f32 %v8150, %v8232
    %v8291 = vadd.f32 %v8151, %v8228
    %v8292 = vadd.f32 %v8152, %v8232
    %v8293 = vadd.f32 %v8153, %v8228
    %v8294 = vadd.f32 %v8154, %v8232
    %v8295 = vadd.f32 %v8155, %v8228
    %v8296 = vadd.f32 %v8156, %v8232
    %v8297 = vadd.f32 %v8157, %v8228
    %v8298 = vadd.f32 %v8158, %v8232
    %v8299 = vadd.f32 %v8159, %v8228
    %v8300 = vadd.f32 %v8160, %v8232
    %v8301 = vadd.f32 %v8161, %v8228
    %v8302 = vadd.f32 %v8162, %v8232
    %v8303 = vadd.f32 %v8163, %v8228
    %v8304 = vadd.f32 %v8164, %v8232
    %v8305 = vadd.f32 %v8165, %v8228
    %v8306 = vadd.f32 %v8166, %v8232
    %v8307 = vadd.f32 %v8167, %v8228
    %v8308 = vadd.f32 %v8168, %v8232
    %v8309 = vadd.f32 %v8169, %v8228
    %v8310 = vadd.f32 %v8170, %v8232
    %v8311 = vadd.f32 %v8171, %v8228
    %v8312 = vadd.f32 %v8172, %v8232
    %v8313 = vadd.f32 %v8173, %v8228
    %v8314 = vadd.f32 %v8174, %v8232
    %v8315 = vadd.f32 %v8175, %v8228
    %v8316 = vadd.f32 %v8176, %v8232
    %v8317 = vadd.f32 %v8177, %v8228
    %v8318 = vadd.f32 %v8178, %v8232
    %v8319 = vadd.f32 %v8179, %v8228
    %v8320 = vadd.f32 %v8180, %v8232
    %v8321 = vadd.f32 %v8181, %v8228
    %v8322 = vadd.f32 %v8182, %v8232
    %v8323 = vadd.f32 %v8183, %v8228
    %v8324 = vadd.f32 %v8184, %v8232
    %v8325 = vadd.f32 %v8185, %v8228
    %v8326 = vadd.f32 %v8186, %v8232
    %v8327 = vadd.f32 %v8187, %v8228
    %v8328 = vadd.f32 %v8188, %v8232
    %v8329 = vadd.f32 %v8189, %v8228
    %v8330 = vadd.f32 %v8190, %v8232
    %v8331 = vadd.f32 %v8191, %v8228
    %v8332 = vadd.f32 %v8192, %v8232
    %v8333 = vadd.f32 %v8193, %v8228
    %v8334 = vadd.f32 %v8194, %v8232
    %v8335 = vadd.f32 %v8195, %v8228
    %v8336 = vadd.f32 %v8196, %v8232
    %v8337 = vadd.f32 %v8197, %v8228
    %v8338 = vadd.f32 %v8198, %v8232
    %v8339 = vadd.f32 %v8199, %v8228
    %v8340 = vadd.f32 %v8200, %v8232
    %v8341 = vadd.f32 %v8201, %v8228
    %v8342 = vadd.f32 %v8202, %v8232
    %v8343 = vadd.f32 %v8203, %v8228
    %v8344 = vadd.f32 %v8204, %v8232
    %v8345 = vadd.f32 %v8205, %v8228
    %v8346 = vadd.f32 %v8206, %v8232
    %v8347 = vadd.f32 %v8207, %v8228
    %v8348 = vadd.f32 %v8208, %v8232
    %v8349 = vadd.f32 %v8209, %v8228
    %v8350 = vadd.f32 %v8210, %v8232
    %v8351 = vadd.f32 %v8211, %v8228
    %v8352 = vadd.f32 %v8212, %v8232
    %v8353 = vadd.f32 %v8213, %v8228
    %v8354 = vadd.f32 %v8214, %v8232
    %v8355 = vadd.f32 %v8215, %v8228
    %v8356 = vadd.f32 %v8216, %v8232
    %v8357 = vadd.f32 %v8217, %v8228
    %v8358 = vadd.f32 %v8218, %v8232
    %v8359 = vadd.f32 %v8219, %v8228
    %v8360 = vadd.f32 %v8220, %v8232
    %v8361 = vadd.f32 %v8221, %v8228
    %v8362 = vadd.f32 %v8222, %v8232
    %v8363 = vmax.f32 %v8235, 0.0
    %v8364 = vmax.f32 %v8236, 0.0
    %v8365 = vmax.f32 %v8237, 0.0
    %v8366 = vmax.f32 %v8238, 0.0
    %v8367 = vmax.f32 %v8239, 0.0
    %v8368 = vmax.f32 %v8240, 0.0
    %v8369 = vmax.f32 %v8241, 0.0
    %v8370 = vmax.f32 %v8242, 0.0
    %v8371 = vmax.f32 %v8243, 0.0
    %v8372 = vmax.f32 %v8244, 0.0
    %v8373 = vmax.f32 %v8245, 0.0
    %v8374 = vmax.f32 %v8246, 0.0
    %v8375 = vmax.f32 %v8247, 0.0
    %v8376 = vmax.f32 %v8248, 0.0
    %v8377 = vmax.f32 %v8249, 0.0
    %v8378 = vmax.f32 %v8250, 0.0
    %v8379 = vmax.f32 %v8251, 0.0
    %v8380 = vmax.f32 %v8252, 0.0
    %v8381 = vmax.f32 %v8253, 0.0
    %v8382 = vmax.f32 %v8254, 0.0
    %v8383 = vmax.f32 %v8255, 0.0
    %v8384 = vmax.f32 %v8256, 0.0
    %v8385 = vmax.f32 %v8257, 0.0
    %v8386 = vmax.f32 %v8258, 0.0
    %v8387 = vmax.f32 %v8259, 0.0
    %v8388 = vmax.f32 %v8260, 0.0
    %v8389 = vmax.f32 %v8261, 0.0
    %v8390 = vmax.f32 %v8262, 0.0
    %v8391 = vmax.f32 %v8263, 0.0
    %v8392 = vmax.f32 %v8264, 0.0
    %v8393 = vmax.f32 %v8265, 0.0
    %v8394 = vmax.f32 %v8266, 0.0
    %v8395 = vmax.f32 %v8267, 0.0
    %v8396 = vmax.f32 %v8268, 0.0
    %v8397 = vmax.f32 %v8269, 0.0
    %v8398 = vmax.f32 %v8270, 0.0
    %v8399 = vmax.f32 %v8271, 0.0
    %v8400 = vmax.f32 %v8272, 0.0
    %v8401 = vmax.f32 %v8273, 0.0
    %v8402 = vmax.f32 %v8274, 0.0
    %v8403 = vmax.f32 %v8275, 0.0
    %v8404 = vmax.f32 %v8276, 0.0
    %v8405 = vmax.f32 %v8277, 0.0
    %v8406 = vmax.f32 %v8278, 0.0
    %v8407 = vmax.f32 %v8279, 0.0
    %v8408 = vmax.f32 %v8280, 0.0
    %v8409 = vmax.f32 %v8281, 0.0
    %v8410 = vmax.f32 %v8282, 0.0
    %v8411 = vmax.f32 %v8283, 0.0
    %v8412 = vmax.f32 %v8284, 0.0
    %v8413 = vmax.f32 %v8285, 0.0
    %v8414 = vmax.f32 %v8286, 0.0
    %v8415 = vmax.f32 %v8287, 0.0
    %v8416 = vmax.f32 %v8288, 0.0
    %v8417 = vmax.f32 %v8289, 0.0
    %v8418 = vmax.f32 %v8290, 0.0
    %v8419 = vmax.f32 %v8291, 0.0
    %v8420 = vmax.f32 %v8292, 0.0
    %v8421 = vmax.f32 %v8293, 0.0
    %v8422 = vmax.f32 %v8294, 0.0
    %v8423 = vmax.f32 %v8295, 0.0
    %v8424 = vmax.f32 %v8296, 0.0
    %v8425 = vmax.f32 %v8297, 0.0
    %v8426 = vmax.f32 %v8298, 0.0
    %v8427 = vmax.f32 %v8299, 0.0
    %v8428 = vmax.f32 %v8300, 0.0
    %v8429 = vmax.f32 %v8301, 0.0
    %v8430 = vmax.f32 %v8302, 0.0
    %v8431 = vmax.f32 %v8303, 0.0
    %v8432 = vmax.f32 %v8304, 0.0
    %v8433 = vmax.f32 %v8305, 0.0
    %v8434 = vmax.f32 %v8306, 0.0
    %v8435 = vmax.f32 %v8307, 0.0
    %v8436 = vmax.f32 %v8308, 0.0
    %v8437 = vmax.f32 %v8309, 0.0
    %v8438 = vmax.f32 %v8310, 0.0
    %v8439 = vmax.f32 %v8311, 0.0
    %v8440 = vmax.f32 %v8312, 0.0
    %v8441 = vmax.f32 %v8313, 0.0
    %v8442 = vmax.f32 %v8314, 0.0
    %v8443 = vmax.f32 %v8315, 0.0
    %v8444 = vmax.f32 %v8316, 0.0
    %v8445 = vmax.f32 %v8317, 0.0
    %v8446 = vmax.f32 %v8318, 0.0
    %v8447 = vmax.f32 %v8319, 0.0
    %v8448 = vmax.f32 %v8320, 0.0
    %v8449 = vmax.f32 %v8321, 0.0
    %v8450 = vmax.f32 %v8322, 0.0
    %v8451 = vmax.f32 %v8323, 0.0
    %v8452 = vmax.f32 %v8324, 0.0
    %v8453 = vmax.f32 %v8325, 0.0
    %v8454 = vmax.f32 %v8326, 0.0
    %v8455 = vmax.f32 %v8327, 0.0
    %v8456 = vmax.f32 %v8328, 0.0
    %v8457 = vmax.f32 %v8329, 0.0
    %v8458 = vmax.f32 %v8330, 0.0
    %v8459 = vmax.f32 %v8331, 0.0
    %v8460 = vmax.f32 %v8332, 0.0
    %v8461 = vmax.f32 %v8333, 0.0
    %v8462 = vmax.f32 %v8334, 0.0
    %v8463 = vmax.f32 %v8335, 0.0
    %v8464 = vmax.f32 %v8336, 0.0
    %v8465 = vmax.f32 %v8337, 0.0
    %v8466 = vmax.f32 %v8338, 0.0
    %v8467 = vmax.f32 %v8339, 0.0
    %v8468 = vmax.f32 %v8340, 0.0
    %v8469 = vmax.f32 %v8341, 0.0
    %v8470 = vmax.f32 %v8342, 0.0
    %v8471 = vmax.f32 %v8343, 0.0
    %v8472 = vmax.f32 %v8344, 0.0
    %v8473 = vmax.f32 %v8345, 0.0
    %v8474 = vmax.f32 %v8346, 0.0
    %v8475 = vmax.f32 %v8347, 0.0
    %v8476 = vmax.f32 %v8348, 0.0
    %v8477 = vmax.f32 %v8349, 0.0
    %v8478 = vmax.f32 %v8350, 0.0
    %v8479 = vmax.f32 %v8351, 0.0
    %v8480 = vmax.f32 %v8352, 0.0
    %v8481 = vmax.f32 %v8353, 0.0
    %v8482 = vmax.f32 %v8354, 0.0
    %v8483 = vmax.f32 %v8355, 0.0
    %v8484 = vmax.f32 %v8356, 0.0
    %v8485 = vmax.f32 %v8357, 0.0
    %v8486 = vmax.f32 %v8358, 0.0
    %v8487 = vmax.f32 %v8359, 0.0
    %v8488 = vmax.f32 %v8360, 0.0
    %v8489 = vmax.f32 %v8361, 0.0
    %v8490 = vmax.f32 %v8362, 0.0
    %v8491 = vld [vmem:[#allocation8] sm:$0xff]
    %v8492 = vld [vmem:[#allocation8 + $0x8] sm:$0xff]
    %v8493 = vld [vmem:[#allocation8 + $0x10] sm:$0xff]
    %v8494 = vld [vmem:[#allocation8 + $0x18] sm:$0xff]
    %v8495 = vld [vmem:[#allocation8 + $0x20] sm:$0xff]
    %v8496 = vld [vmem:[#allocation8 + $0x28] sm:$0xff]
    %v8497 = vld [vmem:[#allocation8 + $0x30] sm:$0xff]
    %v8498 = vld [vmem:[#allocation8 + $0x38] sm:$0xff]
    %v8499 = vld [vmem:[#allocation8 + $0x40] sm:$0xff]
    %v8500 = vld [vmem:[#allocation8 + $0x48] sm:$0xff]
    %v8501 = vld [vmem:[#allocation8 + $0x50] sm:$0xff]
    %v8502 = vld [vmem:[#allocation8 + $0x58] sm:$0xff]
    %v8503 = vld [vmem:[#allocation8 + $0x60] sm:$0xff]
    %v8504 = vld [vmem:[#allocation8 + $0x68] sm:$0xff]
    %v8505 = vld [vmem:[#allocation8 + $0x70] sm:$0xff]
    %v8506 = vld [vmem:[#allocation8 + $0x78] sm:$0xff]
    %v8507 = vld [vmem:[#allocation8 + $0x80] sm:$0xff]
    %v8508 = vld [vmem:[#allocation8 + $0x88] sm:$0xff]
    %v8509 = vld [vmem:[#allocation8 + $0x90] sm:$0xff]
    %v8510 = vld [vmem:[#allocation8 + $0x98] sm:$0xff]
    %v8511 = vld [vmem:[#allocation8 + $0xa0] sm:$0xff]
    %v8512 = vld [vmem:[#allocation8 + $0xa8] sm:$0xff]
    %v8513 = vld [vmem:[#allocation8 + $0xb0] sm:$0xff]
    %v8514 = vld [vmem:[#allocation8 + $0xb8] sm:$0xff]
    %v8515 = vld [vmem:[#allocation8 + $0xc0] sm:$0xff]
    %v8516 = vld [vmem:[#allocation8 + $0xc8] sm:$0xff]
    %v8517 = vld [vmem:[#allocation8 + $0xd0] sm:$0xff]
    %v8518 = vld [vmem:[#allocation8 + $0xd8] sm:$0xff]
    %v8519 = vld [vmem:[#allocation8 + $0xe0] sm:$0xff]
    %v8520 = vld [vmem:[#allocation8 + $0xe8] sm:$0xff]
    %v8521 = vld [vmem:[#allocation8 + $0xf0] sm:$0xff]
    %v8522 = vld [vmem:[#allocation8 + $0xf8] sm:$0xff]
    %v8523 = vld [vmem:[%s20] sm:$0x1]
    %v8525 = vlaneseq
    %v8526 = vshrl.u32 %v8525, 7
    %v8527 = vsub.s32 0, %v8526
    %v8528 = vrot.slane %v8523, %v8527
    %8530 = vmatprep.subr.mxu0 0.0
    %8531 = vmatpush1.msra.mxu0 %v8491
    %8532 = vmatprep.subr.mxu0 0.0
    %8533 = vmatpush1.msra.mxu0 %v8492
    %8534 = vmatprep.subr.mxu0 0.0
    %8535 = vmatpush1.msra.mxu0 %v8493
    %8536 = vmatprep.subr.mxu0 0.0
    %8537 = vmatpush1.msra.mxu0 %v8494
    %8538 = vmatprep.subr.mxu0 0.0
    %8539 = vmatpush1.msra.mxu0 %v8495
    %8540 = vmatprep.subr.mxu0 0.0
    %8541 = vmatpush1.msra.mxu0 %v8496
    %8542 = vmatprep.subr.mxu0 0.0
    %8543 = vmatpush1.msra.mxu0 %v8497
    %8544 = vmatprep.subr.mxu0 0.0
    %8545 = vmatpush1.msra.mxu0 %v8498
    %8546 = vmatprep.subr.mxu0 0.0
    %8547 = vmatpush1.msra.mxu0 %v8499
    %8548 = vmatprep.subr.mxu0 0.0
    %8549 = vmatpush1.msra.mxu0 %v8500
    %8550 = vmatprep.subr.mxu0 0.0
    %8551 = vmatpush1.msra.mxu0 %v8501
    %8552 = vmatprep.subr.mxu0 0.0
    %8553 = vmatpush1.msra.mxu0 %v8502
    %8554 = vmatprep.subr.mxu0 0.0
    %8555 = vmatpush1.msra.mxu0 %v8503
    %8556 = vmatprep.subr.mxu0 0.0
    %8557 = vmatpush1.msra.mxu0 %v8504
    %8558 = vmatprep.subr.mxu0 0.0
    %8559 = vmatpush1.msra.mxu0 %v8505
    %8560 = vmatprep.subr.mxu0 0.0
    %8561 = vmatpush1.msra.mxu0 %v8506
    %8562 = vmatprep.subr.mxu0 0.0
    %8563 = vmatpush1.msra.mxu0 %v8507
    %8564 = vmatprep.subr.mxu0 0.0
    %8565 = vmatpush1.msra.mxu0 %v8508
    %8566 = vmatprep.subr.mxu0 0.0
    %8567 = vmatpush1.msra.mxu0 %v8509
    %8568 = vmatprep.subr.mxu0 0.0
    %8569 = vmatpush1.msra.mxu0 %v8510
    %8570 = vmatprep.subr.mxu0 0.0
    %8571 = vmatpush1.msra.mxu0 %v8511
    %8572 = vmatprep.subr.mxu0 0.0
    %8573 = vmatpush1.msra.mxu0 %v8512
    %8574 = vmatprep.subr.mxu0 0.0
    %8575 = vmatpush1.msra.mxu0 %v8513
    %8576 = vmatprep.subr.mxu0 0.0
    %8577 = vmatpush1.msra.mxu0 %v8514
    %8578 = vmatprep.subr.mxu0 0.0
    %8579 = vmatpush1.msra.mxu0 %v8515
    %8580 = vmatprep.subr.mxu0 0.0
    %8581 = vmatpush1.msra.mxu0 %v8516
    %8582 = vmatprep.subr.mxu0 0.0
    %8583 = vmatpush1.msra.mxu0 %v8517
    %8584 = vmatprep.subr.mxu0 0.0
    %8585 = vmatpush1.msra.mxu0 %v8518
    %8586 = vmatprep.subr.mxu0 0.0
    %8587 = vmatpush1.msra.mxu0 %v8519
    %8588 = vmatprep.subr.mxu0 0.0
    %8589 = vmatpush1.msra.mxu0 %v8520
    %8590 = vmatprep.subr.mxu0 0.0
    %8591 = vmatpush1.msra.mxu0 %v8521
    %8592 = vmatprep.subr.mxu0 0.0
    %8593 = vmatpush1.msra.mxu0 %v8522
    %8594 = vmatprep.mubr.f32.mxu0 %v8364
    %8595 = vmatmul.mubr.f32.gmra.mrb[0].mxu0 %v8363
    %v8596 = vpop.f32.mrb[0].mxu0
    %v8597 = vadd.f32 %v8528, %v8596
    %v8598 = vpop.f32.mrb[0].mxu0
    %8599 = vmatprep.mubr.f32.mxu0 %v8366
    %8600 = vmatmul.mubr.f32.gmra.mrb[0].mxu0 %v8365
    %v8601 = vpop.f32.mrb[0].mxu0
    %v8602 = vadd.f32 %v8528, %v8601
    %v8603 = vpop.f32.mrb[0].mxu0
    %8604 = vmatprep.mubr.f32.mxu0 %v8368
    %8605 = vmatmul.mubr.f32.gmra.mrb[0].mxu0 %v8367
    %v8606 = vpop.f32.mrb[0].mxu0
    %v8607 = vadd.f32 %v8528, %v8606
    %v8608 = vpop.f32.mrb[0].mxu0
    %8609 = vmatprep.mubr.f32.mxu0 %v8370
    %8610 = vmatmul.mubr.f32.gmra.mrb[0].mxu0 %v8369
    %v8611 = vpop.f32.mrb[0].mxu0
    %v8612 = vadd.f32 %v8528, %v8611
    %v8613 = vpop.f32.mrb[0].mxu0
    %8614 = vmatprep.mubr.f32.mxu0 %v8372
    %8615 = vmatmul.mubr.f32.gmra.mrb[0].mxu0 %v8371
    %v8616 = vpop.f32.mrb[0].mxu0
    %v8617 = vadd.f32 %v8528, %v8616
    %v8618 = vpop.f32.mrb[0].mxu0
    %8619 = vmatprep.mubr.f32.mxu0 %v8374
    %8620 = vmatmul.mubr.f32.gmra.mrb[0].mxu0 %v8373
    %v8621 = vpop.f32.mrb[0].mxu0
    %v8622 = vadd.f32 %v8528, %v8621
    %v8623 = vpop.f32.mrb[0].mxu0
    %8624 = vmatprep.mubr.f32.mxu0 %v8376
    %8625 = vmatmul.mubr.f32.gmra.mrb[0].mxu0 %v8375
    %v8626 = vpop.f32.mrb[0].mxu0
    %v8627 = vadd.f32 %v8528, %v8626
    %v8628 = vpop.f32.mrb[0].mxu0
    %8629 = vmatprep.mubr.f32.mxu0 %v8378
    %8630 = vmatmul.mubr.f32.gmra.mrb[0].mxu0 %v8377
    %v8631 = vpop.f32.mrb[0].mxu0
    %v8632 = vadd.f32 %v8528, %v8631
    %v8633 = vpop.f32.mrb[0].mxu0
    %8634 = vmatprep.mubr.f32.mxu0 %v8380
    %8635 = vmatmul.mubr.f32.gmra.mrb[0].mxu0 %v8379
    %v8636 = vpop.f32.mrb[0].mxu0
    %v8637 = vadd.f32 %v8528, %v8636
    %v8638 = vpop.f32.mrb[0].mxu0
    %8639 = vmatprep.mubr.f32.mxu0 %v8382
    %8640 = vmatmul.mubr.f32.gmra.mrb[0].mxu0 %v8381
    %v8641 = vpop.f32.mrb[0].mxu0
    %v8642 = vadd.f32 %v8528, %v8641
    %v8643 = vpop.f32.mrb[0].mxu0
    %8644 = vmatprep.mubr.f32.mxu0 %v8384
    %8645 = vmatmul.mubr.f32.gmra.mrb[0].mxu0 %v8383
    %v8646 = vpop.f32.mrb[0].mxu0
    %v8647 = vadd.f32 %v8528, %v8646
    %v8648 = vpop.f32.mrb[0].mxu0
    %8649 = vmatprep.mubr.f32.mxu0 %v8386
    %8650 = vmatmul.mubr.f32.gmra.mrb[0].mxu0 %v8385
    %v8651 = vpop.f32.mrb[0].mxu0
    %v8652 = vadd.f32 %v8528, %v8651
    %v8653 = vpop.f32.mrb[0].mxu0
    %8654 = vmatprep.mubr.f32.mxu0 %v8388
    %8655 = vmatmul.mubr.f32.gmra.mrb[0].mxu0 %v8387
    %v8656 = vpop.f32.mrb[0].mxu0
    %v8657 = vadd.f32 %v8528, %v8656
    %v8658 = vpop.f32.mrb[0].mxu0
    %8659 = vmatprep.mubr.f32.mxu0 %v8390
    %8660 = vmatmul.mubr.f32.gmra.mrb[0].mxu0 %v8389
    %v8661 = vpop.f32.mrb[0].mxu0
    %v8662 = vadd.f32 %v8528, %v8661
    %v8663 = vpop.f32.mrb[0].mxu0
    %8664 = vmatprep.mubr.f32.mxu0 %v8392
    %8665 = vmatmul.mubr.f32.gmra.mrb[0].mxu0 %v8391
    %v8666 = vpop.f32.mrb[0].mxu0
    %v8667 = vadd.f32 %v8528, %v8666
    %v8668 = vpop.f32.mrb[0].mxu0
    %8669 = vmatprep.mubr.f32.mxu0 %v8394
    %8670 = vmatmul.mubr.f32.gmra.mrb[0].mxu0 %v8393
    %v8671 = vpop.f32.mrb[0].mxu0
    %v8672 = vadd.f32 %v8528, %v8671
    %v8673 = vpop.f32.mrb[0].mxu0
    %8674 = vmatprep.mubr.f32.mxu0 %v8396
    %8675 = vmatmul.mubr.f32.gmra.mrb[0].mxu0 %v8395
    %v8676 = vpop.f32.mrb[0].mxu0
    %v8677 = vadd.f32 %v8528, %v8676
    %v8678 = vpop.f32.mrb[0].mxu0
    %8679 = vmatprep.mubr.f32.mxu0 %v8398
    %8680 = vmatmul.mubr.f32.gmra.mrb[0].mxu0 %v8397
    %v8681 = vpop.f32.mrb[0].mxu0
    %v8682 = vadd.f32 %v8528, %v8681
    %v8683 = vpop.f32.mrb[0].mxu0
    %8684 = vmatprep.mubr.f32.mxu0 %v8400
    %8685 = vmatmul.mubr.f32.gmra.mrb[0].mxu0 %v8399
    %v8686 = vpop.f32.mrb[0].mxu0
    %v8687 = vadd.f32 %v8528, %v8686
    %v8688 = vpop.f32.mrb[0].mxu0
    %8689 = vmatprep.mubr.f32.mxu0 %v8402
    %8690 = vmatmul.mubr.f32.gmra.mrb[0].mxu0 %v8401
    %v8691 = vpop.f32.mrb[0].mxu0
    %v8692 = vadd.f32 %v8528, %v8691
    %v8693 = vpop.f32.mrb[0].mxu0
    %8694 = vmatprep.mubr.f32.mxu0 %v8404
    %8695 = vmatmul.mubr.f32.gmra.mrb[0].mxu0 %v8403
    %v8696 = vpop.f32.mrb[0].mxu0
    %v8697 = vadd.f32 %v8528, %v8696
    %v8698 = vpop.f32.mrb[0].mxu0
    %8699 = vmatprep.mubr.f32.mxu0 %v8406
    %8700 = vmatmul.mubr.f32.gmra.mrb[0].mxu0 %v8405
    %v8701 = vpop.f32.mrb[0].mxu0
    %v8702 = vadd.f32 %v8528, %v8701
    %v8703 = vpop.f32.mrb[0].mxu0
    %8704 = vmatprep.mubr.f32.mxu0 %v8408
    %8705 = vmatmul.mubr.f32.gmra.mrb[0].mxu0 %v8407
    %v8706 = vpop.f32.mrb[0].mxu0
    %v8707 = vadd.f32 %v8528, %v8706
    %v8708 = vpop.f32.mrb[0].mxu0
    %8709 = vmatprep.mubr.f32.mxu0 %v8410
    %8710 = vmatmul.mubr.f32.gmra.mrb[0].mxu0 %v8409
    %v8711 = vpop.f32.mrb[0].mxu0
    %v8712 = vadd.f32 %v8528, %v8711
    %v8713 = vpop.f32.mrb[0].mxu0
    %8714 = vmatprep.mubr.f32.mxu0 %v8412
    %8715 = vmatmul.mubr.f32.gmra.mrb[0].mxu0 %v8411
    %v8716 = vpop.f32.mrb[0].mxu0
    %v8717 = vadd.f32 %v8528, %v8716
    %v8718 = vpop.f32.mrb[0].mxu0
    %8719 = vmatprep.mubr.f32.mxu0 %v8414
    %8720 = vmatmul.mubr.f32.gmra.mrb[0].mxu0 %v8413
    %v8721 = vpop.f32.mrb[0].mxu0
    %v8722 = vadd.f32 %v8528, %v8721
    %v8723 = vpop.f32.mrb[0].mxu0
    %8724 = vmatprep.mubr.f32.mxu0 %v8416
    %8725 = vmatmul.mubr.f32.gmra.mrb[0].mxu0 %v8415
    %v8726 = vpop.f32.mrb[0].mxu0
    %v8727 = vadd.f32 %v8528, %v8726
    %v8728 = vpop.f32.mrb[0].mxu0
    %8729 = vmatprep.mubr.f32.mxu0 %v8418
    %8730 = vmatmul.mubr.f32.gmra.mrb[0].mxu0 %v8417
    %v8731 = vpop.f32.mrb[0].mxu0
    %v8732 = vadd.f32 %v8528, %v8731
    %v8733 = vpop.f32.mrb[0].mxu0
    %8734 = vmatprep.mubr.f32.mxu0 %v8420
    %8735 = vmatmul.mubr.f32.gmra.mrb[0].mxu0 %v8419
    %v8736 = vpop.f32.mrb[0].mxu0
    %v8737 = vadd.f32 %v8528, %v8736
    %v8738 = vpop.f32.mrb[0].mxu0
    %8739 = vmatprep.mubr.f32.mxu0 %v8422
    %8740 = vmatmul.mubr.f32.gmra.mrb[0].mxu0 %v8421
    %v8741 = vpop.f32.mrb[0].mxu0
    %v8742 = vadd.f32 %v8528, %v8741
    %v8743 = vpop.f32.mrb[0].mxu0
    %8744 = vmatprep.mubr.f32.mxu0 %v8424
    %8745 = vmatmul.mubr.f32.gmra.mrb[0].mxu0 %v8423
    %v8746 = vpop.f32.mrb[0].mxu0
    %v8747 = vadd.f32 %v8528, %v8746
    %v8748 = vpop.f32.mrb[0].mxu0
    %8749 = vmatprep.mubr.f32.mxu0 %v8426
    %8750 = vmatmul.mubr.f32.gmra.mrb[0].mxu0 %v8425
    %v8751 = vpop.f32.mrb[0].mxu0
    %v8752 = vadd.f32 %v8528, %v8751
    %v8753 = vpop.f32.mrb[0].mxu0
    %8754 = vmatprep.mubr.f32.mxu0 %v8428
    %8755 = vmatmul.mubr.f32.gmra.mrb[0].mxu0 %v8427
    %v8756 = vpop.f32.mrb[0].mxu0
    %v8757 = vadd.f32 %v8528, %v8756
    %v8758 = vpop.f32.mrb[0].mxu0
    %8759 = vmatprep.mubr.f32.mxu0 %v8430
    %8760 = vmatmul.mubr.f32.gmra.mrb[0].mxu0 %v8429
    %v8761 = vpop.f32.mrb[0].mxu0
    %v8762 = vadd.f32 %v8528, %v8761
    %v8763 = vpop.f32.mrb[0].mxu0
    %8764 = vmatprep.mubr.f32.mxu0 %v8432
    %8765 = vmatmul.mubr.f32.gmra.mrb[0].mxu0 %v8431
    %v8766 = vpop.f32.mrb[0].mxu0
    %v8767 = vadd.f32 %v8528, %v8766
    %v8768 = vpop.f32.mrb[0].mxu0
    %8769 = vmatprep.mubr.f32.mxu0 %v8434
    %8770 = vmatmul.mubr.f32.gmra.mrb[0].mxu0 %v8433
    %v8771 = vpop.f32.mrb[0].mxu0
    %v8772 = vadd.f32 %v8528, %v8771
    %v8773 = vpop.f32.mrb[0].mxu0
    %8774 = vmatprep.mubr.f32.mxu0 %v8436
    %8775 = vmatmul.mubr.f32.gmra.mrb[0].mxu0 %v8435
    %v8776 = vpop.f32.mrb[0].mxu0
    %v8777 = vadd.f32 %v8528, %v8776
    %v8778 = vpop.f32.mrb[0].mxu0
    %8779 = vmatprep.mubr.f32.mxu0 %v8438
    %8780 = vmatmul.mubr.f32.gmra.mrb[0].mxu0 %v8437
    %v8781 = vpop.f32.mrb[0].mxu0
    %v8782 = vadd.f32 %v8528, %v8781
    %v8783 = vpop.f32.mrb[0].mxu0
    %8784 = vmatprep.mubr.f32.mxu0 %v8440
    %8785 = vmatmul.mubr.f32.gmra.mrb[0].mxu0 %v8439
    %v8786 = vpop.f32.mrb[0].mxu0
    %v8787 = vadd.f32 %v8528, %v8786
    %v8788 = vpop.f32.mrb[0].mxu0
    %8789 = vmatprep.mubr.f32.mxu0 %v8442
    %8790 = vmatmul.mubr.f32.gmra.mrb[0].mxu0 %v8441
    %v8791 = vpop.f32.mrb[0].mxu0
    %v8792 = vadd.f32 %v8528, %v8791
    %v8793 = vpop.f32.mrb[0].mxu0
    %8794 = vmatprep.mubr.f32.mxu0 %v8444
    %8795 = vmatmul.mubr.f32.gmra.mrb[0].mxu0 %v8443
    %v8796 = vpop.f32.mrb[0].mxu0
    %v8797 = vadd.f32 %v8528, %v8796
    %v8798 = vpop.f32.mrb[0].mxu0
    %8799 = vmatprep.mubr.f32.mxu0 %v8446
    %8800 = vmatmul.mubr.f32.gmra.mrb[0].mxu0 %v8445
    %v8801 = vpop.f32.mrb[0].mxu0
    %v8802 = vadd.f32 %v8528, %v8801
    %v8803 = vpop.f32.mrb[0].mxu0
    %8804 = vmatprep.mubr.f32.mxu0 %v8448
    %8805 = vmatmul.mubr.f32.gmra.mrb[0].mxu0 %v8447
    %v8806 = vpop.f32.mrb[0].mxu0
    %v8807 = vadd.f32 %v8528, %v8806
    %v8808 = vpop.f32.mrb[0].mxu0
    %8809 = vmatprep.mubr.f32.mxu0 %v8450
    %8810 = vmatmul.mubr.f32.gmra.mrb[0].mxu0 %v8449
    %v8811 = vpop.f32.mrb[0].mxu0
    %v8812 = vadd.f32 %v8528, %v8811
    %v8813 = vpop.f32.mrb[0].mxu0
    %8814 = vmatprep.mubr.f32.mxu0 %v8452
    %8815 = vmatmul.mubr.f32.gmra.mrb[0].mxu0 %v8451
    %v8816 = vpop.f32.mrb[0].mxu0
    %v8817 = vadd.f32 %v8528, %v8816
    %v8818 = vpop.f32.mrb[0].mxu0
    %8819 = vmatprep.mubr.f32.mxu0 %v8454
    %8820 = vmatmul.mubr.f32.gmra.mrb[0].mxu0 %v8453
    %v8821 = vpop.f32.mrb[0].mxu0
    %v8822 = vadd.f32 %v8528, %v8821
    %v8823 = vpop.f32.mrb[0].mxu0
    %8824 = vmatprep.mubr.f32.mxu0 %v8456
    %8825 = vmatmul.mubr.f32.gmra.mrb[0].mxu0 %v8455
    %v8826 = vpop.f32.mrb[0].mxu0
    %v8827 = vadd.f32 %v8528, %v8826
    %v8828 = vpop.f32.mrb[0].mxu0
    %8829 = vmatprep.mubr.f32.mxu0 %v8458
    %8830 = vmatmul.mubr.f32.gmra.mrb[0].mxu0 %v8457
    %v8831 = vpop.f32.mrb[0].mxu0
    %v8832 = vadd.f32 %v8528, %v8831
    %v8833 = vpop.f32.mrb[0].mxu0
    %8834 = vmatprep.mubr.f32.mxu0 %v8460
    %8835 = vmatmul.mubr.f32.gmra.mrb[0].mxu0 %v8459
    %v8836 = vpop.f32.mrb[0].mxu0
    %v8837 = vadd.f32 %v8528, %v8836
    %v8838 = vpop.f32.mrb[0].mxu0
    %8839 = vmatprep.mubr.f32.mxu0 %v8462
    %8840 = vmatmul.mubr.f32.gmra.mrb[0].mxu0 %v8461
    %v8841 = vpop.f32.mrb[0].mxu0
    %v8842 = vadd.f32 %v8528, %v8841
    %v8843 = vpop.f32.mrb[0].mxu0
    %8844 = vmatprep.mubr.f32.mxu0 %v8464
    %8845 = vmatmul.mubr.f32.gmra.mrb[0].mxu0 %v8463
    %v8846 = vpop.f32.mrb[0].mxu0
    %v8847 = vadd.f32 %v8528, %v8846
    %v8848 = vpop.f32.mrb[0].mxu0
    %8849 = vmatprep.mubr.f32.mxu0 %v8466
    %8850 = vmatmul.mubr.f32.gmra.mrb[0].mxu0 %v8465
    %v8851 = vpop.f32.mrb[0].mxu0
    %v8852 = vadd.f32 %v8528, %v8851
    %v8853 = vpop.f32.mrb[0].mxu0
    %8854 = vmatprep.mubr.f32.mxu0 %v8468
    %8855 = vmatmul.mubr.f32.gmra.mrb[0].mxu0 %v8467
    %v8856 = vpop.f32.mrb[0].mxu0
    %v8857 = vadd.f32 %v8528, %v8856
    %v8858 = vpop.f32.mrb[0].mxu0
    %8859 = vmatprep.mubr.f32.mxu0 %v8470
    %8860 = vmatmul.mubr.f32.gmra.mrb[0].mxu0 %v8469
    %v8861 = vpop.f32.mrb[0].mxu0
    %v8862 = vadd.f32 %v8528, %v8861
    %v8863 = vpop.f32.mrb[0].mxu0
    %8864 = vmatprep.mubr.f32.mxu0 %v8472
    %8865 = vmatmul.mubr.f32.gmra.mrb[0].mxu0 %v8471
    %v8866 = vpop.f32.mrb[0].mxu0
    %v8867 = vadd.f32 %v8528, %v8866
    %v8868 = vpop.f32.mrb[0].mxu0
    %8869 = vmatprep.mubr.f32.mxu0 %v8474
    %8870 = vmatmul.mubr.f32.gmra.mrb[0].mxu0 %v8473
    %v8871 = vpop.f32.mrb[0].mxu0
    %v8872 = vadd.f32 %v8528, %v8871
    %v8873 = vpop.f32.mrb[0].mxu0
    %8874 = vmatprep.mubr.f32.mxu0 %v8476
    %8875 = vmatmul.mubr.f32.gmra.mrb[0].mxu0 %v8475
    %v8876 = vpop.f32.mrb[0].mxu0
    %v8877 = vadd.f32 %v8528, %v8876
    %v8878 = vpop.f32.mrb[0].mxu0
    %8879 = vmatprep.mubr.f32.mxu0 %v8478
    %8880 = vmatmul.mubr.f32.gmra.mrb[0].mxu0 %v8477
    %v8881 = vpop.f32.mrb[0].mxu0
    %v8882 = vadd.f32 %v8528, %v8881
    %v8883 = vpop.f32.mrb[0].mxu0
    %8884 = vmatprep.mubr.f32.mxu0 %v8480
    %8885 = vmatmul.mubr.f32.gmra.mrb[0].mxu0 %v8479
    %v8886 = vpop.f32.mrb[0].mxu0
    %v8887 = vadd.f32 %v8528, %v8886
    %v8888 = vpop.f32.mrb[0].mxu0
    %8889 = vmatprep.mubr.f32.mxu0 %v8482
    %8890 = vmatmul.mubr.f32.gmra.mrb[0].mxu0 %v8481
    %v8891 = vpop.f32.mrb[0].mxu0
    %v8892 = vadd.f32 %v8528, %v8891
    %v8893 = vpop.f32.mrb[0].mxu0
    %8894 = vmatprep.mubr.f32.mxu0 %v8484
    %8895 = vmatmul.mubr.f32.gmra.mrb[0].mxu0 %v8483
    %v8896 = vpop.f32.mrb[0].mxu0
    %v8897 = vadd.f32 %v8528, %v8896
    %v8898 = vpop.f32.mrb[0].mxu0
    %8899 = vmatprep.mubr.f32.mxu0 %v8486
    %8900 = vmatmul.mubr.f32.gmra.mrb[0].mxu0 %v8485
    %v8901 = vpop.f32.mrb[0].mxu0
    %v8902 = vadd.f32 %v8528, %v8901
    %v8903 = vpop.f32.mrb[0].mxu0
    %8904 = vmatprep.mubr.f32.mxu0 %v8488
    %8905 = vmatmul.mubr.f32.gmra.mrb[0].mxu0 %v8487
    %v8906 = vpop.f32.mrb[0].mxu0
    %v8907 = vadd.f32 %v8528, %v8906
    %v8908 = vpop.f32.mrb[0].mxu0
    %8909 = vmatprep.mubr.f32.mxu0 %v8490
    %8910 = vmatmul.mubr.f32.gmra.mrb[0].mxu0 %v8489
    %v8911 = vpop.f32.mrb[0].mxu0
    %v8912 = vadd.f32 %v8528, %v8911
    %v8913 = vpop.f32.mrb[0].mxu0
    %8914 = vdwg.mxu0
    %8915 = vadd.xlane.f32.xlu0 %v8597
    %v8916 = vpop.xlane.xlu0 %8915
    %8917 = vadd.xlane.f32.xlu0 %v8602
    %v8918 = vpop.xlane.xlu0 %8917
    %8919 = vadd.xlane.f32.xlu0 %v8607
    %v8920 = vpop.xlane.xlu0 %8919
    %8921 = vadd.xlane.f32.xlu0 %v8612
    %v8922 = vpop.xlane.xlu0 %8921
    %8923 = vadd.xlane.f32.xlu0 %v8617
    %v8924 = vpop.xlane.xlu0 %8923
    %8925 = vadd.xlane.f32.xlu0 %v8622
    %v8926 = vpop.xlane.xlu0 %8925
    %8927 = vadd.xlane.f32.xlu0 %v8627
    %v8928 = vpop.xlane.xlu0 %8927
    %8929 = vadd.xlane.f32.xlu0 %v8632
    %v8930 = vpop.xlane.xlu0 %8929
    %8931 = vadd.xlane.f32.xlu0 %v8637
    %v8932 = vpop.xlane.xlu0 %8931
    %8933 = vadd.xlane.f32.xlu0 %v8642
    %v8934 = vpop.xlane.xlu0 %8933
    %8935 = vadd.xlane.f32.xlu0 %v8647
    %v8936 = vpop.xlane.xlu0 %8935
    %8937 = vadd.xlane.f32.xlu0 %v8652
    %v8938 = vpop.xlane.xlu0 %8937
    %8939 = vadd.xlane.f32.xlu0 %v8657
    %v8940 = vpop.xlane.xlu0 %8939
    %8941 = vadd.xlane.f32.xlu0 %v8662
    %v8942 = vpop.xlane.xlu0 %8941
    %8943 = vadd.xlane.f32.xlu0 %v8667
    %v8944 = vpop.xlane.xlu0 %8943
    %8945 = vadd.xlane.f32.xlu0 %v8672
    %v8946 = vpop.xlane.xlu0 %8945
    %8947 = vadd.xlane.f32.xlu0 %v8677
    %v8948 = vpop.xlane.xlu0 %8947
    %8949 = vadd.xlane.f32.xlu0 %v8682
    %v8950 = vpop.xlane.xlu0 %8949
    %8951 = vadd.xlane.f32.xlu0 %v8687
    %v8952 = vpop.xlane.xlu0 %8951
    %8953 = vadd.xlane.f32.xlu0 %v8692
    %v8954 = vpop.xlane.xlu0 %8953
    %8955 = vadd.xlane.f32.xlu0 %v8697
    %v8956 = vpop.xlane.xlu0 %8955
    %8957 = vadd.xlane.f32.xlu0 %v8702
    %v8958 = vpop.xlane.xlu0 %8957
    %8959 = vadd.xlane.f32.xlu0 %v8707
    %v8960 = vpop.xlane.xlu0 %8959
    %8961 = vadd.xlane.f32.xlu0 %v8712
    %v8962 = vpop.xlane.xlu0 %8961
    %8963 = vadd.xlane.f32.xlu0 %v8717
    %v8964 = vpop.xlane.xlu0 %8963
    %8965 = vadd.xlane.f32.xlu0 %v8722
    %v8966 = vpop.xlane.xlu0 %8965
    %8967 = vadd.xlane.f32.xlu0 %v8727
    %v8968 = vpop.xlane.xlu0 %8967
    %8969 = vadd.xlane.f32.xlu0 %v8732
    %v8970 = vpop.xlane.xlu0 %8969
    %8971 = vadd.xlane.f32.xlu0 %v8737
    %v8972 = vpop.xlane.xlu0 %8971
    %8973 = vadd.xlane.f32.xlu0 %v8742
    %v8974 = vpop.xlane.xlu0 %8973
    %8975 = vadd.xlane.f32.xlu0 %v8747
    %v8976 = vpop.xlane.xlu0 %8975
    %8977 = vadd.xlane.f32.xlu0 %v8752
    %v8978 = vpop.xlane.xlu0 %8977
    %8979 = vadd.xlane.f32.xlu0 %v8757
    %v8980 = vpop.xlane.xlu0 %8979
    %8981 = vadd.xlane.f32.xlu0 %v8762
    %v8982 = vpop.xlane.xlu0 %8981
    %8983 = vadd.xlane.f32.xlu0 %v8767
    %v8984 = vpop.xlane.xlu0 %8983
    %8985 = vadd.xlane.f32.xlu0 %v8772
    %v8986 = vpop.xlane.xlu0 %8985
    %8987 = vadd.xlane.f32.xlu0 %v8777
    %v8988 = vpop.xlane.xlu0 %8987
    %8989 = vadd.xlane.f32.xlu0 %v8782
    %v8990 = vpop.xlane.xlu0 %8989
    %8991 = vadd.xlane.f32.xlu0 %v8787
    %v8992 = vpop.xlane.xlu0 %8991
    %8993 = vadd.xlane.f32.xlu0 %v8792
    %v8994 = vpop.xlane.xlu0 %8993
    %8995 = vadd.xlane.f32.xlu0 %v8797
    %v8996 = vpop.xlane.xlu0 %8995
    %8997 = vadd.xlane.f32.xlu0 %v8802
    %v8998 = vpop.xlane.xlu0 %8997
    %8999 = vadd.xlane.f32.xlu0 %v8807
    %v9000 = vpop.xlane.xlu0 %8999
    %9001 = vadd.xlane.f32.xlu0 %v8812
    %v9002 = vpop.xlane.xlu0 %9001
    %9003 = vadd.xlane.f32.xlu0 %v8817
    %v9004 = vpop.xlane.xlu0 %9003
    %9005 = vadd.xlane.f32.xlu0 %v8822
    %v9006 = vpop.xlane.xlu0 %9005
    %9007 = vadd.xlane.f32.xlu0 %v8827
    %v9008 = vpop.xlane.xlu0 %9007
    %9009 = vadd.xlane.f32.xlu0 %v8832
    %v9010 = vpop.xlane.xlu0 %9009
    %9011 = vadd.xlane.f32.xlu0 %v8837
    %v9012 = vpop.xlane.xlu0 %9011
    %9013 = vadd.xlane.f32.xlu0 %v8842
    %v9014 = vpop.xlane.xlu0 %9013
    %9015 = vadd.xlane.f32.xlu0 %v8847
    %v9016 = vpop.xlane.xlu0 %9015
    %9017 = vadd.xlane.f32.xlu0 %v8852
    %v9018 = vpop.xlane.xlu0 %9017
    %9019 = vadd.xlane.f32.xlu0 %v8857
    %v9020 = vpop.xlane.xlu0 %9019
    %9021 = vadd.xlane.f32.xlu0 %v8862
    %v9022 = vpop.xlane.xlu0 %9021
    %9023 = vadd.xlane.f32.xlu0 %v8867
    %v9024 = vpop.xlane.xlu0 %9023
    %9025 = vadd.xlane.f32.xlu0 %v8872
    %v9026 = vpop.xlane.xlu0 %9025
    %9027 = vadd.xlane.f32.xlu0 %v8877
    %v9028 = vpop.xlane.xlu0 %9027
    %9029 = vadd.xlane.f32.xlu0 %v8882
    %v9030 = vpop.xlane.xlu0 %9029
    %9031 = vadd.xlane.f32.xlu0 %v8887
    %v9032 = vpop.xlane.xlu0 %9031
    %9033 = vadd.xlane.f32.xlu0 %v8892
    %v9034 = vpop.xlane.xlu0 %9033
    %9035 = vadd.xlane.f32.xlu0 %v8897
    %v9036 = vpop.xlane.xlu0 %9035
    %9037 = vadd.xlane.f32.xlu0 %v8902
    %v9038 = vpop.xlane.xlu0 %9037
    %9039 = vadd.xlane.f32.xlu0 %v8907
    %v9040 = vpop.xlane.xlu0 %9039
    %9041 = vadd.xlane.f32.xlu0 %v8912
    %v9042 = vpop.xlane.xlu0 %9041
    %v9043 = vmul.f32 %v8597, %v8597
    %v9044 = vmul.f32 %v8602, %v8602
    %v9045 = vmul.f32 %v8607, %v8607
    %v9046 = vmul.f32 %v8612, %v8612
    %v9047 = vmul.f32 %v8617, %v8617
    %v9048 = vmul.f32 %v8622, %v8622
    %v9049 = vmul.f32 %v8627, %v8627
    %v9050 = vmul.f32 %v8632, %v8632
    %v9051 = vmul.f32 %v8637, %v8637
    %v9052 = vmul.f32 %v8642, %v8642
    %v9053 = vmul.f32 %v8647, %v8647
    %v9054 = vmul.f32 %v8652, %v8652
    %v9055 = vmul.f32 %v8657, %v8657
    %v9056 = vmul.f32 %v8662, %v8662
    %v9057 = vmul.f32 %v8667, %v8667
    %v9058 = vmul.f32 %v8672, %v8672
    %v9059 = vmul.f32 %v8677, %v8677
    %v9060 = vmul.f32 %v8682, %v8682
    %v9061 = vmul.f32 %v8687, %v8687
    %v9062 = vmul.f32 %v8692, %v8692
    %v9063 = vmul.f32 %v8697, %v8697
    %v9064 = vmul.f32 %v8702, %v8702
    %v9065 = vmul.f32 %v8707, %v8707
    %v9066 = vmul.f32 %v8712, %v8712
    %v9067 = vmul.f32 %v8717, %v8717
    %v9068 = vmul.f32 %v8722, %v8722
    %v9069 = vmul.f32 %v8727, %v8727
    %v9070 = vmul.f32 %v8732, %v8732
    %v9071 = vmul.f32 %v8737, %v8737
    %v9072 = vmul.f32 %v8742, %v8742
    %v9073 = vmul.f32 %v8747, %v8747
    %v9074 = vmul.f32 %v8752, %v8752
    %v9075 = vmul.f32 %v8757, %v8757
    %v9076 = vmul.f32 %v8762, %v8762
    %v9077 = vmul.f32 %v8767, %v8767
    %v9078 = vmul.f32 %v8772, %v8772
    %v9079 = vmul.f32 %v8777, %v8777
    %v9080 = vmul.f32 %v8782, %v8782
    %v9081 = vmul.f32 %v8787, %v8787
    %v9082 = vmul.f32 %v8792, %v8792
    %v9083 = vmul.f32 %v8797, %v8797
    %v9084 = vmul.f32 %v8802, %v8802
    %v9085 = vmul.f32 %v8807, %v8807
    %v9086 = vmul.f32 %v8812, %v8812
    %v9087 = vmul.f32 %v8817, %v8817
    %v9088 = vmul.f32 %v8822, %v8822
    %v9089 = vmul.f32 %v8827, %v8827
    %v9090 = vmul.f32 %v8832, %v8832
    %v9091 = vmul.f32 %v8837, %v8837
    %v9092 = vmul.f32 %v8842, %v8842
    %v9093 = vmul.f32 %v8847, %v8847
    %v9094 = vmul.f32 %v8852, %v8852
    %v9095 = vmul.f32 %v8857, %v8857
    %v9096 = vmul.f32 %v8862, %v8862
    %v9097 = vmul.f32 %v8867, %v8867
    %v9098 = vmul.f32 %v8872, %v8872
    %v9099 = vmul.f32 %v8877, %v8877
    %v9100 = vmul.f32 %v8882, %v8882
    %v9101 = vmul.f32 %v8887, %v8887
    %v9102 = vmul.f32 %v8892, %v8892
    %v9103 = vmul.f32 %v8897, %v8897
    %v9104 = vmul.f32 %v8902, %v8902
    %v9105 = vmul.f32 %v8907, %v8907
    %v9106 = vmul.f32 %v8912, %v8912
    %9107 = vadd.xlane.f32.xlu0 %v9043
    %v9108 = vpop.xlane.xlu0 %9107
    %9109 = vadd.xlane.f32.xlu0 %v9044
    %v9110 = vpop.xlane.xlu0 %9109
    %9111 = vadd.xlane.f32.xlu0 %v9045
    %v9112 = vpop.xlane.xlu0 %9111
    %9113 = vadd.xlane.f32.xlu0 %v9046
    %v9114 = vpop.xlane.xlu0 %9113
    %9115 = vadd.xlane.f32.xlu0 %v9047
    %v9116 = vpop.xlane.xlu0 %9115
    %9117 = vadd.xlane.f32.xlu0 %v9048
    %v9118 = vpop.xlane.xlu0 %9117
    %9119 = vadd.xlane.f32.xlu0 %v9049
    %v9120 = vpop.xlane.xlu0 %9119
    %9121 = vadd.xlane.f32.xlu0 %v9050
    %v9122 = vpop.xlane.xlu0 %9121
    %9123 = vadd.xlane.f32.xlu0 %v9051
    %v9124 = vpop.xlane.xlu0 %9123
    %9125 = vadd.xlane.f32.xlu0 %v9052
    %v9126 = vpop.xlane.xlu0 %9125
    %9127 = vadd.xlane.f32.xlu0 %v9053
    %v9128 = vpop.xlane.xlu0 %9127
    %9129 = vadd.xlane.f32.xlu0 %v9054
    %v9130 = vpop.xlane.xlu0 %9129
    %9131 = vadd.xlane.f32.xlu0 %v9055
    %v9132 = vpop.xlane.xlu0 %9131
    %9133 = vadd.xlane.f32.xlu0 %v9056
    %v9134 = vpop.xlane.xlu0 %9133
    %9135 = vadd.xlane.f32.xlu0 %v9057
    %v9136 = vpop.xlane.xlu0 %9135
    %9137 = vadd.xlane.f32.xlu0 %v9058
    %v9138 = vpop.xlane.xlu0 %9137
    %9139 = vadd.xlane.f32.xlu0 %v9059
    %v9140 = vpop.xlane.xlu0 %9139
    %9141 = vadd.xlane.f32.xlu0 %v9060
    %v9142 = vpop.xlane.xlu0 %9141
    %9143 = vadd.xlane.f32.xlu0 %v9061
    %v9144 = vpop.xlane.xlu0 %9143
    %9145 = vadd.xlane.f32.xlu0 %v9062
    %v9146 = vpop.xlane.xlu0 %9145
    %9147 = vadd.xlane.f32.xlu0 %v9063
    %v9148 = vpop.xlane.xlu0 %9147
    %9149 = vadd.xlane.f32.xlu0 %v9064
    %v9150 = vpop.xlane.xlu0 %9149
    %9151 = vadd.xlane.f32.xlu0 %v9065
    %v9152 = vpop.xlane.xlu0 %9151
    %9153 = vadd.xlane.f32.xlu0 %v9066
    %v9154 = vpop.xlane.xlu0 %9153
    %9155 = vadd.xlane.f32.xlu0 %v9067
    %v9156 = vpop.xlane.xlu0 %9155
    %9157 = vadd.xlane.f32.xlu0 %v9068
    %v9158 = vpop.xlane.xlu0 %9157
    %9159 = vadd.xlane.f32.xlu0 %v9069
    %v9160 = vpop.xlane.xlu0 %9159
    %9161 = vadd.xlane.f32.xlu0 %v9070
    %v9162 = vpop.xlane.xlu0 %9161
    %9163 = vadd.xlane.f32.xlu0 %v9071
    %v9164 = vpop.xlane.xlu0 %9163
    %9165 = vadd.xlane.f32.xlu0 %v9072
    %v9166 = vpop.xlane.xlu0 %9165
    %9167 = vadd.xlane.f32.xlu0 %v9073
    %v9168 = vpop.xlane.xlu0 %9167
    %9169 = vadd.xlane.f32.xlu0 %v9074
    %v9170 = vpop.xlane.xlu0 %9169
    %9171 = vadd.xlane.f32.xlu0 %v9075
    %v9172 = vpop.xlane.xlu0 %9171
    %9173 = vadd.xlane.f32.xlu0 %v9076
    %v9174 = vpop.xlane.xlu0 %9173
    %9175 = vadd.xlane.f32.xlu0 %v9077
    %v9176 = vpop.xlane.xlu0 %9175
    %9177 = vadd.xlane.f32.xlu0 %v9078
    %v9178 = vpop.xlane.xlu0 %9177
    %9179 = vadd.xlane.f32.xlu0 %v9079
    %v9180 = vpop.xlane.xlu0 %9179
    %9181 = vadd.xlane.f32.xlu0 %v9080
    %v9182 = vpop.xlane.xlu0 %9181
    %9183 = vadd.xlane.f32.xlu0 %v9081
    %v9184 = vpop.xlane.xlu0 %9183
    %9185 = vadd.xlane.f32.xlu0 %v9082
    %v9186 = vpop.xlane.xlu0 %9185
    %9187 = vadd.xlane.f32.xlu0 %v9083
    %v9188 = vpop.xlane.xlu0 %9187
    %9189 = vadd.xlane.f32.xlu0 %v9084
    %v9190 = vpop.xlane.xlu0 %9189
    %9191 = vadd.xlane.f32.xlu0 %v9085
    %v9192 = vpop.xlane.xlu0 %9191
    %9193 = vadd.xlane.f32.xlu0 %v9086
    %v9194 = vpop.xlane.xlu0 %9193
    %9195 = vadd.xlane.f32.xlu0 %v9087
    %v9196 = vpop.xlane.xlu0 %9195
    %9197 = vadd.xlane.f32.xlu0 %v9088
    %v9198 = vpop.xlane.xlu0 %9197
    %9199 = vadd.xlane.f32.xlu0 %v9089
    %v9200 = vpop.xlane.xlu0 %9199
    %9201 = vadd.xlane.f32.xlu0 %v9090
    %v9202 = vpop.xlane.xlu0 %9201
    %9203 = vadd.xlane.f32.xlu0 %v9091
    %v9204 = vpop.xlane.xlu0 %9203
    %9205 = vadd.xlane.f32.xlu0 %v9092
    %v9206 = vpop.xlane.xlu0 %9205
    %9207 = vadd.xlane.f32.xlu0 %v9093
    %v9208 = vpop.xlane.xlu0 %9207
    %9209 = vadd.xlane.f32.xlu0 %v9094
    %v9210 = vpop.xlane.xlu0 %9209
    %9211 = vadd.xlane.f32.xlu0 %v9095
    %v9212 = vpop.xlane.xlu0 %9211
    %9213 = vadd.xlane.f32.xlu0 %v9096
    %v9214 = vpop.xlane.xlu0 %9213
    %9215 = vadd.xlane.f32.xlu0 %v9097
    %v9216 = vpop.xlane.xlu0 %9215
    %9217 = vadd.xlane.f32.xlu0 %v9098
    %v9218 = vpop.xlane.xlu0 %9217
    %9219 = vadd.xlane.f32.xlu0 %v9099
    %v9220 = vpop.xlane.xlu0 %9219
    %9221 = vadd.xlane.f32.xlu0 %v9100
    %v9222 = vpop.xlane.xlu0 %9221
    %9223 = vadd.xlane.f32.xlu0 %v9101
    %v9224 = vpop.xlane.xlu0 %9223
    %9225 = vadd.xlane.f32.xlu0 %v9102
    %v9226 = vpop.xlane.xlu0 %9225
    %9227 = vadd.xlane.f32.xlu0 %v9103
    %v9228 = vpop.xlane.xlu0 %9227
    %9229 = vadd.xlane.f32.xlu0 %v9104
    %v9230 = vpop.xlane.xlu0 %9229
    %9231 = vadd.xlane.f32.xlu0 %v9105
    %v9232 = vpop.xlane.xlu0 %9231
    %9233 = vadd.xlane.f32.xlu0 %v9106
    %v9234 = vpop.xlane.xlu0 %9233
    %v9235 = vmul.f32 %v8916, 0.0078125
    %v9236 = vmul.f32 %v8918, 0.0078125
    %v9237 = vmul.f32 %v8920, 0.0078125
    %v9238 = vmul.f32 %v8922, 0.0078125
    %v9239 = vmul.f32 %v8924, 0.0078125
    %v9240 = vmul.f32 %v8926, 0.0078125
    %v9241 = vmul.f32 %v8928, 0.0078125
    %v9242 = vmul.f32 %v8930, 0.0078125
    %v9243 = vmul.f32 %v8932, 0.0078125
    %v9244 = vmul.f32 %v8934, 0.0078125
    %v9245 = vmul.f32 %v8936, 0.0078125
    %v9246 = vmul.f32 %v8938, 0.0078125
    %v9247 = vmul.f32 %v8940, 0.0078125
    %v9248 = vmul.f32 %v8942, 0.0078125
    %v9249 = vmul.f32 %v8944, 0.0078125
    %v9250 = vmul.f32 %v8946, 0.0078125
    %v9251 = vmul.f32 %v8948, 0.0078125
    %v9252 = vmul.f32 %v8950, 0.0078125
    %v9253 = vmul.f32 %v8952, 0.0078125
    %v9254 = vmul.f32 %v8954, 0.0078125
    %v9255 = vmul.f32 %v8956, 0.0078125
    %v9256 = vmul.f32 %v8958, 0.0078125
    %v9257 = vmul.f32 %v8960, 0.0078125
    %v9258 = vmul.f32 %v8962, 0.0078125
    %v9259 = vmul.f32 %v8964, 0.0078125
    %v9260 = vmul.f32 %v8966, 0.0078125
    %v9261 = vmul.f32 %v8968, 0.0078125
    %v9262 = vmul.f32 %v8970, 0.0078125
    %v9263 = vmul.f32 %v8972, 0.0078125
    %v9264 = vmul.f32 %v8974, 0.0078125
    %v9265 = vmul.f32 %v8976, 0.0078125
    %v9266 = vmul.f32 %v8978, 0.0078125
    %v9267 = vmul.f32 %v8980, 0.0078125
    %v9268 = vmul.f32 %v8982, 0.0078125
    %v9269 = vmul.f32 %v8984, 0.0078125
    %v9270 = vmul.f32 %v8986, 0.0078125
    %v9271 = vmul.f32 %v8988, 0.0078125
    %v9272 = vmul.f32 %v8990, 0.0078125
    %v9273 = vmul.f32 %v8992, 0.0078125
    %v9274 = vmul.f32 %v8994, 0.0078125
    %v9275 = vmul.f32 %v8996, 0.0078125
    %v9276 = vmul.f32 %v8998, 0.0078125
    %v9277 = vmul.f32 %v9000, 0.0078125
    %v9278 = vmul.f32 %v9002, 0.0078125
    %v9279 = vmul.f32 %v9004, 0.0078125
    %v9280 = vmul.f32 %v9006, 0.0078125
    %v9281 = vmul.f32 %v9008, 0.0078125
    %v9282 = vmul.f32 %v9010, 0.0078125
    %v9283 = vmul.f32 %v9012, 0.0078125
    %v9284 = vmul.f32 %v9014, 0.0078125
    %v9285 = vmul.f32 %v9016, 0.0078125
    %v9286 = vmul.f32 %v9018, 0.0078125
    %v9287 = vmul.f32 %v9020, 0.0078125
    %v9288 = vmul.f32 %v9022, 0.0078125
    %v9289 = vmul.f32 %v9024, 0.0078125
    %v9290 = vmul.f32 %v9026, 0.0078125
    %v9291 = vmul.f32 %v9028, 0.0078125
    %v9292 = vmul.f32 %v9030, 0.0078125
    %v9293 = vmul.f32 %v9032, 0.0078125
    %v9294 = vmul.f32 %v9034, 0.0078125
    %v9295 = vmul.f32 %v9036, 0.0078125
    %v9296 = vmul.f32 %v9038, 0.0078125
    %v9297 = vmul.f32 %v9040, 0.0078125
    %v9298 = vmul.f32 %v9042, 0.0078125
    %v9299 = vmul.f32 %v9108, 0.0078125
    %v9300 = vmul.f32 %v9110, 0.0078125
    %v9301 = vmul.f32 %v9112, 0.0078125
    %v9302 = vmul.f32 %v9114, 0.0078125
    %v9303 = vmul.f32 %v9116, 0.0078125
    %v9304 = vmul.f32 %v9118, 0.0078125
    %v9305 = vmul.f32 %v9120, 0.0078125
    %v9306 = vmul.f32 %v9122, 0.0078125
    %v9307 = vmul.f32 %v9124, 0.0078125
    %v9308 = vmul.f32 %v9126, 0.0078125
    %v9309 = vmul.f32 %v9128, 0.0078125
    %v9310 = vmul.f32 %v9130, 0.0078125
    %v9311 = vmul.f32 %v9132, 0.0078125
    %v9312 = vmul.f32 %v9134, 0.0078125
    %v9313 = vmul.f32 %v9136, 0.0078125
    %v9314 = vmul.f32 %v9138, 0.0078125
    %v9315 = vmul.f32 %v9140, 0.0078125
    %v9316 = vmul.f32 %v9142, 0.0078125
    %v9317 = vmul.f32 %v9144, 0.0078125
    %v9318 = vmul.f32 %v9146, 0.0078125
    %v9319 = vmul.f32 %v9148, 0.0078125
    %v9320 = vmul.f32 %v9150, 0.0078125
    %v9321 = vmul.f32 %v9152, 0.0078125
    %v9322 = vmul.f32 %v9154, 0.0078125
    %v9323 = vmul.f32 %v9156, 0.0078125
    %v9324 = vmul.f32 %v9158, 0.0078125
    %v9325 = vmul.f32 %v9160, 0.0078125
    %v9326 = vmul.f32 %v9162, 0.0078125
    %v9327 = vmul.f32 %v9164, 0.0078125
    %v9328 = vmul.f32 %v9166, 0.0078125
    %v9329 = vmul.f32 %v9168, 0.0078125
    %v9330 = vmul.f32 %v9170, 0.0078125
    %v9331 = vmul.f32 %v9172, 0.0078125
    %v9332 = vmul.f32 %v9174, 0.0078125
    %v9333 = vmul.f32 %v9176, 0.0078125
    %v9334 = vmul.f32 %v9178, 0.0078125
    %v9335 = vmul.f32 %v9180, 0.0078125
    %v9336 = vmul.f32 %v9182, 0.0078125
    %v9337 = vmul.f32 %v9184, 0.0078125
    %v9338 = vmul.f32 %v9186, 0.0078125
    %v9339 = vmul.f32 %v9188, 0.0078125
    %v9340 = vmul.f32 %v9190, 0.0078125
    %v9341 = vmul.f32 %v9192, 0.0078125
    %v9342 = vmul.f32 %v9194, 0.0078125
    %v9343 = vmul.f32 %v9196, 0.0078125
    %v9344 = vmul.f32 %v9198, 0.0078125
    %v9345 = vmul.f32 %v9200, 0.0078125
    %v9346 = vmul.f32 %v9202, 0.0078125
    %v9347 = vmul.f32 %v9204, 0.0078125
    %v9348 = vmul.f32 %v9206, 0.0078125
    %v9349 = vmul.f32 %v9208, 0.0078125
    %v9350 = vmul.f32 %v9210, 0.0078125
    %v9351 = vmul.f32 %v9212, 0.0078125
    %v9352 = vmul.f32 %v9214, 0.0078125
    %v9353 = vmul.f32 %v9216, 0.0078125
    %v9354 = vmul.f32 %v9218, 0.0078125
    %v9355 = vmul.f32 %v9220, 0.0078125
    %v9356 = vmul.f32 %v9222, 0.0078125
    %v9357 = vmul.f32 %v9224, 0.0078125
    %v9358 = vmul.f32 %v9226, 0.0078125
    %v9359 = vmul.f32 %v9228, 0.0078125
    %v9360 = vmul.f32 %v9230, 0.0078125
    %v9361 = vmul.f32 %v9232, 0.0078125
    %v9362 = vmul.f32 %v9234, 0.0078125
    %v9363 = vmul.f32 %v9235, %v9235
    %v9364 = vmul.f32 %v9236, %v9236
    %v9365 = vmul.f32 %v9237, %v9237
    %v9366 = vmul.f32 %v9238, %v9238
    %v9367 = vmul.f32 %v9239, %v9239
    %v9368 = vmul.f32 %v9240, %v9240
    %v9369 = vmul.f32 %v9241, %v9241
    %v9370 = vmul.f32 %v9242, %v9242
    %v9371 = vmul.f32 %v9243, %v9243
    %v9372 = vmul.f32 %v9244, %v9244
    %v9373 = vmul.f32 %v9245, %v9245
    %v9374 = vmul.f32 %v9246, %v9246
    %v9375 = vmul.f32 %v9247, %v9247
    %v9376 = vmul.f32 %v9248, %v9248
    %v9377 = vmul.f32 %v9249, %v9249
    %v9378 = vmul.f32 %v9250, %v9250
    %v9379 = vmul.f32 %v9251, %v9251
    %v9380 = vmul.f32 %v9252, %v9252
    %v9381 = vmul.f32 %v9253, %v9253
    %v9382 = vmul.f32 %v9254, %v9254
    %v9383 = vmul.f32 %v9255, %v9255
    %v9384 = vmul.f32 %v9256, %v9256
    %v9385 = vmul.f32 %v9257, %v9257
    %v9386 = vmul.f32 %v9258, %v9258
    %v9387 = vmul.f32 %v9259, %v9259
    %v9388 = vmul.f32 %v9260, %v9260
    %v9389 = vmul.f32 %v9261, %v9261
    %v9390 = vmul.f32 %v9262, %v9262
    %v9391 = vmul.f32 %v9263, %v9263
    %v9392 = vmul.f32 %v9264, %v9264
    %v9393 = vmul.f32 %v9265, %v9265
    %v9394 = vmul.f32 %v9266, %v9266
    %v9395 = vmul.f32 %v9267, %v9267
    %v9396 = vmul.f32 %v9268, %v9268
    %v9397 = vmul.f32 %v9269, %v9269
    %v9398 = vmul.f32 %v9270, %v9270
    %v9399 = vmul.f32 %v9271, %v9271
    %v9400 = vmul.f32 %v9272, %v9272
    %v9401 = vmul.f32 %v9273, %v9273
    %v9402 = vmul.f32 %v9274, %v9274
    %v9403 = vmul.f32 %v9275, %v9275
    %v9404 = vmul.f32 %v9276, %v9276
    %v9405 = vmul.f32 %v9277, %v9277
    %v9406 = vmul.f32 %v9278, %v9278
    %v9407 = vmul.f32 %v9279, %v9279
    %v9408 = vmul.f32 %v9280, %v9280
    %v9409 = vmul.f32 %v9281, %v9281
    %v9410 = vmul.f32 %v9282, %v9282
    %v9411 = vmul.f32 %v9283, %v9283
    %v9412 = vmul.f32 %v9284, %v9284
    %v9413 = vmul.f32 %v9285, %v9285
    %v9414 = vmul.f32 %v9286, %v9286
    %v9415 = vmul.f32 %v9287, %v9287
    %v9416 = vmul.f32 %v9288, %v9288
    %v9417 = vmul.f32 %v9289, %v9289
    %v9418 = vmul.f32 %v9290, %v9290
    %v9419 = vmul.f32 %v9291, %v9291
    %v9420 = vmul.f32 %v9292, %v9292
    %v9421 = vmul.f32 %v9293, %v9293
    %v9422 = vmul.f32 %v9294, %v9294
    %v9423 = vmul.f32 %v9295, %v9295
    %v9424 = vmul.f32 %v9296, %v9296
    %v9425 = vmul.f32 %v9297, %v9297
    %v9426 = vmul.f32 %v9298, %v9298
    %v9427 = vsub.f32 %v9299, %v9363
    %v9428 = vsub.f32 %v9300, %v9364
    %v9429 = vsub.f32 %v9301, %v9365
    %v9430 = vsub.f32 %v9302, %v9366
    %v9431 = vsub.f32 %v9303, %v9367
    %v9432 = vsub.f32 %v9304, %v9368
    %v9433 = vsub.f32 %v9305, %v9369
    %v9434 = vsub.f32 %v9306, %v9370
    %v9435 = vsub.f32 %v9307, %v9371
    %v9436 = vsub.f32 %v9308, %v9372
    %v9437 = vsub.f32 %v9309, %v9373
    %v9438 = vsub.f32 %v9310, %v9374
    %v9439 = vsub.f32 %v9311, %v9375
    %v9440 = vsub.f32 %v9312, %v9376
    %v9441 = vsub.f32 %v9313, %v9377
    %v9442 = vsub.f32 %v9314, %v9378
    %v9443 = vsub.f32 %v9315, %v9379
    %v9444 = vsub.f32 %v9316, %v9380
    %v9445 = vsub.f32 %v9317, %v9381
    %v9446 = vsub.f32 %v9318, %v9382
    %v9447 = vsub.f32 %v9319, %v9383
    %v9448 = vsub.f32 %v9320, %v9384
    %v9449 = vsub.f32 %v9321, %v9385
    %v9450 = vsub.f32 %v9322, %v9386
    %v9451 = vsub.f32 %v9323, %v9387
    %v9452 = vsub.f32 %v9324, %v9388
    %v9453 = vsub.f32 %v9325, %v9389
    %v9454 = vsub.f32 %v9326, %v9390
    %v9455 = vsub.f32 %v9327, %v9391
    %v9456 = vsub.f32 %v9328, %v9392
    %v9457 = vsub.f32 %v9329, %v9393
    %v9458 = vsub.f32 %v9330, %v9394
    %v9459 = vsub.f32 %v9331, %v9395
    %v9460 = vsub.f32 %v9332, %v9396
    %v9461 = vsub.f32 %v9333, %v9397
    %v9462 = vsub.f32 %v9334, %v9398
    %v9463 = vsub.f32 %v9335, %v9399
    %v9464 = vsub.f32 %v9336, %v9400
    %v9465 = vsub.f32 %v9337, %v9401
    %v9466 = vsub.f32 %v9338, %v9402
    %v9467 = vsub.f32 %v9339, %v9403
    %v9468 = vsub.f32 %v9340, %v9404
    %v9469 = vsub.f32 %v9341, %v9405
    %v9470 = vsub.f32 %v9342, %v9406
    %v9471 = vsub.f32 %v9343, %v9407
    %v9472 = vsub.f32 %v9344, %v9408
    %v9473 = vsub.f32 %v9345, %v9409
    %v9474 = vsub.f32 %v9346, %v9410
    %v9475 = vsub.f32 %v9347, %v9411
    %v9476 = vsub.f32 %v9348, %v9412
    %v9477 = vsub.f32 %v9349, %v9413
    %v9478 = vsub.f32 %v9350, %v9414
    %v9479 = vsub.f32 %v9351, %v9415
    %v9480 = vsub.f32 %v9352, %v9416
    %v9481 = vsub.f32 %v9353, %v9417
    %v9482 = vsub.f32 %v9354, %v9418
    %v9483 = vsub.f32 %v9355, %v9419
    %v9484 = vsub.f32 %v9356, %v9420
    %v9485 = vsub.f32 %v9357, %v9421
    %v9486 = vsub.f32 %v9358, %v9422
    %v9487 = vsub.f32 %v9359, %v9423
    %v9488 = vsub.f32 %v9360, %v9424
    %v9489 = vsub.f32 %v9361, %v9425
    %v9490 = vsub.f32 %v9362, %v9426
    %v9491 = vsub.f32 %v8597, %v9235
    %v9492 = vsub.f32 %v8602, %v9236
    %v9493 = vsub.f32 %v8607, %v9237
    %v9494 = vsub.f32 %v8612, %v9238
    %v9495 = vsub.f32 %v8617, %v9239
    %v9496 = vsub.f32 %v8622, %v9240
    %v9497 = vsub.f32 %v8627, %v9241
    %v9498 = vsub.f32 %v8632, %v9242
    %v9499 = vsub.f32 %v8637, %v9243
    %v9500 = vsub.f32 %v8642, %v9244
    %v9501 = vsub.f32 %v8647, %v9245
    %v9502 = vsub.f32 %v8652, %v9246
    %v9503 = vsub.f32 %v8657, %v9247
    %v9504 = vsub.f32 %v8662, %v9248
    %v9505 = vsub.f32 %v8667, %v9249
    %v9506 = vsub.f32 %v8672, %v9250
    %v9507 = vsub.f32 %v8677, %v9251
    %v9508 = vsub.f32 %v8682, %v9252
    %v9509 = vsub.f32 %v8687, %v9253
    %v9510 = vsub.f32 %v8692, %v9254
    %v9511 = vsub.f32 %v8697, %v9255
    %v9512 = vsub.f32 %v8702, %v9256
    %v9513 = vsub.f32 %v8707, %v9257
    %v9514 = vsub.f32 %v8712, %v9258
    %v9515 = vsub.f32 %v8717, %v9259
    %v9516 = vsub.f32 %v8722, %v9260
    %v9517 = vsub.f32 %v8727, %v9261
    %v9518 = vsub.f32 %v8732, %v9262
    %v9519 = vsub.f32 %v8737, %v9263
    %v9520 = vsub.f32 %v8742, %v9264
    %v9521 = vsub.f32 %v8747, %v9265
    %v9522 = vsub.f32 %v8752, %v9266
    %v9523 = vsub.f32 %v8757, %v9267
    %v9524 = vsub.f32 %v8762, %v9268
    %v9525 = vsub.f32 %v8767, %v9269
    %v9526 = vsub.f32 %v8772, %v9270
    %v9527 = vsub.f32 %v8777, %v9271
    %v9528 = vsub.f32 %v8782, %v9272
    %v9529 = vsub.f32 %v8787, %v9273
    %v9530 = vsub.f32 %v8792, %v9274
    %v9531 = vsub.f32 %v8797, %v9275
    %v9532 = vsub.f32 %v8802, %v9276
    %v9533 = vsub.f32 %v8807, %v9277
    %v9534 = vsub.f32 %v8812, %v9278
    %v9535 = vsub.f32 %v8817, %v9279
    %v9536 = vsub.f32 %v8822, %v9280
    %v9537 = vsub.f32 %v8827, %v9281
    %v9538 = vsub.f32 %v8832, %v9282
    %v9539 = vsub.f32 %v8837, %v9283
    %v9540 = vsub.f32 %v8842, %v9284
    %v9541 = vsub.f32 %v8847, %v9285
    %v9542 = vsub.f32 %v8852, %v9286
    %v9543 = vsub.f32 %v8857, %v9287
    %v9544 = vsub.f32 %v8862, %v9288
    %v9545 = vsub.f32 %v8867, %v9289
    %v9546 = vsub.f32 %v8872, %v9290
    %v9547 = vsub.f32 %v8877, %v9291
    %v9548 = vsub.f32 %v8882, %v9292
    %v9549 = vsub.f32 %v8887, %v9293
    %v9550 = vsub.f32 %v8892, %v9294
    %v9551 = vsub.f32 %v8897, %v9295
    %v9552 = vsub.f32 %v8902, %v9296
    %v9553 = vsub.f32 %v8907, %v9297
    %v9554 = vsub.f32 %v8912, %v9298
    %v9555 = vadd.f32 %v9427, 1e-05
    %v9556 = vadd.f32 %v9428, 1e-05
    %v9557 = vadd.f32 %v9429, 1e-05
    %v9558 = vadd.f32 %v9430, 1e-05
    %v9559 = vadd.f32 %v9431, 1e-05
    %v9560 = vadd.f32 %v9432, 1e-05
    %v9561 = vadd.f32 %v9433, 1e-05
    %v9562 = vadd.f32 %v9434, 1e-05
    %v9563 = vadd.f32 %v9435, 1e-05
    %v9564 = vadd.f32 %v9436, 1e-05
    %v9565 = vadd.f32 %v9437, 1e-05
    %v9566 = vadd.f32 %v9438, 1e-05
    %v9567 = vadd.f32 %v9439, 1e-05
    %v9568 = vadd.f32 %v9440, 1e-05
    %v9569 = vadd.f32 %v9441, 1e-05
    %v9570 = vadd.f32 %v9442, 1e-05
    %v9571 = vadd.f32 %v9443, 1e-05
    %v9572 = vadd.f32 %v9444, 1e-05
    %v9573 = vadd.f32 %v9445, 1e-05
    %v9574 = vadd.f32 %v9446, 1e-05
    %v9575 = vadd.f32 %v9447, 1e-05
    %v9576 = vadd.f32 %v9448, 1e-05
    %v9577 = vadd.f32 %v9449, 1e-05
    %v9578 = vadd.f32 %v9450, 1e-05
    %v9579 = vadd.f32 %v9451, 1e-05
    %v9580 = vadd.f32 %v9452, 1e-05
    %v9581 = vadd.f32 %v9453, 1e-05
    %v9582 = vadd.f32 %v9454, 1e-05
    %v9583 = vadd.f32 %v9455, 1e-05
    %v9584 = vadd.f32 %v9456, 1e-05
    %v9585 = vadd.f32 %v9457, 1e-05
    %v9586 = vadd.f32 %v9458, 1e-05
    %v9587 = vadd.f32 %v9459, 1e-05
    %v9588 = vadd.f32 %v9460, 1e-05
    %v9589 = vadd.f32 %v9461, 1e-05
    %v9590 = vadd.f32 %v9462, 1e-05
    %v9591 = vadd.f32 %v9463, 1e-05
    %v9592 = vadd.f32 %v9464, 1e-05
    %v9593 = vadd.f32 %v9465, 1e-05
    %v9594 = vadd.f32 %v9466, 1e-05
    %v9595 = vadd.f32 %v9467, 1e-05
    %v9596 = vadd.f32 %v9468, 1e-05
    %v9597 = vadd.f32 %v9469, 1e-05
    %v9598 = vadd.f32 %v9470, 1e-05
    %v9599 = vadd.f32 %v9471, 1e-05
    %v9600 = vadd.f32 %v9472, 1e-05
    %v9601 = vadd.f32 %v9473, 1e-05
    %v9602 = vadd.f32 %v9474, 1e-05
    %v9603 = vadd.f32 %v9475, 1e-05
    %v9604 = vadd.f32 %v9476, 1e-05
    %v9605 = vadd.f32 %v9477, 1e-05
    %v9606 = vadd.f32 %v9478, 1e-05
    %v9607 = vadd.f32 %v9479, 1e-05
    %v9608 = vadd.f32 %v9480, 1e-05
    %v9609 = vadd.f32 %v9481, 1e-05
    %v9610 = vadd.f32 %v9482, 1e-05
    %v9611 = vadd.f32 %v9483, 1e-05
    %v9612 = vadd.f32 %v9484, 1e-05
    %v9613 = vadd.f32 %v9485, 1e-05
    %v9614 = vadd.f32 %v9486, 1e-05
    %v9615 = vadd.f32 %v9487, 1e-05
    %v9616 = vadd.f32 %v9488, 1e-05
    %v9617 = vadd.f32 %v9489, 1e-05
    %v9618 = vadd.f32 %v9490, 1e-05
    %v9619 = vrsqrt.pop %v9555
    %v9620 = vrsqrt.pop %v9556
    %v9621 = vrsqrt.pop %v9557
    %v9622 = vrsqrt.pop %v9558
    %v9623 = vrsqrt.pop %v9559
    %v9624 = vrsqrt.pop %v9560
    %v9625 = vrsqrt.pop %v9561
    %v9626 = vrsqrt.pop %v9562
    %v9627 = vrsqrt.pop %v9563
    %v9628 = vrsqrt.pop %v9564
    %v9629 = vrsqrt.pop %v9565
    %v9630 = vrsqrt.pop %v9566
    %v9631 = vrsqrt.pop %v9567
    %v9632 = vrsqrt.pop %v9568
    %v9633 = vrsqrt.pop %v9569
    %v9634 = vrsqrt.pop %v9570
    %v9635 = vrsqrt.pop %v9571
    %v9636 = vrsqrt.pop %v9572
    %v9637 = vrsqrt.pop %v9573
    %v9638 = vrsqrt.pop %v9574
    %v9639 = vrsqrt.pop %v9575
    %v9640 = vrsqrt.pop %v9576
    %v9641 = vrsqrt.pop %v9577
    %v9642 = vrsqrt.pop %v9578
    %v9643 = vrsqrt.pop %v9579
    %v9644 = vrsqrt.pop %v9580
    %v9645 = vrsqrt.pop %v9581
    %v9646 = vrsqrt.pop %v9582
    %v9647 = vrsqrt.pop %v9583
    %v9648 = vrsqrt.pop %v9584
    %v9649 = vrsqrt.pop %v9585
    %v9650 = vrsqrt.pop %v9586
    %v9651 = vrsqrt.pop %v9587
    %v9652 = vrsqrt.pop %v9588
    %v9653 = vrsqrt.pop %v9589
    %v9654 = vrsqrt.pop %v9590
    %v9655 = vrsqrt.pop %v9591
    %v9656 = vrsqrt.pop %v9592
    %v9657 = vrsqrt.pop %v9593
    %v9658 = vrsqrt.pop %v9594
    %v9659 = vrsqrt.pop %v9595
    %v9660 = vrsqrt.pop %v9596
    %v9661 = vrsqrt.pop %v9597
    %v9662 = vrsqrt.pop %v9598
    %v9663 = vrsqrt.pop %v9599
    %v9664 = vrsqrt.pop %v9600
    %v9665 = vrsqrt.pop %v9601
    %v9666 = vrsqrt.pop %v9602
    %v9667 = vrsqrt.pop %v9603
    %v9668 = vrsqrt.pop %v9604
    %v9669 = vrsqrt.pop %v9605
    %v9670 = vrsqrt.pop %v9606
    %v9671 = vrsqrt.pop %v9607
    %v9672 = vrsqrt.pop %v9608
    %v9673 = vrsqrt.pop %v9609
    %v9674 = vrsqrt.pop %v9610
    %v9675 = vrsqrt.pop %v9611
    %v9676 = vrsqrt.pop %v9612
    %v9677 = vrsqrt.pop %v9613
    %v9678 = vrsqrt.pop %v9614
    %v9679 = vrsqrt.pop %v9615
    %v9680 = vrsqrt.pop %v9616
    %v9681 = vrsqrt.pop %v9617
    %v9682 = vrsqrt.pop %v9618
    %v9683 = vmul.f32 %v9491, %v9619
    %v9684 = vmul.f32 %v9492, %v9620
    %v9685 = vmul.f32 %v9493, %v9621
    %v9686 = vmul.f32 %v9494, %v9622
    %v9687 = vmul.f32 %v9495, %v9623
    %v9688 = vmul.f32 %v9496, %v9624
    %v9689 = vmul.f32 %v9497, %v9625
    %v9690 = vmul.f32 %v9498, %v9626
    %v9691 = vmul.f32 %v9499, %v9627
    %v9692 = vmul.f32 %v9500, %v9628
    %v9693 = vmul.f32 %v9501, %v9629
    %v9694 = vmul.f32 %v9502, %v9630
    %v9695 = vmul.f32 %v9503, %v9631
    %v9696 = vmul.f32 %v9504, %v9632
    %v9697 = vmul.f32 %v9505, %v9633
    %v9698 = vmul.f32 %v9506, %v9634
    %v9699 = vmul.f32 %v9507, %v9635
    %v9700 = vmul.f32 %v9508, %v9636
    %v9701 = vmul.f32 %v9509, %v9637
    %v9702 = vmul.f32 %v9510, %v9638
    %v9703 = vmul.f32 %v9511, %v9639
    %v9704 = vmul.f32 %v9512, %v9640
    %v9705 = vmul.f32 %v9513, %v9641
    %v9706 = vmul.f32 %v9514, %v9642
    %v9707 = vmul.f32 %v9515, %v9643
    %v9708 = vmul.f32 %v9516, %v9644
    %v9709 = vmul.f32 %v9517, %v9645
    %v9710 = vmul.f32 %v9518, %v9646
    %v9711 = vmul.f32 %v9519, %v9647
    %v9712 = vmul.f32 %v9520, %v9648
    %v9713 = vmul.f32 %v9521, %v9649
    %v9714 = vmul.f32 %v9522, %v9650
    %v9715 = vmul.f32 %v9523, %v9651
    %v9716 = vmul.f32 %v9524, %v9652
    %v9717 = vmul.f32 %v9525, %v9653
    %v9718 = vmul.f32 %v9526, %v9654
    %v9719 = vmul.f32 %v9527, %v9655
    %v9720 = vmul.f32 %v9528, %v9656
    %v9721 = vmul.f32 %v9529, %v9657
    %v9722 = vmul.f32 %v9530, %v9658
    %v9723 = vmul.f32 %v9531, %v9659
    %v9724 = vmul.f32 %v9532, %v9660
    %v9725 = vmul.f32 %v9533, %v9661
    %v9726 = vmul.f32 %v9534, %v9662
    %v9727 = vmul.f32 %v9535, %v9663
    %v9728 = vmul.f32 %v9536, %v9664
    %v9729 = vmul.f32 %v9537, %v9665
    %v9730 = vmul.f32 %v9538, %v9666
    %v9731 = vmul.f32 %v9539, %v9667
    %v9732 = vmul.f32 %v9540, %v9668
    %v9733 = vmul.f32 %v9541, %v9669
    %v9734 = vmul.f32 %v9542, %v9670
    %v9735 = vmul.f32 %v9543, %v9671
    %v9736 = vmul.f32 %v9544, %v9672
    %v9737 = vmul.f32 %v9545, %v9673
    %v9738 = vmul.f32 %v9546, %v9674
    %v9739 = vmul.f32 %v9547, %v9675
    %v9740 = vmul.f32 %v9548, %v9676
    %v9741 = vmul.f32 %v9549, %v9677
    %v9742 = vmul.f32 %v9550, %v9678
    %v9743 = vmul.f32 %v9551, %v9679
    %v9744 = vmul.f32 %v9552, %v9680
    %v9745 = vmul.f32 %v9553, %v9681
    %v9746 = vmul.f32 %v9554, %v9682
    %v9747 = vld [vmem:[%s21] sm:$0x1]
    %v9749 = vlaneseq
    %v9750 = vshrl.u32 %v9749, 7
    %v9751 = vsub.s32 0, %v9750
    %v9752 = vrot.slane %v9747, %v9751
    %v9754 = vmul.f32 %v9683, %v9752
    %v9755 = vmul.f32 %v9684, %v9752
    %v9756 = vmul.f32 %v9685, %v9752
    %v9757 = vmul.f32 %v9686, %v9752
    %v9758 = vmul.f32 %v9687, %v9752
    %v9759 = vmul.f32 %v9688, %v9752
    %v9760 = vmul.f32 %v9689, %v9752
    %v9761 = vmul.f32 %v9690, %v9752
    %v9762 = vmul.f32 %v9691, %v9752
    %v9763 = vmul.f32 %v9692, %v9752
    %v9764 = vmul.f32 %v9693, %v9752
    %v9765 = vmul.f32 %v9694, %v9752
    %v9766 = vmul.f32 %v9695, %v9752
    %v9767 = vmul.f32 %v9696, %v9752
    %v9768 = vmul.f32 %v9697, %v9752
    %v9769 = vmul.f32 %v9698, %v9752
    %v9770 = vmul.f32 %v9699, %v9752
    %v9771 = vmul.f32 %v9700, %v9752
    %v9772 = vmul.f32 %v9701, %v9752
    %v9773 = vmul.f32 %v9702, %v9752
    %v9774 = vmul.f32 %v9703, %v9752
    %v9775 = vmul.f32 %v9704, %v9752
    %v9776 = vmul.f32 %v9705, %v9752
    %v9777 = vmul.f32 %v9706, %v9752
    %v9778 = vmul.f32 %v9707, %v9752
    %v9779 = vmul.f32 %v9708, %v9752
    %v9780 = vmul.f32 %v9709, %v9752
    %v9781 = vmul.f32 %v9710, %v9752
    %v9782 = vmul.f32 %v9711, %v9752
    %v9783 = vmul.f32 %v9712, %v9752
    %v9784 = vmul.f32 %v9713, %v9752
    %v9785 = vmul.f32 %v9714, %v9752
    %v9786 = vmul.f32 %v9715, %v9752
    %v9787 = vmul.f32 %v9716, %v9752
    %v9788 = vmul.f32 %v9717, %v9752
    %v9789 = vmul.f32 %v9718, %v9752
    %v9790 = vmul.f32 %v9719, %v9752
    %v9791 = vmul.f32 %v9720, %v9752
    %v9792 = vmul.f32 %v9721, %v9752
    %v9793 = vmul.f32 %v9722, %v9752
    %v9794 = vmul.f32 %v9723, %v9752
    %v9795 = vmul.f32 %v9724, %v9752
    %v9796 = vmul.f32 %v9725, %v9752
    %v9797 = vmul.f32 %v9726, %v9752
    %v9798 = vmul.f32 %v9727, %v9752
    %v9799 = vmul.f32 %v9728, %v9752
    %v9800 = vmul.f32 %v9729, %v9752
    %v9801 = vmul.f32 %v9730, %v9752
    %v9802 = vmul.f32 %v9731, %v9752
    %v9803 = vmul.f32 %v9732, %v9752
    %v9804 = vmul.f32 %v9733, %v9752
    %v9805 = vmul.f32 %v9734, %v9752
    %v9806 = vmul.f32 %v9735, %v9752
    %v9807 = vmul.f32 %v9736, %v9752
    %v9808 = vmul.f32 %v9737, %v9752
    %v9809 = vmul.f32 %v9738, %v9752
    %v9810 = vmul.f32 %v9739, %v9752
    %v9811 = vmul.f32 %v9740, %v9752
    %v9812 = vmul.f32 %v9741, %v9752
    %v9813 = vmul.f32 %v9742, %v9752
    %v9814 = vmul.f32 %v9743, %v9752
    %v9815 = vmul.f32 %v9744, %v9752
    %v9816 = vmul.f32 %v9745, %v9752
    %v9817 = vmul.f32 %v9746, %v9752
    %v9818 = vld [vmem:[%s22] sm:$0x1]
    %v9820 = vlaneseq
    %v9821 = vshrl.u32 %v9820, 7
    %v9822 = vsub.s32 0, %v9821
    %v9823 = vrot.slane %v9818, %v9822
    %v9825 = vadd.f32 %v9754, %v9823
    %v9826 = vadd.f32 %v9755, %v9823
    %v9827 = vadd.f32 %v9756, %v9823
    %v9828 = vadd.f32 %v9757, %v9823
    %v9829 = vadd.f32 %v9758, %v9823
    %v9830 = vadd.f32 %v9759, %v9823
    %v9831 = vadd.f32 %v9760, %v9823
    %v9832 = vadd.f32 %v9761, %v9823
    %v9833 = vadd.f32 %v9762, %v9823
    %v9834 = vadd.f32 %v9763, %v9823
    %v9835 = vadd.f32 %v9764, %v9823
    %v9836 = vadd.f32 %v9765, %v9823
    %v9837 = vadd.f32 %v9766, %v9823
    %v9838 = vadd.f32 %v9767, %v9823
    %v9839 = vadd.f32 %v9768, %v9823
    %v9840 = vadd.f32 %v9769, %v9823
    %v9841 = vadd.f32 %v9770, %v9823
    %v9842 = vadd.f32 %v9771, %v9823
    %v9843 = vadd.f32 %v9772, %v9823
    %v9844 = vadd.f32 %v9773, %v9823
    %v9845 = vadd.f32 %v9774, %v9823
    %v9846 = vadd.f32 %v9775, %v9823
    %v9847 = vadd.f32 %v9776, %v9823
    %v9848 = vadd.f32 %v9777, %v9823
    %v9849 = vadd.f32 %v9778, %v9823
    %v9850 = vadd.f32 %v9779, %v9823
    %v9851 = vadd.f32 %v9780, %v9823
    %v9852 = vadd.f32 %v9781, %v9823
    %v9853 = vadd.f32 %v9782, %v9823
    %v9854 = vadd.f32 %v9783, %v9823
    %v9855 = vadd.f32 %v9784, %v9823
    %v9856 = vadd.f32 %v9785, %v9823
    %v9857 = vadd.f32 %v9786, %v9823
    %v9858 = vadd.f32 %v9787, %v9823
    %v9859 = vadd.f32 %v9788, %v9823
    %v9860 = vadd.f32 %v9789, %v9823
    %v9861 = vadd.f32 %v9790, %v9823
    %v9862 = vadd.f32 %v9791, %v9823
    %v9863 = vadd.f32 %v9792, %v9823
    %v9864 = vadd.f32 %v9793, %v9823
    %v9865 = vadd.f32 %v9794, %v9823
    %v9866 = vadd.f32 %v9795, %v9823
    %v9867 = vadd.f32 %v9796, %v9823
    %v9868 = vadd.f32 %v9797, %v9823
    %v9869 = vadd.f32 %v9798, %v9823
    %v9870 = vadd.f32 %v9799, %v9823
    %v9871 = vadd.f32 %v9800, %v9823
    %v9872 = vadd.f32 %v9801, %v9823
    %v9873 = vadd.f32 %v9802, %v9823
    %v9874 = vadd.f32 %v9803, %v9823
    %v9875 = vadd.f32 %v9804, %v9823
    %v9876 = vadd.f32 %v9805, %v9823
    %v9877 = vadd.f32 %v9806, %v9823
    %v9878 = vadd.f32 %v9807, %v9823
    %v9879 = vadd.f32 %v9808, %v9823
    %v9880 = vadd.f32 %v9809, %v9823
    %v9881 = vadd.f32 %v9810, %v9823
    %v9882 = vadd.f32 %v9811, %v9823
    %v9883 = vadd.f32 %v9812, %v9823
    %v9884 = vadd.f32 %v9813, %v9823
    %v9885 = vadd.f32 %v9814, %v9823
    %v9886 = vadd.f32 %v9815, %v9823
    %v9887 = vadd.f32 %v9816, %v9823
    %v9888 = vadd.f32 %v9817, %v9823
    %v9889 = vmax.f32 %v9825, 0.0
    %v9890 = vmax.f32 %v9826, 0.0
    %v9891 = vmax.f32 %v9827, 0.0
    %v9892 = vmax.f32 %v9828, 0.0
    %v9893 = vmax.f32 %v9829, 0.0
    %v9894 = vmax.f32 %v9830, 0.0
    %v9895 = vmax.f32 %v9831, 0.0
    %v9896 = vmax.f32 %v9832, 0.0
    %v9897 = vmax.f32 %v9833, 0.0
    %v9898 = vmax.f32 %v9834, 0.0
    %v9899 = vmax.f32 %v9835, 0.0
    %v9900 = vmax.f32 %v9836, 0.0
    %v9901 = vmax.f32 %v9837, 0.0
    %v9902 = vmax.f32 %v9838, 0.0
    %v9903 = vmax.f32 %v9839, 0.0
    %v9904 = vmax.f32 %v9840, 0.0
    %v9905 = vmax.f32 %v9841, 0.0
    %v9906 = vmax.f32 %v9842, 0.0
    %v9907 = vmax.f32 %v9843, 0.0
    %v9908 = vmax.f32 %v9844, 0.0
    %v9909 = vmax.f32 %v9845, 0.0
    %v9910 = vmax.f32 %v9846, 0.0
    %v9911 = vmax.f32 %v9847, 0.0
    %v9912 = vmax.f32 %v9848, 0.0
    %v9913 = vmax.f32 %v9849, 0.0
    %v9914 = vmax.f32 %v9850, 0.0
    %v9915 = vmax.f32 %v9851, 0.0
    %v9916 = vmax.f32 %v9852, 0.0
    %v9917 = vmax.f32 %v9853, 0.0
    %v9918 = vmax.f32 %v9854, 0.0
    %v9919 = vmax.f32 %v9855, 0.0
    %v9920 = vmax.f32 %v9856, 0.0
    %v9921 = vmax.f32 %v9857, 0.0
    %v9922 = vmax.f32 %v9858, 0.0
    %v9923 = vmax.f32 %v9859, 0.0
    %v9924 = vmax.f32 %v9860, 0.0
    %v9925 = vmax.f32 %v9861, 0.0
    %v9926 = vmax.f32 %v9862, 0.0
    %v9927 = vmax.f32 %v9863, 0.0
    %v9928 = vmax.f32 %v9864, 0.0
    %v9929 = vmax.f32 %v9865, 0.0
    %v9930 = vmax.f32 %v9866, 0.0
    %v9931 = vmax.f32 %v9867, 0.0
    %v9932 = vmax.f32 %v9868, 0.0
    %v9933 = vmax.f32 %v9869, 0.0
    %v9934 = vmax.f32 %v9870, 0.0
    %v9935 = vmax.f32 %v9871, 0.0
    %v9936 = vmax.f32 %v9872, 0.0
    %v9937 = vmax.f32 %v9873, 0.0
    %v9938 = vmax.f32 %v9874, 0.0
    %v9939 = vmax.f32 %v9875, 0.0
    %v9940 = vmax.f32 %v9876, 0.0
    %v9941 = vmax.f32 %v9877, 0.0
    %v9942 = vmax.f32 %v9878, 0.0
    %v9943 = vmax.f32 %v9879, 0.0
    %v9944 = vmax.f32 %v9880, 0.0
    %v9945 = vmax.f32 %v9881, 0.0
    %v9946 = vmax.f32 %v9882, 0.0
    %v9947 = vmax.f32 %v9883, 0.0
    %v9948 = vmax.f32 %v9884, 0.0
    %v9949 = vmax.f32 %v9885, 0.0
    %v9950 = vmax.f32 %v9886, 0.0
    %v9951 = vmax.f32 %v9887, 0.0
    %v9952 = vmax.f32 %v9888, 0.0
    %v9953 = vld [vmem:[%s23] sm:$0xff]
    %v9954 = vld [vmem:[%s23 + $0x8] sm:$0xff]
    %v9955 = vld [vmem:[%s23 + $0x10] sm:$0xff]
    %v9956 = vld [vmem:[%s23 + $0x18] sm:$0xff]
    %v9957 = vld [vmem:[%s23 + $0x20] sm:$0xff]
    %v9958 = vld [vmem:[%s23 + $0x28] sm:$0xff]
    %v9959 = vld [vmem:[%s23 + $0x30] sm:$0xff]
    %v9960 = vld [vmem:[%s23 + $0x38] sm:$0xff]
    %v9961 = vld [vmem:[%s23 + $0x40] sm:$0xff]
    %v9962 = vld [vmem:[%s23 + $0x48] sm:$0xff]
    %v9963 = vld [vmem:[%s23 + $0x50] sm:$0xff]
    %v9964 = vld [vmem:[%s23 + $0x58] sm:$0xff]
    %v9965 = vld [vmem:[%s23 + $0x60] sm:$0xff]
    %v9966 = vld [vmem:[%s23 + $0x68] sm:$0xff]
    %v9967 = vld [vmem:[%s23 + $0x70] sm:$0xff]
    %v9968 = vld [vmem:[%s23 + $0x78] sm:$0xff]
    %v9969 = vld [vmem:[#allocation2] sm:$0x1]
    %v9971 = vlaneseq
    %v9972 = vshrl.u32 %v9971, 7
    %v9973 = vsub.s32 0, %v9972
    %v9974 = vrot.slane %v9969, %v9973
    %9976 = vmatprep.subr.mxu0 0.0
    %9977 = vmatpush1.msra.mxu0 %v9953
    %9978 = vmatprep.subr.mxu0 0.0
    %9979 = vmatpush1.msra.mxu0 %v9954
    %9980 = vmatprep.subr.mxu0 0.0
    %9981 = vmatpush1.msra.mxu0 %v9955
    %9982 = vmatprep.subr.mxu0 0.0
    %9983 = vmatpush1.msra.mxu0 %v9956
    %9984 = vmatprep.subr.mxu0 0.0
    %9985 = vmatpush1.msra.mxu0 %v9957
    %9986 = vmatprep.subr.mxu0 0.0
    %9987 = vmatpush1.msra.mxu0 %v9958
    %9988 = vmatprep.subr.mxu0 0.0
    %9989 = vmatpush1.msra.mxu0 %v9959
    %9990 = vmatprep.subr.mxu0 0.0
    %9991 = vmatpush1.msra.mxu0 %v9960
    %9992 = vmatprep.subr.mxu0 0.0
    %9993 = vmatpush1.msra.mxu0 %v9961
    %9994 = vmatprep.subr.mxu0 0.0
    %9995 = vmatpush1.msra.mxu0 %v9962
    %9996 = vmatprep.subr.mxu0 0.0
    %9997 = vmatpush1.msra.mxu0 %v9963
    %9998 = vmatprep.subr.mxu0 0.0
    %9999 = vmatpush1.msra.mxu0 %v9964
    %10000 = vmatprep.subr.mxu0 0.0
    %10001 = vmatpush1.msra.mxu0 %v9965
    %10002 = vmatprep.subr.mxu0 0.0
    %10003 = vmatpush1.msra.mxu0 %v9966
    %10004 = vmatprep.subr.mxu0 0.0
    %10005 = vmatpush1.msra.mxu0 %v9967
    %10006 = vmatprep.subr.mxu0 0.0
    %10007 = vmatpush1.msra.mxu0 %v9968
    %10008 = vmatprep.subr.mxu0 0.0
    %10009 = vmatpush1.msra.mxu0 0.0
    %10010 = vmatprep.subr.mxu0 0.0
    %10011 = vmatpush1.msra.mxu0 0.0
    %10012 = vmatprep.subr.mxu0 0.0
    %10013 = vmatpush1.msra.mxu0 0.0
    %10014 = vmatprep.subr.mxu0 0.0
    %10015 = vmatpush1.msra.mxu0 0.0
    %10016 = vmatprep.subr.mxu0 0.0
    %10017 = vmatpush1.msra.mxu0 0.0
    %10018 = vmatprep.subr.mxu0 0.0
    %10019 = vmatpush1.msra.mxu0 0.0
    %10020 = vmatprep.subr.mxu0 0.0
    %10021 = vmatpush1.msra.mxu0 0.0
    %10022 = vmatprep.subr.mxu0 0.0
    %10023 = vmatpush1.msra.mxu0 0.0
    %10024 = vmatprep.subr.mxu0 0.0
    %10025 = vmatpush1.msra.mxu0 0.0
    %10026 = vmatprep.subr.mxu0 0.0
    %10027 = vmatpush1.msra.mxu0 0.0
    %10028 = vmatprep.subr.mxu0 0.0
    %10029 = vmatpush1.msra.mxu0 0.0
    %10030 = vmatprep.subr.mxu0 0.0
    %10031 = vmatpush1.msra.mxu0 0.0
    %10032 = vmatprep.subr.mxu0 0.0
    %10033 = vmatpush1.msra.mxu0 0.0
    %10034 = vmatprep.subr.mxu0 0.0
    %10035 = vmatpush1.msra.mxu0 0.0
    %10036 = vmatprep.subr.mxu0 0.0
    %10037 = vmatpush1.msra.mxu0 0.0
    %10038 = vmatprep.subr.mxu0 0.0
    %10039 = vmatpush1.msra.mxu0 0.0
    %10040 = vmatprep.mubr.f32.mxu0 0.0
    %10041 = vmatmul.mubr.f32.gmra.mrb[0].mxu0 %v9889
    %v10042 = vpop.f32.mrb[0].mxu0
    %v10043 = vadd.f32 %v9974, %v10042
    %v10044 = vpop.f32.mrb[0].mxu0
    %10045 = vmatprep.mubr.f32.mxu0 0.0
    %10046 = vmatmul.mubr.f32.gmra.mrb[0].mxu0 %v9890
    %v10047 = vpop.f32.mrb[0].mxu0
    %v10048 = vadd.f32 %v9974, %v10047
    %v10049 = vpop.f32.mrb[0].mxu0
    %10050 = vmatprep.mubr.f32.mxu0 0.0
    %10051 = vmatmul.mubr.f32.gmra.mrb[0].mxu0 %v9891
    %v10052 = vpop.f32.mrb[0].mxu0
    %v10053 = vadd.f32 %v9974, %v10052
    %v10054 = vpop.f32.mrb[0].mxu0
    %10055 = vmatprep.mubr.f32.mxu0 0.0
    %10056 = vmatmul.mubr.f32.gmra.mrb[0].mxu0 %v9892
    %v10057 = vpop.f32.mrb[0].mxu0
    %v10058 = vadd.f32 %v9974, %v10057
    %v10059 = vpop.f32.mrb[0].mxu0
    %10060 = vmatprep.mubr.f32.mxu0 0.0
    %10061 = vmatmul.mubr.f32.gmra.mrb[0].mxu0 %v9893
    %v10062 = vpop.f32.mrb[0].mxu0
    %v10063 = vadd.f32 %v9974, %v10062
    %v10064 = vpop.f32.mrb[0].mxu0
    %10065 = vmatprep.mubr.f32.mxu0 0.0
    %10066 = vmatmul.mubr.f32.gmra.mrb[0].mxu0 %v9894
    %v10067 = vpop.f32.mrb[0].mxu0
    %v10068 = vadd.f32 %v9974, %v10067
    %v10069 = vpop.f32.mrb[0].mxu0
    %10070 = vmatprep.mubr.f32.mxu0 0.0
    %10071 = vmatmul.mubr.f32.gmra.mrb[0].mxu0 %v9895
    %v10072 = vpop.f32.mrb[0].mxu0
    %v10073 = vadd.f32 %v9974, %v10072
    %v10074 = vpop.f32.mrb[0].mxu0
    %10075 = vmatprep.mubr.f32.mxu0 0.0
    %10076 = vmatmul.mubr.f32.gmra.mrb[0].mxu0 %v9896
    %v10077 = vpop.f32.mrb[0].mxu0
    %v10078 = vadd.f32 %v9974, %v10077
    %v10079 = vpop.f32.mrb[0].mxu0
    %10080 = vmatprep.mubr.f32.mxu0 0.0
    %10081 = vmatmul.mubr.f32.gmra.mrb[0].mxu0 %v9897
    %v10082 = vpop.f32.mrb[0].mxu0
    %v10083 = vadd.f32 %v9974, %v10082
    %v10084 = vpop.f32.mrb[0].mxu0
    %10085 = vmatprep.mubr.f32.mxu0 0.0
    %10086 = vmatmul.mubr.f32.gmra.mrb[0].mxu0 %v9898
    %v10087 = vpop.f32.mrb[0].mxu0
    %v10088 = vadd.f32 %v9974, %v10087
    %v10089 = vpop.f32.mrb[0].mxu0
    %10090 = vmatprep.mubr.f32.mxu0 0.0
    %10091 = vmatmul.mubr.f32.gmra.mrb[0].mxu0 %v9899
    %v10092 = vpop.f32.mrb[0].mxu0
    %v10093 = vadd.f32 %v9974, %v10092
    %v10094 = vpop.f32.mrb[0].mxu0
    %10095 = vmatprep.mubr.f32.mxu0 0.0
    %10096 = vmatmul.mubr.f32.gmra.mrb[0].mxu0 %v9900
    %v10097 = vpop.f32.mrb[0].mxu0
    %v10098 = vadd.f32 %v9974, %v10097
    %v10099 = vpop.f32.mrb[0].mxu0
    %10100 = vmatprep.mubr.f32.mxu0 0.0
    %10101 = vmatmul.mubr.f32.gmra.mrb[0].mxu0 %v9901
    %v10102 = vpop.f32.mrb[0].mxu0
    %v10103 = vadd.f32 %v9974, %v10102
    %v10104 = vpop.f32.mrb[0].mxu0
    %10105 = vmatprep.mubr.f32.mxu0 0.0
    %10106 = vmatmul.mubr.f32.gmra.mrb[0].mxu0 %v9902
    %v10107 = vpop.f32.mrb[0].mxu0
    %v10108 = vadd.f32 %v9974, %v10107
    %v10109 = vpop.f32.mrb[0].mxu0
    %10110 = vmatprep.mubr.f32.mxu0 0.0
    %10111 = vmatmul.mubr.f32.gmra.mrb[0].mxu0 %v9903
    %v10112 = vpop.f32.mrb[0].mxu0
    %v10113 = vadd.f32 %v9974, %v10112
    %v10114 = vpop.f32.mrb[0].mxu0
    %10115 = vmatprep.mubr.f32.mxu0 0.0
    %10116 = vmatmul.mubr.f32.gmra.mrb[0].mxu0 %v9904
    %v10117 = vpop.f32.mrb[0].mxu0
    %v10118 = vadd.f32 %v9974, %v10117
    %v10119 = vpop.f32.mrb[0].mxu0
    %10120 = vmatprep.mubr.f32.mxu0 0.0
    %10121 = vmatmul.mubr.f32.gmra.mrb[0].mxu0 %v9905
    %v10122 = vpop.f32.mrb[0].mxu0
    %v10123 = vadd.f32 %v9974, %v10122
    %v10124 = vpop.f32.mrb[0].mxu0
    %10125 = vmatprep.mubr.f32.mxu0 0.0
    %10126 = vmatmul.mubr.f32.gmra.mrb[0].mxu0 %v9906
    %v10127 = vpop.f32.mrb[0].mxu0
    %v10128 = vadd.f32 %v9974, %v10127
    %v10129 = vpop.f32.mrb[0].mxu0
    %10130 = vmatprep.mubr.f32.mxu0 0.0
    %10131 = vmatmul.mubr.f32.gmra.mrb[0].mxu0 %v9907
    %v10132 = vpop.f32.mrb[0].mxu0
    %v10133 = vadd.f32 %v9974, %v10132
    %v10134 = vpop.f32.mrb[0].mxu0
    %10135 = vmatprep.mubr.f32.mxu0 0.0
    %10136 = vmatmul.mubr.f32.gmra.mrb[0].mxu0 %v9908
    %v10137 = vpop.f32.mrb[0].mxu0
    %v10138 = vadd.f32 %v9974, %v10137
    %v10139 = vpop.f32.mrb[0].mxu0
    %10140 = vmatprep.mubr.f32.mxu0 0.0
    %10141 = vmatmul.mubr.f32.gmra.mrb[0].mxu0 %v9909
    %v10142 = vpop.f32.mrb[0].mxu0
    %v10143 = vadd.f32 %v9974, %v10142
    %v10144 = vpop.f32.mrb[0].mxu0
    %10145 = vmatprep.mubr.f32.mxu0 0.0
    %10146 = vmatmul.mubr.f32.gmra.mrb[0].mxu0 %v9910
    %v10147 = vpop.f32.mrb[0].mxu0
    %v10148 = vadd.f32 %v9974, %v10147
    %v10149 = vpop.f32.mrb[0].mxu0
    %10150 = vmatprep.mubr.f32.mxu0 0.0
    %10151 = vmatmul.mubr.f32.gmra.mrb[0].mxu0 %v9911
    %v10152 = vpop.f32.mrb[0].mxu0
    %v10153 = vadd.f32 %v9974, %v10152
    %v10154 = vpop.f32.mrb[0].mxu0
    %10155 = vmatprep.mubr.f32.mxu0 0.0
    %10156 = vmatmul.mubr.f32.gmra.mrb[0].mxu0 %v9912
    %v10157 = vpop.f32.mrb[0].mxu0
    %v10158 = vadd.f32 %v9974, %v10157
    %v10159 = vpop.f32.mrb[0].mxu0
    %10160 = vmatprep.mubr.f32.mxu0 0.0
    %10161 = vmatmul.mubr.f32.gmra.mrb[0].mxu0 %v9913
    %v10162 = vpop.f32.mrb[0].mxu0
    %v10163 = vadd.f32 %v9974, %v10162
    %v10164 = vpop.f32.mrb[0].mxu0
    %10165 = vmatprep.mubr.f32.mxu0 0.0
    %10166 = vmatmul.mubr.f32.gmra.mrb[0].mxu0 %v9914
    %v10167 = vpop.f32.mrb[0].mxu0
    %v10168 = vadd.f32 %v9974, %v10167
    %v10169 = vpop.f32.mrb[0].mxu0
    %10170 = vmatprep.mubr.f32.mxu0 0.0
    %10171 = vmatmul.mubr.f32.gmra.mrb[0].mxu0 %v9915
    %v10172 = vpop.f32.mrb[0].mxu0
    %v10173 = vadd.f32 %v9974, %v10172
    %v10174 = vpop.f32.mrb[0].mxu0
    %10175 = vmatprep.mubr.f32.mxu0 0.0
    %10176 = vmatmul.mubr.f32.gmra.mrb[0].mxu0 %v9916
    %v10177 = vpop.f32.mrb[0].mxu0
    %v10178 = vadd.f32 %v9974, %v10177
    %v10179 = vpop.f32.mrb[0].mxu0
    %10180 = vmatprep.mubr.f32.mxu0 0.0
    %10181 = vmatmul.mubr.f32.gmra.mrb[0].mxu0 %v9917
    %v10182 = vpop.f32.mrb[0].mxu0
    %v10183 = vadd.f32 %v9974, %v10182
    %v10184 = vpop.f32.mrb[0].mxu0
    %10185 = vmatprep.mubr.f32.mxu0 0.0
    %10186 = vmatmul.mubr.f32.gmra.mrb[0].mxu0 %v9918
    %v10187 = vpop.f32.mrb[0].mxu0
    %v10188 = vadd.f32 %v9974, %v10187
    %v10189 = vpop.f32.mrb[0].mxu0
    %10190 = vmatprep.mubr.f32.mxu0 0.0
    %10191 = vmatmul.mubr.f32.gmra.mrb[0].mxu0 %v9919
    %v10192 = vpop.f32.mrb[0].mxu0
    %v10193 = vadd.f32 %v9974, %v10192
    %v10194 = vpop.f32.mrb[0].mxu0
    %10195 = vmatprep.mubr.f32.mxu0 0.0
    %10196 = vmatmul.mubr.f32.gmra.mrb[0].mxu0 %v9920
    %v10197 = vpop.f32.mrb[0].mxu0
    %v10198 = vadd.f32 %v9974, %v10197
    %v10199 = vpop.f32.mrb[0].mxu0
    %10200 = vmatprep.mubr.f32.mxu0 0.0
    %10201 = vmatmul.mubr.f32.gmra.mrb[0].mxu0 %v9921
    %v10202 = vpop.f32.mrb[0].mxu0
    %v10203 = vadd.f32 %v9974, %v10202
    %v10204 = vpop.f32.mrb[0].mxu0
    %10205 = vmatprep.mubr.f32.mxu0 0.0
    %10206 = vmatmul.mubr.f32.gmra.mrb[0].mxu0 %v9922
    %v10207 = vpop.f32.mrb[0].mxu0
    %v10208 = vadd.f32 %v9974, %v10207
    %v10209 = vpop.f32.mrb[0].mxu0
    %10210 = vmatprep.mubr.f32.mxu0 0.0
    %10211 = vmatmul.mubr.f32.gmra.mrb[0].mxu0 %v9923
    %v10212 = vpop.f32.mrb[0].mxu0
    %v10213 = vadd.f32 %v9974, %v10212
    %v10214 = vpop.f32.mrb[0].mxu0
    %10215 = vmatprep.mubr.f32.mxu0 0.0
    %10216 = vmatmul.mubr.f32.gmra.mrb[0].mxu0 %v9924
    %v10217 = vpop.f32.mrb[0].mxu0
    %v10218 = vadd.f32 %v9974, %v10217
    %v10219 = vpop.f32.mrb[0].mxu0
    %10220 = vmatprep.mubr.f32.mxu0 0.0
    %10221 = vmatmul.mubr.f32.gmra.mrb[0].mxu0 %v9925
    %v10222 = vpop.f32.mrb[0].mxu0
    %v10223 = vadd.f32 %v9974, %v10222
    %v10224 = vpop.f32.mrb[0].mxu0
    %10225 = vmatprep.mubr.f32.mxu0 0.0
    %10226 = vmatmul.mubr.f32.gmra.mrb[0].mxu0 %v9926
    %v10227 = vpop.f32.mrb[0].mxu0
    %v10228 = vadd.f32 %v9974, %v10227
    %v10229 = vpop.f32.mrb[0].mxu0
    %10230 = vmatprep.mubr.f32.mxu0 0.0
    %10231 = vmatmul.mubr.f32.gmra.mrb[0].mxu0 %v9927
    %v10232 = vpop.f32.mrb[0].mxu0
    %v10233 = vadd.f32 %v9974, %v10232
    %v10234 = vpop.f32.mrb[0].mxu0
    %10235 = vmatprep.mubr.f32.mxu0 0.0
    %10236 = vmatmul.mubr.f32.gmra.mrb[0].mxu0 %v9928
    %v10237 = vpop.f32.mrb[0].mxu0
    %v10238 = vadd.f32 %v9974, %v10237
    %v10239 = vpop.f32.mrb[0].mxu0
    %10240 = vmatprep.mubr.f32.mxu0 0.0
    %10241 = vmatmul.mubr.f32.gmra.mrb[0].mxu0 %v9929
    %v10242 = vpop.f32.mrb[0].mxu0
    %v10243 = vadd.f32 %v9974, %v10242
    %v10244 = vpop.f32.mrb[0].mxu0
    %10245 = vmatprep.mubr.f32.mxu0 0.0
    %10246 = vmatmul.mubr.f32.gmra.mrb[0].mxu0 %v9930
    %v10247 = vpop.f32.mrb[0].mxu0
    %v10248 = vadd.f32 %v9974, %v10247
    %v10249 = vpop.f32.mrb[0].mxu0
    %10250 = vmatprep.mubr.f32.mxu0 0.0
    %10251 = vmatmul.mubr.f32.gmra.mrb[0].mxu0 %v9931
    %v10252 = vpop.f32.mrb[0].mxu0
    %v10253 = vadd.f32 %v9974, %v10252
    %v10254 = vpop.f32.mrb[0].mxu0
    %10255 = vmatprep.mubr.f32.mxu0 0.0
    %10256 = vmatmul.mubr.f32.gmra.mrb[0].mxu0 %v9932
    %v10257 = vpop.f32.mrb[0].mxu0
    %v10258 = vadd.f32 %v9974, %v10257
    %v10259 = vpop.f32.mrb[0].mxu0
    %10260 = vmatprep.mubr.f32.mxu0 0.0
    %10261 = vmatmul.mubr.f32.gmra.mrb[0].mxu0 %v9933
    %v10262 = vpop.f32.mrb[0].mxu0
    %v10263 = vadd.f32 %v9974, %v10262
    %v10264 = vpop.f32.mrb[0].mxu0
    %10265 = vmatprep.mubr.f32.mxu0 0.0
    %10266 = vmatmul.mubr.f32.gmra.mrb[0].mxu0 %v9934
    %v10267 = vpop.f32.mrb[0].mxu0
    %v10268 = vadd.f32 %v9974, %v10267
    %v10269 = vpop.f32.mrb[0].mxu0
    %10270 = vmatprep.mubr.f32.mxu0 0.0
    %10271 = vmatmul.mubr.f32.gmra.mrb[0].mxu0 %v9935
    %v10272 = vpop.f32.mrb[0].mxu0
    %v10273 = vadd.f32 %v9974, %v10272
    %v10274 = vpop.f32.mrb[0].mxu0
    %10275 = vmatprep.mubr.f32.mxu0 0.0
    %10276 = vmatmul.mubr.f32.gmra.mrb[0].mxu0 %v9936
    %v10277 = vpop.f32.mrb[0].mxu0
    %v10278 = vadd.f32 %v9974, %v10277
    %v10279 = vpop.f32.mrb[0].mxu0
    %10280 = vmatprep.mubr.f32.mxu0 0.0
    %10281 = vmatmul.mubr.f32.gmra.mrb[0].mxu0 %v9937
    %v10282 = vpop.f32.mrb[0].mxu0
    %v10283 = vadd.f32 %v9974, %v10282
    %v10284 = vpop.f32.mrb[0].mxu0
    %10285 = vmatprep.mubr.f32.mxu0 0.0
    %10286 = vmatmul.mubr.f32.gmra.mrb[0].mxu0 %v9938
    %v10287 = vpop.f32.mrb[0].mxu0
    %v10288 = vadd.f32 %v9974, %v10287
    %v10289 = vpop.f32.mrb[0].mxu0
    %10290 = vmatprep.mubr.f32.mxu0 0.0
    %10291 = vmatmul.mubr.f32.gmra.mrb[0].mxu0 %v9939
    %v10292 = vpop.f32.mrb[0].mxu0
    %v10293 = vadd.f32 %v9974, %v10292
    %v10294 = vpop.f32.mrb[0].mxu0
    %10295 = vmatprep.mubr.f32.mxu0 0.0
    %10296 = vmatmul.mubr.f32.gmra.mrb[0].mxu0 %v9940
    %v10297 = vpop.f32.mrb[0].mxu0
    %v10298 = vadd.f32 %v9974, %v10297
    %v10299 = vpop.f32.mrb[0].mxu0
    %10300 = vmatprep.mubr.f32.mxu0 0.0
    %10301 = vmatmul.mubr.f32.gmra.mrb[0].mxu0 %v9941
    %v10302 = vpop.f32.mrb[0].mxu0
    %v10303 = vadd.f32 %v9974, %v10302
    %v10304 = vpop.f32.mrb[0].mxu0
    %10305 = vmatprep.mubr.f32.mxu0 0.0
    %10306 = vmatmul.mubr.f32.gmra.mrb[0].mxu0 %v9942
    %v10307 = vpop.f32.mrb[0].mxu0
    %v10308 = vadd.f32 %v9974, %v10307
    %v10309 = vpop.f32.mrb[0].mxu0
    %10310 = vmatprep.mubr.f32.mxu0 0.0
    %10311 = vmatmul.mubr.f32.gmra.mrb[0].mxu0 %v9943
    %v10312 = vpop.f32.mrb[0].mxu0
    %v10313 = vadd.f32 %v9974, %v10312
    %v10314 = vpop.f32.mrb[0].mxu0
    %10315 = vmatprep.mubr.f32.mxu0 0.0
    %10316 = vmatmul.mubr.f32.gmra.mrb[0].mxu0 %v9944
    %v10317 = vpop.f32.mrb[0].mxu0
    %v10318 = vadd.f32 %v9974, %v10317
    %v10319 = vpop.f32.mrb[0].mxu0
    %10320 = vmatprep.mubr.f32.mxu0 0.0
    %10321 = vmatmul.mubr.f32.gmra.mrb[0].mxu0 %v9945
    %v10322 = vpop.f32.mrb[0].mxu0
    %v10323 = vadd.f32 %v9974, %v10322
    %v10324 = vpop.f32.mrb[0].mxu0
    %10325 = vmatprep.mubr.f32.mxu0 0.0
    %10326 = vmatmul.mubr.f32.gmra.mrb[0].mxu0 %v9946
    %v10327 = vpop.f32.mrb[0].mxu0
    %v10328 = vadd.f32 %v9974, %v10327
    %v10329 = vpop.f32.mrb[0].mxu0
    %10330 = vmatprep.mubr.f32.mxu0 0.0
    %10331 = vmatmul.mubr.f32.gmra.mrb[0].mxu0 %v9947
    %v10332 = vpop.f32.mrb[0].mxu0
    %v10333 = vadd.f32 %v9974, %v10332
    %v10334 = vpop.f32.mrb[0].mxu0
    %10335 = vmatprep.mubr.f32.mxu0 0.0
    %10336 = vmatmul.mubr.f32.gmra.mrb[0].mxu0 %v9948
    %v10337 = vpop.f32.mrb[0].mxu0
    %v10338 = vadd.f32 %v9974, %v10337
    %v10339 = vpop.f32.mrb[0].mxu0
    %10340 = vmatprep.mubr.f32.mxu0 0.0
    %10341 = vmatmul.mubr.f32.gmra.mrb[0].mxu0 %v9949
    %v10342 = vpop.f32.mrb[0].mxu0
    %v10343 = vadd.f32 %v9974, %v10342
    %v10344 = vpop.f32.mrb[0].mxu0
    %10345 = vmatprep.mubr.f32.mxu0 0.0
    %10346 = vmatmul.mubr.f32.gmra.mrb[0].mxu0 %v9950
    %v10347 = vpop.f32.mrb[0].mxu0
    %v10348 = vadd.f32 %v9974, %v10347
    %v10349 = vpop.f32.mrb[0].mxu0
    %10350 = vmatprep.mubr.f32.mxu0 0.0
    %10351 = vmatmul.mubr.f32.gmra.mrb[0].mxu0 %v9951
    %v10352 = vpop.f32.mrb[0].mxu0
    %v10353 = vadd.f32 %v9974, %v10352
    %v10354 = vpop.f32.mrb[0].mxu0
    %10355 = vmatprep.mubr.f32.mxu0 0.0
    %10356 = vmatmul.mubr.f32.gmra.mrb[0].mxu0 %v9952
    %v10357 = vpop.f32.mrb[0].mxu0
    %v10358 = vadd.f32 %v9974, %v10357
    %v10359 = vpop.f32.mrb[0].mxu0
    %10360 = vdwg.mxu0
    %vm10361 = vcmask 7168
    %10362 = vst.msk [vmem:[%s25] sm:$0xff] %vm10361, %v10043
    %10363 = vst.msk [vmem:[%s25 + $0x8] sm:$0xff] %vm10361, %v10048
    %10364 = vst.msk [vmem:[%s25 + $0x10] sm:$0xff] %vm10361, %v10053
    %10365 = vst.msk [vmem:[%s25 + $0x18] sm:$0xff] %vm10361, %v10058
    %10366 = vst.msk [vmem:[%s25 + $0x20] sm:$0xff] %vm10361, %v10063
    %10367 = vst.msk [vmem:[%s25 + $0x28] sm:$0xff] %vm10361, %v10068
    %10368 = vst.msk [vmem:[%s25 + $0x30] sm:$0xff] %vm10361, %v10073
    %10369 = vst.msk [vmem:[%s25 + $0x38] sm:$0xff] %vm10361, %v10078
    %10370 = vst.msk [vmem:[%s25 + $0x40] sm:$0xff] %vm10361, %v10083
    %10371 = vst.msk [vmem:[%s25 + $0x48] sm:$0xff] %vm10361, %v10088
    %10372 = vst.msk [vmem:[%s25 + $0x50] sm:$0xff] %vm10361, %v10093
    %10373 = vst.msk [vmem:[%s25 + $0x58] sm:$0xff] %vm10361, %v10098
    %10374 = vst.msk [vmem:[%s25 + $0x60] sm:$0xff] %vm10361, %v10103
    %10375 = vst.msk [vmem:[%s25 + $0x68] sm:$0xff] %vm10361, %v10108
    %10376 = vst.msk [vmem:[%s25 + $0x70] sm:$0xff] %vm10361, %v10113
    %10377 = vst.msk [vmem:[%s25 + $0x78] sm:$0xff] %vm10361, %v10118
    %10378 = vst.msk [vmem:[%s25 + $0x80] sm:$0xff] %vm10361, %v10123
    %10379 = vst.msk [vmem:[%s25 + $0x88] sm:$0xff] %vm10361, %v10128
    %10380 = vst.msk [vmem:[%s25 + $0x90] sm:$0xff] %vm10361, %v10133
    %10381 = vst.msk [vmem:[%s25 + $0x98] sm:$0xff] %vm10361, %v10138
    %10382 = vst.msk [vmem:[%s25 + $0xa0] sm:$0xff] %vm10361, %v10143
    %10383 = vst.msk [vmem:[%s25 + $0xa8] sm:$0xff] %vm10361, %v10148
    %10384 = vst.msk [vmem:[%s25 + $0xb0] sm:$0xff] %vm10361, %v10153
    %10385 = vst.msk [vmem:[%s25 + $0xb8] sm:$0xff] %vm10361, %v10158
    %10386 = vst.msk [vmem:[%s25 + $0xc0] sm:$0xff] %vm10361, %v10163
    %10387 = vst.msk [vmem:[%s25 + $0xc8] sm:$0xff] %vm10361, %v10168
    %10388 = vst.msk [vmem:[%s25 + $0xd0] sm:$0xff] %vm10361, %v10173
    %10389 = vst.msk [vmem:[%s25 + $0xd8] sm:$0xff] %vm10361, %v10178
    %10390 = vst.msk [vmem:[%s25 + $0xe0] sm:$0xff] %vm10361, %v10183
    %10391 = vst.msk [vmem:[%s25 + $0xe8] sm:$0xff] %vm10361, %v10188
    %10392 = vst.msk [vmem:[%s25 + $0xf0] sm:$0xff] %vm10361, %v10193
    %10393 = vst.msk [vmem:[%s25 + $0xf8] sm:$0xff] %vm10361, %v10198
    %10394 = vst.msk [vmem:[%s25 + $0x100] sm:$0xff] %vm10361, %v10203
    %10395 = vst.msk [vmem:[%s25 + $0x108] sm:$0xff] %vm10361, %v10208
    %10396 = vst.msk [vmem:[%s25 + $0x110] sm:$0xff] %vm10361, %v10213
    %10397 = vst.msk [vmem:[%s25 + $0x118] sm:$0xff] %vm10361, %v10218
    %10398 = vst.msk [vmem:[%s25 + $0x120] sm:$0xff] %vm10361, %v10223
    %10399 = vst.msk [vmem:[%s25 + $0x128] sm:$0xff] %vm10361, %v10228
    %10400 = vst.msk [vmem:[%s25 + $0x130] sm:$0xff] %vm10361, %v10233
    %10401 = vst.msk [vmem:[%s25 + $0x138] sm:$0xff] %vm10361, %v10238
    %10402 = vst.msk [vmem:[%s25 + $0x140] sm:$0xff] %vm10361, %v10243
    %10403 = vst.msk [vmem:[%s25 + $0x148] sm:$0xff] %vm10361, %v10248
    %10404 = vst.msk [vmem:[%s25 + $0x150] sm:$0xff] %vm10361, %v10253
    %10405 = vst.msk [vmem:[%s25 + $0x158] sm:$0xff] %vm10361, %v10258
    %10406 = vst.msk [vmem:[%s25 + $0x160] sm:$0xff] %vm10361, %v10263
    %10407 = vst.msk [vmem:[%s25 + $0x168] sm:$0xff] %vm10361, %v10268
    %10408 = vst.msk [vmem:[%s25 + $0x170] sm:$0xff] %vm10361, %v10273
    %10409 = vst.msk [vmem:[%s25 + $0x178] sm:$0xff] %vm10361, %v10278
    %10410 = vst.msk [vmem:[%s25 + $0x180] sm:$0xff] %vm10361, %v10283
    %10411 = vst.msk [vmem:[%s25 + $0x188] sm:$0xff] %vm10361, %v10288
    %10412 = vst.msk [vmem:[%s25 + $0x190] sm:$0xff] %vm10361, %v10293
    %10413 = vst.msk [vmem:[%s25 + $0x198] sm:$0xff] %vm10361, %v10298
    %10414 = vst.msk [vmem:[%s25 + $0x1a0] sm:$0xff] %vm10361, %v10303
    %10415 = vst.msk [vmem:[%s25 + $0x1a8] sm:$0xff] %vm10361, %v10308
    %10416 = vst.msk [vmem:[%s25 + $0x1b0] sm:$0xff] %vm10361, %v10313
    %10417 = vst.msk [vmem:[%s25 + $0x1b8] sm:$0xff] %vm10361, %v10318
    %10418 = vst.msk [vmem:[%s25 + $0x1c0] sm:$0xff] %vm10361, %v10323
    %10419 = vst.msk [vmem:[%s25 + $0x1c8] sm:$0xff] %vm10361, %v10328
    %10420 = vst.msk [vmem:[%s25 + $0x1d0] sm:$0xff] %vm10361, %v10333
    %10421 = vst.msk [vmem:[%s25 + $0x1d8] sm:$0xff] %vm10361, %v10338
    %10422 = vst.msk [vmem:[%s25 + $0x1e0] sm:$0xff] %vm10361, %v10343
    %10423 = vst.msk [vmem:[%s25 + $0x1e8] sm:$0xff] %vm10361, %v10348
    %10424 = vst.msk [vmem:[%s25 + $0x1f0] sm:$0xff] %vm10361, %v10353
    %10425 = vst.msk [vmem:[%s25 + $0x1f8] sm:$0xff] %vm10361, %v10358
    // Predicated region
    $region118: #{tpu_custom_call.1} parent=1 // pred_check
      _
    $region119: #{tpu_custom_call.1} parent=1 // pred_check_branch
      %10427 = sbr.rel (0) target = $region121
    $region120: #{tpu_custom_call.1} parent=1 // pred_region
      _
    $region121: #{tpu_custom_call.1} parent=1 // pred_fallthru
      _
    // Predicated region
    $region122: #{tpu_custom_call.1} parent=1 // pred_check
      _
    $region123: #{tpu_custom_call.1} parent=1 // pred_check_branch
      %10429 = sbr.rel (0) target = $region125
    $region124: #{tpu_custom_call.1} parent=1 // pred_region
      _
    $region125: #{tpu_custom_call.1} parent=1 // pred_fallthru
      _
    %10430 = vsyncpa [#allocation4], 1
    %10431 = vsyncpa [#allocation6], 1
    %10432 = vsyncpa [#allocation9], 1

</llo_original>
